<compile_context>
chip_gen: v5e
topology: v5e:2x2
jax: 0.10.0
libtpu: 0.0.40
codegen_flags: <defaults>
</compile_context>

<pallas_src>
import math

import jax
import jax.numpy as jnp
from jax.experimental import pallas as pl
from jax.experimental.pallas import tpu as pltpu

DIM = 128
HEADS = 8
HEAD_DIM = DIM // HEADS          # 16
FFN_DIM = DIM * 4                # 512
LN_EPS = 1e-5


def _layer_norm(z, gamma, beta):
    mu = jnp.mean(z, axis=-1, keepdims=True)
    var = jnp.mean((z - mu) * (z - mu), axis=-1, keepdims=True)
    return (z - mu) * jax.lax.rsqrt(var + LN_EPS) * gamma + beta


def _self_transformer_kernel(x_ref,
                             wqkv_ref, bqkv_ref, wo_ref, bo_ref,
                             g1_ref, be1_ref,
                             wf1_ref, bf1_ref, wf2_ref, bf2_ref,
                             g2_ref, be2_ref,
                             out_ref,
                             qkv_scr, ctx_scr):
    Bt, S, D = x_ref.shape
    N = Bt * S

    x = x_ref[...].astype(jnp.float32).reshape(N, D)          # (N, 128) f32
    xb = x.astype(jnp.bfloat16)

    # Fused Q/K/V projection: one (N,128)@(128,384) bf16 MXU pass, f32 accum.
    # The 1/sqrt(head_dim) softmax scale is pre-folded into the Q columns.
    qkv = jnp.dot(xb, wqkv_ref[...],
                  preferred_element_type=jnp.float32) + bqkv_ref[...]
    qkv_scr[...] = qkv.astype(qkv_scr.dtype)

    # Per-head attention, batched over the Bt sequences in one 3-D dot per
    # head. Head slices are read back from VMEM scratch (16-lane window vld)
    # instead of jnp lane-slices, and head outputs are written into the ctx
    # scratch instead of an 8-way lane concatenate.
    for h in range(HEADS):                                     # static unroll
        lo = h * HEAD_DIM
        qh = qkv_scr[:, lo:lo + HEAD_DIM].reshape(Bt, S, HEAD_DIM)
        kh = qkv_scr[:, DIM + lo:DIM + lo + HEAD_DIM].reshape(Bt, S, HEAD_DIM)
        vh = qkv_scr[:, 2 * DIM + lo:2 * DIM + lo + HEAD_DIM].reshape(Bt, S, HEAD_DIM)

        s = jnp.einsum('bqd,bkd->bqk', qh, kh,
                       preferred_element_type=jnp.float32)     # (Bt, S, S) f32
        s = s - jnp.max(s, axis=-1, keepdims=True)
        e = jnp.exp(s)
        p = e * pl.reciprocal(jnp.sum(e, axis=-1, keepdims=True), approx=True)
        ctx_h = jnp.einsum('bqk,bkd->bqd', p.astype(jnp.bfloat16), vh,
                           preferred_element_type=jnp.float32)  # (Bt, S, 16)
        ctx_scr[:, lo:lo + HEAD_DIM] = ctx_h.reshape(N, HEAD_DIM)

    attn = jnp.dot(ctx_scr[...].astype(jnp.bfloat16), wo_ref[...],
                   preferred_element_type=jnp.float32) + bo_ref[...]

    # Residual + LayerNorm 1 (f32).
    y = _layer_norm(attn + x, g1_ref[...], be1_ref[...])

    # FFN: Linear(128,512) -> ReLU -> Linear(512,128); dropout = eval identity.
    h1 = jnp.dot(y.astype(jnp.bfloat16), wf1_ref[...],
                 preferred_element_type=jnp.float32) + bf1_ref[...]
    h1 = jnp.maximum(h1, 0.0)
    f = jnp.dot(h1.astype(jnp.bfloat16), wf2_ref[...],
                preferred_element_type=jnp.float32) + bf2_ref[...]

    # Residual + LayerNorm 2 (f32).
    out = _layer_norm(f + y, g2_ref[...], be2_ref[...])
    out_ref[...] = out.reshape(Bt, S, D).astype(out_ref.dtype)


def _pick_bt(B, S, target_rows=128):
    """Largest divisor Bt of B with Bt*S <= target_rows (at least 1).

    Bt*S ~= 128 already saturates the MXU M dimension on v5e while keeping
    multiple grid steps alive for pipelining / v7x dual-TensorCore sharding.
    """
    bt = 1
    for d in range(1, B + 1):
        if B % d == 0 and d * S <= target_rows:
            bt = d
    return bt


def self_transformer(x, params):
    """x: (B, S, 128) float32 (or bfloat16). Returns same shape/dtype as x."""
    B, S, D = x.shape
    assert D == DIM

    (wq, bq, wk, bk, wv, bv, wo, bo,
     g1, be1, wf1, bf1, wf2, bf2, g2, be2) = params

    # Fold the softmax scale (1/sqrt(16) = 0.25, exact) into the Q projection,
    # fuse Q/K/V into one weight matrix, and pre-cast all weight matrices to
    # bf16 (MXU-native on v6e/v7x); biases and LN affine stay f32.
    scale = 1.0 / math.sqrt(float(HEAD_DIM))
    wqkv = jnp.concatenate([wq * scale, wk, wv], axis=1).astype(jnp.bfloat16)
    bqkv = jnp.concatenate([bq * scale, bk, bv], axis=1).astype(jnp.float32)
    wo_b, wf1_b, wf2_b = (w.astype(jnp.bfloat16) for w in (wo, wf1, wf2))

    Bt = _pick_bt(B, S)
    assert B % Bt == 0
    grid = (B // Bt,)
    N = Bt * S

    xmap = lambda i: (i, 0, 0)     # activation tile: Bt sequences per step
    wmap = lambda i: (0, 0)        # weights: constant block -> VMEM-resident

    flops = int(B * S * (2 * D * 3 * D + 2 * D * D + 4 * D * FFN_DIM)
                + 4 * B * HEADS * S * S * HEAD_DIM)
    transcendentals = int(B * HEADS * S * (S + 1))
    bytes_accessed = int(4 * 2 * B * S * D                       # x in + out (f32)
                         + 2 * (4 * D * D + 2 * D * FFN_DIM)     # bf16 weights
                         + 4 * (8 * D + FFN_DIM))                # biases + LN affine

    out = pl.pallas_call(
        _self_transformer_kernel,
        out_shape=jax.ShapeDtypeStruct((B, S, D), x.dtype),
        grid=grid,
        in_specs=[
            pl.BlockSpec((Bt, S, D), xmap),
            pl.BlockSpec((D, 3 * D), wmap), pl.BlockSpec((1, 3 * D), wmap),      # fused qkv
            pl.BlockSpec((D, D), wmap), pl.BlockSpec((1, D), wmap),              # out_proj
            pl.BlockSpec((1, D), wmap), pl.BlockSpec((1, D), wmap),              # norm_1
            pl.BlockSpec((D, FFN_DIM), wmap), pl.BlockSpec((1, FFN_DIM), wmap),  # ffn1
            pl.BlockSpec((FFN_DIM, D), wmap), pl.BlockSpec((1, D), wmap),        # ffn2
            pl.BlockSpec((1, D), wmap), pl.BlockSpec((1, D), wmap),              # norm_2
        ],
        out_specs=pl.BlockSpec((Bt, S, D), xmap),
        scratch_shapes=[
            pltpu.VMEM((N, 3 * DIM), jnp.bfloat16),   # fused q|k|v, head-sliced
            pltpu.VMEM((N, DIM), jnp.float32),        # per-head ctx assembly
        ],
        compiler_params=pltpu.CompilerParams(
            dimension_semantics=("parallel",),
            vmem_limit_bytes=32 * 1024 * 1024),
        cost_estimate=pl.CostEstimate(flops=flops,
                                      transcendentals=transcendentals,
                                      bytes_accessed=bytes_accessed),
    )(x, wqkv, bqkv, wo_b, bo, g1, be1, wf1_b, bf1, wf2_b, bf2, g2, be2)
    return out


def init_params(key):
    """PyTorch-style uniform(-1/sqrt(fan_in), 1/sqrt(fan_in)) init; LN affine = (1, 0)."""
    def linear(k, fan_in, fan_out):
        kw, kb = jax.random.split(k)
        bound = 1.0 / math.sqrt(float(fan_in))
        w = jax.random.uniform(kw, (fan_in, fan_out), jnp.float32, -bound, bound)
        b = jax.random.uniform(kb, (1, fan_out), jnp.float32, -bound, bound)
        return w, b

    ks = jax.random.split(key, 6)
    wq, bq = linear(ks[0], DIM, DIM)
    wk, bk = linear(ks[1], DIM, DIM)
    wv, bv = linear(ks[2], DIM, DIM)
    wo, bo = linear(ks[3], DIM, DIM)
    wf1, bf1 = linear(ks[4], DIM, FFN_DIM)
    wf2, bf2 = linear(ks[5], FFN_DIM, DIM)
    g1 = jnp.ones((1, DIM), jnp.float32)
    be1 = jnp.zeros((1, DIM), jnp.float32)
    g2 = jnp.ones((1, DIM), jnp.float32)
    be2 = jnp.zeros((1, DIM), jnp.float32)
    return (wq, bq, wk, bk, wv, bv, wo, bo,
            g1, be1, wf1, bf1, wf2, bf2, g2, be2)


def self_transformer_ref(x, params):
    """Pure-JAX f32 reference of the PyTorch forward (eval mode, mask=None)."""
    (wq, bq, wk, bk, wv, bv, wo, bo,
     g1, be1, wf1, bf1, wf2, bf2, g2, be2) = params
    B, S, D = x.shape

    q = x @ wq + bq[0]
    k = x @ wk + bk[0]
    v = x @ wv + bv[0]
    qh = q.reshape(B, S, HEADS, HEAD_DIM).transpose(0, 2, 1, 3)
    kh = k.reshape(B, S, HEADS, HEAD_DIM).transpose(0, 2, 1, 3)
    vh = v.reshape(B, S, HEADS, HEAD_DIM).transpose(0, 2, 1, 3)
    s = jnp.einsum('bhqd,bhkd->bhqk', qh, kh) / math.sqrt(float(HEAD_DIM))
    p = jax.nn.softmax(s, axis=-1)
    ctx = jnp.einsum('bhqk,bhkd->bhqd', p, vh).transpose(0, 2, 1, 3).reshape(B, S, D)
    attn = ctx @ wo + bo[0]

    def ln(z, g, b):
        mu = z.mean(-1, keepdims=True)
        var = ((z - mu) ** 2).mean(-1, keepdims=True)
        return (z - mu) * jax.lax.rsqrt(var + LN_EPS) * g + b

    y = ln(attn + x, g1[0], be1[0])
    f = jnp.maximum(y @ wf1 + bf1[0], 0.0) @ wf2 + bf2[0]
    return ln(f + y, g2[0], be2[0])


if __name__ == "__main__":
    B, S, D = 16, 16, 128       # Bt = 8 -> 128-row MXU tiles, 2 grid steps

    key = jax.random.PRNGKey(0)
    kx, kp = jax.random.split(key)
    x = jax.random.normal(kx, (B, S, D), jnp.float32)
    params = init_params(kp)

    out = jax.block_until_ready(self_transformer(x, params))

    ref = self_transformer_ref(x, params)
    assert out.shape == (B, S, D)
    # Tolerance loosened vs. the f32 reference: the kernel uses bf16 matmul
    # operands (f32 accumulation) and an approximate softmax reciprocal.
    max_err = float(jnp.max(jnp.abs(out - ref)))
    assert jnp.allclose(out, ref, atol=5e-2, rtol=5e-2), max_err

    print("KERNEL_OK")
</pallas_src>

<mosaic_0001>
module attributes {stable_mosaic.version = 11 : i64} {
  func.func @_self_transformer_kernel(%arg0: i32, %arg1: memref<8x16x128xf32, #tpu.memory_space<vmem>>, %arg2: memref<128x384xbf16, #tpu.memory_space<vmem>>, %arg3: memref<1x384xf32, #tpu.memory_space<vmem>>, %arg4: memref<128x128xbf16, #tpu.memory_space<vmem>>, %arg5: memref<1x128xf32, #tpu.memory_space<vmem>>, %arg6: memref<1x128xf32, #tpu.memory_space<vmem>>, %arg7: memref<1x128xf32, #tpu.memory_space<vmem>>, %arg8: memref<128x512xbf16, #tpu.memory_space<vmem>>, %arg9: memref<1x512xf32, #tpu.memory_space<vmem>>, %arg10: memref<512x128xbf16, #tpu.memory_space<vmem>>, %arg11: memref<1x128xf32, #tpu.memory_space<vmem>>, %arg12: memref<1x128xf32, #tpu.memory_space<vmem>>, %arg13: memref<1x128xf32, #tpu.memory_space<vmem>>, %arg14: memref<8x16x128xf32, #tpu.memory_space<vmem>>, %arg15: memref<128x384xbf16, #tpu.memory_space<vmem>>, %arg16: memref<128x128xf32, #tpu.memory_space<vmem>>) attributes {dimension_semantics = [#tpu.dimension_semantics<parallel>], iteration_bounds = array<i64: 2>, scalar_prefetch = 0 : i64, scratch_operands = 2 : i64, tpu.core_type = #tpu.core_type<tc>, window_params = [{transform_indices = @transform_0, window_bounds = array<i64: 8, 16, 128>}, {pipeline_mode = #tpu.pipeline_mode<synchronous>, transform_indices = @transform_1, window_bounds = array<i64: 128, 384>}, {pipeline_mode = #tpu.pipeline_mode<synchronous>, transform_indices = @transform_2, window_bounds = array<i64: 1, 384>}, {pipeline_mode = #tpu.pipeline_mode<synchronous>, transform_indices = @transform_3, window_bounds = array<i64: 128, 128>}, {pipeline_mode = #tpu.pipeline_mode<synchronous>, transform_indices = @transform_4, window_bounds = array<i64: 1, 128>}, {pipeline_mode = #tpu.pipeline_mode<synchronous>, transform_indices = @transform_5, window_bounds = array<i64: 1, 128>}, {pipeline_mode = #tpu.pipeline_mode<synchronous>, transform_indices = @transform_6, window_bounds = array<i64: 1, 128>}, {pipeline_mode = #tpu.pipeline_mode<synchronous>, transform_indices = @transform_7, window_bounds = array<i64: 128, 512>}, {pipeline_mode = #tpu.pipeline_mode<synchronous>, transform_indices = @transform_8, window_bounds = array<i64: 1, 512>}, {pipeline_mode = #tpu.pipeline_mode<synchronous>, transform_indices = @transform_9, window_bounds = array<i64: 512, 128>}, {pipeline_mode = #tpu.pipeline_mode<synchronous>, transform_indices = @transform_10, window_bounds = array<i64: 1, 128>}, {pipeline_mode = #tpu.pipeline_mode<synchronous>, transform_indices = @transform_11, window_bounds = array<i64: 1, 128>}, {pipeline_mode = #tpu.pipeline_mode<synchronous>, transform_indices = @transform_12, window_bounds = array<i64: 1, 128>}, {transform_indices = @transform_13, window_bounds = array<i64: 8, 16, 128>}]} {
    %c0 = arith.constant 0 : index
    %c0_0 = arith.constant 0 : index
    %c0_1 = arith.constant 0 : index
    %0 = vector.load %arg1[%c0, %c0_0, %c0_1] : memref<8x16x128xf32, #tpu.memory_space<vmem>>, vector<8x16x128xf32>
    %1 = vector.shape_cast %0 : vector<8x16x128xf32> to vector<128x128xf32>
    %2 = arith.truncf %1 : vector<128x128xf32> to vector<128x128xbf16>
    %c0_2 = arith.constant 0 : index
    %c0_3 = arith.constant 0 : index
    %3 = vector.load %arg2[%c0_2, %c0_3] : memref<128x384xbf16, #tpu.memory_space<vmem>>, vector<128x384xbf16>
    %cst = arith.constant dense<0.000000e+00> : vector<128x384xf32>
    %4 = tpu.matmul %2, %3, %cst {dimension_numbers = #tpu.dot_dimension_numbers<[1], [0], [0], [1], [0, 0, 1, 1], [], []>} : vector<128x128xbf16>, vector<128x384xbf16>, vector<128x384xf32> -> vector<128x384xf32>
    %c0_4 = arith.constant 0 : index
    %c0_5 = arith.constant 0 : index
    %5 = vector.load %arg3[%c0_4, %c0_5] : memref<1x384xf32, #tpu.memory_space<vmem>>, vector<1x384xf32>
    %6 = vector.broadcast %5 : vector<1x384xf32> to vector<128x384xf32>
    %7 = arith.addf %4, %6 : vector<128x384xf32>
    %8 = arith.truncf %7 : vector<128x384xf32> to vector<128x384xbf16>
    %c0_6 = arith.constant 0 : index
    %c0_7 = arith.constant 0 : index
    %9 = vector.load %arg15[%c0_6, %c0_7] : memref<128x384xbf16, #tpu.memory_space<vmem>>, vector<128x384xbf16>
    tpu.vector_store %arg15[%c0_6, %c0_7], %8 {strides = array<i32>} : memref<128x384xbf16, #tpu.memory_space<vmem>>, vector<128x384xbf16>,
    %c0_8 = arith.constant 0 : index
    %c0_9 = arith.constant 0 : index
    %10 = vector.load %arg15[%c0_8, %c0_9] : memref<128x384xbf16, #tpu.memory_space<vmem>>, vector<128x16xbf16>
    %11 = vector.shape_cast %10 : vector<128x16xbf16> to vector<8x16x16xbf16>
    %c0_10 = arith.constant 0 : index
    %c128 = arith.constant 128 : index
    %12 = vector.load %arg15[%c0_10, %c128] : memref<128x384xbf16, #tpu.memory_space<vmem>>, vector<128x16xbf16>
    %13 = vector.shape_cast %12 : vector<128x16xbf16> to vector<8x16x16xbf16>
    %c0_11 = arith.constant 0 : index
    %c256 = arith.constant 256 : index
    %14 = vector.load %arg15[%c0_11, %c256] : memref<128x384xbf16, #tpu.memory_space<vmem>>, vector<128x16xbf16>
    %15 = vector.shape_cast %14 : vector<128x16xbf16> to vector<8x16x16xbf16>
    "tpu.trace_start"() <{level = 10 : i32, message = "bqd,bkd->bqk"}> : () -> ()
    %cst_12 = arith.constant dense<0.000000e+00> : vector<8x16x16xf32>
    %16 = tpu.matmul %11, %13, %cst_12 {dimension_numbers = #tpu.dot_dimension_numbers<[2], [2], [1], [1], [0, 0, 0, 1, 1, 1], [0], [0]>} : vector<8x16x16xbf16>, vector<8x16x16xbf16>, vector<8x16x16xf32> -> vector<8x16x16xf32>
    "tpu.trace_stop"() : () -> ()
    %cst_13 = arith.constant dense<0xFF800000> : vector<8x16xf32>
    %17 = vector.multi_reduction <maximumf>, %16, %cst_13 [2] : vector<8x16x16xf32> to vector<8x16xf32>
    %18 = vector.shape_cast %17 : vector<8x16xf32> to vector<8x16x1xf32>
    %19 = vector.broadcast %18 : vector<8x16x1xf32> to vector<8x16x16xf32>
    %20 = arith.subf %16, %19 : vector<8x16x16xf32>
    %21 = math.exp %20 : vector<8x16x16xf32>
    %cst_14 = arith.constant dense<0.000000e+00> : vector<8x16xf32>
    %22 = vector.multi_reduction <add>, %21, %cst_14 [2] : vector<8x16x16xf32> to vector<8x16xf32>
    %23 = vector.shape_cast %22 : vector<8x16xf32> to vector<8x16x1xf32>
    %24 = tpu.reciprocal %23 {approx = true} : vector<8x16x1xf32> -> vector<8x16x1xf32>
    %25 = vector.broadcast %24 : vector<8x16x1xf32> to vector<8x16x16xf32>
    %26 = arith.mulf %21, %25 : vector<8x16x16xf32>
    %27 = arith.truncf %26 : vector<8x16x16xf32> to vector<8x16x16xbf16>
    "tpu.trace_start"() <{level = 10 : i32, message = "bqk,bkd->bqd"}> : () -> ()
    %cst_15 = arith.constant dense<0.000000e+00> : vector<8x16x16xf32>
    %28 = tpu.matmul %27, %15, %cst_15 {dimension_numbers = #tpu.dot_dimension_numbers<[2], [1], [1], [2], [0, 0, 0, 1, 1, 2], [0], [0]>} : vector<8x16x16xbf16>, vector<8x16x16xbf16>, vector<8x16x16xf32> -> vector<8x16x16xf32>
    "tpu.trace_stop"() : () -> ()
    %29 = vector.shape_cast %28 : vector<8x16x16xf32> to vector<128x16xf32>
    %c0_16 = arith.constant 0 : index
    %c0_17 = arith.constant 0 : index
    %30 = vector.load %arg16[%c0_16, %c0_17] : memref<128x128xf32, #tpu.memory_space<vmem>>, vector<128x16xf32>
    tpu.vector_store %arg16[%c0_16, %c0_17], %29 {strides = array<i32>} : memref<128x128xf32, #tpu.memory_space<vmem>>, vector<128x16xf32>,
    %c0_18 = arith.constant 0 : index
    %c16 = arith.constant 16 : index
    %31 = vector.load %arg15[%c0_18, %c16] : memref<128x384xbf16, #tpu.memory_space<vmem>>, vector<128x16xbf16>
    %32 = vector.shape_cast %31 : vector<128x16xbf16> to vector<8x16x16xbf16>
    %c0_19 = arith.constant 0 : index
    %c144 = arith.constant 144 : index
    %33 = vector.load %arg15[%c0_19, %c144] : memref<128x384xbf16, #tpu.memory_space<vmem>>, vector<128x16xbf16>
    %34 = vector.shape_cast %33 : vector<128x16xbf16> to vector<8x16x16xbf16>
    %c0_20 = arith.constant 0 : index
    %c272 = arith.constant 272 : index
    %35 = vector.load %arg15[%c0_20, %c272] : memref<128x384xbf16, #tpu.memory_space<vmem>>, vector<128x16xbf16>
    %36 = vector.shape_cast %35 : vector<128x16xbf16> to vector<8x16x16xbf16>
    "tpu.trace_start"() <{level = 10 : i32, message = "bqd,bkd->bqk"}> : () -> ()
    %cst_21 = arith.constant dense<0.000000e+00> : vector<8x16x16xf32>
    %37 = tpu.matmul %32, %34, %cst_21 {dimension_numbers = #tpu.dot_dimension_numbers<[2], [2], [1], [1], [0, 0, 0, 1, 1, 1], [0], [0]>} : vector<8x16x16xbf16>, vector<8x16x16xbf16>, vector<8x16x16xf32> -> vector<8x16x16xf32>
    "tpu.trace_stop"() : () -> ()
    %cst_22 = arith.constant dense<0xFF800000> : vector<8x16xf32>
    %38 = vector.multi_reduction <maximumf>, %37, %cst_22 [2] : vector<8x16x16xf32> to vector<8x16xf32>
    %39 = vector.shape_cast %38 : vector<8x16xf32> to vector<8x16x1xf32>
    %40 = vector.broadcast %39 : vector<8x16x1xf32> to vector<8x16x16xf32>
    %41 = arith.subf %37, %40 : vector<8x16x16xf32>
    %42 = math.exp %41 : vector<8x16x16xf32>
    %cst_23 = arith.constant dense<0.000000e+00> : vector<8x16xf32>
    %43 = vector.multi_reduction <add>, %42, %cst_23 [2] : vector<8x16x16xf32> to vector<8x16xf32>
    %44 = vector.shape_cast %43 : vector<8x16xf32> to vector<8x16x1xf32>
    %45 = tpu.reciprocal %44 {approx = true} : vector<8x16x1xf32> -> vector<8x16x1xf32>
    %46 = vector.broadcast %45 : vector<8x16x1xf32> to vector<8x16x16xf32>
    %47 = arith.mulf %42, %46 : vector<8x16x16xf32>
    %48 = arith.truncf %47 : vector<8x16x16xf32> to vector<8x16x16xbf16>
    "tpu.trace_start"() <{level = 10 : i32, message = "bqk,bkd->bqd"}> : () -> ()
    %cst_24 = arith.constant dense<0.000000e+00> : vector<8x16x16xf32>
    %49 = tpu.matmul %48, %36, %cst_24 {dimension_numbers = #tpu.dot_dimension_numbers<[2], [1], [1], [2], [0, 0, 0, 1, 1, 2], [0], [0]>} : vector<8x16x16xbf16>, vector<8x16x16xbf16>, vector<8x16x16xf32> -> vector<8x16x16xf32>
    "tpu.trace_stop"() : () -> ()
    %50 = vector.shape_cast %49 : vector<8x16x16xf32> to vector<128x16xf32>
    %c0_25 = arith.constant 0 : index
    %c16_26 = arith.constant 16 : index
    %51 = vector.load %arg16[%c0_25, %c16_26] : memref<128x128xf32, #tpu.memory_space<vmem>>, vector<128x16xf32>
    tpu.vector_store %arg16[%c0_25, %c16_26], %50 {strides = array<i32>} : memref<128x128xf32, #tpu.memory_space<vmem>>, vector<128x16xf32>,
    %c0_27 = arith.constant 0 : index
    %c32 = arith.constant 32 : index
    %52 = vector.load %arg15[%c0_27, %c32] : memref<128x384xbf16, #tpu.memory_space<vmem>>, vector<128x16xbf16>
    %53 = vector.shape_cast %52 : vector<128x16xbf16> to vector<8x16x16xbf16>
    %c0_28 = arith.constant 0 : index
    %c160 = arith.constant 160 : index
    %54 = vector.load %arg15[%c0_28, %c160] : memref<128x384xbf16, #tpu.memory_space<vmem>>, vector<128x16xbf16>
    %55 = vector.shape_cast %54 : vector<128x16xbf16> to vector<8x16x16xbf16>
    %c0_29 = arith.constant 0 : index
    %c288 = arith.constant 288 : index
    %56 = vector.load %arg15[%c0_29, %c288] : memref<128x384xbf16, #tpu.memory_space<vmem>>, vector<128x16xbf16>
    %57 = vector.shape_cast %56 : vector<128x16xbf16> to vector<8x16x16xbf16>
    "tpu.trace_start"() <{level = 10 : i32, message = "bqd,bkd->bqk"}> : () -> ()
    %cst_30 = arith.constant dense<0.000000e+00> : vector<8x16x16xf32>
    %58 = tpu.matmul %53, %55, %cst_30 {dimension_numbers = #tpu.dot_dimension_numbers<[2], [2], [1], [1], [0, 0, 0, 1, 1, 1], [0], [0]>} : vector<8x16x16xbf16>, vector<8x16x16xbf16>, vector<8x16x16xf32> -> vector<8x16x16xf32>
    "tpu.trace_stop"() : () -> ()
    %cst_31 = arith.constant dense<0xFF800000> : vector<8x16xf32>
    %59 = vector.multi_reduction <maximumf>, %58, %cst_31 [2] : vector<8x16x16xf32> to vector<8x16xf32>
    %60 = vector.shape_cast %59 : vector<8x16xf32> to vector<8x16x1xf32>
    %61 = vector.broadcast %60 : vector<8x16x1xf32> to vector<8x16x16xf32>
    %62 = arith.subf %58, %61 : vector<8x16x16xf32>
    %63 = math.exp %62 : vector<8x16x16xf32>
    %cst_32 = arith.constant dense<0.000000e+00> : vector<8x16xf32>
    %64 = vector.multi_reduction <add>, %63, %cst_32 [2] : vector<8x16x16xf32> to vector<8x16xf32>
    %65 = vector.shape_cast %64 : vector<8x16xf32> to vector<8x16x1xf32>
    %66 = tpu.reciprocal %65 {approx = true} : vector<8x16x1xf32> -> vector<8x16x1xf32>
    %67 = vector.broadcast %66 : vector<8x16x1xf32> to vector<8x16x16xf32>
    %68 = arith.mulf %63, %67 : vector<8x16x16xf32>
    %69 = arith.truncf %68 : vector<8x16x16xf32> to vector<8x16x16xbf16>
    "tpu.trace_start"() <{level = 10 : i32, message = "bqk,bkd->bqd"}> : () -> ()
    %cst_33 = arith.constant dense<0.000000e+00> : vector<8x16x16xf32>
    %70 = tpu.matmul %69, %57, %cst_33 {dimension_numbers = #tpu.dot_dimension_numbers<[2], [1], [1], [2], [0, 0, 0, 1, 1, 2], [0], [0]>} : vector<8x16x16xbf16>, vector<8x16x16xbf16>, vector<8x16x16xf32> -> vector<8x16x16xf32>
    "tpu.trace_stop"() : () -> ()
    %71 = vector.shape_cast %70 : vector<8x16x16xf32> to vector<128x16xf32>
    %c0_34 = arith.constant 0 : index
    %c32_35 = arith.constant 32 : index
    %72 = vector.load %arg16[%c0_34, %c32_35] : memref<128x128xf32, #tpu.memory_space<vmem>>, vector<128x16xf32>
    tpu.vector_store %arg16[%c0_34, %c32_35], %71 {strides = array<i32>} : memref<128x128xf32, #tpu.memory_space<vmem>>, vector<128x16xf32>,
    %c0_36 = arith.constant 0 : index
    %c48 = arith.constant 48 : index
    %73 = vector.load %arg15[%c0_36, %c48] : memref<128x384xbf16, #tpu.memory_space<vmem>>, vector<128x16xbf16>
    %74 = vector.shape_cast %73 : vector<128x16xbf16> to vector<8x16x16xbf16>
    %c0_37 = arith.constant 0 : index
    %c176 = arith.constant 176 : index
    %75 = vector.load %arg15[%c0_37, %c176] : memref<128x384xbf16, #tpu.memory_space<vmem>>, vector<128x16xbf16>
    %76 = vector.shape_cast %75 : vector<128x16xbf16> to vector<8x16x16xbf16>
    %c0_38 = arith.constant 0 : index
    %c304 = arith.constant 304 : index
    %77 = vector.load %arg15[%c0_38, %c304] : memref<128x384xbf16, #tpu.memory_space<vmem>>, vector<128x16xbf16>
    %78 = vector.shape_cast %77 : vector<128x16xbf16> to vector<8x16x16xbf16>
    "tpu.trace_start"() <{level = 10 : i32, message = "bqd,bkd->bqk"}> : () -> ()
    %cst_39 = arith.constant dense<0.000000e+00> : vector<8x16x16xf32>
    %79 = tpu.matmul %74, %76, %cst_39 {dimension_numbers = #tpu.dot_dimension_numbers<[2], [2], [1], [1], [0, 0, 0, 1, 1, 1], [0], [0]>} : vector<8x16x16xbf16>, vector<8x16x16xbf16>, vector<8x16x16xf32> -> vector<8x16x16xf32>
    "tpu.trace_stop"() : () -> ()
    %cst_40 = arith.constant dense<0xFF800000> : vector<8x16xf32>
    %80 = vector.multi_reduction <maximumf>, %79, %cst_40 [2] : vector<8x16x16xf32> to vector<8x16xf32>
    %81 = vector.shape_cast %80 : vector<8x16xf32> to vector<8x16x1xf32>
    %82 = vector.broadcast %81 : vector<8x16x1xf32> to vector<8x16x16xf32>
    %83 = arith.subf %79, %82 : vector<8x16x16xf32>
    %84 = math.exp %83 : vector<8x16x16xf32>
    %cst_41 = arith.constant dense<0.000000e+00> : vector<8x16xf32>
    %85 = vector.multi_reduction <add>, %84, %cst_41 [2] : vector<8x16x16xf32> to vector<8x16xf32>
    %86 = vector.shape_cast %85 : vector<8x16xf32> to vector<8x16x1xf32>
    %87 = tpu.reciprocal %86 {approx = true} : vector<8x16x1xf32> -> vector<8x16x1xf32>
    %88 = vector.broadcast %87 : vector<8x16x1xf32> to vector<8x16x16xf32>
    %89 = arith.mulf %84, %88 : vector<8x16x16xf32>
    %90 = arith.truncf %89 : vector<8x16x16xf32> to vector<8x16x16xbf16>
    "tpu.trace_start"() <{level = 10 : i32, message = "bqk,bkd->bqd"}> : () -> ()
    %cst_42 = arith.constant dense<0.000000e+00> : vector<8x16x16xf32>
    %91 = tpu.matmul %90, %78, %cst_42 {dimension_numbers = #tpu.dot_dimension_numbers<[2], [1], [1], [2], [0, 0, 0, 1, 1, 2], [0], [0]>} : vector<8x16x16xbf16>, vector<8x16x16xbf16>, vector<8x16x16xf32> -> vector<8x16x16xf32>
    "tpu.trace_stop"() : () -> ()
    %92 = vector.shape_cast %91 : vector<8x16x16xf32> to vector<128x16xf32>
    %c0_43 = arith.constant 0 : index
    %c48_44 = arith.constant 48 : index
    %93 = vector.load %arg16[%c0_43, %c48_44] : memref<128x128xf32, #tpu.memory_space<vmem>>, vector<128x16xf32>
    tpu.vector_store %arg16[%c0_43, %c48_44], %92 {strides = array<i32>} : memref<128x128xf32, #tpu.memory_space<vmem>>, vector<128x16xf32>,
    %c0_45 = arith.constant 0 : index
    %c64 = arith.constant 64 : index
    %94 = vector.load %arg15[%c0_45, %c64] : memref<128x384xbf16, #tpu.memory_space<vmem>>, vector<128x16xbf16>
    %95 = vector.shape_cast %94 : vector<128x16xbf16> to vector<8x16x16xbf16>
    %c0_46 = arith.constant 0 : index
    %c192 = arith.constant 192 : index
    %96 = vector.load %arg15[%c0_46, %c192] : memref<128x384xbf16, #tpu.memory_space<vmem>>, vector<128x16xbf16>
    %97 = vector.shape_cast %96 : vector<128x16xbf16> to vector<8x16x16xbf16>
    %c0_47 = arith.constant 0 : index
    %c320 = arith.constant 320 : index
    %98 = vector.load %arg15[%c0_47, %c320] : memref<128x384xbf16, #tpu.memory_space<vmem>>, vector<128x16xbf16>
    %99 = vector.shape_cast %98 : vector<128x16xbf16> to vector<8x16x16xbf16>
    "tpu.trace_start"() <{level = 10 : i32, message = "bqd,bkd->bqk"}> : () -> ()
    %cst_48 = arith.constant dense<0.000000e+00> : vector<8x16x16xf32>
    %100 = tpu.matmul %95, %97, %cst_48 {dimension_numbers = #tpu.dot_dimension_numbers<[2], [2], [1], [1], [0, 0, 0, 1, 1, 1], [0], [0]>} : vector<8x16x16xbf16>, vector<8x16x16xbf16>, vector<8x16x16xf32> -> vector<8x16x16xf32>
    "tpu.trace_stop"() : () -> ()
    %cst_49 = arith.constant dense<0xFF800000> : vector<8x16xf32>
    %101 = vector.multi_reduction <maximumf>, %100, %cst_49 [2] : vector<8x16x16xf32> to vector<8x16xf32>
    %102 = vector.shape_cast %101 : vector<8x16xf32> to vector<8x16x1xf32>
    %103 = vector.broadcast %102 : vector<8x16x1xf32> to vector<8x16x16xf32>
    %104 = arith.subf %100, %103 : vector<8x16x16xf32>
    %105 = math.exp %104 : vector<8x16x16xf32>
    %cst_50 = arith.constant dense<0.000000e+00> : vector<8x16xf32>
    %106 = vector.multi_reduction <add>, %105, %cst_50 [2] : vector<8x16x16xf32> to vector<8x16xf32>
    %107 = vector.shape_cast %106 : vector<8x16xf32> to vector<8x16x1xf32>
    %108 = tpu.reciprocal %107 {approx = true} : vector<8x16x1xf32> -> vector<8x16x1xf32>
    %109 = vector.broadcast %108 : vector<8x16x1xf32> to vector<8x16x16xf32>
    %110 = arith.mulf %105, %109 : vector<8x16x16xf32>
    %111 = arith.truncf %110 : vector<8x16x16xf32> to vector<8x16x16xbf16>
    "tpu.trace_start"() <{level = 10 : i32, message = "bqk,bkd->bqd"}> : () -> ()
    %cst_51 = arith.constant dense<0.000000e+00> : vector<8x16x16xf32>
    %112 = tpu.matmul %111, %99, %cst_51 {dimension_numbers = #tpu.dot_dimension_numbers<[2], [1], [1], [2], [0, 0, 0, 1, 1, 2], [0], [0]>} : vector<8x16x16xbf16>, vector<8x16x16xbf16>, vector<8x16x16xf32> -> vector<8x16x16xf32>
    "tpu.trace_stop"() : () -> ()
    %113 = vector.shape_cast %112 : vector<8x16x16xf32> to vector<128x16xf32>
    %c0_52 = arith.constant 0 : index
    %c64_53 = arith.constant 64 : index
    %114 = vector.load %arg16[%c0_52, %c64_53] : memref<128x128xf32, #tpu.memory_space<vmem>>, vector<128x16xf32>
    tpu.vector_store %arg16[%c0_52, %c64_53], %113 {strides = array<i32>} : memref<128x128xf32, #tpu.memory_space<vmem>>, vector<128x16xf32>,
    %c0_54 = arith.constant 0 : index
    %c80 = arith.constant 80 : index
    %115 = vector.load %arg15[%c0_54, %c80] : memref<128x384xbf16, #tpu.memory_space<vmem>>, vector<128x16xbf16>
    %116 = vector.shape_cast %115 : vector<128x16xbf16> to vector<8x16x16xbf16>
    %c0_55 = arith.constant 0 : index
    %c208 = arith.constant 208 : index
    %117 = vector.load %arg15[%c0_55, %c208] : memref<128x384xbf16, #tpu.memory_space<vmem>>, vector<128x16xbf16>
    %118 = vector.shape_cast %117 : vector<128x16xbf16> to vector<8x16x16xbf16>
    %c0_56 = arith.constant 0 : index
    %c336 = arith.constant 336 : index
    %119 = vector.load %arg15[%c0_56, %c336] : memref<128x384xbf16, #tpu.memory_space<vmem>>, vector<128x16xbf16>
    %120 = vector.shape_cast %119 : vector<128x16xbf16> to vector<8x16x16xbf16>
    "tpu.trace_start"() <{level = 10 : i32, message = "bqd,bkd->bqk"}> : () -> ()
    %cst_57 = arith.constant dense<0.000000e+00> : vector<8x16x16xf32>
    %121 = tpu.matmul %116, %118, %cst_57 {dimension_numbers = #tpu.dot_dimension_numbers<[2], [2], [1], [1], [0, 0, 0, 1, 1, 1], [0], [0]>} : vector<8x16x16xbf16>, vector<8x16x16xbf16>, vector<8x16x16xf32> -> vector<8x16x16xf32>
    "tpu.trace_stop"() : () -> ()
    %cst_58 = arith.constant dense<0xFF800000> : vector<8x16xf32>
    %122 = vector.multi_reduction <maximumf>, %121, %cst_58 [2] : vector<8x16x16xf32> to vector<8x16xf32>
    %123 = vector.shape_cast %122 : vector<8x16xf32> to vector<8x16x1xf32>
    %124 = vector.broadcast %123 : vector<8x16x1xf32> to vector<8x16x16xf32>
    %125 = arith.subf %121, %124 : vector<8x16x16xf32>
    %126 = math.exp %125 : vector<8x16x16xf32>
    %cst_59 = arith.constant dense<0.000000e+00> : vector<8x16xf32>
    %127 = vector.multi_reduction <add>, %126, %cst_59 [2] : vector<8x16x16xf32> to vector<8x16xf32>
    %128 = vector.shape_cast %127 : vector<8x16xf32> to vector<8x16x1xf32>
    %129 = tpu.reciprocal %128 {approx = true} : vector<8x16x1xf32> -> vector<8x16x1xf32>
    %130 = vector.broadcast %129 : vector<8x16x1xf32> to vector<8x16x16xf32>
    %131 = arith.mulf %126, %130 : vector<8x16x16xf32>
    %132 = arith.truncf %131 : vector<8x16x16xf32> to vector<8x16x16xbf16>
    "tpu.trace_start"() <{level = 10 : i32, message = "bqk,bkd->bqd"}> : () -> ()
    %cst_60 = arith.constant dense<0.000000e+00> : vector<8x16x16xf32>
    %133 = tpu.matmul %132, %120, %cst_60 {dimension_numbers = #tpu.dot_dimension_numbers<[2], [1], [1], [2], [0, 0, 0, 1, 1, 2], [0], [0]>} : vector<8x16x16xbf16>, vector<8x16x16xbf16>, vector<8x16x16xf32> -> vector<8x16x16xf32>
    "tpu.trace_stop"() : () -> ()
    %134 = vector.shape_cast %133 : vector<8x16x16xf32> to vector<128x16xf32>
    %c0_61 = arith.constant 0 : index
    %c80_62 = arith.constant 80 : index
    %135 = vector.load %arg16[%c0_61, %c80_62] : memref<128x128xf32, #tpu.memory_space<vmem>>, vector<128x16xf32>
    tpu.vector_store %arg16[%c0_61, %c80_62], %134 {strides = array<i32>} : memref<128x128xf32, #tpu.memory_space<vmem>>, vector<128x16xf32>,
    %c0_63 = arith.constant 0 : index
    %c96 = arith.constant 96 : index
    %136 = vector.load %arg15[%c0_63, %c96] : memref<128x384xbf16, #tpu.memory_space<vmem>>, vector<128x16xbf16>
    %137 = vector.shape_cast %136 : vector<128x16xbf16> to vector<8x16x16xbf16>
    %c0_64 = arith.constant 0 : index
    %c224 = arith.constant 224 : index
    %138 = vector.load %arg15[%c0_64, %c224] : memref<128x384xbf16, #tpu.memory_space<vmem>>, vector<128x16xbf16>
    %139 = vector.shape_cast %138 : vector<128x16xbf16> to vector<8x16x16xbf16>
    %c0_65 = arith.constant 0 : index
    %c352 = arith.constant 352 : index
    %140 = vector.load %arg15[%c0_65, %c352] : memref<128x384xbf16, #tpu.memory_space<vmem>>, vector<128x16xbf16>
    %141 = vector.shape_cast %140 : vector<128x16xbf16> to vector<8x16x16xbf16>
    "tpu.trace_start"() <{level = 10 : i32, message = "bqd,bkd->bqk"}> : () -> ()
    %cst_66 = arith.constant dense<0.000000e+00> : vector<8x16x16xf32>
    %142 = tpu.matmul %137, %139, %cst_66 {dimension_numbers = #tpu.dot_dimension_numbers<[2], [2], [1], [1], [0, 0, 0, 1, 1, 1], [0], [0]>} : vector<8x16x16xbf16>, vector<8x16x16xbf16>, vector<8x16x16xf32> -> vector<8x16x16xf32>
    "tpu.trace_stop"() : () -> ()
    %cst_67 = arith.constant dense<0xFF800000> : vector<8x16xf32>
    %143 = vector.multi_reduction <maximumf>, %142, %cst_67 [2] : vector<8x16x16xf32> to vector<8x16xf32>
    %144 = vector.shape_cast %143 : vector<8x16xf32> to vector<8x16x1xf32>
    %145 = vector.broadcast %144 : vector<8x16x1xf32> to vector<8x16x16xf32>
    %146 = arith.subf %142, %145 : vector<8x16x16xf32>
    %147 = math.exp %146 : vector<8x16x16xf32>
    %cst_68 = arith.constant dense<0.000000e+00> : vector<8x16xf32>
    %148 = vector.multi_reduction <add>, %147, %cst_68 [2] : vector<8x16x16xf32> to vector<8x16xf32>
    %149 = vector.shape_cast %148 : vector<8x16xf32> to vector<8x16x1xf32>
    %150 = tpu.reciprocal %149 {approx = true} : vector<8x16x1xf32> -> vector<8x16x1xf32>
    %151 = vector.broadcast %150 : vector<8x16x1xf32> to vector<8x16x16xf32>
    %152 = arith.mulf %147, %151 : vector<8x16x16xf32>
    %153 = arith.truncf %152 : vector<8x16x16xf32> to vector<8x16x16xbf16>
    "tpu.trace_start"() <{level = 10 : i32, message = "bqk,bkd->bqd"}> : () -> ()
    %cst_69 = arith.constant dense<0.000000e+00> : vector<8x16x16xf32>
    %154 = tpu.matmul %153, %141, %cst_69 {dimension_numbers = #tpu.dot_dimension_numbers<[2], [1], [1], [2], [0, 0, 0, 1, 1, 2], [0], [0]>} : vector<8x16x16xbf16>, vector<8x16x16xbf16>, vector<8x16x16xf32> -> vector<8x16x16xf32>
    "tpu.trace_stop"() : () -> ()
    %155 = vector.shape_cast %154 : vector<8x16x16xf32> to vector<128x16xf32>
    %c0_70 = arith.constant 0 : index
    %c96_71 = arith.constant 96 : index
    %156 = vector.load %arg16[%c0_70, %c96_71] : memref<128x128xf32, #tpu.memory_space<vmem>>, vector<128x16xf32>
    tpu.vector_store %arg16[%c0_70, %c96_71], %155 {strides = array<i32>} : memref<128x128xf32, #tpu.memory_space<vmem>>, vector<128x16xf32>,
    %c0_72 = arith.constant 0 : index
    %c112 = arith.constant 112 : index
    %157 = vector.load %arg15[%c0_72, %c112] : memref<128x384xbf16, #tpu.memory_space<vmem>>, vector<128x16xbf16>
    %158 = vector.shape_cast %157 : vector<128x16xbf16> to vector<8x16x16xbf16>
    %c0_73 = arith.constant 0 : index
    %c240 = arith.constant 240 : index
    %159 = vector.load %arg15[%c0_73, %c240] : memref<128x384xbf16, #tpu.memory_space<vmem>>, vector<128x16xbf16>
    %160 = vector.shape_cast %159 : vector<128x16xbf16> to vector<8x16x16xbf16>
    %c0_74 = arith.constant 0 : index
    %c368 = arith.constant 368 : index
    %161 = vector.load %arg15[%c0_74, %c368] : memref<128x384xbf16, #tpu.memory_space<vmem>>, vector<128x16xbf16>
    %162 = vector.shape_cast %161 : vector<128x16xbf16> to vector<8x16x16xbf16>
    "tpu.trace_start"() <{level = 10 : i32, message = "bqd,bkd->bqk"}> : () -> ()
    %cst_75 = arith.constant dense<0.000000e+00> : vector<8x16x16xf32>
    %163 = tpu.matmul %158, %160, %cst_75 {dimension_numbers = #tpu.dot_dimension_numbers<[2], [2], [1], [1], [0, 0, 0, 1, 1, 1], [0], [0]>} : vector<8x16x16xbf16>, vector<8x16x16xbf16>, vector<8x16x16xf32> -> vector<8x16x16xf32>
    "tpu.trace_stop"() : () -> ()
    %cst_76 = arith.constant dense<0xFF800000> : vector<8x16xf32>
    %164 = vector.multi_reduction <maximumf>, %163, %cst_76 [2] : vector<8x16x16xf32> to vector<8x16xf32>
    %165 = vector.shape_cast %164 : vector<8x16xf32> to vector<8x16x1xf32>
    %166 = vector.broadcast %165 : vector<8x16x1xf32> to vector<8x16x16xf32>
    %167 = arith.subf %163, %166 : vector<8x16x16xf32>
    %168 = math.exp %167 : vector<8x16x16xf32>
    %cst_77 = arith.constant dense<0.000000e+00> : vector<8x16xf32>
    %169 = vector.multi_reduction <add>, %168, %cst_77 [2] : vector<8x16x16xf32> to vector<8x16xf32>
    %170 = vector.shape_cast %169 : vector<8x16xf32> to vector<8x16x1xf32>
    %171 = tpu.reciprocal %170 {approx = true} : vector<8x16x1xf32> -> vector<8x16x1xf32>
    %172 = vector.broadcast %171 : vector<8x16x1xf32> to vector<8x16x16xf32>
    %173 = arith.mulf %168, %172 : vector<8x16x16xf32>
    %174 = arith.truncf %173 : vector<8x16x16xf32> to vector<8x16x16xbf16>
    "tpu.trace_start"() <{level = 10 : i32, message = "bqk,bkd->bqd"}> : () -> ()
    %cst_78 = arith.constant dense<0.000000e+00> : vector<8x16x16xf32>
    %175 = tpu.matmul %174, %162, %cst_78 {dimension_numbers = #tpu.dot_dimension_numbers<[2], [1], [1], [2], [0, 0, 0, 1, 1, 2], [0], [0]>} : vector<8x16x16xbf16>, vector<8x16x16xbf16>, vector<8x16x16xf32> -> vector<8x16x16xf32>
    "tpu.trace_stop"() : () -> ()
    %176 = vector.shape_cast %175 : vector<8x16x16xf32> to vector<128x16xf32>
    %c0_79 = arith.constant 0 : index
    %c112_80 = arith.constant 112 : index
    %177 = vector.load %arg16[%c0_79, %c112_80] : memref<128x128xf32, #tpu.memory_space<vmem>>, vector<128x16xf32>
    tpu.vector_store %arg16[%c0_79, %c112_80], %176 {strides = array<i32>} : memref<128x128xf32, #tpu.memory_space<vmem>>, vector<128x16xf32>,
    %c0_81 = arith.constant 0 : index
    %c0_82 = arith.constant 0 : index
    %178 = vector.load %arg16[%c0_81, %c0_82] : memref<128x128xf32, #tpu.memory_space<vmem>>, vector<128x128xf32>
    %179 = arith.truncf %178 : vector<128x128xf32> to vector<128x128xbf16>
    %c0_83 = arith.constant 0 : index
    %c0_84 = arith.constant 0 : index
    %180 = vector.load %arg4[%c0_83, %c0_84] : memref<128x128xbf16, #tpu.memory_space<vmem>>, vector<128x128xbf16>
    %cst_85 = arith.constant dense<0.000000e+00> : vector<128x128xf32>
    %181 = tpu.matmul %179, %180, %cst_85 {dimension_numbers = #tpu.dot_dimension_numbers<[1], [0], [0], [1], [0, 0, 1, 1], [], []>} : vector<128x128xbf16>, vector<128x128xbf16>, vector<128x128xf32> -> vector<128x128xf32>
    %c0_86 = arith.constant 0 : index
    %c0_87 = arith.constant 0 : index
    %182 = vector.load %arg5[%c0_86, %c0_87] : memref<1x128xf32, #tpu.memory_space<vmem>>, vector<1x128xf32>
    %183 = vector.broadcast %182 : vector<1x128xf32> to vector<128x128xf32>
    %184 = arith.addf %181, %183 : vector<128x128xf32>
    %185 = arith.addf %184, %1 : vector<128x128xf32>
    %c0_88 = arith.constant 0 : index
    %c0_89 = arith.constant 0 : index
    %186 = vector.load %arg6[%c0_88, %c0_89] : memref<1x128xf32, #tpu.memory_space<vmem>>, vector<1x128xf32>
    %c0_90 = arith.constant 0 : index
    %c0_91 = arith.constant 0 : index
    %187 = vector.load %arg7[%c0_90, %c0_91] : memref<1x128xf32, #tpu.memory_space<vmem>>, vector<1x128xf32>
    %cst_92 = arith.constant dense<0.000000e+00> : vector<128xf32>
    %188 = vector.multi_reduction <add>, %185, %cst_92 [1] : vector<128x128xf32> to vector<128xf32>
    %189 = vector.shape_cast %188 : vector<128xf32> to vector<128x1xf32>
    %cst_93 = arith.constant 1.280000e+02 : f32
    %190 = vector.broadcast %cst_93 : f32 to vector<128x1xf32>
    %191 = arith.divf %189, %190 : vector<128x1xf32>
    %192 = vector.broadcast %191 : vector<128x1xf32> to vector<128x128xf32>
    %193 = arith.subf %185, %192 : vector<128x128xf32>
    %194 = vector.broadcast %191 : vector<128x1xf32> to vector<128x128xf32>
    %195 = arith.subf %185, %194 : vector<128x128xf32>
    %196 = arith.mulf %193, %195 : vector<128x128xf32>
    %cst_94 = arith.constant dense<0.000000e+00> : vector<128xf32>
    %197 = vector.multi_reduction <add>, %196, %cst_94 [1] : vector<128x128xf32> to vector<128xf32>
    %198 = vector.shape_cast %197 : vector<128xf32> to vector<128x1xf32>
    %cst_95 = arith.constant 1.280000e+02 : f32
    %199 = vector.broadcast %cst_95 : f32 to vector<128x1xf32>
    %200 = arith.divf %198, %199 : vector<128x1xf32>
    %201 = vector.broadcast %191 : vector<128x1xf32> to vector<128x128xf32>
    %202 = arith.subf %185, %201 : vector<128x128xf32>
    %cst_96 = arith.constant 9.99999974E-6 : f32
    %203 = vector.broadcast %cst_96 : f32 to vector<128x1xf32>
    %204 = arith.addf %200, %203 : vector<128x1xf32>
    %205 = math.rsqrt %204 : vector<128x1xf32>
    %206 = vector.broadcast %205 : vector<128x1xf32> to vector<128x128xf32>
    %207 = arith.mulf %202, %206 : vector<128x128xf32>
    %208 = vector.broadcast %186 : vector<1x128xf32> to vector<128x128xf32>
    %209 = arith.mulf %207, %208 : vector<128x128xf32>
    %210 = vector.broadcast %187 : vector<1x128xf32> to vector<128x128xf32>
    %211 = arith.addf %209, %210 : vector<128x128xf32>
    %212 = arith.truncf %211 : vector<128x128xf32> to vector<128x128xbf16>
    %c0_97 = arith.constant 0 : index
    %c0_98 = arith.constant 0 : index
    %213 = vector.load %arg8[%c0_97, %c0_98] : memref<128x512xbf16, #tpu.memory_space<vmem>>, vector<128x512xbf16>
    %cst_99 = arith.constant dense<0.000000e+00> : vector<128x512xf32>
    %214 = tpu.matmul %212, %213, %cst_99 {dimension_numbers = #tpu.dot_dimension_numbers<[1], [0], [0], [1], [0, 0, 1, 1], [], []>} : vector<128x128xbf16>, vector<128x512xbf16>, vector<128x512xf32> -> vector<128x512xf32>
    %c0_100 = arith.constant 0 : index
    %c0_101 = arith.constant 0 : index
    %215 = vector.load %arg9[%c0_100, %c0_101] : memref<1x512xf32, #tpu.memory_space<vmem>>, vector<1x512xf32>
    %216 = vector.broadcast %215 : vector<1x512xf32> to vector<128x512xf32>
    %217 = arith.addf %214, %216 : vector<128x512xf32>
    %cst_102 = arith.constant 0.000000e+00 : f32
    %218 = vector.broadcast %cst_102 : f32 to vector<128x512xf32>
    %219 = arith.maximumf %217, %218 : vector<128x512xf32>
    %220 = arith.truncf %219 : vector<128x512xf32> to vector<128x512xbf16>
    %c0_103 = arith.constant 0 : index
    %c0_104 = arith.constant 0 : index
    %221 = vector.load %arg10[%c0_103, %c0_104] : memref<512x128xbf16, #tpu.memory_space<vmem>>, vector<512x128xbf16>
    %cst_105 = arith.constant dense<0.000000e+00> : vector<128x128xf32>
    %222 = tpu.matmul %220, %221, %cst_105 {dimension_numbers = #tpu.dot_dimension_numbers<[1], [0], [0], [1], [0, 0, 1, 1], [], []>} : vector<128x512xbf16>, vector<512x128xbf16>, vector<128x128xf32> -> vector<128x128xf32>
    %c0_106 = arith.constant 0 : index
    %c0_107 = arith.constant 0 : index
    %223 = vector.load %arg11[%c0_106, %c0_107] : memref<1x128xf32, #tpu.memory_space<vmem>>, vector<1x128xf32>
    %224 = vector.broadcast %223 : vector<1x128xf32> to vector<128x128xf32>
    %225 = arith.addf %222, %224 : vector<128x128xf32>
    %226 = arith.addf %225, %211 : vector<128x128xf32>
    %c0_108 = arith.constant 0 : index
    %c0_109 = arith.constant 0 : index
    %227 = vector.load %arg12[%c0_108, %c0_109] : memref<1x128xf32, #tpu.memory_space<vmem>>, vector<1x128xf32>
    %c0_110 = arith.constant 0 : index
    %c0_111 = arith.constant 0 : index
    %228 = vector.load %arg13[%c0_110, %c0_111] : memref<1x128xf32, #tpu.memory_space<vmem>>, vector<1x128xf32>
    %cst_112 = arith.constant dense<0.000000e+00> : vector<128xf32>
    %229 = vector.multi_reduction <add>, %226, %cst_112 [1] : vector<128x128xf32> to vector<128xf32>
    %230 = vector.shape_cast %229 : vector<128xf32> to vector<128x1xf32>
    %cst_113 = arith.constant 1.280000e+02 : f32
    %231 = vector.broadcast %cst_113 : f32 to vector<128x1xf32>
    %232 = arith.divf %230, %231 : vector<128x1xf32>
    %233 = vector.broadcast %232 : vector<128x1xf32> to vector<128x128xf32>
    %234 = arith.subf %226, %233 : vector<128x128xf32>
    %235 = vector.broadcast %232 : vector<128x1xf32> to vector<128x128xf32>
    %236 = arith.subf %226, %235 : vector<128x128xf32>
    %237 = arith.mulf %234, %236 : vector<128x128xf32>
    %cst_114 = arith.constant dense<0.000000e+00> : vector<128xf32>
    %238 = vector.multi_reduction <add>, %237, %cst_114 [1] : vector<128x128xf32> to vector<128xf32>
    %239 = vector.shape_cast %238 : vector<128xf32> to vector<128x1xf32>
    %cst_115 = arith.constant 1.280000e+02 : f32
    %240 = vector.broadcast %cst_115 : f32 to vector<128x1xf32>
    %241 = arith.divf %239, %240 : vector<128x1xf32>
    %242 = vector.broadcast %232 : vector<128x1xf32> to vector<128x128xf32>
    %243 = arith.subf %226, %242 : vector<128x128xf32>
    %cst_116 = arith.constant 9.99999974E-6 : f32
    %244 = vector.broadcast %cst_116 : f32 to vector<128x1xf32>
    %245 = arith.addf %241, %244 : vector<128x1xf32>
    %246 = math.rsqrt %245 : vector<128x1xf32>
    %247 = vector.broadcast %246 : vector<128x1xf32> to vector<128x128xf32>
    %248 = arith.mulf %243, %247 : vector<128x128xf32>
    %249 = vector.broadcast %227 : vector<1x128xf32> to vector<128x128xf32>
    %250 = arith.mulf %248, %249 : vector<128x128xf32>
    %251 = vector.broadcast %228 : vector<1x128xf32> to vector<128x128xf32>
    %252 = arith.addf %250, %251 : vector<128x128xf32>
    %253 = vector.shape_cast %252 : vector<128x128xf32> to vector<8x16x128xf32>
    %c0_117 = arith.constant 0 : index
    %c0_118 = arith.constant 0 : index
    %c0_119 = arith.constant 0 : index
    %254 = vector.load %arg14[%c0_117, %c0_118, %c0_119] : memref<8x16x128xf32, #tpu.memory_space<vmem>>, vector<8x16x128xf32>
    tpu.vector_store %arg14[%c0_117, %c0_118, %c0_119], %253 {strides = array<i32>} : memref<8x16x128xf32, #tpu.memory_space<vmem>>, vector<8x16x128xf32>,
    return
  }
  func.func @transform_0(%arg0: i32) -> (i32, i32, i32) {
    %c0_i32 = arith.constant 0 : i32
    %c0_i32_0 = arith.constant 0 : i32
    %c0_i32_1 = arith.constant 0 : i32
    return %arg0, %c0_i32, %c0_i32_0 : i32, i32, i32
  }
  func.func @transform_1(%arg0: i32) -> (i32, i32) {
    %c0_i32 = arith.constant 0 : i32
    %c0_i32_0 = arith.constant 0 : i32
    %c0_i32_1 = arith.constant 0 : i32
    return %c0_i32, %c0_i32_0 : i32, i32
  }
  func.func @transform_2(%arg0: i32) -> (i32, i32) {
    %c0_i32 = arith.constant 0 : i32
    %c0_i32_0 = arith.constant 0 : i32
    %c0_i32_1 = arith.constant 0 : i32
    return %c0_i32, %c0_i32_0 : i32, i32
  }
  func.func @transform_3(%arg0: i32) -> (i32, i32) {
    %c0_i32 = arith.constant 0 : i32
    %c0_i32_0 = arith.constant 0 : i32
    %c0_i32_1 = arith.constant 0 : i32
    return %c0_i32, %c0_i32_0 : i32, i32
  }
  func.func @transform_4(%arg0: i32) -> (i32, i32) {
    %c0_i32 = arith.constant 0 : i32
    %c0_i32_0 = arith.constant 0 : i32
    %c0_i32_1 = arith.constant 0 : i32
    return %c0_i32, %c0_i32_0 : i32, i32
  }
  func.func @transform_5(%arg0: i32) -> (i32, i32) {
    %c0_i32 = arith.constant 0 : i32
    %c0_i32_0 = arith.constant 0 : i32
    %c0_i32_1 = arith.constant 0 : i32
    return %c0_i32, %c0_i32_0 : i32, i32
  }
  func.func @transform_6(%arg0: i32) -> (i32, i32) {
    %c0_i32 = arith.constant 0 : i32
    %c0_i32_0 = arith.constant 0 : i32
    %c0_i32_1 = arith.constant 0 : i32
    return %c0_i32, %c0_i32_0 : i32, i32
  }
  func.func @transform_7(%arg0: i32) -> (i32, i32) {
    %c0_i32 = arith.constant 0 : i32
    %c0_i32_0 = arith.constant 0 : i32
    %c0_i32_1 = arith.constant 0 : i32
    return %c0_i32, %c0_i32_0 : i32, i32
  }
  func.func @transform_8(%arg0: i32) -> (i32, i32) {
    %c0_i32 = arith.constant 0 : i32
    %c0_i32_0 = arith.constant 0 : i32
    %c0_i32_1 = arith.constant 0 : i32
    return %c0_i32, %c0_i32_0 : i32, i32
  }
  func.func @transform_9(%arg0: i32) -> (i32, i32) {
    %c0_i32 = arith.constant 0 : i32
    %c0_i32_0 = arith.constant 0 : i32
    %c0_i32_1 = arith.constant 0 : i32
    return %c0_i32, %c0_i32_0 : i32, i32
  }
  func.func @transform_10(%arg0: i32) -> (i32, i32) {
    %c0_i32 = arith.constant 0 : i32
    %c0_i32_0 = arith.constant 0 : i32
    %c0_i32_1 = arith.constant 0 : i32
    return %c0_i32, %c0_i32_0 : i32, i32
  }
  func.func @transform_11(%arg0: i32) -> (i32, i32) {
    %c0_i32 = arith.constant 0 : i32
    %c0_i32_0 = arith.constant 0 : i32
    %c0_i32_1 = arith.constant 0 : i32
    return %c0_i32, %c0_i32_0 : i32, i32
  }
  func.func @transform_12(%arg0: i32) -> (i32, i32) {
    %c0_i32 = arith.constant 0 : i32
    %c0_i32_0 = arith.constant 0 : i32
    %c0_i32_1 = arith.constant 0 : i32
    return %c0_i32, %c0_i32_0 : i32, i32
  }
  func.func @transform_13(%arg0: i32) -> (i32, i32, i32) {
    %c0_i32 = arith.constant 0 : i32
    %c0_i32_0 = arith.constant 0 : i32
    %c0_i32_1 = arith.constant 0 : i32
    return %arg0, %c0_i32, %c0_i32_0 : i32, i32, i32
  }
}

</mosaic_0001>

<llo_original>
// kernel: tpu_custom_call.1
$region0: #{tpu_custom_call.1}
  #allocation0 [shape = 'u32[]', space=smem, size = 0x4, offset = 0x4, fixed_abs, tag = 'smem constant byte address 0x4 - core index']
  #allocation1 [shape = 'u32[72,128]{1,0:T(1,128)}', space=vmem, size = 0x9000, scoped, tag = 'internal scratch']
  #allocation2 [shape = 'bf16[128,384]{1,0:T(8,128)(2,1)}', space=vmem, size = 0x18000, scoped, tag = 'scratch operand']
  #allocation3 [shape = 'f32[128,128]{1,0:T(8,128)}', space=vmem, size = 0x10000, scoped, tag = 'scratch operand']
  %s0 = inlined_call_operand.hbm [shape: f32[16,16,128], index: 0, kind: input, shape index: {}]
  %s1 = inlined_call_operand.hbm [shape: bf16[128,384], index: 1, kind: input, shape index: {}]
  %s2 = inlined_call_operand.hbm [shape: f32[1,384], index: 2, kind: input, shape index: {}]
  %s3 = inlined_call_operand.hbm [shape: bf16[128,128], index: 3, kind: input, shape index: {}]
  %s4 = inlined_call_operand.vmem [shape: f32[1,128], index: 4, kind: input, shape index: {}]
  %s5 = inlined_call_operand.vmem [shape: f32[1,128], index: 5, kind: input, shape index: {}]
  %s6 = inlined_call_operand.vmem [shape: f32[1,128], index: 6, kind: input, shape index: {}]
  %s7 = inlined_call_operand.hbm [shape: bf16[128,512], index: 7, kind: input, shape index: {}]
  %s8 = inlined_call_operand.vmem [shape: f32[1,512], index: 8, kind: input, shape index: {}]
  %s9 = inlined_call_operand.hbm [shape: bf16[512,128], index: 9, kind: input, shape index: {}]
  %s10 = inlined_call_operand.vmem [shape: f32[1,128], index: 10, kind: input, shape index: {}]
  %s11 = inlined_call_operand.vmem [shape: f32[1,128], index: 11, kind: input, shape index: {}]
  %s12 = inlined_call_operand.vmem [shape: f32[1,128], index: 12, kind: input, shape index: {}]
  %s13 = inlined_call_operand.hbm [shape: f32[16,16,128], index: 13, kind: output, shape index: {}]
  %s14 = sld [smem:[#allocation0]]
  $region109: #{tpu_custom_call.1} parent=0
    _
  %s16 = ssub.s32 1, %s14
  %s17 = scalar_select 0, %s16, %s14
  $region1: #{tpu_custom_call.1} parent=0
    #allocation4 [shape = 'u8[131072]{0}', space=vmem, size = 0x20000, scoped, tag = 'input window, operand 0']
    #allocation5 [shape = 's32[2]{0}', space=sflag, size = 0x8, scoped, tag = 'scoped memory for tpu_custom_call.1']
    #allocation6 [shape = 's32[2]{0}', space=sflag, size = 0x8, scoped, tag = 'scoped memory for tpu_custom_call.1']
    #allocation7 [shape = 'u8[98304]{0}', space=vmem, size = 0x18000, scoped, tag = 'input window, operand 1, single buffered']
    #allocation8 [shape = 's32[1]{0}', space=sflag, size = 0x4, scoped, tag = 'scoped memory for tpu_custom_call.1']
    #allocation9 [shape = 'u8[1536]{0}', space=vmem, size = 0x800, scoped, tag = 'input window, operand 2, single buffered']
    #allocation10 [shape = 'u8[32768]{0}', space=vmem, size = 0x8000, scoped, tag = 'input window, operand 3, single buffered']
    #allocation11 [shape = 's32[1]{0}', space=sflag, size = 0x4, scoped, tag = 'scoped memory for tpu_custom_call.1']
    #allocation12 [shape = 'u8[131072]{0}', space=vmem, size = 0x20000, scoped, tag = 'input window, operand 7, single buffered']
    #allocation13 [shape = 'u8[131072]{0}', space=vmem, size = 0x20000, scoped, tag = 'input window, operand 9, single buffered']
    #allocation14 [shape = 's32[1]{0}', space=sflag, size = 0x4, scoped, tag = 'scoped memory for tpu_custom_call.1']
    #allocation15 [shape = 'u8[131072]{0}', space=vmem, size = 0x20000, scoped, tag = 'output window, operand 0']
    %18 = vsyncpa [#allocation5], 0
    %s19 = scalar_lea.sflag [#allocation5], 1
    %20 = vsyncpa %s19, 0
    %21 = vsyncpa [#allocation8], 0
    %22 = vsyncpa [#allocation11], 0
    %23 = vsyncpa [#allocation14], 0
    %24 = vsyncpa [#allocation6], 0
    %s25 = scalar_lea.sflag [#allocation6], 1
    %26 = vsyncpa %s25, 0
    loop: start=0, step=1, limit=4
    $region2: #{tpu_custom_call.1} parent=1 // loop_pre_header
      _
    $region3: #{tpu_custom_call.1} parent=1 // loop_header
      %s28 = sphi 0, %s32
      %p29 = scmp.ge.s32.totalorder %s28, 4
      %s38 = sphi 0, %s40
      %s41 = sphi 0, %s38
      %s42 = sphi 0, %s41
      %s58 = sphi 0, %s42
      %s62 = sphi 0, %s62
      %s64 = sphi 0, %s62
      %s65 = sphi 0, %s64
      %s79 = sphi 0, %s65
      %s83 = sphi 0, %s83
      %s85 = sphi 0, %s83
      %s86 = sphi 0, %s85
      %s100 = sphi 0, %s86
      %s104 = sphi 0, %s104
      %s106 = sphi 0, %s104
      %s107 = sphi 0, %s106
      %s121 = sphi 0, %s107
      %s125 = sphi 0, %s125
      %s127 = sphi 0, %s125
      %s128 = sphi 0, %s127
      %s142 = sphi 0, %s128
      %s146 = sphi 0, %s146
      %s148 = sphi 0, %s146
      %s149 = sphi 0, %s148
      %s163 = sphi 0, %s149
      %s167 = sphi 0, %s167
      %s169 = sphi 0, %s167
      %s170 = sphi 0, %s169
      %s184 = sphi 0, %s170
      %s188 = sphi 0, %s188
      %s190 = sphi 0, %s188
      %s191 = sphi 0, %s190
      %s205 = sphi 0, %s191
      %s209 = sphi 0, %s209
      %s211 = sphi 0, %s209
      %s212 = sphi 0, %s211
      %s226 = sphi 0, %s212
      %s230 = sphi 0, %s230
      %s232 = sphi 0, %s230
      %s233 = sphi 0, %s232
      %s247 = sphi 0, %s233
      %s251 = sphi 0, %s251
      %s253 = sphi 0, %s251
      %s254 = sphi 0, %s253
      %s268 = sphi 0, %s254
      %s272 = sphi 0, %s272
      %s274 = sphi 0, %s272
      %s275 = sphi 0, %s274
      %s289 = sphi 0, %s275
      %s293 = sphi 0, %s293
      %s295 = sphi 0, %s293
      %s296 = sphi 0, %s295
      %s310 = sphi 0, %s296
      %s316 = sphi 0, %s318
      %s319 = sphi 0, %s316
      %s320 = sphi 0, %s319
      %s336 = sphi 0, %s320
    $region4: #{tpu_custom_call.1} parent=1 // loop_header_branch
      %31 = sbr.rel (%p29) target = $region8
    $region5: #{tpu_custom_call.1} parent=1 // loop_body
      %s33 = ssub.s32 %s28, 1
      %s34 = ssub.s32 %s28, 2
      %s35 = sadd.s32 %s28, 1
      %s36 = ssub.s32 %s28, %s35
      %p37 = scmp.eq.s32.totalorder %s36, 0
      %s39 = sadd.s32 %s38, 1
      %s40 = scalar_select %p37, %s38, %s39
      %p43 = pneg %p37
      %p44 = scmp.eq.s32.totalorder %s28, 1
      %p45 = por %p43, %p44
      %p46 = scmp.ne.s32.totalorder %s38, %s41
      %p47 = scmp.eq.s32.totalorder %s28, 0
      %p48 = por %p46, %p47
      %p49 = scmp.ne.s32.totalorder %s38, %s41
      %p50 = scmp.eq.s32.totalorder %s33, 1
      %p51 = por %p49, %p50
      %p52 = scmp.ne.s32.totalorder %s41, %s42
      %p53 = scmp.eq.s32.totalorder %s33, 0
      %p54 = por %p52, %p53
      %p55 = scmp.ne.s32.totalorder %s41, %s42
      %p56 = scmp.eq.s32.totalorder %s34, 1
      %p57 = por %p55, %p56
      %p59 = scmp.ne.s32.totalorder %s42, %s58
      %p60 = scmp.eq.s32.totalorder %s34, 0
      %p61 = por %p59, %p60
      %s63 = sadd.s32 %s62, 1
      %p66 = scmp.eq.s32.totalorder %s28, 1
      %p67 = scmp.ne.s32.totalorder %s62, %s64
      %p68 = scmp.eq.s32.totalorder %s28, 0
      %p69 = por %p67, %p68
      %p70 = scmp.ne.s32.totalorder %s62, %s64
      %p71 = scmp.eq.s32.totalorder %s33, 1
      %p72 = por %p70, %p71
      %p73 = scmp.ne.s32.totalorder %s64, %s65
      %p74 = scmp.eq.s32.totalorder %s33, 0
      %p75 = por %p73, %p74
      %p76 = scmp.ne.s32.totalorder %s64, %s65
      %p77 = scmp.eq.s32.totalorder %s34, 1
      %p78 = por %p76, %p77
      %p80 = scmp.ne.s32.totalorder %s65, %s79
      %p81 = scmp.eq.s32.totalorder %s34, 0
      %p82 = por %p80, %p81
      %s84 = sadd.s32 %s83, 1
      %p87 = scmp.eq.s32.totalorder %s28, 1
      %p88 = scmp.ne.s32.totalorder %s83, %s85
      %p89 = scmp.eq.s32.totalorder %s28, 0
      %p90 = por %p88, %p89
      %p91 = scmp.ne.s32.totalorder %s83, %s85
      %p92 = scmp.eq.s32.totalorder %s33, 1
      %p93 = por %p91, %p92
      %p94 = scmp.ne.s32.totalorder %s85, %s86
      %p95 = scmp.eq.s32.totalorder %s33, 0
      %p96 = por %p94, %p95
      %p97 = scmp.ne.s32.totalorder %s85, %s86
      %p98 = scmp.eq.s32.totalorder %s34, 1
      %p99 = por %p97, %p98
      %p101 = scmp.ne.s32.totalorder %s86, %s100
      %p102 = scmp.eq.s32.totalorder %s34, 0
      %p103 = por %p101, %p102
      %s105 = sadd.s32 %s104, 1
      %p108 = scmp.eq.s32.totalorder %s28, 1
      %p109 = scmp.ne.s32.totalorder %s104, %s106
      %p110 = scmp.eq.s32.totalorder %s28, 0
      %p111 = por %p109, %p110
      %p112 = scmp.ne.s32.totalorder %s104, %s106
      %p113 = scmp.eq.s32.totalorder %s33, 1
      %p114 = por %p112, %p113
      %p115 = scmp.ne.s32.totalorder %s106, %s107
      %p116 = scmp.eq.s32.totalorder %s33, 0
      %p117 = por %p115, %p116
      %p118 = scmp.ne.s32.totalorder %s106, %s107
      %p119 = scmp.eq.s32.totalorder %s34, 1
      %p120 = por %p118, %p119
      %p122 = scmp.ne.s32.totalorder %s107, %s121
      %p123 = scmp.eq.s32.totalorder %s34, 0
      %p124 = por %p122, %p123
      %s126 = sadd.s32 %s125, 1
      %p129 = scmp.eq.s32.totalorder %s28, 1
      %p130 = scmp.ne.s32.totalorder %s125, %s127
      %p131 = scmp.eq.s32.totalorder %s28, 0
      %p132 = por %p130, %p131
      %p133 = scmp.ne.s32.totalorder %s125, %s127
      %p134 = scmp.eq.s32.totalorder %s33, 1
      %p135 = por %p133, %p134
      %p136 = scmp.ne.s32.totalorder %s127, %s128
      %p137 = scmp.eq.s32.totalorder %s33, 0
      %p138 = por %p136, %p137
      %p139 = scmp.ne.s32.totalorder %s127, %s128
      %p140 = scmp.eq.s32.totalorder %s34, 1
      %p141 = por %p139, %p140
      %p143 = scmp.ne.s32.totalorder %s128, %s142
      %p144 = scmp.eq.s32.totalorder %s34, 0
      %p145 = por %p143, %p144
      %s147 = sadd.s32 %s146, 1
      %p150 = scmp.eq.s32.totalorder %s28, 1
      %p151 = scmp.ne.s32.totalorder %s146, %s148
      %p152 = scmp.eq.s32.totalorder %s28, 0
      %p153 = por %p151, %p152
      %p154 = scmp.ne.s32.totalorder %s146, %s148
      %p155 = scmp.eq.s32.totalorder %s33, 1
      %p156 = por %p154, %p155
      %p157 = scmp.ne.s32.totalorder %s148, %s149
      %p158 = scmp.eq.s32.totalorder %s33, 0
      %p159 = por %p157, %p158
      %p160 = scmp.ne.s32.totalorder %s148, %s149
      %p161 = scmp.eq.s32.totalorder %s34, 1
      %p162 = por %p160, %p161
      %p164 = scmp.ne.s32.totalorder %s149, %s163
      %p165 = scmp.eq.s32.totalorder %s34, 0
      %p166 = por %p164, %p165
      %s168 = sadd.s32 %s167, 1
      %p171 = scmp.eq.s32.totalorder %s28, 1
      %p172 = scmp.ne.s32.totalorder %s167, %s169
      %p173 = scmp.eq.s32.totalorder %s28, 0
      %p174 = por %p172, %p173
      %p175 = scmp.ne.s32.totalorder %s167, %s169
      %p176 = scmp.eq.s32.totalorder %s33, 1
      %p177 = por %p175, %p176
      %p178 = scmp.ne.s32.totalorder %s169, %s170
      %p179 = scmp.eq.s32.totalorder %s33, 0
      %p180 = por %p178, %p179
      %p181 = scmp.ne.s32.totalorder %s169, %s170
      %p182 = scmp.eq.s32.totalorder %s34, 1
      %p183 = por %p181, %p182
      %p185 = scmp.ne.s32.totalorder %s170, %s184
      %p186 = scmp.eq.s32.totalorder %s34, 0
      %p187 = por %p185, %p186
      %s189 = sadd.s32 %s188, 1
      %p192 = scmp.eq.s32.totalorder %s28, 1
      %p193 = scmp.ne.s32.totalorder %s188, %s190
      %p194 = scmp.eq.s32.totalorder %s28, 0
      %p195 = por %p193, %p194
      %p196 = scmp.ne.s32.totalorder %s188, %s190
      %p197 = scmp.eq.s32.totalorder %s33, 1
      %p198 = por %p196, %p197
      %p199 = scmp.ne.s32.totalorder %s190, %s191
      %p200 = scmp.eq.s32.totalorder %s33, 0
      %p201 = por %p199, %p200
      %p202 = scmp.ne.s32.totalorder %s190, %s191
      %p203 = scmp.eq.s32.totalorder %s34, 1
      %p204 = por %p202, %p203
      %p206 = scmp.ne.s32.totalorder %s191, %s205
      %p207 = scmp.eq.s32.totalorder %s34, 0
      %p208 = por %p206, %p207
      %s210 = sadd.s32 %s209, 1
      %p213 = scmp.eq.s32.totalorder %s28, 1
      %p214 = scmp.ne.s32.totalorder %s209, %s211
      %p215 = scmp.eq.s32.totalorder %s28, 0
      %p216 = por %p214, %p215
      %p217 = scmp.ne.s32.totalorder %s209, %s211
      %p218 = scmp.eq.s32.totalorder %s33, 1
      %p219 = por %p217, %p218
      %p220 = scmp.ne.s32.totalorder %s211, %s212
      %p221 = scmp.eq.s32.totalorder %s33, 0
      %p222 = por %p220, %p221
      %p223 = scmp.ne.s32.totalorder %s211, %s212
      %p224 = scmp.eq.s32.totalorder %s34, 1
      %p225 = por %p223, %p224
      %p227 = scmp.ne.s32.totalorder %s212, %s226
      %p228 = scmp.eq.s32.totalorder %s34, 0
      %p229 = por %p227, %p228
      %s231 = sadd.s32 %s230, 1
      %p234 = scmp.eq.s32.totalorder %s28, 1
      %p235 = scmp.ne.s32.totalorder %s230, %s232
      %p236 = scmp.eq.s32.totalorder %s28, 0
      %p237 = por %p235, %p236
      %p238 = scmp.ne.s32.totalorder %s230, %s232
      %p239 = scmp.eq.s32.totalorder %s33, 1
      %p240 = por %p238, %p239
      %p241 = scmp.ne.s32.totalorder %s232, %s233
      %p242 = scmp.eq.s32.totalorder %s33, 0
      %p243 = por %p241, %p242
      %p244 = scmp.ne.s32.totalorder %s232, %s233
      %p245 = scmp.eq.s32.totalorder %s34, 1
      %p246 = por %p244, %p245
      %p248 = scmp.ne.s32.totalorder %s233, %s247
      %p249 = scmp.eq.s32.totalorder %s34, 0
      %p250 = por %p248, %p249
      %s252 = sadd.s32 %s251, 1
      %p255 = scmp.eq.s32.totalorder %s28, 1
      %p256 = scmp.ne.s32.totalorder %s251, %s253
      %p257 = scmp.eq.s32.totalorder %s28, 0
      %p258 = por %p256, %p257
      %p259 = scmp.ne.s32.totalorder %s251, %s253
      %p260 = scmp.eq.s32.totalorder %s33, 1
      %p261 = por %p259, %p260
      %p262 = scmp.ne.s32.totalorder %s253, %s254
      %p263 = scmp.eq.s32.totalorder %s33, 0
      %p264 = por %p262, %p263
      %p265 = scmp.ne.s32.totalorder %s253, %s254
      %p266 = scmp.eq.s32.totalorder %s34, 1
      %p267 = por %p265, %p266
      %p269 = scmp.ne.s32.totalorder %s254, %s268
      %p270 = scmp.eq.s32.totalorder %s34, 0
      %p271 = por %p269, %p270
      %s273 = sadd.s32 %s272, 1
      %p276 = scmp.eq.s32.totalorder %s28, 1
      %p277 = scmp.ne.s32.totalorder %s272, %s274
      %p278 = scmp.eq.s32.totalorder %s28, 0
      %p279 = por %p277, %p278
      %p280 = scmp.ne.s32.totalorder %s272, %s274
      %p281 = scmp.eq.s32.totalorder %s33, 1
      %p282 = por %p280, %p281
      %p283 = scmp.ne.s32.totalorder %s274, %s275
      %p284 = scmp.eq.s32.totalorder %s33, 0
      %p285 = por %p283, %p284
      %p286 = scmp.ne.s32.totalorder %s274, %s275
      %p287 = scmp.eq.s32.totalorder %s34, 1
      %p288 = por %p286, %p287
      %p290 = scmp.ne.s32.totalorder %s275, %s289
      %p291 = scmp.eq.s32.totalorder %s34, 0
      %p292 = por %p290, %p291
      %s294 = sadd.s32 %s293, 1
      %p297 = scmp.eq.s32.totalorder %s28, 1
      %p298 = scmp.ne.s32.totalorder %s293, %s295
      %p299 = scmp.eq.s32.totalorder %s28, 0
      %p300 = por %p298, %p299
      %p301 = scmp.ne.s32.totalorder %s293, %s295
      %p302 = scmp.eq.s32.totalorder %s33, 1
      %p303 = por %p301, %p302
      %p304 = scmp.ne.s32.totalorder %s295, %s296
      %p305 = scmp.eq.s32.totalorder %s33, 0
      %p306 = por %p304, %p305
      %p307 = scmp.ne.s32.totalorder %s295, %s296
      %p308 = scmp.eq.s32.totalorder %s34, 1
      %p309 = por %p307, %p308
      %p311 = scmp.ne.s32.totalorder %s296, %s310
      %p312 = scmp.eq.s32.totalorder %s34, 0
      %p313 = por %p311, %p312
      %s314 = ssub.s32 %s28, %s35
      %p315 = scmp.eq.s32.totalorder %s314, 0
      %s317 = sadd.s32 %s316, 1
      %s318 = scalar_select %p315, %s316, %s317
      %p321 = pneg %p315
      %p322 = scmp.eq.s32.totalorder %s28, 1
      %p323 = por %p321, %p322
      %p324 = scmp.ne.s32.totalorder %s316, %s319
      %p325 = scmp.eq.s32.totalorder %s28, 0
      %p326 = por %p324, %p325
      %p327 = scmp.ne.s32.totalorder %s316, %s319
      %p328 = scmp.eq.s32.totalorder %s33, 1
      %p329 = por %p327, %p328
      %p330 = scmp.ne.s32.totalorder %s319, %s320
      %p331 = scmp.eq.s32.totalorder %s33, 0
      %p332 = por %p330, %p331
      %p333 = scmp.ne.s32.totalorder %s319, %s320
      %p334 = scmp.eq.s32.totalorder %s34, 1
      %p335 = por %p333, %p334
      %p337 = scmp.ne.s32.totalorder %s320, %s336
      %p338 = scmp.eq.s32.totalorder %s34, 0
      %p339 = por %p337, %p338
      %p340 = scmp.le.s32.totalorder 1, %s28
      %p341 = scmp.lt.s32.totalorder %s28, 3
      %p342 = pnand %p340, %p341
      %p343 = pneg %p342
      // Predicated region
      $region9: #{tpu_custom_call.1} parent=5 // pred_check
        _
      $region10: #{tpu_custom_call.1} parent=5 // pred_check_branch
        %345 = sbr.rel (%p342) target = $region12
      $region11: #{tpu_custom_call.1} parent=5 // pred_region
        %s346 = ssub.s32 %s28, 1
        // Predicated region
        $region13: #{tpu_custom_call.1} parent=11 // pred_check
          %p347 = pneg %p75
        $region14: #{tpu_custom_call.1} parent=11 // pred_check_branch
          %349 = sbr.rel (%p347) target = $region16
        $region15: #{tpu_custom_call.1} parent=11 // pred_region
          %351 = vsyncadd [#allocation8], 0
          %s352 = sshll.u32 %s1, 4
          %s353 = int_to_ptr.hbm [resolvable:$true] %s352
          %s354 = sshll.u32 [#allocation7], 4
          %s355 = int_to_ptr.vmem [resolvable:$true] %s354
          %360 = dma.hbm_to_vmem [thread:$0]  %s353, 3072, %s355, [#allocation8], 192, 192, 12
        $region16: #{tpu_custom_call.1} parent=11 // pred_fallthru
          _
        // Predicated region
        $region17: #{tpu_custom_call.1} parent=11 // pred_check
          %p361 = pneg %p96
        $region18: #{tpu_custom_call.1} parent=11 // pred_check_branch
          %363 = sbr.rel (%p361) target = $region20
        $region19: #{tpu_custom_call.1} parent=11 // pred_region
          %365 = vsyncadd [#allocation8], 0
          %s367 = sshll.u32 %s2, 4
          %s368 = int_to_ptr.hbm [resolvable:$true] %s367
          %s369 = sshll.u32 [#allocation9], 4
          %s370 = int_to_ptr.vmem [resolvable:$true] %s369
          %372 = dma.hbm_to_vmem [thread:$0]  %s368, 48, %s370, [#allocation8]
        $region20: #{tpu_custom_call.1} parent=11 // pred_fallthru
          _
        // Predicated region
        $region21: #{tpu_custom_call.1} parent=11 // pred_check
          %p373 = pneg %p117
        $region22: #{tpu_custom_call.1} parent=11 // pred_check_branch
          %375 = sbr.rel (%p373) target = $region24
        $region23: #{tpu_custom_call.1} parent=11 // pred_region
          %377 = vsyncadd [#allocation11], 0
          %s378 = sshll.u32 %s3, 4
          %s379 = int_to_ptr.hbm [resolvable:$true] %s378
          %s380 = sshll.u32 [#allocation10], 4
          %s381 = int_to_ptr.vmem [resolvable:$true] %s380
          %386 = dma.hbm_to_vmem [thread:$0]  %s379, 1024, %s381, [#allocation11], 64, 64, 4
        $region24: #{tpu_custom_call.1} parent=11 // pred_fallthru
          _
        // Predicated region
        $region25: #{tpu_custom_call.1} parent=11 // pred_check
          %p387 = pneg %p138
        $region26: #{tpu_custom_call.1} parent=11 // pred_check_branch
          %389 = sbr.rel (%p387) target = $region28
        $region27: #{tpu_custom_call.1} parent=11 // pred_region
          _
        $region28: #{tpu_custom_call.1} parent=11 // pred_fallthru
          _
        // Predicated region
        $region29: #{tpu_custom_call.1} parent=11 // pred_check
          %p390 = pneg %p159
        $region30: #{tpu_custom_call.1} parent=11 // pred_check_branch
          %392 = sbr.rel (%p390) target = $region32
        $region31: #{tpu_custom_call.1} parent=11 // pred_region
          _
        $region32: #{tpu_custom_call.1} parent=11 // pred_fallthru
          _
        // Predicated region
        $region33: #{tpu_custom_call.1} parent=11 // pred_check
          %p393 = pneg %p180
        $region34: #{tpu_custom_call.1} parent=11 // pred_check_branch
          %395 = sbr.rel (%p393) target = $region36
        $region35: #{tpu_custom_call.1} parent=11 // pred_region
          _
        $region36: #{tpu_custom_call.1} parent=11 // pred_fallthru
          _
        // Predicated region
        $region37: #{tpu_custom_call.1} parent=11 // pred_check
          %p396 = pneg %p201
        $region38: #{tpu_custom_call.1} parent=11 // pred_check_branch
          %398 = sbr.rel (%p396) target = $region40
        $region39: #{tpu_custom_call.1} parent=11 // pred_region
          %400 = vsyncadd [#allocation11], 0
          %s401 = sshll.u32 %s7, 4
          %s402 = int_to_ptr.hbm [resolvable:$true] %s401
          %s403 = sshll.u32 [#allocation12], 4
          %s404 = int_to_ptr.vmem [resolvable:$true] %s403
          %409 = dma.hbm_to_vmem [thread:$0]  %s402, 4096, %s404, [#allocation11], 256, 256, 16
        $region40: #{tpu_custom_call.1} parent=11 // pred_fallthru
          _
        // Predicated region
        $region41: #{tpu_custom_call.1} parent=11 // pred_check
          %p410 = pneg %p222
        $region42: #{tpu_custom_call.1} parent=11 // pred_check_branch
          %412 = sbr.rel (%p410) target = $region44
        $region43: #{tpu_custom_call.1} parent=11 // pred_region
          _
        $region44: #{tpu_custom_call.1} parent=11 // pred_fallthru
          _
        // Predicated region
        $region45: #{tpu_custom_call.1} parent=11 // pred_check
          %p413 = pneg %p243
        $region46: #{tpu_custom_call.1} parent=11 // pred_check_branch
          %415 = sbr.rel (%p413) target = $region48
        $region47: #{tpu_custom_call.1} parent=11 // pred_region
          %417 = vsyncadd [#allocation14], 0
          %s418 = sshll.u32 %s9, 4
          %s419 = int_to_ptr.hbm [resolvable:$true] %s418
          %s420 = sshll.u32 [#allocation13], 4
          %s421 = int_to_ptr.vmem [resolvable:$true] %s420
          %426 = dma.hbm_to_vmem [thread:$0]  %s419, 4096, %s421, [#allocation14], 64, 64, 4
        $region48: #{tpu_custom_call.1} parent=11 // pred_fallthru
          _
        // Predicated region
        $region49: #{tpu_custom_call.1} parent=11 // pred_check
          %p427 = pneg %p264
        $region50: #{tpu_custom_call.1} parent=11 // pred_check_branch
          %429 = sbr.rel (%p427) target = $region52
        $region51: #{tpu_custom_call.1} parent=11 // pred_region
          _
        $region52: #{tpu_custom_call.1} parent=11 // pred_fallthru
          _
        // Predicated region
        $region53: #{tpu_custom_call.1} parent=11 // pred_check
          %p430 = pneg %p285
        $region54: #{tpu_custom_call.1} parent=11 // pred_check_branch
          %432 = sbr.rel (%p430) target = $region56
        $region55: #{tpu_custom_call.1} parent=11 // pred_region
          _
        $region56: #{tpu_custom_call.1} parent=11 // pred_fallthru
          _
        // Predicated region
        $region57: #{tpu_custom_call.1} parent=11 // pred_check
          %p433 = pneg %p306
        $region58: #{tpu_custom_call.1} parent=11 // pred_check_branch
          %435 = sbr.rel (%p433) target = $region60
        $region59: #{tpu_custom_call.1} parent=11 // pred_region
          _
        $region60: #{tpu_custom_call.1} parent=11 // pred_fallthru
          _
      $region12: #{tpu_custom_call.1} parent=5 // pred_fallthru
        _
      %p436 = scmp.lt.s32.totalorder %s28, 2
      // Predicated region
      $region61: #{tpu_custom_call.1} parent=5 // pred_check
        %p437 = pneg %p436
      $region62: #{tpu_custom_call.1} parent=5 // pred_check_branch
        %439 = sbr.rel (%p437) target = $region64
      $region63: #{tpu_custom_call.1} parent=5 // pred_region
        // Predicated region
        $region65: #{tpu_custom_call.1} parent=63 // pred_check
          %p440 = pneg %p48
        $region66: #{tpu_custom_call.1} parent=63 // pred_check_branch
          %442 = sbr.rel (%p440) target = $region68
        $region67: #{tpu_custom_call.1} parent=63 // pred_region
          %s443 = sand.u32 %s38, 1
          %s444 = scalar_lea.sflag [#allocation5], %s443
          %s445 = sand.u32 %s38, 1
          %s446 = smul.addr %s445, 128
          %s447 = scalar_lea.vmem [#allocation4], %s446
          %s448 = smul.u32 8, %s28
          %450 = vsyncadd %s444, 0
          %s451 = smul.addr %s448, 2
          %s452 = smul.addr %s451, 8
          %s453 = scalar_lea.hbm %s0, %s452
          %s454 = sshll.u32 %s453, 4
          %s455 = int_to_ptr.hbm [resolvable:$true] %s454
          %s456 = sshll.u32 %s447, 4
          %s457 = int_to_ptr.vmem [resolvable:$true] %s456
          %462 = dma.hbm_to_vmem [thread:$0]  %s455, 2048, %s457, %s444, 128, 128, 8
        $region68: #{tpu_custom_call.1} parent=63 // pred_fallthru
          _
      $region64: #{tpu_custom_call.1} parent=5 // pred_fallthru
        _
      %p463 = scmp.le.s32.totalorder 1, %s28
      %p464 = scmp.lt.s32.totalorder %s28, 3
      %p465 = pnand %p463, %p464
      %p466 = pneg %p465
      // Predicated region
      $region69: #{tpu_custom_call.1} parent=5 // pred_check
        _
      $region70: #{tpu_custom_call.1} parent=5 // pred_check_branch
        %468 = sbr.rel (%p465) target = $region72
      $region71: #{tpu_custom_call.1} parent=5 // pred_region
        %s469 = ssub.s32 %s28, 1
        %s470 = sand.u32 %s41, 1
        %s471 = scalar_lea.sflag [#allocation5], %s470
        %s472 = sand.u32 %s41, 1
        %s473 = smul.addr %s472, 128
        %s474 = scalar_lea.vmem [#allocation4], %s473
        // Predicated region
        $region73: #{tpu_custom_call.1} parent=71 // pred_check
          %p475 = pneg %p54
        $region74: #{tpu_custom_call.1} parent=71 // pred_check_branch
          %477 = sbr.rel (%p475) target = $region76
        $region75: #{tpu_custom_call.1} parent=71 // pred_region
          %479 = dma.done %s471, 2048
        $region76: #{tpu_custom_call.1} parent=71 // pred_fallthru
          _
        // Predicated region
        $region77: #{tpu_custom_call.1} parent=71 // pred_check
          %p480 = pneg %p75
        $region78: #{tpu_custom_call.1} parent=71 // pred_check_branch
          %482 = sbr.rel (%p480) target = $region80
        $region79: #{tpu_custom_call.1} parent=71 // pred_region
          %484 = dma.done [#allocation8], 3072
        $region80: #{tpu_custom_call.1} parent=71 // pred_fallthru
          _
        // Predicated region
        $region81: #{tpu_custom_call.1} parent=71 // pred_check
          %p485 = pneg %p96
        $region82: #{tpu_custom_call.1} parent=71 // pred_check_branch
          %487 = sbr.rel (%p485) target = $region84
        $region83: #{tpu_custom_call.1} parent=71 // pred_region
          %489 = dma.done [#allocation8], 48
        $region84: #{tpu_custom_call.1} parent=71 // pred_fallthru
          _
        // Predicated region
        $region85: #{tpu_custom_call.1} parent=71 // pred_check
          %p490 = pneg %p117
        $region86: #{tpu_custom_call.1} parent=71 // pred_check_branch
          %492 = sbr.rel (%p490) target = $region88
        $region87: #{tpu_custom_call.1} parent=71 // pred_region
          %494 = dma.done [#allocation11], 1024
        $region88: #{tpu_custom_call.1} parent=71 // pred_fallthru
          _
        // Predicated region
        $region89: #{tpu_custom_call.1} parent=71 // pred_check
          %p495 = pneg %p201
        $region90: #{tpu_custom_call.1} parent=71 // pred_check_branch
          %497 = sbr.rel (%p495) target = $region92
        $region91: #{tpu_custom_call.1} parent=71 // pred_region
          %499 = dma.done [#allocation11], 4096
        $region92: #{tpu_custom_call.1} parent=71 // pred_fallthru
          _
        // Predicated region
        $region93: #{tpu_custom_call.1} parent=71 // pred_check
          %p500 = pneg %p243
        $region94: #{tpu_custom_call.1} parent=71 // pred_check_branch
          %502 = sbr.rel (%p500) target = $region96
        $region95: #{tpu_custom_call.1} parent=71 // pred_region
          %504 = dma.done [#allocation14], 4096
        $region96: #{tpu_custom_call.1} parent=71 // pred_fallthru
          _
        %s505 = sand.u32 %s41, 1
        %s506 = scalar_lea.sflag [#allocation5], %s505
        %s507 = sand.u32 %s41, 1
        %s508 = smul.addr %s507, 128
        %s509 = scalar_lea.vmem [#allocation4], %s508
        %p510 = pneg %p54
        %p511 = pneg %p51
        %p512 = pneg %p75
        %p513 = pneg %p72
        %p514 = pneg %p96
        %p515 = pneg %p93
        %p516 = pneg %p117
        %p517 = pneg %p114
        %p518 = pneg %p138
        %p519 = pneg %p135
        %p520 = pneg %p159
        %p521 = pneg %p156
        %p522 = pneg %p180
        %p523 = pneg %p177
        %p524 = pneg %p201
        %p525 = pneg %p198
        %p526 = pneg %p222
        %p527 = pneg %p219
        %p528 = pneg %p243
        %p529 = pneg %p240
        %p530 = pneg %p264
        %p531 = pneg %p261
        %p532 = pneg %p285
        %p533 = pneg %p282
        %p534 = pneg %p306
        %p535 = pneg %p303
        %p536 = pneg %p332
        %p537 = pneg %p329
        %s538 = sand.u32 %s319, 1
        %s539 = scalar_lea.sflag [#allocation6], %s538
        %s540 = sand.u32 %s319, 1
        %s541 = smul.addr %s540, 128
        %s542 = scalar_lea.vmem [#allocation15], %s541
        %s543 = smul.u32 8, %s33
        %s544 = smul.u32 8, %s33
        %v546 = vld [vmem:[%s474] sm:$0xff]
        %v547 = vld [vmem:[%s474 + $0x8] sm:$0xff]
        %v548 = vld [vmem:[%s474 + $0x10] sm:$0xff]
        %v549 = vld [vmem:[%s474 + $0x18] sm:$0xff]
        %v550 = vld [vmem:[%s474 + $0x20] sm:$0xff]
        %v551 = vld [vmem:[%s474 + $0x28] sm:$0xff]
        %v552 = vld [vmem:[%s474 + $0x30] sm:$0xff]
        %v553 = vld [vmem:[%s474 + $0x38] sm:$0xff]
        %v554 = vld [vmem:[%s474 + $0x40] sm:$0xff]
        %v555 = vld [vmem:[%s474 + $0x48] sm:$0xff]
        %v556 = vld [vmem:[%s474 + $0x50] sm:$0xff]
        %v557 = vld [vmem:[%s474 + $0x58] sm:$0xff]
        %v558 = vld [vmem:[%s474 + $0x60] sm:$0xff]
        %v559 = vld [vmem:[%s474 + $0x68] sm:$0xff]
        %v560 = vld [vmem:[%s474 + $0x70] sm:$0xff]
        %v561 = vld [vmem:[%s474 + $0x78] sm:$0xff]
        %v562 = vpack.c.bf16 %v547, %v546
        %v563 = vpack.c.bf16 %v549, %v548
        %v564 = vpack.c.bf16 %v551, %v550
        %v565 = vpack.c.bf16 %v553, %v552
        %v566 = vpack.c.bf16 %v555, %v554
        %v567 = vpack.c.bf16 %v557, %v556
        %v568 = vpack.c.bf16 %v559, %v558
        %v569 = vpack.c.bf16 %v561, %v560
        %v570 = vld [vmem:[#allocation7] sm:$0xff]
        %v571 = vld [vmem:[#allocation7 + $0x8] sm:$0xf]
        %v572 = vld [vmem:[#allocation7 + $0xc] sm:$0xff]
        %v573 = vld [vmem:[#allocation7 + $0x14] sm:$0xf]
        %v574 = vld [vmem:[#allocation7 + $0x18] sm:$0xff]
        %v575 = vld [vmem:[#allocation7 + $0x20] sm:$0xf]
        %v576 = vld [vmem:[#allocation7 + $0x24] sm:$0xff]
        %v577 = vld [vmem:[#allocation7 + $0x2c] sm:$0xf]
        %v578 = vld [vmem:[#allocation7 + $0x30] sm:$0xff]
        %v579 = vld [vmem:[#allocation7 + $0x38] sm:$0xf]
        %v580 = vld [vmem:[#allocation7 + $0x3c] sm:$0xff]
        %v581 = vld [vmem:[#allocation7 + $0x44] sm:$0xf]
        %v582 = vld [vmem:[#allocation7 + $0x48] sm:$0xff]
        %v583 = vld [vmem:[#allocation7 + $0x50] sm:$0xf]
        %v584 = vld [vmem:[#allocation7 + $0x54] sm:$0xff]
        %v585 = vld [vmem:[#allocation7 + $0x5c] sm:$0xf]
        %v586 = vld [vmem:[#allocation7 + $0x60] sm:$0xff]
        %v587 = vld [vmem:[#allocation7 + $0x68] sm:$0xf]
        %v588 = vld [vmem:[#allocation7 + $0x6c] sm:$0xff]
        %v589 = vld [vmem:[#allocation7 + $0x74] sm:$0xf]
        %v590 = vld [vmem:[#allocation7 + $0x78] sm:$0xff]
        %v591 = vld [vmem:[#allocation7 + $0x80] sm:$0xf]
        %v592 = vld [vmem:[#allocation7 + $0x84] sm:$0xff]
        %v593 = vld [vmem:[#allocation7 + $0x8c] sm:$0xf]
        %v594 = vld [vmem:[#allocation7 + $0x90] sm:$0xff]
        %v595 = vld [vmem:[#allocation7 + $0x98] sm:$0xf]
        %v596 = vld [vmem:[#allocation7 + $0x9c] sm:$0xff]
        %v597 = vld [vmem:[#allocation7 + $0xa4] sm:$0xf]
        %v598 = vld [vmem:[#allocation7 + $0xa8] sm:$0xff]
        %v599 = vld [vmem:[#allocation7 + $0xb0] sm:$0xf]
        %v600 = vld [vmem:[#allocation7 + $0xb4] sm:$0xff]
        %v601 = vld [vmem:[#allocation7 + $0xbc] sm:$0xf]
        %v602 = vld [vmem:[#allocation9] sm:$0x7]
        %v604 = vperm.slane %v602, 0
        %v605 = vperm.slane %v602, 1
        %v606 = vperm.slane %v602, 2
        %v642 = vunpack.c.l.b16 %v570
        %v643 = vunpack.c.h.b16 %v570
        %v644 = vunpack.c.l.b16 %v571
        %v645 = vunpack.c.l.b16 %v572
        %v646 = vunpack.c.h.b16 %v572
        %v647 = vunpack.c.l.b16 %v573
        %v648 = vunpack.c.l.b16 %v574
        %v649 = vunpack.c.h.b16 %v574
        %v650 = vunpack.c.l.b16 %v575
        %v651 = vunpack.c.l.b16 %v576
        %v652 = vunpack.c.h.b16 %v576
        %v653 = vunpack.c.l.b16 %v577
        %v654 = vunpack.c.l.b16 %v578
        %v655 = vunpack.c.h.b16 %v578
        %v656 = vunpack.c.l.b16 %v579
        %v657 = vunpack.c.l.b16 %v580
        %v658 = vunpack.c.h.b16 %v580
        %v659 = vunpack.c.l.b16 %v581
        %v660 = vunpack.c.l.b16 %v582
        %v661 = vunpack.c.h.b16 %v582
        %v662 = vunpack.c.l.b16 %v583
        %v663 = vunpack.c.l.b16 %v584
        %v664 = vunpack.c.h.b16 %v584
        %v665 = vunpack.c.l.b16 %v585
        %v666 = vunpack.c.l.b16 %v586
        %v667 = vunpack.c.h.b16 %v586
        %v668 = vunpack.c.l.b16 %v587
        %v669 = vunpack.c.l.b16 %v588
        %v670 = vunpack.c.h.b16 %v588
        %v671 = vunpack.c.l.b16 %v589
        %v672 = vunpack.c.l.b16 %v590
        %v673 = vunpack.c.h.b16 %v590
        %v674 = vunpack.c.l.b16 %v591
        %v675 = vunpack.c.l.b16 %v592
        %v676 = vunpack.c.h.b16 %v592
        %v677 = vunpack.c.l.b16 %v593
        %v678 = vunpack.c.l.b16 %v594
        %v679 = vunpack.c.h.b16 %v594
        %v680 = vunpack.c.l.b16 %v595
        %v681 = vunpack.c.l.b16 %v596
        %v682 = vunpack.c.h.b16 %v596
        %v683 = vunpack.c.l.b16 %v597
        %v684 = vunpack.c.l.b16 %v598
        %v685 = vunpack.c.h.b16 %v598
        %v686 = vunpack.c.l.b16 %v599
        %v687 = vunpack.c.l.b16 %v600
        %v688 = vunpack.c.h.b16 %v600
        %v689 = vunpack.c.l.b16 %v601
        %v690 = vpack.c.b16 %v645, %v642
        %v691 = vpack.c.b16 %v646, %v643
        %v692 = vpack.c.b16 %v647, %v644
        %v693 = vpack.c.b16 %v651, %v648
        %v694 = vpack.c.b16 %v652, %v649
        %v695 = vpack.c.b16 %v653, %v650
        %v696 = vpack.c.b16 %v657, %v654
        %v697 = vpack.c.b16 %v658, %v655
        %v698 = vpack.c.b16 %v659, %v656
        %v699 = vpack.c.b16 %v663, %v660
        %v700 = vpack.c.b16 %v664, %v661
        %v701 = vpack.c.b16 %v665, %v662
        %v702 = vpack.c.b16 %v669, %v666
        %v703 = vpack.c.b16 %v670, %v667
        %v704 = vpack.c.b16 %v671, %v668
        %v705 = vpack.c.b16 %v675, %v672
        %v706 = vpack.c.b16 %v676, %v673
        %v707 = vpack.c.b16 %v677, %v674
        %v708 = vpack.c.b16 %v681, %v678
        %v709 = vpack.c.b16 %v682, %v679
        %v710 = vpack.c.b16 %v683, %v680
        %v711 = vpack.c.b16 %v687, %v684
        %v712 = vpack.c.b16 %v688, %v685
        %v713 = vpack.c.b16 %v689, %v686
        %738 = vmatpush.bf16.msra.mxu0 %v711
        %739 = vmatpush.bf16.msra.mxu0 %v708
        %740 = vmatpush.bf16.msra.mxu0 %v705
        %741 = vmatpush.bf16.msra.mxu0 %v702
        %742 = vmatpush.bf16.msra.mxu0 %v699
        %743 = vmatpush.bf16.msra.mxu0 %v696
        %744 = vmatpush.bf16.msra.mxu0 %v693
        %745 = vmatpush.bf16.msra.mxu0 %v690
        %746 = vmatmul.bf16.gmra.mxu0 %v562
        %v747 = vpop.f32.mrf.mxu0
        %v748 = vadd.f32 %v604, %v747
        %v749 = vpop.f32.mrf.mxu0
        %v750 = vadd.f32 %v604, %v749
        %751 = vmatmul.bf16.gmra.mxu0 %v563
        %v752 = vpop.f32.mrf.mxu0
        %v753 = vadd.f32 %v604, %v752
        %v754 = vpop.f32.mrf.mxu0
        %v755 = vadd.f32 %v604, %v754
        %756 = vmatmul.bf16.gmra.mxu0 %v564
        %v757 = vpop.f32.mrf.mxu0
        %v758 = vadd.f32 %v604, %v757
        %v759 = vpop.f32.mrf.mxu0
        %v760 = vadd.f32 %v604, %v759
        %761 = vmatmul.bf16.gmra.mxu0 %v565
        %v762 = vpop.f32.mrf.mxu0
        %v763 = vadd.f32 %v604, %v762
        %v764 = vpop.f32.mrf.mxu0
        %v765 = vadd.f32 %v604, %v764
        %766 = vmatmul.bf16.gmra.mxu0 %v566
        %v767 = vpop.f32.mrf.mxu0
        %v768 = vadd.f32 %v604, %v767
        %v769 = vpop.f32.mrf.mxu0
        %v770 = vadd.f32 %v604, %v769
        %771 = vmatmul.bf16.gmra.mxu0 %v567
        %v772 = vpop.f32.mrf.mxu0
        %v773 = vadd.f32 %v604, %v772
        %v774 = vpop.f32.mrf.mxu0
        %v775 = vadd.f32 %v604, %v774
        %776 = vmatmul.bf16.gmra.mxu0 %v568
        %v777 = vpop.f32.mrf.mxu0
        %v778 = vadd.f32 %v604, %v777
        %v779 = vpop.f32.mrf.mxu0
        %v780 = vadd.f32 %v604, %v779
        %781 = vmatmul.bf16.gmra.mxu0 %v569
        %v782 = vpop.f32.mrf.mxu0
        %v783 = vadd.f32 %v604, %v782
        %v784 = vpop.f32.mrf.mxu0
        %v785 = vadd.f32 %v604, %v784
        %786 = vdwg.mxu0
        %787 = vmatpush.bf16.msra.mxu0 %v712
        %788 = vmatpush.bf16.msra.mxu0 %v709
        %789 = vmatpush.bf16.msra.mxu0 %v706
        %790 = vmatpush.bf16.msra.mxu0 %v703
        %791 = vmatpush.bf16.msra.mxu0 %v700
        %792 = vmatpush.bf16.msra.mxu0 %v697
        %793 = vmatpush.bf16.msra.mxu0 %v694
        %794 = vmatpush.bf16.msra.mxu0 %v691
        %795 = vmatmul.bf16.gmra.mxu0 %v562
        %v796 = vpop.f32.mrf.mxu0
        %v797 = vadd.f32 %v605, %v796
        %v798 = vpop.f32.mrf.mxu0
        %v799 = vadd.f32 %v605, %v798
        %800 = vmatmul.bf16.gmra.mxu0 %v563
        %v801 = vpop.f32.mrf.mxu0
        %v802 = vadd.f32 %v605, %v801
        %v803 = vpop.f32.mrf.mxu0
        %v804 = vadd.f32 %v605, %v803
        %805 = vmatmul.bf16.gmra.mxu0 %v564
        %v806 = vpop.f32.mrf.mxu0
        %v807 = vadd.f32 %v605, %v806
        %v808 = vpop.f32.mrf.mxu0
        %v809 = vadd.f32 %v605, %v808
        %810 = vmatmul.bf16.gmra.mxu0 %v565
        %v811 = vpop.f32.mrf.mxu0
        %v812 = vadd.f32 %v605, %v811
        %v813 = vpop.f32.mrf.mxu0
        %v814 = vadd.f32 %v605, %v813
        %815 = vmatmul.bf16.gmra.mxu0 %v566
        %v816 = vpop.f32.mrf.mxu0
        %v817 = vadd.f32 %v605, %v816
        %v818 = vpop.f32.mrf.mxu0
        %v819 = vadd.f32 %v605, %v818
        %820 = vmatmul.bf16.gmra.mxu0 %v567
        %v821 = vpop.f32.mrf.mxu0
        %v822 = vadd.f32 %v605, %v821
        %v823 = vpop.f32.mrf.mxu0
        %v824 = vadd.f32 %v605, %v823
        %825 = vmatmul.bf16.gmra.mxu0 %v568
        %v826 = vpop.f32.mrf.mxu0
        %v827 = vadd.f32 %v605, %v826
        %v828 = vpop.f32.mrf.mxu0
        %v829 = vadd.f32 %v605, %v828
        %830 = vmatmul.bf16.gmra.mxu0 %v569
        %v831 = vpop.f32.mrf.mxu0
        %v832 = vadd.f32 %v605, %v831
        %v833 = vpop.f32.mrf.mxu0
        %v834 = vadd.f32 %v605, %v833
        %835 = vdwg.mxu0
        %836 = vmatpush.bf16.msra.mxu0 %v713
        %837 = vmatpush.bf16.msra.mxu0 %v710
        %838 = vmatpush.bf16.msra.mxu0 %v707
        %839 = vmatpush.bf16.msra.mxu0 %v704
        %840 = vmatpush.bf16.msra.mxu0 %v701
        %841 = vmatpush.bf16.msra.mxu0 %v698
        %842 = vmatpush.bf16.msra.mxu0 %v695
        %843 = vmatpush.bf16.msra.mxu0 %v692
        %844 = vmatmul.bf16.gmra.mxu0 %v562
        %v845 = vpop.f32.mrf.mxu0
        %v846 = vadd.f32 %v606, %v845
        %v847 = vpop.f32.mrf.mxu0
        %v848 = vadd.f32 %v606, %v847
        %849 = vmatmul.bf16.gmra.mxu0 %v563
        %v850 = vpop.f32.mrf.mxu0
        %v851 = vadd.f32 %v606, %v850
        %v852 = vpop.f32.mrf.mxu0
        %v853 = vadd.f32 %v606, %v852
        %854 = vmatmul.bf16.gmra.mxu0 %v564
        %v855 = vpop.f32.mrf.mxu0
        %v856 = vadd.f32 %v606, %v855
        %v857 = vpop.f32.mrf.mxu0
        %v858 = vadd.f32 %v606, %v857
        %859 = vmatmul.bf16.gmra.mxu0 %v565
        %v860 = vpop.f32.mrf.mxu0
        %v861 = vadd.f32 %v606, %v860
        %v862 = vpop.f32.mrf.mxu0
        %v863 = vadd.f32 %v606, %v862
        %864 = vmatmul.bf16.gmra.mxu0 %v566
        %v865 = vpop.f32.mrf.mxu0
        %v866 = vadd.f32 %v606, %v865
        %v867 = vpop.f32.mrf.mxu0
        %v868 = vadd.f32 %v606, %v867
        %869 = vmatmul.bf16.gmra.mxu0 %v567
        %v870 = vpop.f32.mrf.mxu0
        %v871 = vadd.f32 %v606, %v870
        %v872 = vpop.f32.mrf.mxu0
        %v873 = vadd.f32 %v606, %v872
        %874 = vmatmul.bf16.gmra.mxu0 %v568
        %v875 = vpop.f32.mrf.mxu0
        %v876 = vadd.f32 %v606, %v875
        %v877 = vpop.f32.mrf.mxu0
        %v878 = vadd.f32 %v606, %v877
        %879 = vmatmul.bf16.gmra.mxu0 %v569
        %v880 = vpop.f32.mrf.mxu0
        %v881 = vadd.f32 %v606, %v880
        %v882 = vpop.f32.mrf.mxu0
        %v883 = vadd.f32 %v606, %v882
        %884 = vdwg.mxu0
        %v885 = vpack.c.bf16 %v797, %v748
        %v886 = vpack.c.bf16 %v846, %v846
        %v887 = vpack.c.bf16 %v799, %v750
        %v888 = vpack.c.bf16 %v848, %v848
        %v889 = vpack.c.bf16 %v802, %v753
        %v890 = vpack.c.bf16 %v851, %v851
        %v891 = vpack.c.bf16 %v804, %v755
        %v892 = vpack.c.bf16 %v853, %v853
        %v893 = vpack.c.bf16 %v807, %v758
        %v894 = vpack.c.bf16 %v856, %v856
        %v895 = vpack.c.bf16 %v809, %v760
        %v896 = vpack.c.bf16 %v858, %v858
        %v897 = vpack.c.bf16 %v812, %v763
        %v898 = vpack.c.bf16 %v861, %v861
        %v899 = vpack.c.bf16 %v814, %v765
        %v900 = vpack.c.bf16 %v863, %v863
        %v901 = vpack.c.bf16 %v817, %v768
        %v902 = vpack.c.bf16 %v866, %v866
        %v903 = vpack.c.bf16 %v819, %v770
        %v904 = vpack.c.bf16 %v868, %v868
        %v905 = vpack.c.bf16 %v822, %v773
        %v906 = vpack.c.bf16 %v871, %v871
        %v907 = vpack.c.bf16 %v824, %v775
        %v908 = vpack.c.bf16 %v873, %v873
        %v909 = vpack.c.bf16 %v827, %v778
        %v910 = vpack.c.bf16 %v876, %v876
        %v911 = vpack.c.bf16 %v829, %v780
        %v912 = vpack.c.bf16 %v878, %v878
        %v913 = vpack.c.bf16 %v832, %v783
        %v914 = vpack.c.bf16 %v881, %v881
        %v915 = vpack.c.bf16 %v834, %v785
        %v916 = vpack.c.bf16 %v883, %v883
        %917 = vst [vmem:[#allocation2] sm:$0xff] %v885
        %918 = vst [vmem:[#allocation2 + $0x8] sm:$0xf] %v886
        %919 = vst [vmem:[#allocation2 + $0xc] sm:$0xff] %v887
        %920 = vst [vmem:[#allocation2 + $0x14] sm:$0xf] %v888
        %921 = vst [vmem:[#allocation2 + $0x18] sm:$0xff] %v889
        %922 = vst [vmem:[#allocation2 + $0x20] sm:$0xf] %v890
        %923 = vst [vmem:[#allocation2 + $0x24] sm:$0xff] %v891
        %924 = vst [vmem:[#allocation2 + $0x2c] sm:$0xf] %v892
        %925 = vst [vmem:[#allocation2 + $0x30] sm:$0xff] %v893
        %926 = vst [vmem:[#allocation2 + $0x38] sm:$0xf] %v894
        %927 = vst [vmem:[#allocation2 + $0x3c] sm:$0xff] %v895
        %928 = vst [vmem:[#allocation2 + $0x44] sm:$0xf] %v896
        %929 = vst [vmem:[#allocation2 + $0x48] sm:$0xff] %v897
        %930 = vst [vmem:[#allocation2 + $0x50] sm:$0xf] %v898
        %931 = vst [vmem:[#allocation2 + $0x54] sm:$0xff] %v899
        %932 = vst [vmem:[#allocation2 + $0x5c] sm:$0xf] %v900
        %933 = vst [vmem:[#allocation2 + $0x60] sm:$0xff] %v901
        %934 = vst [vmem:[#allocation2 + $0x68] sm:$0xf] %v902
        %935 = vst [vmem:[#allocation2 + $0x6c] sm:$0xff] %v903
        %936 = vst [vmem:[#allocation2 + $0x74] sm:$0xf] %v904
        %937 = vst [vmem:[#allocation2 + $0x78] sm:$0xff] %v905
        %938 = vst [vmem:[#allocation2 + $0x80] sm:$0xf] %v906
        %939 = vst [vmem:[#allocation2 + $0x84] sm:$0xff] %v907
        %940 = vst [vmem:[#allocation2 + $0x8c] sm:$0xf] %v908
        %941 = vst [vmem:[#allocation2 + $0x90] sm:$0xff] %v909
        %942 = vst [vmem:[#allocation2 + $0x98] sm:$0xf] %v910
        %943 = vst [vmem:[#allocation2 + $0x9c] sm:$0xff] %v911
        %944 = vst [vmem:[#allocation2 + $0xa4] sm:$0xf] %v912
        %945 = vst [vmem:[#allocation2 + $0xa8] sm:$0xff] %v913
        %946 = vst [vmem:[#allocation2 + $0xb0] sm:$0xf] %v914
        %947 = vst [vmem:[#allocation2 + $0xb4] sm:$0xff] %v915
        %948 = vst [vmem:[#allocation2 + $0xbc] sm:$0xf] %v916
        %v949 = vld [vmem:[#allocation2] sm:$0xf]
        %v950 = vld [vmem:[#allocation2 + $0xc] sm:$0xf]
        %v951 = vld [vmem:[#allocation2 + $0x18] sm:$0xf]
        %v952 = vld [vmem:[#allocation2 + $0x24] sm:$0xf]
        %v953 = vld [vmem:[#allocation2 + $0x30] sm:$0xf]
        %v954 = vld [vmem:[#allocation2 + $0x3c] sm:$0xf]
        %v955 = vld [vmem:[#allocation2 + $0x48] sm:$0xf]
        %v956 = vld [vmem:[#allocation2 + $0x54] sm:$0xf]
        %v957 = vld [vmem:[#allocation2 + $0x60] sm:$0xf]
        %v958 = vld [vmem:[#allocation2 + $0x6c] sm:$0xf]
        %v959 = vld [vmem:[#allocation2 + $0x78] sm:$0xf]
        %v960 = vld [vmem:[#allocation2 + $0x84] sm:$0xf]
        %v961 = vld [vmem:[#allocation2 + $0x90] sm:$0xf]
        %v962 = vld [vmem:[#allocation2 + $0x9c] sm:$0xf]
        %v963 = vld [vmem:[#allocation2 + $0xa8] sm:$0xf]
        %v964 = vld [vmem:[#allocation2 + $0xb4] sm:$0xf]
        %v965 = vld [vmem:[#allocation2 + $0x4] sm:$0xf]
        %v966 = vld [vmem:[#allocation2 + $0x10] sm:$0xf]
        %v967 = vld [vmem:[#allocation2 + $0x1c] sm:$0xf]
        %v968 = vld [vmem:[#allocation2 + $0x28] sm:$0xf]
        %v969 = vld [vmem:[#allocation2 + $0x34] sm:$0xf]
        %v970 = vld [vmem:[#allocation2 + $0x40] sm:$0xf]
        %v971 = vld [vmem:[#allocation2 + $0x4c] sm:$0xf]
        %v972 = vld [vmem:[#allocation2 + $0x58] sm:$0xf]
        %v973 = vld [vmem:[#allocation2 + $0x64] sm:$0xf]
        %v974 = vld [vmem:[#allocation2 + $0x70] sm:$0xf]
        %v975 = vld [vmem:[#allocation2 + $0x7c] sm:$0xf]
        %v976 = vld [vmem:[#allocation2 + $0x88] sm:$0xf]
        %v977 = vld [vmem:[#allocation2 + $0x94] sm:$0xf]
        %v978 = vld [vmem:[#allocation2 + $0xa0] sm:$0xf]
        %v979 = vld [vmem:[#allocation2 + $0xac] sm:$0xf]
        %v980 = vld [vmem:[#allocation2 + $0xb8] sm:$0xf]
        %v981 = vld [vmem:[#allocation2 + $0x8] sm:$0xf]
        %v982 = vld [vmem:[#allocation2 + $0x14] sm:$0xf]
        %v983 = vld [vmem:[#allocation2 + $0x20] sm:$0xf]
        %v984 = vld [vmem:[#allocation2 + $0x2c] sm:$0xf]
        %v985 = vld [vmem:[#allocation2 + $0x38] sm:$0xf]
        %v986 = vld [vmem:[#allocation2 + $0x44] sm:$0xf]
        %v987 = vld [vmem:[#allocation2 + $0x50] sm:$0xf]
        %v988 = vld [vmem:[#allocation2 + $0x5c] sm:$0xf]
        %v989 = vld [vmem:[#allocation2 + $0x68] sm:$0xf]
        %v990 = vld [vmem:[#allocation2 + $0x74] sm:$0xf]
        %v991 = vld [vmem:[#allocation2 + $0x80] sm:$0xf]
        %v992 = vld [vmem:[#allocation2 + $0x8c] sm:$0xf]
        %v993 = vld [vmem:[#allocation2 + $0x98] sm:$0xf]
        %v994 = vld [vmem:[#allocation2 + $0xa4] sm:$0xf]
        %v995 = vld [vmem:[#allocation2 + $0xb0] sm:$0xf]
        %v996 = vld [vmem:[#allocation2 + $0xbc] sm:$0xf]
        %v999 = vunpack.c.l.b16 %v949
        %v1000 = vunpack.c.l.b16 %v950
        %v1001 = vpack.c.b16 %v1000, %v999
        %v1004 = vunpack.c.l.b16 %v965
        %v1005 = vunpack.c.l.b16 %v966
        %v1006 = vpack.c.b16 %v1005, %v1004
        %vm1007 = vcmask 130048
        %v1009 = vsel %vm1007, %v1001, 0
        %v1012 = vsel %vm1007, %v1006, 0
        %1014 = vmatpush.bf16.xpose.msra.mxu0 0
        %1015 = vmatpush.bf16.xpose.msra.mxu0 0
        %1016 = vmatpush.bf16.xpose.msra.mxu0 0
        %1017 = vmatpush.bf16.xpose.msra.mxu0 0
        %1018 = vmatpush.bf16.xpose.msra.mxu0 0
        %1019 = vmatpush.bf16.xpose.msra.mxu0 0
        %1020 = vmatpush.bf16.xpose.msra.mxu0 0
        %1021 = vmatpush.bf16.xpose.msra.mxu0 %v1012
        %1022 = vmatmul.bf16.gmra.mxu0 %v1009
        %v1023 = vpop.f32.mrf.mxu0
        %v1024 = vadd.f32 0.0, %v1023
        %v1025 = vpop.f32.mrf.mxu0
        %v1026 = vadd.f32 0.0, %v1025
        %1027 = vdwg.mxu0
        %v1030 = vunpack.c.l.b16 %v951
        %v1031 = vunpack.c.l.b16 %v952
        %v1032 = vpack.c.b16 %v1031, %v1030
        %v1035 = vunpack.c.l.b16 %v967
        %v1036 = vunpack.c.l.b16 %v968
        %v1037 = vpack.c.b16 %v1036, %v1035
        %v1039 = vsel %vm1007, %v1032, 0
        %v1042 = vsel %vm1007, %v1037, 0
        %1044 = vmatpush.bf16.xpose.msra.mxu0 0
        %1045 = vmatpush.bf16.xpose.msra.mxu0 0
        %1046 = vmatpush.bf16.xpose.msra.mxu0 0
        %1047 = vmatpush.bf16.xpose.msra.mxu0 0
        %1048 = vmatpush.bf16.xpose.msra.mxu0 0
        %1049 = vmatpush.bf16.xpose.msra.mxu0 0
        %1050 = vmatpush.bf16.xpose.msra.mxu0 0
        %1051 = vmatpush.bf16.xpose.msra.mxu0 %v1042
        %1052 = vmatmul.bf16.gmra.mxu0 %v1039
        %v1053 = vpop.f32.mrf.mxu0
        %v1054 = vadd.f32 0.0, %v1053
        %v1055 = vpop.f32.mrf.mxu0
        %v1056 = vadd.f32 0.0, %v1055
        %1057 = vdwg.mxu0
        %v1060 = vunpack.c.l.b16 %v953
        %v1061 = vunpack.c.l.b16 %v954
        %v1062 = vpack.c.b16 %v1061, %v1060
        %v1065 = vunpack.c.l.b16 %v969
        %v1066 = vunpack.c.l.b16 %v970
        %v1067 = vpack.c.b16 %v1066, %v1065
        %v1069 = vsel %vm1007, %v1062, 0
        %v1072 = vsel %vm1007, %v1067, 0
        %1074 = vmatpush.bf16.xpose.msra.mxu0 0
        %1075 = vmatpush.bf16.xpose.msra.mxu0 0
        %1076 = vmatpush.bf16.xpose.msra.mxu0 0
        %1077 = vmatpush.bf16.xpose.msra.mxu0 0
        %1078 = vmatpush.bf16.xpose.msra.mxu0 0
        %1079 = vmatpush.bf16.xpose.msra.mxu0 0
        %1080 = vmatpush.bf16.xpose.msra.mxu0 0
        %1081 = vmatpush.bf16.xpose.msra.mxu0 %v1072
        %1082 = vmatmul.bf16.gmra.mxu0 %v1069
        %v1083 = vpop.f32.mrf.mxu0
        %v1084 = vadd.f32 0.0, %v1083
        %v1085 = vpop.f32.mrf.mxu0
        %v1086 = vadd.f32 0.0, %v1085
        %1087 = vdwg.mxu0
        %v1090 = vunpack.c.l.b16 %v955
        %v1091 = vunpack.c.l.b16 %v956
        %v1092 = vpack.c.b16 %v1091, %v1090
        %v1095 = vunpack.c.l.b16 %v971
        %v1096 = vunpack.c.l.b16 %v972
        %v1097 = vpack.c.b16 %v1096, %v1095
        %v1099 = vsel %vm1007, %v1092, 0
        %v1102 = vsel %vm1007, %v1097, 0
        %1104 = vmatpush.bf16.xpose.msra.mxu0 0
        %1105 = vmatpush.bf16.xpose.msra.mxu0 0
        %1106 = vmatpush.bf16.xpose.msra.mxu0 0
        %1107 = vmatpush.bf16.xpose.msra.mxu0 0
        %1108 = vmatpush.bf16.xpose.msra.mxu0 0
        %1109 = vmatpush.bf16.xpose.msra.mxu0 0
        %1110 = vmatpush.bf16.xpose.msra.mxu0 0
        %1111 = vmatpush.bf16.xpose.msra.mxu0 %v1102
        %1112 = vmatmul.bf16.gmra.mxu0 %v1099
        %v1113 = vpop.f32.mrf.mxu0
        %v1114 = vadd.f32 0.0, %v1113
        %v1115 = vpop.f32.mrf.mxu0
        %v1116 = vadd.f32 0.0, %v1115
        %1117 = vdwg.mxu0
        %v1120 = vunpack.c.l.b16 %v957
        %v1121 = vunpack.c.l.b16 %v958
        %v1122 = vpack.c.b16 %v1121, %v1120
        %v1125 = vunpack.c.l.b16 %v973
        %v1126 = vunpack.c.l.b16 %v974
        %v1127 = vpack.c.b16 %v1126, %v1125
        %v1129 = vsel %vm1007, %v1122, 0
        %v1132 = vsel %vm1007, %v1127, 0
        %1134 = vmatpush.bf16.xpose.msra.mxu0 0
        %1135 = vmatpush.bf16.xpose.msra.mxu0 0
        %1136 = vmatpush.bf16.xpose.msra.mxu0 0
        %1137 = vmatpush.bf16.xpose.msra.mxu0 0
        %1138 = vmatpush.bf16.xpose.msra.mxu0 0
        %1139 = vmatpush.bf16.xpose.msra.mxu0 0
        %1140 = vmatpush.bf16.xpose.msra.mxu0 0
        %1141 = vmatpush.bf16.xpose.msra.mxu0 %v1132
        %1142 = vmatmul.bf16.gmra.mxu0 %v1129
        %v1143 = vpop.f32.mrf.mxu0
        %v1144 = vadd.f32 0.0, %v1143
        %v1145 = vpop.f32.mrf.mxu0
        %v1146 = vadd.f32 0.0, %v1145
        %1147 = vdwg.mxu0
        %v1150 = vunpack.c.l.b16 %v959
        %v1151 = vunpack.c.l.b16 %v960
        %v1152 = vpack.c.b16 %v1151, %v1150
        %v1155 = vunpack.c.l.b16 %v975
        %v1156 = vunpack.c.l.b16 %v976
        %v1157 = vpack.c.b16 %v1156, %v1155
        %v1159 = vsel %vm1007, %v1152, 0
        %v1162 = vsel %vm1007, %v1157, 0
        %1164 = vmatpush.bf16.xpose.msra.mxu0 0
        %1165 = vmatpush.bf16.xpose.msra.mxu0 0
        %1166 = vmatpush.bf16.xpose.msra.mxu0 0
        %1167 = vmatpush.bf16.xpose.msra.mxu0 0
        %1168 = vmatpush.bf16.xpose.msra.mxu0 0
        %1169 = vmatpush.bf16.xpose.msra.mxu0 0
        %1170 = vmatpush.bf16.xpose.msra.mxu0 0
        %1171 = vmatpush.bf16.xpose.msra.mxu0 %v1162
        %1172 = vmatmul.bf16.gmra.mxu0 %v1159
        %v1173 = vpop.f32.mrf.mxu0
        %v1174 = vadd.f32 0.0, %v1173
        %v1175 = vpop.f32.mrf.mxu0
        %v1176 = vadd.f32 0.0, %v1175
        %1177 = vdwg.mxu0
        %v1180 = vunpack.c.l.b16 %v961
        %v1181 = vunpack.c.l.b16 %v962
        %v1182 = vpack.c.b16 %v1181, %v1180
        %v1185 = vunpack.c.l.b16 %v977
        %v1186 = vunpack.c.l.b16 %v978
        %v1187 = vpack.c.b16 %v1186, %v1185
        %v1189 = vsel %vm1007, %v1182, 0
        %v1192 = vsel %vm1007, %v1187, 0
        %1194 = vmatpush.bf16.xpose.msra.mxu0 0
        %1195 = vmatpush.bf16.xpose.msra.mxu0 0
        %1196 = vmatpush.bf16.xpose.msra.mxu0 0
        %1197 = vmatpush.bf16.xpose.msra.mxu0 0
        %1198 = vmatpush.bf16.xpose.msra.mxu0 0
        %1199 = vmatpush.bf16.xpose.msra.mxu0 0
        %1200 = vmatpush.bf16.xpose.msra.mxu0 0
        %1201 = vmatpush.bf16.xpose.msra.mxu0 %v1192
        %1202 = vmatmul.bf16.gmra.mxu0 %v1189
        %v1203 = vpop.f32.mrf.mxu0
        %v1204 = vadd.f32 0.0, %v1203
        %v1205 = vpop.f32.mrf.mxu0
        %v1206 = vadd.f32 0.0, %v1205
        %1207 = vdwg.mxu0
        %v1210 = vunpack.c.l.b16 %v963
        %v1211 = vunpack.c.l.b16 %v964
        %v1212 = vpack.c.b16 %v1211, %v1210
        %v1215 = vunpack.c.l.b16 %v979
        %v1216 = vunpack.c.l.b16 %v980
        %v1217 = vpack.c.b16 %v1216, %v1215
        %v1219 = vsel %vm1007, %v1212, 0
        %v1222 = vsel %vm1007, %v1217, 0
        %1224 = vmatpush.bf16.xpose.msra.mxu0 0
        %1225 = vmatpush.bf16.xpose.msra.mxu0 0
        %1226 = vmatpush.bf16.xpose.msra.mxu0 0
        %1227 = vmatpush.bf16.xpose.msra.mxu0 0
        %1228 = vmatpush.bf16.xpose.msra.mxu0 0
        %1229 = vmatpush.bf16.xpose.msra.mxu0 0
        %1230 = vmatpush.bf16.xpose.msra.mxu0 0
        %1231 = vmatpush.bf16.xpose.msra.mxu0 %v1222
        %1232 = vmatmul.bf16.gmra.mxu0 %v1219
        %v1233 = vpop.f32.mrf.mxu0
        %v1234 = vadd.f32 0.0, %v1233
        %v1235 = vpop.f32.mrf.mxu0
        %v1236 = vadd.f32 0.0, %v1235
        %1237 = vdwg.mxu0
        %v1238 = vsel %vm1007, %v1024, -inf
        %1239 = vmax.xlane.f32.xlu0 %v1238
        %v1240 = vpop.xlane.xlu0 %1239
        %v1241 = vsel %vm1007, %v1026, -inf
        %1242 = vmax.xlane.f32.xlu0 %v1241
        %v1243 = vpop.xlane.xlu0 %1242
        %v1244 = vsel %vm1007, %v1054, -inf
        %1245 = vmax.xlane.f32.xlu0 %v1244
        %v1246 = vpop.xlane.xlu0 %1245
        %v1247 = vsel %vm1007, %v1056, -inf
        %1248 = vmax.xlane.f32.xlu0 %v1247
        %v1249 = vpop.xlane.xlu0 %1248
        %v1250 = vsel %vm1007, %v1084, -inf
        %1251 = vmax.xlane.f32.xlu0 %v1250
        %v1252 = vpop.xlane.xlu0 %1251
        %v1253 = vsel %vm1007, %v1086, -inf
        %1254 = vmax.xlane.f32.xlu0 %v1253
        %v1255 = vpop.xlane.xlu0 %1254
        %v1256 = vsel %vm1007, %v1114, -inf
        %1257 = vmax.xlane.f32.xlu0 %v1256
        %v1258 = vpop.xlane.xlu0 %1257
        %v1259 = vsel %vm1007, %v1116, -inf
        %1260 = vmax.xlane.f32.xlu0 %v1259
        %v1261 = vpop.xlane.xlu0 %1260
        %v1262 = vsel %vm1007, %v1144, -inf
        %1263 = vmax.xlane.f32.xlu0 %v1262
        %v1264 = vpop.xlane.xlu0 %1263
        %v1265 = vsel %vm1007, %v1146, -inf
        %1266 = vmax.xlane.f32.xlu0 %v1265
        %v1267 = vpop.xlane.xlu0 %1266
        %v1268 = vsel %vm1007, %v1174, -inf
        %1269 = vmax.xlane.f32.xlu0 %v1268
        %v1270 = vpop.xlane.xlu0 %1269
        %v1271 = vsel %vm1007, %v1176, -inf
        %1272 = vmax.xlane.f32.xlu0 %v1271
        %v1273 = vpop.xlane.xlu0 %1272
        %v1274 = vsel %vm1007, %v1204, -inf
        %1275 = vmax.xlane.f32.xlu0 %v1274
        %v1276 = vpop.xlane.xlu0 %1275
        %v1277 = vsel %vm1007, %v1206, -inf
        %1278 = vmax.xlane.f32.xlu0 %v1277
        %v1279 = vpop.xlane.xlu0 %1278
        %v1280 = vsel %vm1007, %v1234, -inf
        %1281 = vmax.xlane.f32.xlu0 %v1280
        %v1282 = vpop.xlane.xlu0 %1281
        %v1283 = vsel %vm1007, %v1236, -inf
        %1284 = vmax.xlane.f32.xlu0 %v1283
        %v1285 = vpop.xlane.xlu0 %1284
        %v1286 = vsub.f32 %v1024, %v1240
        %v1287 = vsub.f32 %v1026, %v1243
        %v1288 = vsub.f32 %v1054, %v1246
        %v1289 = vsub.f32 %v1056, %v1249
        %v1290 = vsub.f32 %v1084, %v1252
        %v1291 = vsub.f32 %v1086, %v1255
        %v1292 = vsub.f32 %v1114, %v1258
        %v1293 = vsub.f32 %v1116, %v1261
        %v1294 = vsub.f32 %v1144, %v1264
        %v1295 = vsub.f32 %v1146, %v1267
        %v1296 = vsub.f32 %v1174, %v1270
        %v1297 = vsub.f32 %v1176, %v1273
        %v1298 = vsub.f32 %v1204, %v1276
        %v1299 = vsub.f32 %v1206, %v1279
        %v1300 = vsub.f32 %v1234, %v1282
        %v1301 = vsub.f32 %v1236, %v1285
        %v1302 = vmul.f32 %v1286, 1.442695
        %v1303 = vpow.pop %v1302
        %v1304 = vmul.f32 %v1287, 1.442695
        %v1305 = vpow.pop %v1304
        %v1306 = vmul.f32 %v1288, 1.442695
        %v1307 = vpow.pop %v1306
        %v1308 = vmul.f32 %v1289, 1.442695
        %v1309 = vpow.pop %v1308
        %v1310 = vmul.f32 %v1290, 1.442695
        %v1311 = vpow.pop %v1310
        %v1312 = vmul.f32 %v1291, 1.442695
        %v1313 = vpow.pop %v1312
        %v1314 = vmul.f32 %v1292, 1.442695
        %v1315 = vpow.pop %v1314
        %v1316 = vmul.f32 %v1293, 1.442695
        %v1317 = vpow.pop %v1316
        %v1318 = vmul.f32 %v1294, 1.442695
        %v1319 = vpow.pop %v1318
        %v1320 = vmul.f32 %v1295, 1.442695
        %v1321 = vpow.pop %v1320
        %v1322 = vmul.f32 %v1296, 1.442695
        %v1323 = vpow.pop %v1322
        %v1324 = vmul.f32 %v1297, 1.442695
        %v1325 = vpow.pop %v1324
        %v1326 = vmul.f32 %v1298, 1.442695
        %v1327 = vpow.pop %v1326
        %v1328 = vmul.f32 %v1299, 1.442695
        %v1329 = vpow.pop %v1328
        %v1330 = vmul.f32 %v1300, 1.442695
        %v1331 = vpow.pop %v1330
        %v1332 = vmul.f32 %v1301, 1.442695
        %v1333 = vpow.pop %v1332
        %v1334 = vsel %vm1007, %v1303, 0.0
        %1335 = vadd.xlane.f32.xlu0 %v1334
        %v1336 = vpop.xlane.xlu0 %1335
        %v1337 = vsel %vm1007, %v1305, 0.0
        %1338 = vadd.xlane.f32.xlu0 %v1337
        %v1339 = vpop.xlane.xlu0 %1338
        %v1340 = vsel %vm1007, %v1307, 0.0
        %1341 = vadd.xlane.f32.xlu0 %v1340
        %v1342 = vpop.xlane.xlu0 %1341
        %v1343 = vsel %vm1007, %v1309, 0.0
        %1344 = vadd.xlane.f32.xlu0 %v1343
        %v1345 = vpop.xlane.xlu0 %1344
        %v1346 = vsel %vm1007, %v1311, 0.0
        %1347 = vadd.xlane.f32.xlu0 %v1346
        %v1348 = vpop.xlane.xlu0 %1347
        %v1349 = vsel %vm1007, %v1313, 0.0
        %1350 = vadd.xlane.f32.xlu0 %v1349
        %v1351 = vpop.xlane.xlu0 %1350
        %v1352 = vsel %vm1007, %v1315, 0.0
        %1353 = vadd.xlane.f32.xlu0 %v1352
        %v1354 = vpop.xlane.xlu0 %1353
        %v1355 = vsel %vm1007, %v1317, 0.0
        %1356 = vadd.xlane.f32.xlu0 %v1355
        %v1357 = vpop.xlane.xlu0 %1356
        %v1358 = vsel %vm1007, %v1319, 0.0
        %1359 = vadd.xlane.f32.xlu0 %v1358
        %v1360 = vpop.xlane.xlu0 %1359
        %v1361 = vsel %vm1007, %v1321, 0.0
        %1362 = vadd.xlane.f32.xlu0 %v1361
        %v1363 = vpop.xlane.xlu0 %1362
        %v1364 = vsel %vm1007, %v1323, 0.0
        %1365 = vadd.xlane.f32.xlu0 %v1364
        %v1366 = vpop.xlane.xlu0 %1365
        %v1367 = vsel %vm1007, %v1325, 0.0
        %1368 = vadd.xlane.f32.xlu0 %v1367
        %v1369 = vpop.xlane.xlu0 %1368
        %v1370 = vsel %vm1007, %v1327, 0.0
        %1371 = vadd.xlane.f32.xlu0 %v1370
        %v1372 = vpop.xlane.xlu0 %1371
        %v1373 = vsel %vm1007, %v1329, 0.0
        %1374 = vadd.xlane.f32.xlu0 %v1373
        %v1375 = vpop.xlane.xlu0 %1374
        %v1376 = vsel %vm1007, %v1331, 0.0
        %1377 = vadd.xlane.f32.xlu0 %v1376
        %v1378 = vpop.xlane.xlu0 %1377
        %v1379 = vsel %vm1007, %v1333, 0.0
        %1380 = vadd.xlane.f32.xlu0 %v1379
        %v1381 = vpop.xlane.xlu0 %1380
        %v1382 = vrcp.pop %v1336
        %v1383 = vrcp.pop %v1339
        %v1384 = vrcp.pop %v1342
        %v1385 = vrcp.pop %v1345
        %v1386 = vrcp.pop %v1348
        %v1387 = vrcp.pop %v1351
        %v1388 = vrcp.pop %v1354
        %v1389 = vrcp.pop %v1357
        %v1390 = vrcp.pop %v1360
        %v1391 = vrcp.pop %v1363
        %v1392 = vrcp.pop %v1366
        %v1393 = vrcp.pop %v1369
        %v1394 = vrcp.pop %v1372
        %v1395 = vrcp.pop %v1375
        %v1396 = vrcp.pop %v1378
        %v1397 = vrcp.pop %v1381
        %v1398 = vmul.f32 %v1303, %v1382
        %v1399 = vmul.f32 %v1305, %v1383
        %v1400 = vmul.f32 %v1307, %v1384
        %v1401 = vmul.f32 %v1309, %v1385
        %v1402 = vmul.f32 %v1311, %v1386
        %v1403 = vmul.f32 %v1313, %v1387
        %v1404 = vmul.f32 %v1315, %v1388
        %v1405 = vmul.f32 %v1317, %v1389
        %v1406 = vmul.f32 %v1319, %v1390
        %v1407 = vmul.f32 %v1321, %v1391
        %v1408 = vmul.f32 %v1323, %v1392
        %v1409 = vmul.f32 %v1325, %v1393
        %v1410 = vmul.f32 %v1327, %v1394
        %v1411 = vmul.f32 %v1329, %v1395
        %v1412 = vmul.f32 %v1331, %v1396
        %v1413 = vmul.f32 %v1333, %v1397
        %v1414 = vpack.c.bf16 %v1398, %v1398
        %v1415 = vpack.c.bf16 %v1399, %v1399
        %v1416 = vpack.c.bf16 %v1400, %v1400
        %v1417 = vpack.c.bf16 %v1401, %v1401
        %v1418 = vpack.c.bf16 %v1402, %v1402
        %v1419 = vpack.c.bf16 %v1403, %v1403
        %v1420 = vpack.c.bf16 %v1404, %v1404
        %v1421 = vpack.c.bf16 %v1405, %v1405
        %v1422 = vpack.c.bf16 %v1406, %v1406
        %v1423 = vpack.c.bf16 %v1407, %v1407
        %v1424 = vpack.c.bf16 %v1408, %v1408
        %v1425 = vpack.c.bf16 %v1409, %v1409
        %v1426 = vpack.c.bf16 %v1410, %v1410
        %v1427 = vpack.c.bf16 %v1411, %v1411
        %v1428 = vpack.c.bf16 %v1412, %v1412
        %v1429 = vpack.c.bf16 %v1413, %v1413
        %v1432 = vunpack.c.l.b16 %v1414
        %v1433 = vunpack.c.l.b16 %v1415
        %v1434 = vpack.c.b16 %v1433, %v1432
        %v1437 = vunpack.c.l.b16 %v981
        %v1438 = vunpack.c.l.b16 %v982
        %v1439 = vpack.c.b16 %v1438, %v1437
        %v1442 = vsel %vm1007, %v1434, 0
        %1444 = vmatpush.bf16.msra.mxu0 0
        %1445 = vmatpush.bf16.msra.mxu0 0
        %1446 = vmatpush.bf16.msra.mxu0 0
        %1447 = vmatpush.bf16.msra.mxu0 0
        %1448 = vmatpush.bf16.msra.mxu0 0
        %1449 = vmatpush.bf16.msra.mxu0 0
        %1450 = vmatpush.bf16.msra.mxu0 0
        %1451 = vmatpush.bf16.msra.mxu0 %v1439
        %1452 = vmatmul.bf16.gmra.mxu0 %v1442
        %v1453 = vpop.f32.mrf.mxu0
        %v1454 = vadd.f32 0.0, %v1453
        %v1455 = vpop.f32.mrf.mxu0
        %v1456 = vadd.f32 0.0, %v1455
        %1457 = vdwg.mxu0
        %v1460 = vunpack.c.l.b16 %v1416
        %v1461 = vunpack.c.l.b16 %v1417
        %v1462 = vpack.c.b16 %v1461, %v1460
        %v1465 = vunpack.c.l.b16 %v983
        %v1466 = vunpack.c.l.b16 %v984
        %v1467 = vpack.c.b16 %v1466, %v1465
        %v1470 = vsel %vm1007, %v1462, 0
        %1472 = vmatpush.bf16.msra.mxu0 0
        %1473 = vmatpush.bf16.msra.mxu0 0
        %1474 = vmatpush.bf16.msra.mxu0 0
        %1475 = vmatpush.bf16.msra.mxu0 0
        %1476 = vmatpush.bf16.msra.mxu0 0
        %1477 = vmatpush.bf16.msra.mxu0 0
        %1478 = vmatpush.bf16.msra.mxu0 0
        %1479 = vmatpush.bf16.msra.mxu0 %v1467
        %1480 = vmatmul.bf16.gmra.mxu0 %v1470
        %v1481 = vpop.f32.mrf.mxu0
        %v1482 = vadd.f32 0.0, %v1481
        %v1483 = vpop.f32.mrf.mxu0
        %v1484 = vadd.f32 0.0, %v1483
        %1485 = vdwg.mxu0
        %v1488 = vunpack.c.l.b16 %v1418
        %v1489 = vunpack.c.l.b16 %v1419
        %v1490 = vpack.c.b16 %v1489, %v1488
        %v1493 = vunpack.c.l.b16 %v985
        %v1494 = vunpack.c.l.b16 %v986
        %v1495 = vpack.c.b16 %v1494, %v1493
        %v1498 = vsel %vm1007, %v1490, 0
        %1500 = vmatpush.bf16.msra.mxu0 0
        %1501 = vmatpush.bf16.msra.mxu0 0
        %1502 = vmatpush.bf16.msra.mxu0 0
        %1503 = vmatpush.bf16.msra.mxu0 0
        %1504 = vmatpush.bf16.msra.mxu0 0
        %1505 = vmatpush.bf16.msra.mxu0 0
        %1506 = vmatpush.bf16.msra.mxu0 0
        %1507 = vmatpush.bf16.msra.mxu0 %v1495
        %1508 = vmatmul.bf16.gmra.mxu0 %v1498
        %v1509 = vpop.f32.mrf.mxu0
        %v1510 = vadd.f32 0.0, %v1509
        %v1511 = vpop.f32.mrf.mxu0
        %v1512 = vadd.f32 0.0, %v1511
        %1513 = vdwg.mxu0
        %v1516 = vunpack.c.l.b16 %v1420
        %v1517 = vunpack.c.l.b16 %v1421
        %v1518 = vpack.c.b16 %v1517, %v1516
        %v1521 = vunpack.c.l.b16 %v987
        %v1522 = vunpack.c.l.b16 %v988
        %v1523 = vpack.c.b16 %v1522, %v1521
        %v1526 = vsel %vm1007, %v1518, 0
        %1528 = vmatpush.bf16.msra.mxu0 0
        %1529 = vmatpush.bf16.msra.mxu0 0
        %1530 = vmatpush.bf16.msra.mxu0 0
        %1531 = vmatpush.bf16.msra.mxu0 0
        %1532 = vmatpush.bf16.msra.mxu0 0
        %1533 = vmatpush.bf16.msra.mxu0 0
        %1534 = vmatpush.bf16.msra.mxu0 0
        %1535 = vmatpush.bf16.msra.mxu0 %v1523
        %1536 = vmatmul.bf16.gmra.mxu0 %v1526
        %v1537 = vpop.f32.mrf.mxu0
        %v1538 = vadd.f32 0.0, %v1537
        %v1539 = vpop.f32.mrf.mxu0
        %v1540 = vadd.f32 0.0, %v1539
        %1541 = vdwg.mxu0
        %v1544 = vunpack.c.l.b16 %v1422
        %v1545 = vunpack.c.l.b16 %v1423
        %v1546 = vpack.c.b16 %v1545, %v1544
        %v1549 = vunpack.c.l.b16 %v989
        %v1550 = vunpack.c.l.b16 %v990
        %v1551 = vpack.c.b16 %v1550, %v1549
        %v1554 = vsel %vm1007, %v1546, 0
        %1556 = vmatpush.bf16.msra.mxu0 0
        %1557 = vmatpush.bf16.msra.mxu0 0
        %1558 = vmatpush.bf16.msra.mxu0 0
        %1559 = vmatpush.bf16.msra.mxu0 0
        %1560 = vmatpush.bf16.msra.mxu0 0
        %1561 = vmatpush.bf16.msra.mxu0 0
        %1562 = vmatpush.bf16.msra.mxu0 0
        %1563 = vmatpush.bf16.msra.mxu0 %v1551
        %1564 = vmatmul.bf16.gmra.mxu0 %v1554
        %v1565 = vpop.f32.mrf.mxu0
        %v1566 = vadd.f32 0.0, %v1565
        %v1567 = vpop.f32.mrf.mxu0
        %v1568 = vadd.f32 0.0, %v1567
        %1569 = vdwg.mxu0
        %v1572 = vunpack.c.l.b16 %v1424
        %v1573 = vunpack.c.l.b16 %v1425
        %v1574 = vpack.c.b16 %v1573, %v1572
        %v1577 = vunpack.c.l.b16 %v991
        %v1578 = vunpack.c.l.b16 %v992
        %v1579 = vpack.c.b16 %v1578, %v1577
        %v1582 = vsel %vm1007, %v1574, 0
        %1584 = vmatpush.bf16.msra.mxu0 0
        %1585 = vmatpush.bf16.msra.mxu0 0
        %1586 = vmatpush.bf16.msra.mxu0 0
        %1587 = vmatpush.bf16.msra.mxu0 0
        %1588 = vmatpush.bf16.msra.mxu0 0
        %1589 = vmatpush.bf16.msra.mxu0 0
        %1590 = vmatpush.bf16.msra.mxu0 0
        %1591 = vmatpush.bf16.msra.mxu0 %v1579
        %1592 = vmatmul.bf16.gmra.mxu0 %v1582
        %v1593 = vpop.f32.mrf.mxu0
        %v1594 = vadd.f32 0.0, %v1593
        %v1595 = vpop.f32.mrf.mxu0
        %v1596 = vadd.f32 0.0, %v1595
        %1597 = vdwg.mxu0
        %v1600 = vunpack.c.l.b16 %v1426
        %v1601 = vunpack.c.l.b16 %v1427
        %v1602 = vpack.c.b16 %v1601, %v1600
        %v1605 = vunpack.c.l.b16 %v993
        %v1606 = vunpack.c.l.b16 %v994
        %v1607 = vpack.c.b16 %v1606, %v1605
        %v1610 = vsel %vm1007, %v1602, 0
        %1612 = vmatpush.bf16.msra.mxu0 0
        %1613 = vmatpush.bf16.msra.mxu0 0
        %1614 = vmatpush.bf16.msra.mxu0 0
        %1615 = vmatpush.bf16.msra.mxu0 0
        %1616 = vmatpush.bf16.msra.mxu0 0
        %1617 = vmatpush.bf16.msra.mxu0 0
        %1618 = vmatpush.bf16.msra.mxu0 0
        %1619 = vmatpush.bf16.msra.mxu0 %v1607
        %1620 = vmatmul.bf16.gmra.mxu0 %v1610
        %v1621 = vpop.f32.mrf.mxu0
        %v1622 = vadd.f32 0.0, %v1621
        %v1623 = vpop.f32.mrf.mxu0
        %v1624 = vadd.f32 0.0, %v1623
        %1625 = vdwg.mxu0
        %v1628 = vunpack.c.l.b16 %v1428
        %v1629 = vunpack.c.l.b16 %v1429
        %v1630 = vpack.c.b16 %v1629, %v1628
        %v1633 = vunpack.c.l.b16 %v995
        %v1634 = vunpack.c.l.b16 %v996
        %v1635 = vpack.c.b16 %v1634, %v1633
        %v1638 = vsel %vm1007, %v1630, 0
        %1640 = vmatpush.bf16.msra.mxu0 0
        %1641 = vmatpush.bf16.msra.mxu0 0
        %1642 = vmatpush.bf16.msra.mxu0 0
        %1643 = vmatpush.bf16.msra.mxu0 0
        %1644 = vmatpush.bf16.msra.mxu0 0
        %1645 = vmatpush.bf16.msra.mxu0 0
        %1646 = vmatpush.bf16.msra.mxu0 0
        %1647 = vmatpush.bf16.msra.mxu0 %v1635
        %1648 = vmatmul.bf16.gmra.mxu0 %v1638
        %v1649 = vpop.f32.mrf.mxu0
        %v1650 = vadd.f32 0.0, %v1649
        %v1651 = vpop.f32.mrf.mxu0
        %v1652 = vadd.f32 0.0, %v1651
        %1653 = vdwg.mxu0
        %1654 = vst.msk [vmem:[#allocation3] sm:$0xff] %vm1007, %v1454
        %1655 = vst.msk [vmem:[#allocation3 + $0x8] sm:$0xff] %vm1007, %v1456
        %1656 = vst.msk [vmem:[#allocation3 + $0x10] sm:$0xff] %vm1007, %v1482
        %1657 = vst.msk [vmem:[#allocation3 + $0x18] sm:$0xff] %vm1007, %v1484
        %1658 = vst.msk [vmem:[#allocation3 + $0x20] sm:$0xff] %vm1007, %v1510
        %1659 = vst.msk [vmem:[#allocation3 + $0x28] sm:$0xff] %vm1007, %v1512
        %1660 = vst.msk [vmem:[#allocation3 + $0x30] sm:$0xff] %vm1007, %v1538
        %1661 = vst.msk [vmem:[#allocation3 + $0x38] sm:$0xff] %vm1007, %v1540
        %1662 = vst.msk [vmem:[#allocation3 + $0x40] sm:$0xff] %vm1007, %v1566
        %1663 = vst.msk [vmem:[#allocation3 + $0x48] sm:$0xff] %vm1007, %v1568
        %1664 = vst.msk [vmem:[#allocation3 + $0x50] sm:$0xff] %vm1007, %v1594
        %1665 = vst.msk [vmem:[#allocation3 + $0x58] sm:$0xff] %vm1007, %v1596
        %1666 = vst.msk [vmem:[#allocation3 + $0x60] sm:$0xff] %vm1007, %v1622
        %1667 = vst.msk [vmem:[#allocation3 + $0x68] sm:$0xff] %vm1007, %v1624
        %1668 = vst.msk [vmem:[#allocation3 + $0x70] sm:$0xff] %vm1007, %v1650
        %1669 = vst.msk [vmem:[#allocation3 + $0x78] sm:$0xff] %vm1007, %v1652
        %v1670 = vld [vmem:[#allocation2] sm:$0xf]
        %v1671 = vld [vmem:[#allocation2 + $0xc] sm:$0xf]
        %v1672 = vld [vmem:[#allocation2 + $0x18] sm:$0xf]
        %v1673 = vld [vmem:[#allocation2 + $0x24] sm:$0xf]
        %v1674 = vld [vmem:[#allocation2 + $0x30] sm:$0xf]
        %v1675 = vld [vmem:[#allocation2 + $0x3c] sm:$0xf]
        %v1676 = vld [vmem:[#allocation2 + $0x48] sm:$0xf]
        %v1677 = vld [vmem:[#allocation2 + $0x54] sm:$0xf]
        %v1678 = vld [vmem:[#allocation2 + $0x60] sm:$0xf]
        %v1679 = vld [vmem:[#allocation2 + $0x6c] sm:$0xf]
        %v1680 = vld [vmem:[#allocation2 + $0x78] sm:$0xf]
        %v1681 = vld [vmem:[#allocation2 + $0x84] sm:$0xf]
        %v1682 = vld [vmem:[#allocation2 + $0x90] sm:$0xf]
        %v1683 = vld [vmem:[#allocation2 + $0x9c] sm:$0xf]
        %v1684 = vld [vmem:[#allocation2 + $0xa8] sm:$0xf]
        %v1685 = vld [vmem:[#allocation2 + $0xb4] sm:$0xf]
        %v1686 = vld [vmem:[#allocation2 + $0x4] sm:$0xf]
        %v1687 = vld [vmem:[#allocation2 + $0x10] sm:$0xf]
        %v1688 = vld [vmem:[#allocation2 + $0x1c] sm:$0xf]
        %v1689 = vld [vmem:[#allocation2 + $0x28] sm:$0xf]
        %v1690 = vld [vmem:[#allocation2 + $0x34] sm:$0xf]
        %v1691 = vld [vmem:[#allocation2 + $0x40] sm:$0xf]
        %v1692 = vld [vmem:[#allocation2 + $0x4c] sm:$0xf]
        %v1693 = vld [vmem:[#allocation2 + $0x58] sm:$0xf]
        %v1694 = vld [vmem:[#allocation2 + $0x64] sm:$0xf]
        %v1695 = vld [vmem:[#allocation2 + $0x70] sm:$0xf]
        %v1696 = vld [vmem:[#allocation2 + $0x7c] sm:$0xf]
        %v1697 = vld [vmem:[#allocation2 + $0x88] sm:$0xf]
        %v1698 = vld [vmem:[#allocation2 + $0x94] sm:$0xf]
        %v1699 = vld [vmem:[#allocation2 + $0xa0] sm:$0xf]
        %v1700 = vld [vmem:[#allocation2 + $0xac] sm:$0xf]
        %v1701 = vld [vmem:[#allocation2 + $0xb8] sm:$0xf]
        %v1702 = vld [vmem:[#allocation2 + $0x8] sm:$0xf]
        %v1703 = vld [vmem:[#allocation2 + $0x14] sm:$0xf]
        %v1704 = vld [vmem:[#allocation2 + $0x20] sm:$0xf]
        %v1705 = vld [vmem:[#allocation2 + $0x2c] sm:$0xf]
        %v1706 = vld [vmem:[#allocation2 + $0x38] sm:$0xf]
        %v1707 = vld [vmem:[#allocation2 + $0x44] sm:$0xf]
        %v1708 = vld [vmem:[#allocation2 + $0x50] sm:$0xf]
        %v1709 = vld [vmem:[#allocation2 + $0x5c] sm:$0xf]
        %v1710 = vld [vmem:[#allocation2 + $0x68] sm:$0xf]
        %v1711 = vld [vmem:[#allocation2 + $0x74] sm:$0xf]
        %v1712 = vld [vmem:[#allocation2 + $0x80] sm:$0xf]
        %v1713 = vld [vmem:[#allocation2 + $0x8c] sm:$0xf]
        %v1714 = vld [vmem:[#allocation2 + $0x98] sm:$0xf]
        %v1715 = vld [vmem:[#allocation2 + $0xa4] sm:$0xf]
        %v1716 = vld [vmem:[#allocation2 + $0xb0] sm:$0xf]
        %v1717 = vld [vmem:[#allocation2 + $0xbc] sm:$0xf]
        %v1720 = vunpack.c.l.b16 %v1670
        %v1721 = vunpack.c.l.b16 %v1671
        %v1722 = vpack.c.b16 %v1721, %v1720
        %1723 = vrot.lane.b32.xlu0 %v1722, 112
        %v1724 = vpop.permute.xlu0 %1723
        %v1727 = vunpack.c.l.b16 %v1686
        %v1728 = vunpack.c.l.b16 %v1687
        %v1729 = vpack.c.b16 %v1728, %v1727
        %1730 = vrot.lane.b32.xlu0 %v1729, 112
        %v1731 = vpop.permute.xlu0 %1730
        %v1733 = vsel %vm1007, %v1724, 0
        %v1736 = vsel %vm1007, %v1731, 0
        %1738 = vmatpush.bf16.xpose.msra.mxu0 0
        %1739 = vmatpush.bf16.xpose.msra.mxu0 0
        %1740 = vmatpush.bf16.xpose.msra.mxu0 0
        %1741 = vmatpush.bf16.xpose.msra.mxu0 0
        %1742 = vmatpush.bf16.xpose.msra.mxu0 0
        %1743 = vmatpush.bf16.xpose.msra.mxu0 0
        %1744 = vmatpush.bf16.xpose.msra.mxu0 0
        %1745 = vmatpush.bf16.xpose.msra.mxu0 %v1736
        %1746 = vmatmul.bf16.gmra.mxu0 %v1733
        %v1747 = vpop.f32.mrf.mxu0
        %v1748 = vadd.f32 0.0, %v1747
        %v1749 = vpop.f32.mrf.mxu0
        %v1750 = vadd.f32 0.0, %v1749
        %1751 = vdwg.mxu0
        %v1754 = vunpack.c.l.b16 %v1672
        %v1755 = vunpack.c.l.b16 %v1673
        %v1756 = vpack.c.b16 %v1755, %v1754
        %1757 = vrot.lane.b32.xlu0 %v1756, 112
        %v1758 = vpop.permute.xlu0 %1757
        %v1761 = vunpack.c.l.b16 %v1688
        %v1762 = vunpack.c.l.b16 %v1689
        %v1763 = vpack.c.b16 %v1762, %v1761
        %1764 = vrot.lane.b32.xlu0 %v1763, 112
        %v1765 = vpop.permute.xlu0 %1764
        %v1767 = vsel %vm1007, %v1758, 0
        %v1770 = vsel %vm1007, %v1765, 0
        %1772 = vmatpush.bf16.xpose.msra.mxu0 0
        %1773 = vmatpush.bf16.xpose.msra.mxu0 0
        %1774 = vmatpush.bf16.xpose.msra.mxu0 0
        %1775 = vmatpush.bf16.xpose.msra.mxu0 0
        %1776 = vmatpush.bf16.xpose.msra.mxu0 0
        %1777 = vmatpush.bf16.xpose.msra.mxu0 0
        %1778 = vmatpush.bf16.xpose.msra.mxu0 0
        %1779 = vmatpush.bf16.xpose.msra.mxu0 %v1770
        %1780 = vmatmul.bf16.gmra.mxu0 %v1767
        %v1781 = vpop.f32.mrf.mxu0
        %v1782 = vadd.f32 0.0, %v1781
        %v1783 = vpop.f32.mrf.mxu0
        %v1784 = vadd.f32 0.0, %v1783
        %1785 = vdwg.mxu0
        %v1788 = vunpack.c.l.b16 %v1674
        %v1789 = vunpack.c.l.b16 %v1675
        %v1790 = vpack.c.b16 %v1789, %v1788
        %1791 = vrot.lane.b32.xlu0 %v1790, 112
        %v1792 = vpop.permute.xlu0 %1791
        %v1795 = vunpack.c.l.b16 %v1690
        %v1796 = vunpack.c.l.b16 %v1691
        %v1797 = vpack.c.b16 %v1796, %v1795
        %1798 = vrot.lane.b32.xlu0 %v1797, 112
        %v1799 = vpop.permute.xlu0 %1798
        %v1801 = vsel %vm1007, %v1792, 0
        %v1804 = vsel %vm1007, %v1799, 0
        %1806 = vmatpush.bf16.xpose.msra.mxu0 0
        %1807 = vmatpush.bf16.xpose.msra.mxu0 0
        %1808 = vmatpush.bf16.xpose.msra.mxu0 0
        %1809 = vmatpush.bf16.xpose.msra.mxu0 0
        %1810 = vmatpush.bf16.xpose.msra.mxu0 0
        %1811 = vmatpush.bf16.xpose.msra.mxu0 0
        %1812 = vmatpush.bf16.xpose.msra.mxu0 0
        %1813 = vmatpush.bf16.xpose.msra.mxu0 %v1804
        %1814 = vmatmul.bf16.gmra.mxu0 %v1801
        %v1815 = vpop.f32.mrf.mxu0
        %v1816 = vadd.f32 0.0, %v1815
        %v1817 = vpop.f32.mrf.mxu0
        %v1818 = vadd.f32 0.0, %v1817
        %1819 = vdwg.mxu0
        %v1822 = vunpack.c.l.b16 %v1676
        %v1823 = vunpack.c.l.b16 %v1677
        %v1824 = vpack.c.b16 %v1823, %v1822
        %1825 = vrot.lane.b32.xlu0 %v1824, 112
        %v1826 = vpop.permute.xlu0 %1825
        %v1829 = vunpack.c.l.b16 %v1692
        %v1830 = vunpack.c.l.b16 %v1693
        %v1831 = vpack.c.b16 %v1830, %v1829
        %1832 = vrot.lane.b32.xlu0 %v1831, 112
        %v1833 = vpop.permute.xlu0 %1832
        %v1835 = vsel %vm1007, %v1826, 0
        %v1838 = vsel %vm1007, %v1833, 0
        %1840 = vmatpush.bf16.xpose.msra.mxu0 0
        %1841 = vmatpush.bf16.xpose.msra.mxu0 0
        %1842 = vmatpush.bf16.xpose.msra.mxu0 0
        %1843 = vmatpush.bf16.xpose.msra.mxu0 0
        %1844 = vmatpush.bf16.xpose.msra.mxu0 0
        %1845 = vmatpush.bf16.xpose.msra.mxu0 0
        %1846 = vmatpush.bf16.xpose.msra.mxu0 0
        %1847 = vmatpush.bf16.xpose.msra.mxu0 %v1838
        %1848 = vmatmul.bf16.gmra.mxu0 %v1835
        %v1849 = vpop.f32.mrf.mxu0
        %v1850 = vadd.f32 0.0, %v1849
        %v1851 = vpop.f32.mrf.mxu0
        %v1852 = vadd.f32 0.0, %v1851
        %1853 = vdwg.mxu0
        %v1856 = vunpack.c.l.b16 %v1678
        %v1857 = vunpack.c.l.b16 %v1679
        %v1858 = vpack.c.b16 %v1857, %v1856
        %1859 = vrot.lane.b32.xlu0 %v1858, 112
        %v1860 = vpop.permute.xlu0 %1859
        %v1863 = vunpack.c.l.b16 %v1694
        %v1864 = vunpack.c.l.b16 %v1695
        %v1865 = vpack.c.b16 %v1864, %v1863
        %1866 = vrot.lane.b32.xlu0 %v1865, 112
        %v1867 = vpop.permute.xlu0 %1866
        %v1869 = vsel %vm1007, %v1860, 0
        %v1872 = vsel %vm1007, %v1867, 0
        %1874 = vmatpush.bf16.xpose.msra.mxu0 0
        %1875 = vmatpush.bf16.xpose.msra.mxu0 0
        %1876 = vmatpush.bf16.xpose.msra.mxu0 0
        %1877 = vmatpush.bf16.xpose.msra.mxu0 0
        %1878 = vmatpush.bf16.xpose.msra.mxu0 0
        %1879 = vmatpush.bf16.xpose.msra.mxu0 0
        %1880 = vmatpush.bf16.xpose.msra.mxu0 0
        %1881 = vmatpush.bf16.xpose.msra.mxu0 %v1872
        %1882 = vmatmul.bf16.gmra.mxu0 %v1869
        %v1883 = vpop.f32.mrf.mxu0
        %v1884 = vadd.f32 0.0, %v1883
        %v1885 = vpop.f32.mrf.mxu0
        %v1886 = vadd.f32 0.0, %v1885
        %1887 = vdwg.mxu0
        %v1890 = vunpack.c.l.b16 %v1680
        %v1891 = vunpack.c.l.b16 %v1681
        %v1892 = vpack.c.b16 %v1891, %v1890
        %1893 = vrot.lane.b32.xlu0 %v1892, 112
        %v1894 = vpop.permute.xlu0 %1893
        %v1897 = vunpack.c.l.b16 %v1696
        %v1898 = vunpack.c.l.b16 %v1697
        %v1899 = vpack.c.b16 %v1898, %v1897
        %1900 = vrot.lane.b32.xlu0 %v1899, 112
        %v1901 = vpop.permute.xlu0 %1900
        %v1903 = vsel %vm1007, %v1894, 0
        %v1906 = vsel %vm1007, %v1901, 0
        %1908 = vmatpush.bf16.xpose.msra.mxu0 0
        %1909 = vmatpush.bf16.xpose.msra.mxu0 0
        %1910 = vmatpush.bf16.xpose.msra.mxu0 0
        %1911 = vmatpush.bf16.xpose.msra.mxu0 0
        %1912 = vmatpush.bf16.xpose.msra.mxu0 0
        %1913 = vmatpush.bf16.xpose.msra.mxu0 0
        %1914 = vmatpush.bf16.xpose.msra.mxu0 0
        %1915 = vmatpush.bf16.xpose.msra.mxu0 %v1906
        %1916 = vmatmul.bf16.gmra.mxu0 %v1903
        %v1917 = vpop.f32.mrf.mxu0
        %v1918 = vadd.f32 0.0, %v1917
        %v1919 = vpop.f32.mrf.mxu0
        %v1920 = vadd.f32 0.0, %v1919
        %1921 = vdwg.mxu0
        %v1924 = vunpack.c.l.b16 %v1682
        %v1925 = vunpack.c.l.b16 %v1683
        %v1926 = vpack.c.b16 %v1925, %v1924
        %1927 = vrot.lane.b32.xlu0 %v1926, 112
        %v1928 = vpop.permute.xlu0 %1927
        %v1931 = vunpack.c.l.b16 %v1698
        %v1932 = vunpack.c.l.b16 %v1699
        %v1933 = vpack.c.b16 %v1932, %v1931
        %1934 = vrot.lane.b32.xlu0 %v1933, 112
        %v1935 = vpop.permute.xlu0 %1934
        %v1937 = vsel %vm1007, %v1928, 0
        %v1940 = vsel %vm1007, %v1935, 0
        %1942 = vmatpush.bf16.xpose.msra.mxu0 0
        %1943 = vmatpush.bf16.xpose.msra.mxu0 0
        %1944 = vmatpush.bf16.xpose.msra.mxu0 0
        %1945 = vmatpush.bf16.xpose.msra.mxu0 0
        %1946 = vmatpush.bf16.xpose.msra.mxu0 0
        %1947 = vmatpush.bf16.xpose.msra.mxu0 0
        %1948 = vmatpush.bf16.xpose.msra.mxu0 0
        %1949 = vmatpush.bf16.xpose.msra.mxu0 %v1940
        %1950 = vmatmul.bf16.gmra.mxu0 %v1937
        %v1951 = vpop.f32.mrf.mxu0
        %v1952 = vadd.f32 0.0, %v1951
        %v1953 = vpop.f32.mrf.mxu0
        %v1954 = vadd.f32 0.0, %v1953
        %1955 = vdwg.mxu0
        %v1958 = vunpack.c.l.b16 %v1684
        %v1959 = vunpack.c.l.b16 %v1685
        %v1960 = vpack.c.b16 %v1959, %v1958
        %1961 = vrot.lane.b32.xlu0 %v1960, 112
        %v1962 = vpop.permute.xlu0 %1961
        %v1965 = vunpack.c.l.b16 %v1700
        %v1966 = vunpack.c.l.b16 %v1701
        %v1967 = vpack.c.b16 %v1966, %v1965
        %1968 = vrot.lane.b32.xlu0 %v1967, 112
        %v1969 = vpop.permute.xlu0 %1968
        %v1971 = vsel %vm1007, %v1962, 0
        %v1974 = vsel %vm1007, %v1969, 0
        %1976 = vmatpush.bf16.xpose.msra.mxu0 0
        %1977 = vmatpush.bf16.xpose.msra.mxu0 0
        %1978 = vmatpush.bf16.xpose.msra.mxu0 0
        %1979 = vmatpush.bf16.xpose.msra.mxu0 0
        %1980 = vmatpush.bf16.xpose.msra.mxu0 0
        %1981 = vmatpush.bf16.xpose.msra.mxu0 0
        %1982 = vmatpush.bf16.xpose.msra.mxu0 0
        %1983 = vmatpush.bf16.xpose.msra.mxu0 %v1974
        %1984 = vmatmul.bf16.gmra.mxu0 %v1971
        %v1985 = vpop.f32.mrf.mxu0
        %v1986 = vadd.f32 0.0, %v1985
        %v1987 = vpop.f32.mrf.mxu0
        %v1988 = vadd.f32 0.0, %v1987
        %1989 = vdwg.mxu0
        %v1990 = vsel %vm1007, %v1748, -inf
        %1991 = vmax.xlane.f32.xlu0 %v1990
        %v1992 = vpop.xlane.xlu0 %1991
        %v1993 = vsel %vm1007, %v1750, -inf
        %1994 = vmax.xlane.f32.xlu0 %v1993
        %v1995 = vpop.xlane.xlu0 %1994
        %v1996 = vsel %vm1007, %v1782, -inf
        %1997 = vmax.xlane.f32.xlu0 %v1996
        %v1998 = vpop.xlane.xlu0 %1997
        %v1999 = vsel %vm1007, %v1784, -inf
        %2000 = vmax.xlane.f32.xlu0 %v1999
        %v2001 = vpop.xlane.xlu0 %2000
        %v2002 = vsel %vm1007, %v1816, -inf
        %2003 = vmax.xlane.f32.xlu0 %v2002
        %v2004 = vpop.xlane.xlu0 %2003
        %v2005 = vsel %vm1007, %v1818, -inf
        %2006 = vmax.xlane.f32.xlu0 %v2005
        %v2007 = vpop.xlane.xlu0 %2006
        %v2008 = vsel %vm1007, %v1850, -inf
        %2009 = vmax.xlane.f32.xlu0 %v2008
        %v2010 = vpop.xlane.xlu0 %2009
        %v2011 = vsel %vm1007, %v1852, -inf
        %2012 = vmax.xlane.f32.xlu0 %v2011
        %v2013 = vpop.xlane.xlu0 %2012
        %v2014 = vsel %vm1007, %v1884, -inf
        %2015 = vmax.xlane.f32.xlu0 %v2014
        %v2016 = vpop.xlane.xlu0 %2015
        %v2017 = vsel %vm1007, %v1886, -inf
        %2018 = vmax.xlane.f32.xlu0 %v2017
        %v2019 = vpop.xlane.xlu0 %2018
        %v2020 = vsel %vm1007, %v1918, -inf
        %2021 = vmax.xlane.f32.xlu0 %v2020
        %v2022 = vpop.xlane.xlu0 %2021
        %v2023 = vsel %vm1007, %v1920, -inf
        %2024 = vmax.xlane.f32.xlu0 %v2023
        %v2025 = vpop.xlane.xlu0 %2024
        %v2026 = vsel %vm1007, %v1952, -inf
        %2027 = vmax.xlane.f32.xlu0 %v2026
        %v2028 = vpop.xlane.xlu0 %2027
        %v2029 = vsel %vm1007, %v1954, -inf
        %2030 = vmax.xlane.f32.xlu0 %v2029
        %v2031 = vpop.xlane.xlu0 %2030
        %v2032 = vsel %vm1007, %v1986, -inf
        %2033 = vmax.xlane.f32.xlu0 %v2032
        %v2034 = vpop.xlane.xlu0 %2033
        %v2035 = vsel %vm1007, %v1988, -inf
        %2036 = vmax.xlane.f32.xlu0 %v2035
        %v2037 = vpop.xlane.xlu0 %2036
        %v2038 = vsub.f32 %v1748, %v1992
        %v2039 = vsub.f32 %v1750, %v1995
        %v2040 = vsub.f32 %v1782, %v1998
        %v2041 = vsub.f32 %v1784, %v2001
        %v2042 = vsub.f32 %v1816, %v2004
        %v2043 = vsub.f32 %v1818, %v2007
        %v2044 = vsub.f32 %v1850, %v2010
        %v2045 = vsub.f32 %v1852, %v2013
        %v2046 = vsub.f32 %v1884, %v2016
        %v2047 = vsub.f32 %v1886, %v2019
        %v2048 = vsub.f32 %v1918, %v2022
        %v2049 = vsub.f32 %v1920, %v2025
        %v2050 = vsub.f32 %v1952, %v2028
        %v2051 = vsub.f32 %v1954, %v2031
        %v2052 = vsub.f32 %v1986, %v2034
        %v2053 = vsub.f32 %v1988, %v2037
        %v2054 = vmul.f32 %v2038, 1.442695
        %v2055 = vpow.pop %v2054
        %v2056 = vmul.f32 %v2039, 1.442695
        %v2057 = vpow.pop %v2056
        %v2058 = vmul.f32 %v2040, 1.442695
        %v2059 = vpow.pop %v2058
        %v2060 = vmul.f32 %v2041, 1.442695
        %v2061 = vpow.pop %v2060
        %v2062 = vmul.f32 %v2042, 1.442695
        %v2063 = vpow.pop %v2062
        %v2064 = vmul.f32 %v2043, 1.442695
        %v2065 = vpow.pop %v2064
        %v2066 = vmul.f32 %v2044, 1.442695
        %v2067 = vpow.pop %v2066
        %v2068 = vmul.f32 %v2045, 1.442695
        %v2069 = vpow.pop %v2068
        %v2070 = vmul.f32 %v2046, 1.442695
        %v2071 = vpow.pop %v2070
        %v2072 = vmul.f32 %v2047, 1.442695
        %v2073 = vpow.pop %v2072
        %v2074 = vmul.f32 %v2048, 1.442695
        %v2075 = vpow.pop %v2074
        %v2076 = vmul.f32 %v2049, 1.442695
        %v2077 = vpow.pop %v2076
        %v2078 = vmul.f32 %v2050, 1.442695
        %v2079 = vpow.pop %v2078
        %v2080 = vmul.f32 %v2051, 1.442695
        %v2081 = vpow.pop %v2080
        %v2082 = vmul.f32 %v2052, 1.442695
        %v2083 = vpow.pop %v2082
        %v2084 = vmul.f32 %v2053, 1.442695
        %v2085 = vpow.pop %v2084
        %v2086 = vsel %vm1007, %v2055, 0.0
        %2087 = vadd.xlane.f32.xlu0 %v2086
        %v2088 = vpop.xlane.xlu0 %2087
        %v2089 = vsel %vm1007, %v2057, 0.0
        %2090 = vadd.xlane.f32.xlu0 %v2089
        %v2091 = vpop.xlane.xlu0 %2090
        %v2092 = vsel %vm1007, %v2059, 0.0
        %2093 = vadd.xlane.f32.xlu0 %v2092
        %v2094 = vpop.xlane.xlu0 %2093
        %v2095 = vsel %vm1007, %v2061, 0.0
        %2096 = vadd.xlane.f32.xlu0 %v2095
        %v2097 = vpop.xlane.xlu0 %2096
        %v2098 = vsel %vm1007, %v2063, 0.0
        %2099 = vadd.xlane.f32.xlu0 %v2098
        %v2100 = vpop.xlane.xlu0 %2099
        %v2101 = vsel %vm1007, %v2065, 0.0
        %2102 = vadd.xlane.f32.xlu0 %v2101
        %v2103 = vpop.xlane.xlu0 %2102
        %v2104 = vsel %vm1007, %v2067, 0.0
        %2105 = vadd.xlane.f32.xlu0 %v2104
        %v2106 = vpop.xlane.xlu0 %2105
        %v2107 = vsel %vm1007, %v2069, 0.0
        %2108 = vadd.xlane.f32.xlu0 %v2107
        %v2109 = vpop.xlane.xlu0 %2108
        %v2110 = vsel %vm1007, %v2071, 0.0
        %2111 = vadd.xlane.f32.xlu0 %v2110
        %v2112 = vpop.xlane.xlu0 %2111
        %v2113 = vsel %vm1007, %v2073, 0.0
        %2114 = vadd.xlane.f32.xlu0 %v2113
        %v2115 = vpop.xlane.xlu0 %2114
        %v2116 = vsel %vm1007, %v2075, 0.0
        %2117 = vadd.xlane.f32.xlu0 %v2116
        %v2118 = vpop.xlane.xlu0 %2117
        %v2119 = vsel %vm1007, %v2077, 0.0
        %2120 = vadd.xlane.f32.xlu0 %v2119
        %v2121 = vpop.xlane.xlu0 %2120
        %v2122 = vsel %vm1007, %v2079, 0.0
        %2123 = vadd.xlane.f32.xlu0 %v2122
        %v2124 = vpop.xlane.xlu0 %2123
        %v2125 = vsel %vm1007, %v2081, 0.0
        %2126 = vadd.xlane.f32.xlu0 %v2125
        %v2127 = vpop.xlane.xlu0 %2126
        %v2128 = vsel %vm1007, %v2083, 0.0
        %2129 = vadd.xlane.f32.xlu0 %v2128
        %v2130 = vpop.xlane.xlu0 %2129
        %v2131 = vsel %vm1007, %v2085, 0.0
        %2132 = vadd.xlane.f32.xlu0 %v2131
        %v2133 = vpop.xlane.xlu0 %2132
        %v2134 = vrcp.pop %v2088
        %v2135 = vrcp.pop %v2091
        %v2136 = vrcp.pop %v2094
        %v2137 = vrcp.pop %v2097
        %v2138 = vrcp.pop %v2100
        %v2139 = vrcp.pop %v2103
        %v2140 = vrcp.pop %v2106
        %v2141 = vrcp.pop %v2109
        %v2142 = vrcp.pop %v2112
        %v2143 = vrcp.pop %v2115
        %v2144 = vrcp.pop %v2118
        %v2145 = vrcp.pop %v2121
        %v2146 = vrcp.pop %v2124
        %v2147 = vrcp.pop %v2127
        %v2148 = vrcp.pop %v2130
        %v2149 = vrcp.pop %v2133
        %v2150 = vmul.f32 %v2055, %v2134
        %v2151 = vmul.f32 %v2057, %v2135
        %v2152 = vmul.f32 %v2059, %v2136
        %v2153 = vmul.f32 %v2061, %v2137
        %v2154 = vmul.f32 %v2063, %v2138
        %v2155 = vmul.f32 %v2065, %v2139
        %v2156 = vmul.f32 %v2067, %v2140
        %v2157 = vmul.f32 %v2069, %v2141
        %v2158 = vmul.f32 %v2071, %v2142
        %v2159 = vmul.f32 %v2073, %v2143
        %v2160 = vmul.f32 %v2075, %v2144
        %v2161 = vmul.f32 %v2077, %v2145
        %v2162 = vmul.f32 %v2079, %v2146
        %v2163 = vmul.f32 %v2081, %v2147
        %v2164 = vmul.f32 %v2083, %v2148
        %v2165 = vmul.f32 %v2085, %v2149
        %v2166 = vpack.c.bf16 %v2150, %v2150
        %v2167 = vpack.c.bf16 %v2151, %v2151
        %v2168 = vpack.c.bf16 %v2152, %v2152
        %v2169 = vpack.c.bf16 %v2153, %v2153
        %v2170 = vpack.c.bf16 %v2154, %v2154
        %v2171 = vpack.c.bf16 %v2155, %v2155
        %v2172 = vpack.c.bf16 %v2156, %v2156
        %v2173 = vpack.c.bf16 %v2157, %v2157
        %v2174 = vpack.c.bf16 %v2158, %v2158
        %v2175 = vpack.c.bf16 %v2159, %v2159
        %v2176 = vpack.c.bf16 %v2160, %v2160
        %v2177 = vpack.c.bf16 %v2161, %v2161
        %v2178 = vpack.c.bf16 %v2162, %v2162
        %v2179 = vpack.c.bf16 %v2163, %v2163
        %v2180 = vpack.c.bf16 %v2164, %v2164
        %v2181 = vpack.c.bf16 %v2165, %v2165
        %v2184 = vunpack.c.l.b16 %v2166
        %v2185 = vunpack.c.l.b16 %v2167
        %v2186 = vpack.c.b16 %v2185, %v2184
        %v2189 = vunpack.c.l.b16 %v1702
        %v2190 = vunpack.c.l.b16 %v1703
        %v2191 = vpack.c.b16 %v2190, %v2189
        %2192 = vrot.lane.b32.xlu0 %v2191, 112
        %v2193 = vpop.permute.xlu0 %2192
        %v2196 = vsel %vm1007, %v2186, 0
        %2198 = vmatpush.bf16.msra.mxu0 0
        %2199 = vmatpush.bf16.msra.mxu0 0
        %2200 = vmatpush.bf16.msra.mxu0 0
        %2201 = vmatpush.bf16.msra.mxu0 0
        %2202 = vmatpush.bf16.msra.mxu0 0
        %2203 = vmatpush.bf16.msra.mxu0 0
        %2204 = vmatpush.bf16.msra.mxu0 0
        %2205 = vmatpush.bf16.msra.mxu0 %v2193
        %2206 = vmatmul.bf16.gmra.mxu0 %v2196
        %v2207 = vpop.f32.mrf.mxu0
        %v2208 = vadd.f32 0.0, %v2207
        %v2209 = vpop.f32.mrf.mxu0
        %v2210 = vadd.f32 0.0, %v2209
        %2211 = vdwg.mxu0
        %v2214 = vunpack.c.l.b16 %v2168
        %v2215 = vunpack.c.l.b16 %v2169
        %v2216 = vpack.c.b16 %v2215, %v2214
        %v2219 = vunpack.c.l.b16 %v1704
        %v2220 = vunpack.c.l.b16 %v1705
        %v2221 = vpack.c.b16 %v2220, %v2219
        %2222 = vrot.lane.b32.xlu0 %v2221, 112
        %v2223 = vpop.permute.xlu0 %2222
        %v2226 = vsel %vm1007, %v2216, 0
        %2228 = vmatpush.bf16.msra.mxu0 0
        %2229 = vmatpush.bf16.msra.mxu0 0
        %2230 = vmatpush.bf16.msra.mxu0 0
        %2231 = vmatpush.bf16.msra.mxu0 0
        %2232 = vmatpush.bf16.msra.mxu0 0
        %2233 = vmatpush.bf16.msra.mxu0 0
        %2234 = vmatpush.bf16.msra.mxu0 0
        %2235 = vmatpush.bf16.msra.mxu0 %v2223
        %2236 = vmatmul.bf16.gmra.mxu0 %v2226
        %v2237 = vpop.f32.mrf.mxu0
        %v2238 = vadd.f32 0.0, %v2237
        %v2239 = vpop.f32.mrf.mxu0
        %v2240 = vadd.f32 0.0, %v2239
        %2241 = vdwg.mxu0
        %v2244 = vunpack.c.l.b16 %v2170
        %v2245 = vunpack.c.l.b16 %v2171
        %v2246 = vpack.c.b16 %v2245, %v2244
        %v2249 = vunpack.c.l.b16 %v1706
        %v2250 = vunpack.c.l.b16 %v1707
        %v2251 = vpack.c.b16 %v2250, %v2249
        %2252 = vrot.lane.b32.xlu0 %v2251, 112
        %v2253 = vpop.permute.xlu0 %2252
        %v2256 = vsel %vm1007, %v2246, 0
        %2258 = vmatpush.bf16.msra.mxu0 0
        %2259 = vmatpush.bf16.msra.mxu0 0
        %2260 = vmatpush.bf16.msra.mxu0 0
        %2261 = vmatpush.bf16.msra.mxu0 0
        %2262 = vmatpush.bf16.msra.mxu0 0
        %2263 = vmatpush.bf16.msra.mxu0 0
        %2264 = vmatpush.bf16.msra.mxu0 0
        %2265 = vmatpush.bf16.msra.mxu0 %v2253
        %2266 = vmatmul.bf16.gmra.mxu0 %v2256
        %v2267 = vpop.f32.mrf.mxu0
        %v2268 = vadd.f32 0.0, %v2267
        %v2269 = vpop.f32.mrf.mxu0
        %v2270 = vadd.f32 0.0, %v2269
        %2271 = vdwg.mxu0
        %v2274 = vunpack.c.l.b16 %v2172
        %v2275 = vunpack.c.l.b16 %v2173
        %v2276 = vpack.c.b16 %v2275, %v2274
        %v2279 = vunpack.c.l.b16 %v1708
        %v2280 = vunpack.c.l.b16 %v1709
        %v2281 = vpack.c.b16 %v2280, %v2279
        %2282 = vrot.lane.b32.xlu0 %v2281, 112
        %v2283 = vpop.permute.xlu0 %2282
        %v2286 = vsel %vm1007, %v2276, 0
        %2288 = vmatpush.bf16.msra.mxu0 0
        %2289 = vmatpush.bf16.msra.mxu0 0
        %2290 = vmatpush.bf16.msra.mxu0 0
        %2291 = vmatpush.bf16.msra.mxu0 0
        %2292 = vmatpush.bf16.msra.mxu0 0
        %2293 = vmatpush.bf16.msra.mxu0 0
        %2294 = vmatpush.bf16.msra.mxu0 0
        %2295 = vmatpush.bf16.msra.mxu0 %v2283
        %2296 = vmatmul.bf16.gmra.mxu0 %v2286
        %v2297 = vpop.f32.mrf.mxu0
        %v2298 = vadd.f32 0.0, %v2297
        %v2299 = vpop.f32.mrf.mxu0
        %v2300 = vadd.f32 0.0, %v2299
        %2301 = vdwg.mxu0
        %v2304 = vunpack.c.l.b16 %v2174
        %v2305 = vunpack.c.l.b16 %v2175
        %v2306 = vpack.c.b16 %v2305, %v2304
        %v2309 = vunpack.c.l.b16 %v1710
        %v2310 = vunpack.c.l.b16 %v1711
        %v2311 = vpack.c.b16 %v2310, %v2309
        %2312 = vrot.lane.b32.xlu0 %v2311, 112
        %v2313 = vpop.permute.xlu0 %2312
        %v2316 = vsel %vm1007, %v2306, 0
        %2318 = vmatpush.bf16.msra.mxu0 0
        %2319 = vmatpush.bf16.msra.mxu0 0
        %2320 = vmatpush.bf16.msra.mxu0 0
        %2321 = vmatpush.bf16.msra.mxu0 0
        %2322 = vmatpush.bf16.msra.mxu0 0
        %2323 = vmatpush.bf16.msra.mxu0 0
        %2324 = vmatpush.bf16.msra.mxu0 0
        %2325 = vmatpush.bf16.msra.mxu0 %v2313
        %2326 = vmatmul.bf16.gmra.mxu0 %v2316
        %v2327 = vpop.f32.mrf.mxu0
        %v2328 = vadd.f32 0.0, %v2327
        %v2329 = vpop.f32.mrf.mxu0
        %v2330 = vadd.f32 0.0, %v2329
        %2331 = vdwg.mxu0
        %v2334 = vunpack.c.l.b16 %v2176
        %v2335 = vunpack.c.l.b16 %v2177
        %v2336 = vpack.c.b16 %v2335, %v2334
        %v2339 = vunpack.c.l.b16 %v1712
        %v2340 = vunpack.c.l.b16 %v1713
        %v2341 = vpack.c.b16 %v2340, %v2339
        %2342 = vrot.lane.b32.xlu0 %v2341, 112
        %v2343 = vpop.permute.xlu0 %2342
        %v2346 = vsel %vm1007, %v2336, 0
        %2348 = vmatpush.bf16.msra.mxu0 0
        %2349 = vmatpush.bf16.msra.mxu0 0
        %2350 = vmatpush.bf16.msra.mxu0 0
        %2351 = vmatpush.bf16.msra.mxu0 0
        %2352 = vmatpush.bf16.msra.mxu0 0
        %2353 = vmatpush.bf16.msra.mxu0 0
        %2354 = vmatpush.bf16.msra.mxu0 0
        %2355 = vmatpush.bf16.msra.mxu0 %v2343
        %2356 = vmatmul.bf16.gmra.mxu0 %v2346
        %v2357 = vpop.f32.mrf.mxu0
        %v2358 = vadd.f32 0.0, %v2357
        %v2359 = vpop.f32.mrf.mxu0
        %v2360 = vadd.f32 0.0, %v2359
        %2361 = vdwg.mxu0
        %v2364 = vunpack.c.l.b16 %v2178
        %v2365 = vunpack.c.l.b16 %v2179
        %v2366 = vpack.c.b16 %v2365, %v2364
        %v2369 = vunpack.c.l.b16 %v1714
        %v2370 = vunpack.c.l.b16 %v1715
        %v2371 = vpack.c.b16 %v2370, %v2369
        %2372 = vrot.lane.b32.xlu0 %v2371, 112
        %v2373 = vpop.permute.xlu0 %2372
        %v2376 = vsel %vm1007, %v2366, 0
        %2378 = vmatpush.bf16.msra.mxu0 0
        %2379 = vmatpush.bf16.msra.mxu0 0
        %2380 = vmatpush.bf16.msra.mxu0 0
        %2381 = vmatpush.bf16.msra.mxu0 0
        %2382 = vmatpush.bf16.msra.mxu0 0
        %2383 = vmatpush.bf16.msra.mxu0 0
        %2384 = vmatpush.bf16.msra.mxu0 0
        %2385 = vmatpush.bf16.msra.mxu0 %v2373
        %2386 = vmatmul.bf16.gmra.mxu0 %v2376
        %v2387 = vpop.f32.mrf.mxu0
        %v2388 = vadd.f32 0.0, %v2387
        %v2389 = vpop.f32.mrf.mxu0
        %v2390 = vadd.f32 0.0, %v2389
        %2391 = vdwg.mxu0
        %v2394 = vunpack.c.l.b16 %v2180
        %v2395 = vunpack.c.l.b16 %v2181
        %v2396 = vpack.c.b16 %v2395, %v2394
        %v2399 = vunpack.c.l.b16 %v1716
        %v2400 = vunpack.c.l.b16 %v1717
        %v2401 = vpack.c.b16 %v2400, %v2399
        %2402 = vrot.lane.b32.xlu0 %v2401, 112
        %v2403 = vpop.permute.xlu0 %2402
        %v2406 = vsel %vm1007, %v2396, 0
        %2408 = vmatpush.bf16.msra.mxu0 0
        %2409 = vmatpush.bf16.msra.mxu0 0
        %2410 = vmatpush.bf16.msra.mxu0 0
        %2411 = vmatpush.bf16.msra.mxu0 0
        %2412 = vmatpush.bf16.msra.mxu0 0
        %2413 = vmatpush.bf16.msra.mxu0 0
        %2414 = vmatpush.bf16.msra.mxu0 0
        %2415 = vmatpush.bf16.msra.mxu0 %v2403
        %2416 = vmatmul.bf16.gmra.mxu0 %v2406
        %v2417 = vpop.f32.mrf.mxu0
        %v2418 = vadd.f32 0.0, %v2417
        %v2419 = vpop.f32.mrf.mxu0
        %v2420 = vadd.f32 0.0, %v2419
        %2421 = vdwg.mxu0
        %2438 = vrot.lane.b32.xlu0 %v2208, 16
        %v2439 = vpop.permute.xlu0 %2438
        %2440 = vrot.lane.b32.xlu0 %v2210, 16
        %v2441 = vpop.permute.xlu0 %2440
        %2442 = vrot.lane.b32.xlu0 %v2238, 16
        %v2443 = vpop.permute.xlu0 %2442
        %2444 = vrot.lane.b32.xlu0 %v2240, 16
        %v2445 = vpop.permute.xlu0 %2444
        %2446 = vrot.lane.b32.xlu0 %v2268, 16
        %v2447 = vpop.permute.xlu0 %2446
        %2448 = vrot.lane.b32.xlu0 %v2270, 16
        %v2449 = vpop.permute.xlu0 %2448
        %2450 = vrot.lane.b32.xlu0 %v2298, 16
        %v2451 = vpop.permute.xlu0 %2450
        %2452 = vrot.lane.b32.xlu0 %v2300, 16
        %v2453 = vpop.permute.xlu0 %2452
        %2454 = vrot.lane.b32.xlu0 %v2328, 16
        %v2455 = vpop.permute.xlu0 %2454
        %2456 = vrot.lane.b32.xlu0 %v2330, 16
        %v2457 = vpop.permute.xlu0 %2456
        %2458 = vrot.lane.b32.xlu0 %v2358, 16
        %v2459 = vpop.permute.xlu0 %2458
        %2460 = vrot.lane.b32.xlu0 %v2360, 16
        %v2461 = vpop.permute.xlu0 %2460
        %2462 = vrot.lane.b32.xlu0 %v2388, 16
        %v2463 = vpop.permute.xlu0 %2462
        %2464 = vrot.lane.b32.xlu0 %v2390, 16
        %v2465 = vpop.permute.xlu0 %2464
        %2466 = vrot.lane.b32.xlu0 %v2418, 16
        %v2467 = vpop.permute.xlu0 %2466
        %2468 = vrot.lane.b32.xlu0 %v2420, 16
        %v2469 = vpop.permute.xlu0 %2468
        %vm2486 = vcmask 261248
        %2487 = vst.msk [vmem:[#allocation3] sm:$0xff] %vm2486, %v2439
        %2488 = vst.msk [vmem:[#allocation3 + $0x8] sm:$0xff] %vm2486, %v2441
        %2489 = vst.msk [vmem:[#allocation3 + $0x10] sm:$0xff] %vm2486, %v2443
        %2490 = vst.msk [vmem:[#allocation3 + $0x18] sm:$0xff] %vm2486, %v2445
        %2491 = vst.msk [vmem:[#allocation3 + $0x20] sm:$0xff] %vm2486, %v2447
        %2492 = vst.msk [vmem:[#allocation3 + $0x28] sm:$0xff] %vm2486, %v2449
        %2493 = vst.msk [vmem:[#allocation3 + $0x30] sm:$0xff] %vm2486, %v2451
        %2494 = vst.msk [vmem:[#allocation3 + $0x38] sm:$0xff] %vm2486, %v2453
        %2495 = vst.msk [vmem:[#allocation3 + $0x40] sm:$0xff] %vm2486, %v2455
        %2496 = vst.msk [vmem:[#allocation3 + $0x48] sm:$0xff] %vm2486, %v2457
        %2497 = vst.msk [vmem:[#allocation3 + $0x50] sm:$0xff] %vm2486, %v2459
        %2498 = vst.msk [vmem:[#allocation3 + $0x58] sm:$0xff] %vm2486, %v2461
        %2499 = vst.msk [vmem:[#allocation3 + $0x60] sm:$0xff] %vm2486, %v2463
        %2500 = vst.msk [vmem:[#allocation3 + $0x68] sm:$0xff] %vm2486, %v2465
        %2501 = vst.msk [vmem:[#allocation3 + $0x70] sm:$0xff] %vm2486, %v2467
        %2502 = vst.msk [vmem:[#allocation3 + $0x78] sm:$0xff] %vm2486, %v2469
        %v2503 = vld [vmem:[#allocation2] sm:$0xf]
        %v2504 = vld [vmem:[#allocation2 + $0xc] sm:$0xf]
        %v2505 = vld [vmem:[#allocation2 + $0x18] sm:$0xf]
        %v2506 = vld [vmem:[#allocation2 + $0x24] sm:$0xf]
        %v2507 = vld [vmem:[#allocation2 + $0x30] sm:$0xf]
        %v2508 = vld [vmem:[#allocation2 + $0x3c] sm:$0xf]
        %v2509 = vld [vmem:[#allocation2 + $0x48] sm:$0xf]
        %v2510 = vld [vmem:[#allocation2 + $0x54] sm:$0xf]
        %v2511 = vld [vmem:[#allocation2 + $0x60] sm:$0xf]
        %v2512 = vld [vmem:[#allocation2 + $0x6c] sm:$0xf]
        %v2513 = vld [vmem:[#allocation2 + $0x78] sm:$0xf]
        %v2514 = vld [vmem:[#allocation2 + $0x84] sm:$0xf]
        %v2515 = vld [vmem:[#allocation2 + $0x90] sm:$0xf]
        %v2516 = vld [vmem:[#allocation2 + $0x9c] sm:$0xf]
        %v2517 = vld [vmem:[#allocation2 + $0xa8] sm:$0xf]
        %v2518 = vld [vmem:[#allocation2 + $0xb4] sm:$0xf]
        %v2519 = vld [vmem:[#allocation2 + $0x4] sm:$0xf]
        %v2520 = vld [vmem:[#allocation2 + $0x10] sm:$0xf]
        %v2521 = vld [vmem:[#allocation2 + $0x1c] sm:$0xf]
        %v2522 = vld [vmem:[#allocation2 + $0x28] sm:$0xf]
        %v2523 = vld [vmem:[#allocation2 + $0x34] sm:$0xf]
        %v2524 = vld [vmem:[#allocation2 + $0x40] sm:$0xf]
        %v2525 = vld [vmem:[#allocation2 + $0x4c] sm:$0xf]
        %v2526 = vld [vmem:[#allocation2 + $0x58] sm:$0xf]
        %v2527 = vld [vmem:[#allocation2 + $0x64] sm:$0xf]
        %v2528 = vld [vmem:[#allocation2 + $0x70] sm:$0xf]
        %v2529 = vld [vmem:[#allocation2 + $0x7c] sm:$0xf]
        %v2530 = vld [vmem:[#allocation2 + $0x88] sm:$0xf]
        %v2531 = vld [vmem:[#allocation2 + $0x94] sm:$0xf]
        %v2532 = vld [vmem:[#allocation2 + $0xa0] sm:$0xf]
        %v2533 = vld [vmem:[#allocation2 + $0xac] sm:$0xf]
        %v2534 = vld [vmem:[#allocation2 + $0xb8] sm:$0xf]
        %v2535 = vld [vmem:[#allocation2 + $0x8] sm:$0xf]
        %v2536 = vld [vmem:[#allocation2 + $0x14] sm:$0xf]
        %v2537 = vld [vmem:[#allocation2 + $0x20] sm:$0xf]
        %v2538 = vld [vmem:[#allocation2 + $0x2c] sm:$0xf]
        %v2539 = vld [vmem:[#allocation2 + $0x38] sm:$0xf]
        %v2540 = vld [vmem:[#allocation2 + $0x44] sm:$0xf]
        %v2541 = vld [vmem:[#allocation2 + $0x50] sm:$0xf]
        %v2542 = vld [vmem:[#allocation2 + $0x5c] sm:$0xf]
        %v2543 = vld [vmem:[#allocation2 + $0x68] sm:$0xf]
        %v2544 = vld [vmem:[#allocation2 + $0x74] sm:$0xf]
        %v2545 = vld [vmem:[#allocation2 + $0x80] sm:$0xf]
        %v2546 = vld [vmem:[#allocation2 + $0x8c] sm:$0xf]
        %v2547 = vld [vmem:[#allocation2 + $0x98] sm:$0xf]
        %v2548 = vld [vmem:[#allocation2 + $0xa4] sm:$0xf]
        %v2549 = vld [vmem:[#allocation2 + $0xb0] sm:$0xf]
        %v2550 = vld [vmem:[#allocation2 + $0xbc] sm:$0xf]
        %v2553 = vunpack.c.l.b16 %v2503
        %v2554 = vunpack.c.l.b16 %v2504
        %v2555 = vpack.c.b16 %v2554, %v2553
        %2556 = vrot.lane.b32.xlu0 %v2555, 96
        %v2557 = vpop.permute.xlu0 %2556
        %v2560 = vunpack.c.l.b16 %v2519
        %v2561 = vunpack.c.l.b16 %v2520
        %v2562 = vpack.c.b16 %v2561, %v2560
        %2563 = vrot.lane.b32.xlu0 %v2562, 96
        %v2564 = vpop.permute.xlu0 %2563
        %v2566 = vsel %vm1007, %v2557, 0
        %v2569 = vsel %vm1007, %v2564, 0
        %2571 = vmatpush.bf16.xpose.msra.mxu0 0
        %2572 = vmatpush.bf16.xpose.msra.mxu0 0
        %2573 = vmatpush.bf16.xpose.msra.mxu0 0
        %2574 = vmatpush.bf16.xpose.msra.mxu0 0
        %2575 = vmatpush.bf16.xpose.msra.mxu0 0
        %2576 = vmatpush.bf16.xpose.msra.mxu0 0
        %2577 = vmatpush.bf16.xpose.msra.mxu0 0
        %2578 = vmatpush.bf16.xpose.msra.mxu0 %v2569
        %2579 = vmatmul.bf16.gmra.mxu0 %v2566
        %v2580 = vpop.f32.mrf.mxu0
        %v2581 = vadd.f32 0.0, %v2580
        %v2582 = vpop.f32.mrf.mxu0
        %v2583 = vadd.f32 0.0, %v2582
        %2584 = vdwg.mxu0
        %v2587 = vunpack.c.l.b16 %v2505
        %v2588 = vunpack.c.l.b16 %v2506
        %v2589 = vpack.c.b16 %v2588, %v2587
        %2590 = vrot.lane.b32.xlu0 %v2589, 96
        %v2591 = vpop.permute.xlu0 %2590
        %v2594 = vunpack.c.l.b16 %v2521
        %v2595 = vunpack.c.l.b16 %v2522
        %v2596 = vpack.c.b16 %v2595, %v2594
        %2597 = vrot.lane.b32.xlu0 %v2596, 96
        %v2598 = vpop.permute.xlu0 %2597
        %v2600 = vsel %vm1007, %v2591, 0
        %v2603 = vsel %vm1007, %v2598, 0
        %2605 = vmatpush.bf16.xpose.msra.mxu0 0
        %2606 = vmatpush.bf16.xpose.msra.mxu0 0
        %2607 = vmatpush.bf16.xpose.msra.mxu0 0
        %2608 = vmatpush.bf16.xpose.msra.mxu0 0
        %2609 = vmatpush.bf16.xpose.msra.mxu0 0
        %2610 = vmatpush.bf16.xpose.msra.mxu0 0
        %2611 = vmatpush.bf16.xpose.msra.mxu0 0
        %2612 = vmatpush.bf16.xpose.msra.mxu0 %v2603
        %2613 = vmatmul.bf16.gmra.mxu0 %v2600
        %v2614 = vpop.f32.mrf.mxu0
        %v2615 = vadd.f32 0.0, %v2614
        %v2616 = vpop.f32.mrf.mxu0
        %v2617 = vadd.f32 0.0, %v2616
        %2618 = vdwg.mxu0
        %v2621 = vunpack.c.l.b16 %v2507
        %v2622 = vunpack.c.l.b16 %v2508
        %v2623 = vpack.c.b16 %v2622, %v2621
        %2624 = vrot.lane.b32.xlu0 %v2623, 96
        %v2625 = vpop.permute.xlu0 %2624
        %v2628 = vunpack.c.l.b16 %v2523
        %v2629 = vunpack.c.l.b16 %v2524
        %v2630 = vpack.c.b16 %v2629, %v2628
        %2631 = vrot.lane.b32.xlu0 %v2630, 96
        %v2632 = vpop.permute.xlu0 %2631
        %v2634 = vsel %vm1007, %v2625, 0
        %v2637 = vsel %vm1007, %v2632, 0
        %2639 = vmatpush.bf16.xpose.msra.mxu0 0
        %2640 = vmatpush.bf16.xpose.msra.mxu0 0
        %2641 = vmatpush.bf16.xpose.msra.mxu0 0
        %2642 = vmatpush.bf16.xpose.msra.mxu0 0
        %2643 = vmatpush.bf16.xpose.msra.mxu0 0
        %2644 = vmatpush.bf16.xpose.msra.mxu0 0
        %2645 = vmatpush.bf16.xpose.msra.mxu0 0
        %2646 = vmatpush.bf16.xpose.msra.mxu0 %v2637
        %2647 = vmatmul.bf16.gmra.mxu0 %v2634
        %v2648 = vpop.f32.mrf.mxu0
        %v2649 = vadd.f32 0.0, %v2648
        %v2650 = vpop.f32.mrf.mxu0
        %v2651 = vadd.f32 0.0, %v2650
        %2652 = vdwg.mxu0
        %v2655 = vunpack.c.l.b16 %v2509
        %v2656 = vunpack.c.l.b16 %v2510
        %v2657 = vpack.c.b16 %v2656, %v2655
        %2658 = vrot.lane.b32.xlu0 %v2657, 96
        %v2659 = vpop.permute.xlu0 %2658
        %v2662 = vunpack.c.l.b16 %v2525
        %v2663 = vunpack.c.l.b16 %v2526
        %v2664 = vpack.c.b16 %v2663, %v2662
        %2665 = vrot.lane.b32.xlu0 %v2664, 96
        %v2666 = vpop.permute.xlu0 %2665
        %v2668 = vsel %vm1007, %v2659, 0
        %v2671 = vsel %vm1007, %v2666, 0
        %2673 = vmatpush.bf16.xpose.msra.mxu0 0
        %2674 = vmatpush.bf16.xpose.msra.mxu0 0
        %2675 = vmatpush.bf16.xpose.msra.mxu0 0
        %2676 = vmatpush.bf16.xpose.msra.mxu0 0
        %2677 = vmatpush.bf16.xpose.msra.mxu0 0
        %2678 = vmatpush.bf16.xpose.msra.mxu0 0
        %2679 = vmatpush.bf16.xpose.msra.mxu0 0
        %2680 = vmatpush.bf16.xpose.msra.mxu0 %v2671
        %2681 = vmatmul.bf16.gmra.mxu0 %v2668
        %v2682 = vpop.f32.mrf.mxu0
        %v2683 = vadd.f32 0.0, %v2682
        %v2684 = vpop.f32.mrf.mxu0
        %v2685 = vadd.f32 0.0, %v2684
        %2686 = vdwg.mxu0
        %v2689 = vunpack.c.l.b16 %v2511
        %v2690 = vunpack.c.l.b16 %v2512
        %v2691 = vpack.c.b16 %v2690, %v2689
        %2692 = vrot.lane.b32.xlu0 %v2691, 96
        %v2693 = vpop.permute.xlu0 %2692
        %v2696 = vunpack.c.l.b16 %v2527
        %v2697 = vunpack.c.l.b16 %v2528
        %v2698 = vpack.c.b16 %v2697, %v2696
        %2699 = vrot.lane.b32.xlu0 %v2698, 96
        %v2700 = vpop.permute.xlu0 %2699
        %v2702 = vsel %vm1007, %v2693, 0
        %v2705 = vsel %vm1007, %v2700, 0
        %2707 = vmatpush.bf16.xpose.msra.mxu0 0
        %2708 = vmatpush.bf16.xpose.msra.mxu0 0
        %2709 = vmatpush.bf16.xpose.msra.mxu0 0
        %2710 = vmatpush.bf16.xpose.msra.mxu0 0
        %2711 = vmatpush.bf16.xpose.msra.mxu0 0
        %2712 = vmatpush.bf16.xpose.msra.mxu0 0
        %2713 = vmatpush.bf16.xpose.msra.mxu0 0
        %2714 = vmatpush.bf16.xpose.msra.mxu0 %v2705
        %2715 = vmatmul.bf16.gmra.mxu0 %v2702
        %v2716 = vpop.f32.mrf.mxu0
        %v2717 = vadd.f32 0.0, %v2716
        %v2718 = vpop.f32.mrf.mxu0
        %v2719 = vadd.f32 0.0, %v2718
        %2720 = vdwg.mxu0
        %v2723 = vunpack.c.l.b16 %v2513
        %v2724 = vunpack.c.l.b16 %v2514
        %v2725 = vpack.c.b16 %v2724, %v2723
        %2726 = vrot.lane.b32.xlu0 %v2725, 96
        %v2727 = vpop.permute.xlu0 %2726
        %v2730 = vunpack.c.l.b16 %v2529
        %v2731 = vunpack.c.l.b16 %v2530
        %v2732 = vpack.c.b16 %v2731, %v2730
        %2733 = vrot.lane.b32.xlu0 %v2732, 96
        %v2734 = vpop.permute.xlu0 %2733
        %v2736 = vsel %vm1007, %v2727, 0
        %v2739 = vsel %vm1007, %v2734, 0
        %2741 = vmatpush.bf16.xpose.msra.mxu0 0
        %2742 = vmatpush.bf16.xpose.msra.mxu0 0
        %2743 = vmatpush.bf16.xpose.msra.mxu0 0
        %2744 = vmatpush.bf16.xpose.msra.mxu0 0
        %2745 = vmatpush.bf16.xpose.msra.mxu0 0
        %2746 = vmatpush.bf16.xpose.msra.mxu0 0
        %2747 = vmatpush.bf16.xpose.msra.mxu0 0
        %2748 = vmatpush.bf16.xpose.msra.mxu0 %v2739
        %2749 = vmatmul.bf16.gmra.mxu0 %v2736
        %v2750 = vpop.f32.mrf.mxu0
        %v2751 = vadd.f32 0.0, %v2750
        %v2752 = vpop.f32.mrf.mxu0
        %v2753 = vadd.f32 0.0, %v2752
        %2754 = vdwg.mxu0
        %v2757 = vunpack.c.l.b16 %v2515
        %v2758 = vunpack.c.l.b16 %v2516
        %v2759 = vpack.c.b16 %v2758, %v2757
        %2760 = vrot.lane.b32.xlu0 %v2759, 96
        %v2761 = vpop.permute.xlu0 %2760
        %v2764 = vunpack.c.l.b16 %v2531
        %v2765 = vunpack.c.l.b16 %v2532
        %v2766 = vpack.c.b16 %v2765, %v2764
        %2767 = vrot.lane.b32.xlu0 %v2766, 96
        %v2768 = vpop.permute.xlu0 %2767
        %v2770 = vsel %vm1007, %v2761, 0
        %v2773 = vsel %vm1007, %v2768, 0
        %2775 = vmatpush.bf16.xpose.msra.mxu0 0
        %2776 = vmatpush.bf16.xpose.msra.mxu0 0
        %2777 = vmatpush.bf16.xpose.msra.mxu0 0
        %2778 = vmatpush.bf16.xpose.msra.mxu0 0
        %2779 = vmatpush.bf16.xpose.msra.mxu0 0
        %2780 = vmatpush.bf16.xpose.msra.mxu0 0
        %2781 = vmatpush.bf16.xpose.msra.mxu0 0
        %2782 = vmatpush.bf16.xpose.msra.mxu0 %v2773
        %2783 = vmatmul.bf16.gmra.mxu0 %v2770
        %v2784 = vpop.f32.mrf.mxu0
        %v2785 = vadd.f32 0.0, %v2784
        %v2786 = vpop.f32.mrf.mxu0
        %v2787 = vadd.f32 0.0, %v2786
        %2788 = vdwg.mxu0
        %v2791 = vunpack.c.l.b16 %v2517
        %v2792 = vunpack.c.l.b16 %v2518
        %v2793 = vpack.c.b16 %v2792, %v2791
        %2794 = vrot.lane.b32.xlu0 %v2793, 96
        %v2795 = vpop.permute.xlu0 %2794
        %v2798 = vunpack.c.l.b16 %v2533
        %v2799 = vunpack.c.l.b16 %v2534
        %v2800 = vpack.c.b16 %v2799, %v2798
        %2801 = vrot.lane.b32.xlu0 %v2800, 96
        %v2802 = vpop.permute.xlu0 %2801
        %v2804 = vsel %vm1007, %v2795, 0
        %v2807 = vsel %vm1007, %v2802, 0
        %2809 = vmatpush.bf16.xpose.msra.mxu0 0
        %2810 = vmatpush.bf16.xpose.msra.mxu0 0
        %2811 = vmatpush.bf16.xpose.msra.mxu0 0
        %2812 = vmatpush.bf16.xpose.msra.mxu0 0
        %2813 = vmatpush.bf16.xpose.msra.mxu0 0
        %2814 = vmatpush.bf16.xpose.msra.mxu0 0
        %2815 = vmatpush.bf16.xpose.msra.mxu0 0
        %2816 = vmatpush.bf16.xpose.msra.mxu0 %v2807
        %2817 = vmatmul.bf16.gmra.mxu0 %v2804
        %v2818 = vpop.f32.mrf.mxu0
        %v2819 = vadd.f32 0.0, %v2818
        %v2820 = vpop.f32.mrf.mxu0
        %v2821 = vadd.f32 0.0, %v2820
        %2822 = vdwg.mxu0
        %v2823 = vsel %vm1007, %v2581, -inf
        %2824 = vmax.xlane.f32.xlu0 %v2823
        %v2825 = vpop.xlane.xlu0 %2824
        %v2826 = vsel %vm1007, %v2583, -inf
        %2827 = vmax.xlane.f32.xlu0 %v2826
        %v2828 = vpop.xlane.xlu0 %2827
        %v2829 = vsel %vm1007, %v2615, -inf
        %2830 = vmax.xlane.f32.xlu0 %v2829
        %v2831 = vpop.xlane.xlu0 %2830
        %v2832 = vsel %vm1007, %v2617, -inf
        %2833 = vmax.xlane.f32.xlu0 %v2832
        %v2834 = vpop.xlane.xlu0 %2833
        %v2835 = vsel %vm1007, %v2649, -inf
        %2836 = vmax.xlane.f32.xlu0 %v2835
        %v2837 = vpop.xlane.xlu0 %2836
        %v2838 = vsel %vm1007, %v2651, -inf
        %2839 = vmax.xlane.f32.xlu0 %v2838
        %v2840 = vpop.xlane.xlu0 %2839
        %v2841 = vsel %vm1007, %v2683, -inf
        %2842 = vmax.xlane.f32.xlu0 %v2841
        %v2843 = vpop.xlane.xlu0 %2842
        %v2844 = vsel %vm1007, %v2685, -inf
        %2845 = vmax.xlane.f32.xlu0 %v2844
        %v2846 = vpop.xlane.xlu0 %2845
        %v2847 = vsel %vm1007, %v2717, -inf
        %2848 = vmax.xlane.f32.xlu0 %v2847
        %v2849 = vpop.xlane.xlu0 %2848
        %v2850 = vsel %vm1007, %v2719, -inf
        %2851 = vmax.xlane.f32.xlu0 %v2850
        %v2852 = vpop.xlane.xlu0 %2851
        %v2853 = vsel %vm1007, %v2751, -inf
        %2854 = vmax.xlane.f32.xlu0 %v2853
        %v2855 = vpop.xlane.xlu0 %2854
        %v2856 = vsel %vm1007, %v2753, -inf
        %2857 = vmax.xlane.f32.xlu0 %v2856
        %v2858 = vpop.xlane.xlu0 %2857
        %v2859 = vsel %vm1007, %v2785, -inf
        %2860 = vmax.xlane.f32.xlu0 %v2859
        %v2861 = vpop.xlane.xlu0 %2860
        %v2862 = vsel %vm1007, %v2787, -inf
        %2863 = vmax.xlane.f32.xlu0 %v2862
        %v2864 = vpop.xlane.xlu0 %2863
        %v2865 = vsel %vm1007, %v2819, -inf
        %2866 = vmax.xlane.f32.xlu0 %v2865
        %v2867 = vpop.xlane.xlu0 %2866
        %v2868 = vsel %vm1007, %v2821, -inf
        %2869 = vmax.xlane.f32.xlu0 %v2868
        %v2870 = vpop.xlane.xlu0 %2869
        %v2871 = vsub.f32 %v2581, %v2825
        %v2872 = vsub.f32 %v2583, %v2828
        %v2873 = vsub.f32 %v2615, %v2831
        %v2874 = vsub.f32 %v2617, %v2834
        %v2875 = vsub.f32 %v2649, %v2837
        %v2876 = vsub.f32 %v2651, %v2840
        %v2877 = vsub.f32 %v2683, %v2843
        %v2878 = vsub.f32 %v2685, %v2846
        %v2879 = vsub.f32 %v2717, %v2849
        %v2880 = vsub.f32 %v2719, %v2852
        %v2881 = vsub.f32 %v2751, %v2855
        %v2882 = vsub.f32 %v2753, %v2858
        %v2883 = vsub.f32 %v2785, %v2861
        %v2884 = vsub.f32 %v2787, %v2864
        %v2885 = vsub.f32 %v2819, %v2867
        %v2886 = vsub.f32 %v2821, %v2870
        %v2887 = vmul.f32 %v2871, 1.442695
        %v2888 = vpow.pop %v2887
        %v2889 = vmul.f32 %v2872, 1.442695
        %v2890 = vpow.pop %v2889
        %v2891 = vmul.f32 %v2873, 1.442695
        %v2892 = vpow.pop %v2891
        %v2893 = vmul.f32 %v2874, 1.442695
        %v2894 = vpow.pop %v2893
        %v2895 = vmul.f32 %v2875, 1.442695
        %v2896 = vpow.pop %v2895
        %v2897 = vmul.f32 %v2876, 1.442695
        %v2898 = vpow.pop %v2897
        %v2899 = vmul.f32 %v2877, 1.442695
        %v2900 = vpow.pop %v2899
        %v2901 = vmul.f32 %v2878, 1.442695
        %v2902 = vpow.pop %v2901
        %v2903 = vmul.f32 %v2879, 1.442695
        %v2904 = vpow.pop %v2903
        %v2905 = vmul.f32 %v2880, 1.442695
        %v2906 = vpow.pop %v2905
        %v2907 = vmul.f32 %v2881, 1.442695
        %v2908 = vpow.pop %v2907
        %v2909 = vmul.f32 %v2882, 1.442695
        %v2910 = vpow.pop %v2909
        %v2911 = vmul.f32 %v2883, 1.442695
        %v2912 = vpow.pop %v2911
        %v2913 = vmul.f32 %v2884, 1.442695
        %v2914 = vpow.pop %v2913
        %v2915 = vmul.f32 %v2885, 1.442695
        %v2916 = vpow.pop %v2915
        %v2917 = vmul.f32 %v2886, 1.442695
        %v2918 = vpow.pop %v2917
        %v2919 = vsel %vm1007, %v2888, 0.0
        %2920 = vadd.xlane.f32.xlu0 %v2919
        %v2921 = vpop.xlane.xlu0 %2920
        %v2922 = vsel %vm1007, %v2890, 0.0
        %2923 = vadd.xlane.f32.xlu0 %v2922
        %v2924 = vpop.xlane.xlu0 %2923
        %v2925 = vsel %vm1007, %v2892, 0.0
        %2926 = vadd.xlane.f32.xlu0 %v2925
        %v2927 = vpop.xlane.xlu0 %2926
        %v2928 = vsel %vm1007, %v2894, 0.0
        %2929 = vadd.xlane.f32.xlu0 %v2928
        %v2930 = vpop.xlane.xlu0 %2929
        %v2931 = vsel %vm1007, %v2896, 0.0
        %2932 = vadd.xlane.f32.xlu0 %v2931
        %v2933 = vpop.xlane.xlu0 %2932
        %v2934 = vsel %vm1007, %v2898, 0.0
        %2935 = vadd.xlane.f32.xlu0 %v2934
        %v2936 = vpop.xlane.xlu0 %2935
        %v2937 = vsel %vm1007, %v2900, 0.0
        %2938 = vadd.xlane.f32.xlu0 %v2937
        %v2939 = vpop.xlane.xlu0 %2938
        %v2940 = vsel %vm1007, %v2902, 0.0
        %2941 = vadd.xlane.f32.xlu0 %v2940
        %v2942 = vpop.xlane.xlu0 %2941
        %v2943 = vsel %vm1007, %v2904, 0.0
        %2944 = vadd.xlane.f32.xlu0 %v2943
        %v2945 = vpop.xlane.xlu0 %2944
        %v2946 = vsel %vm1007, %v2906, 0.0
        %2947 = vadd.xlane.f32.xlu0 %v2946
        %v2948 = vpop.xlane.xlu0 %2947
        %v2949 = vsel %vm1007, %v2908, 0.0
        %2950 = vadd.xlane.f32.xlu0 %v2949
        %v2951 = vpop.xlane.xlu0 %2950
        %v2952 = vsel %vm1007, %v2910, 0.0
        %2953 = vadd.xlane.f32.xlu0 %v2952
        %v2954 = vpop.xlane.xlu0 %2953
        %v2955 = vsel %vm1007, %v2912, 0.0
        %2956 = vadd.xlane.f32.xlu0 %v2955
        %v2957 = vpop.xlane.xlu0 %2956
        %v2958 = vsel %vm1007, %v2914, 0.0
        %2959 = vadd.xlane.f32.xlu0 %v2958
        %v2960 = vpop.xlane.xlu0 %2959
        %v2961 = vsel %vm1007, %v2916, 0.0
        %2962 = vadd.xlane.f32.xlu0 %v2961
        %v2963 = vpop.xlane.xlu0 %2962
        %v2964 = vsel %vm1007, %v2918, 0.0
        %2965 = vadd.xlane.f32.xlu0 %v2964
        %v2966 = vpop.xlane.xlu0 %2965
        %v2967 = vrcp.pop %v2921
        %v2968 = vrcp.pop %v2924
        %v2969 = vrcp.pop %v2927
        %v2970 = vrcp.pop %v2930
        %v2971 = vrcp.pop %v2933
        %v2972 = vrcp.pop %v2936
        %v2973 = vrcp.pop %v2939
        %v2974 = vrcp.pop %v2942
        %v2975 = vrcp.pop %v2945
        %v2976 = vrcp.pop %v2948
        %v2977 = vrcp.pop %v2951
        %v2978 = vrcp.pop %v2954
        %v2979 = vrcp.pop %v2957
        %v2980 = vrcp.pop %v2960
        %v2981 = vrcp.pop %v2963
        %v2982 = vrcp.pop %v2966
        %v2983 = vmul.f32 %v2888, %v2967
        %v2984 = vmul.f32 %v2890, %v2968
        %v2985 = vmul.f32 %v2892, %v2969
        %v2986 = vmul.f32 %v2894, %v2970
        %v2987 = vmul.f32 %v2896, %v2971
        %v2988 = vmul.f32 %v2898, %v2972
        %v2989 = vmul.f32 %v2900, %v2973
        %v2990 = vmul.f32 %v2902, %v2974
        %v2991 = vmul.f32 %v2904, %v2975
        %v2992 = vmul.f32 %v2906, %v2976
        %v2993 = vmul.f32 %v2908, %v2977
        %v2994 = vmul.f32 %v2910, %v2978
        %v2995 = vmul.f32 %v2912, %v2979
        %v2996 = vmul.f32 %v2914, %v2980
        %v2997 = vmul.f32 %v2916, %v2981
        %v2998 = vmul.f32 %v2918, %v2982
        %v2999 = vpack.c.bf16 %v2983, %v2983
        %v3000 = vpack.c.bf16 %v2984, %v2984
        %v3001 = vpack.c.bf16 %v2985, %v2985
        %v3002 = vpack.c.bf16 %v2986, %v2986
        %v3003 = vpack.c.bf16 %v2987, %v2987
        %v3004 = vpack.c.bf16 %v2988, %v2988
        %v3005 = vpack.c.bf16 %v2989, %v2989
        %v3006 = vpack.c.bf16 %v2990, %v2990
        %v3007 = vpack.c.bf16 %v2991, %v2991
        %v3008 = vpack.c.bf16 %v2992, %v2992
        %v3009 = vpack.c.bf16 %v2993, %v2993
        %v3010 = vpack.c.bf16 %v2994, %v2994
        %v3011 = vpack.c.bf16 %v2995, %v2995
        %v3012 = vpack.c.bf16 %v2996, %v2996
        %v3013 = vpack.c.bf16 %v2997, %v2997
        %v3014 = vpack.c.bf16 %v2998, %v2998
        %v3017 = vunpack.c.l.b16 %v2999
        %v3018 = vunpack.c.l.b16 %v3000
        %v3019 = vpack.c.b16 %v3018, %v3017
        %v3022 = vunpack.c.l.b16 %v2535
        %v3023 = vunpack.c.l.b16 %v2536
        %v3024 = vpack.c.b16 %v3023, %v3022
        %3025 = vrot.lane.b32.xlu0 %v3024, 96
        %v3026 = vpop.permute.xlu0 %3025
        %v3029 = vsel %vm1007, %v3019, 0
        %3031 = vmatpush.bf16.msra.mxu0 0
        %3032 = vmatpush.bf16.msra.mxu0 0
        %3033 = vmatpush.bf16.msra.mxu0 0
        %3034 = vmatpush.bf16.msra.mxu0 0
        %3035 = vmatpush.bf16.msra.mxu0 0
        %3036 = vmatpush.bf16.msra.mxu0 0
        %3037 = vmatpush.bf16.msra.mxu0 0
        %3038 = vmatpush.bf16.msra.mxu0 %v3026
        %3039 = vmatmul.bf16.gmra.mxu0 %v3029
        %v3040 = vpop.f32.mrf.mxu0
        %v3041 = vadd.f32 0.0, %v3040
        %v3042 = vpop.f32.mrf.mxu0
        %v3043 = vadd.f32 0.0, %v3042
        %3044 = vdwg.mxu0
        %v3047 = vunpack.c.l.b16 %v3001
        %v3048 = vunpack.c.l.b16 %v3002
        %v3049 = vpack.c.b16 %v3048, %v3047
        %v3052 = vunpack.c.l.b16 %v2537
        %v3053 = vunpack.c.l.b16 %v2538
        %v3054 = vpack.c.b16 %v3053, %v3052
        %3055 = vrot.lane.b32.xlu0 %v3054, 96
        %v3056 = vpop.permute.xlu0 %3055
        %v3059 = vsel %vm1007, %v3049, 0
        %3061 = vmatpush.bf16.msra.mxu0 0
        %3062 = vmatpush.bf16.msra.mxu0 0
        %3063 = vmatpush.bf16.msra.mxu0 0
        %3064 = vmatpush.bf16.msra.mxu0 0
        %3065 = vmatpush.bf16.msra.mxu0 0
        %3066 = vmatpush.bf16.msra.mxu0 0
        %3067 = vmatpush.bf16.msra.mxu0 0
        %3068 = vmatpush.bf16.msra.mxu0 %v3056
        %3069 = vmatmul.bf16.gmra.mxu0 %v3059
        %v3070 = vpop.f32.mrf.mxu0
        %v3071 = vadd.f32 0.0, %v3070
        %v3072 = vpop.f32.mrf.mxu0
        %v3073 = vadd.f32 0.0, %v3072
        %3074 = vdwg.mxu0
        %v3077 = vunpack.c.l.b16 %v3003
        %v3078 = vunpack.c.l.b16 %v3004
        %v3079 = vpack.c.b16 %v3078, %v3077
        %v3082 = vunpack.c.l.b16 %v2539
        %v3083 = vunpack.c.l.b16 %v2540
        %v3084 = vpack.c.b16 %v3083, %v3082
        %3085 = vrot.lane.b32.xlu0 %v3084, 96
        %v3086 = vpop.permute.xlu0 %3085
        %v3089 = vsel %vm1007, %v3079, 0
        %3091 = vmatpush.bf16.msra.mxu0 0
        %3092 = vmatpush.bf16.msra.mxu0 0
        %3093 = vmatpush.bf16.msra.mxu0 0
        %3094 = vmatpush.bf16.msra.mxu0 0
        %3095 = vmatpush.bf16.msra.mxu0 0
        %3096 = vmatpush.bf16.msra.mxu0 0
        %3097 = vmatpush.bf16.msra.mxu0 0
        %3098 = vmatpush.bf16.msra.mxu0 %v3086
        %3099 = vmatmul.bf16.gmra.mxu0 %v3089
        %v3100 = vpop.f32.mrf.mxu0
        %v3101 = vadd.f32 0.0, %v3100
        %v3102 = vpop.f32.mrf.mxu0
        %v3103 = vadd.f32 0.0, %v3102
        %3104 = vdwg.mxu0
        %v3107 = vunpack.c.l.b16 %v3005
        %v3108 = vunpack.c.l.b16 %v3006
        %v3109 = vpack.c.b16 %v3108, %v3107
        %v3112 = vunpack.c.l.b16 %v2541
        %v3113 = vunpack.c.l.b16 %v2542
        %v3114 = vpack.c.b16 %v3113, %v3112
        %3115 = vrot.lane.b32.xlu0 %v3114, 96
        %v3116 = vpop.permute.xlu0 %3115
        %v3119 = vsel %vm1007, %v3109, 0
        %3121 = vmatpush.bf16.msra.mxu0 0
        %3122 = vmatpush.bf16.msra.mxu0 0
        %3123 = vmatpush.bf16.msra.mxu0 0
        %3124 = vmatpush.bf16.msra.mxu0 0
        %3125 = vmatpush.bf16.msra.mxu0 0
        %3126 = vmatpush.bf16.msra.mxu0 0
        %3127 = vmatpush.bf16.msra.mxu0 0
        %3128 = vmatpush.bf16.msra.mxu0 %v3116
        %3129 = vmatmul.bf16.gmra.mxu0 %v3119
        %v3130 = vpop.f32.mrf.mxu0
        %v3131 = vadd.f32 0.0, %v3130
        %v3132 = vpop.f32.mrf.mxu0
        %v3133 = vadd.f32 0.0, %v3132
        %3134 = vdwg.mxu0
        %v3137 = vunpack.c.l.b16 %v3007
        %v3138 = vunpack.c.l.b16 %v3008
        %v3139 = vpack.c.b16 %v3138, %v3137
        %v3142 = vunpack.c.l.b16 %v2543
        %v3143 = vunpack.c.l.b16 %v2544
        %v3144 = vpack.c.b16 %v3143, %v3142
        %3145 = vrot.lane.b32.xlu0 %v3144, 96
        %v3146 = vpop.permute.xlu0 %3145
        %v3149 = vsel %vm1007, %v3139, 0
        %3151 = vmatpush.bf16.msra.mxu0 0
        %3152 = vmatpush.bf16.msra.mxu0 0
        %3153 = vmatpush.bf16.msra.mxu0 0
        %3154 = vmatpush.bf16.msra.mxu0 0
        %3155 = vmatpush.bf16.msra.mxu0 0
        %3156 = vmatpush.bf16.msra.mxu0 0
        %3157 = vmatpush.bf16.msra.mxu0 0
        %3158 = vmatpush.bf16.msra.mxu0 %v3146
        %3159 = vmatmul.bf16.gmra.mxu0 %v3149
        %v3160 = vpop.f32.mrf.mxu0
        %v3161 = vadd.f32 0.0, %v3160
        %v3162 = vpop.f32.mrf.mxu0
        %v3163 = vadd.f32 0.0, %v3162
        %3164 = vdwg.mxu0
        %v3167 = vunpack.c.l.b16 %v3009
        %v3168 = vunpack.c.l.b16 %v3010
        %v3169 = vpack.c.b16 %v3168, %v3167
        %v3172 = vunpack.c.l.b16 %v2545
        %v3173 = vunpack.c.l.b16 %v2546
        %v3174 = vpack.c.b16 %v3173, %v3172
        %3175 = vrot.lane.b32.xlu0 %v3174, 96
        %v3176 = vpop.permute.xlu0 %3175
        %v3179 = vsel %vm1007, %v3169, 0
        %3181 = vmatpush.bf16.msra.mxu0 0
        %3182 = vmatpush.bf16.msra.mxu0 0
        %3183 = vmatpush.bf16.msra.mxu0 0
        %3184 = vmatpush.bf16.msra.mxu0 0
        %3185 = vmatpush.bf16.msra.mxu0 0
        %3186 = vmatpush.bf16.msra.mxu0 0
        %3187 = vmatpush.bf16.msra.mxu0 0
        %3188 = vmatpush.bf16.msra.mxu0 %v3176
        %3189 = vmatmul.bf16.gmra.mxu0 %v3179
        %v3190 = vpop.f32.mrf.mxu0
        %v3191 = vadd.f32 0.0, %v3190
        %v3192 = vpop.f32.mrf.mxu0
        %v3193 = vadd.f32 0.0, %v3192
        %3194 = vdwg.mxu0
        %v3197 = vunpack.c.l.b16 %v3011
        %v3198 = vunpack.c.l.b16 %v3012
        %v3199 = vpack.c.b16 %v3198, %v3197
        %v3202 = vunpack.c.l.b16 %v2547
        %v3203 = vunpack.c.l.b16 %v2548
        %v3204 = vpack.c.b16 %v3203, %v3202
        %3205 = vrot.lane.b32.xlu0 %v3204, 96
        %v3206 = vpop.permute.xlu0 %3205
        %v3209 = vsel %vm1007, %v3199, 0
        %3211 = vmatpush.bf16.msra.mxu0 0
        %3212 = vmatpush.bf16.msra.mxu0 0
        %3213 = vmatpush.bf16.msra.mxu0 0
        %3214 = vmatpush.bf16.msra.mxu0 0
        %3215 = vmatpush.bf16.msra.mxu0 0
        %3216 = vmatpush.bf16.msra.mxu0 0
        %3217 = vmatpush.bf16.msra.mxu0 0
        %3218 = vmatpush.bf16.msra.mxu0 %v3206
        %3219 = vmatmul.bf16.gmra.mxu0 %v3209
        %v3220 = vpop.f32.mrf.mxu0
        %v3221 = vadd.f32 0.0, %v3220
        %v3222 = vpop.f32.mrf.mxu0
        %v3223 = vadd.f32 0.0, %v3222
        %3224 = vdwg.mxu0
        %v3227 = vunpack.c.l.b16 %v3013
        %v3228 = vunpack.c.l.b16 %v3014
        %v3229 = vpack.c.b16 %v3228, %v3227
        %v3232 = vunpack.c.l.b16 %v2549
        %v3233 = vunpack.c.l.b16 %v2550
        %v3234 = vpack.c.b16 %v3233, %v3232
        %3235 = vrot.lane.b32.xlu0 %v3234, 96
        %v3236 = vpop.permute.xlu0 %3235
        %v3239 = vsel %vm1007, %v3229, 0
        %3241 = vmatpush.bf16.msra.mxu0 0
        %3242 = vmatpush.bf16.msra.mxu0 0
        %3243 = vmatpush.bf16.msra.mxu0 0
        %3244 = vmatpush.bf16.msra.mxu0 0
        %3245 = vmatpush.bf16.msra.mxu0 0
        %3246 = vmatpush.bf16.msra.mxu0 0
        %3247 = vmatpush.bf16.msra.mxu0 0
        %3248 = vmatpush.bf16.msra.mxu0 %v3236
        %3249 = vmatmul.bf16.gmra.mxu0 %v3239
        %v3250 = vpop.f32.mrf.mxu0
        %v3251 = vadd.f32 0.0, %v3250
        %v3252 = vpop.f32.mrf.mxu0
        %v3253 = vadd.f32 0.0, %v3252
        %3254 = vdwg.mxu0
        %3271 = vrot.lane.b32.xlu0 %v3041, 32
        %v3272 = vpop.permute.xlu0 %3271
        %3273 = vrot.lane.b32.xlu0 %v3043, 32
        %v3274 = vpop.permute.xlu0 %3273
        %3275 = vrot.lane.b32.xlu0 %v3071, 32
        %v3276 = vpop.permute.xlu0 %3275
        %3277 = vrot.lane.b32.xlu0 %v3073, 32
        %v3278 = vpop.permute.xlu0 %3277
        %3279 = vrot.lane.b32.xlu0 %v3101, 32
        %v3280 = vpop.permute.xlu0 %3279
        %3281 = vrot.lane.b32.xlu0 %v3103, 32
        %v3282 = vpop.permute.xlu0 %3281
        %3283 = vrot.lane.b32.xlu0 %v3131, 32
        %v3284 = vpop.permute.xlu0 %3283
        %3285 = vrot.lane.b32.xlu0 %v3133, 32
        %v3286 = vpop.permute.xlu0 %3285
        %3287 = vrot.lane.b32.xlu0 %v3161, 32
        %v3288 = vpop.permute.xlu0 %3287
        %3289 = vrot.lane.b32.xlu0 %v3163, 32
        %v3290 = vpop.permute.xlu0 %3289
        %3291 = vrot.lane.b32.xlu0 %v3191, 32
        %v3292 = vpop.permute.xlu0 %3291
        %3293 = vrot.lane.b32.xlu0 %v3193, 32
        %v3294 = vpop.permute.xlu0 %3293
        %3295 = vrot.lane.b32.xlu0 %v3221, 32
        %v3296 = vpop.permute.xlu0 %3295
        %3297 = vrot.lane.b32.xlu0 %v3223, 32
        %v3298 = vpop.permute.xlu0 %3297
        %3299 = vrot.lane.b32.xlu0 %v3251, 32
        %v3300 = vpop.permute.xlu0 %3299
        %3301 = vrot.lane.b32.xlu0 %v3253, 32
        %v3302 = vpop.permute.xlu0 %3301
        %vm3319 = vcmask 392448
        %3320 = vst.msk [vmem:[#allocation3] sm:$0xff] %vm3319, %v3272
        %3321 = vst.msk [vmem:[#allocation3 + $0x8] sm:$0xff] %vm3319, %v3274
        %3322 = vst.msk [vmem:[#allocation3 + $0x10] sm:$0xff] %vm3319, %v3276
        %3323 = vst.msk [vmem:[#allocation3 + $0x18] sm:$0xff] %vm3319, %v3278
        %3324 = vst.msk [vmem:[#allocation3 + $0x20] sm:$0xff] %vm3319, %v3280
        %3325 = vst.msk [vmem:[#allocation3 + $0x28] sm:$0xff] %vm3319, %v3282
        %3326 = vst.msk [vmem:[#allocation3 + $0x30] sm:$0xff] %vm3319, %v3284
        %3327 = vst.msk [vmem:[#allocation3 + $0x38] sm:$0xff] %vm3319, %v3286
        %3328 = vst.msk [vmem:[#allocation3 + $0x40] sm:$0xff] %vm3319, %v3288
        %3329 = vst.msk [vmem:[#allocation3 + $0x48] sm:$0xff] %vm3319, %v3290
        %3330 = vst.msk [vmem:[#allocation3 + $0x50] sm:$0xff] %vm3319, %v3292
        %3331 = vst.msk [vmem:[#allocation3 + $0x58] sm:$0xff] %vm3319, %v3294
        %3332 = vst.msk [vmem:[#allocation3 + $0x60] sm:$0xff] %vm3319, %v3296
        %3333 = vst.msk [vmem:[#allocation3 + $0x68] sm:$0xff] %vm3319, %v3298
        %3334 = vst.msk [vmem:[#allocation3 + $0x70] sm:$0xff] %vm3319, %v3300
        %3335 = vst.msk [vmem:[#allocation3 + $0x78] sm:$0xff] %vm3319, %v3302
        %v3336 = vld [vmem:[#allocation2] sm:$0xf]
        %v3337 = vld [vmem:[#allocation2 + $0xc] sm:$0xf]
        %v3338 = vld [vmem:[#allocation2 + $0x18] sm:$0xf]
        %v3339 = vld [vmem:[#allocation2 + $0x24] sm:$0xf]
        %v3340 = vld [vmem:[#allocation2 + $0x30] sm:$0xf]
        %v3341 = vld [vmem:[#allocation2 + $0x3c] sm:$0xf]
        %v3342 = vld [vmem:[#allocation2 + $0x48] sm:$0xf]
        %v3343 = vld [vmem:[#allocation2 + $0x54] sm:$0xf]
        %v3344 = vld [vmem:[#allocation2 + $0x60] sm:$0xf]
        %v3345 = vld [vmem:[#allocation2 + $0x6c] sm:$0xf]
        %v3346 = vld [vmem:[#allocation2 + $0x78] sm:$0xf]
        %v3347 = vld [vmem:[#allocation2 + $0x84] sm:$0xf]
        %v3348 = vld [vmem:[#allocation2 + $0x90] sm:$0xf]
        %v3349 = vld [vmem:[#allocation2 + $0x9c] sm:$0xf]
        %v3350 = vld [vmem:[#allocation2 + $0xa8] sm:$0xf]
        %v3351 = vld [vmem:[#allocation2 + $0xb4] sm:$0xf]
        %v3352 = vld [vmem:[#allocation2 + $0x4] sm:$0xf]
        %v3353 = vld [vmem:[#allocation2 + $0x10] sm:$0xf]
        %v3354 = vld [vmem:[#allocation2 + $0x1c] sm:$0xf]
        %v3355 = vld [vmem:[#allocation2 + $0x28] sm:$0xf]
        %v3356 = vld [vmem:[#allocation2 + $0x34] sm:$0xf]
        %v3357 = vld [vmem:[#allocation2 + $0x40] sm:$0xf]
        %v3358 = vld [vmem:[#allocation2 + $0x4c] sm:$0xf]
        %v3359 = vld [vmem:[#allocation2 + $0x58] sm:$0xf]
        %v3360 = vld [vmem:[#allocation2 + $0x64] sm:$0xf]
        %v3361 = vld [vmem:[#allocation2 + $0x70] sm:$0xf]
        %v3362 = vld [vmem:[#allocation2 + $0x7c] sm:$0xf]
        %v3363 = vld [vmem:[#allocation2 + $0x88] sm:$0xf]
        %v3364 = vld [vmem:[#allocation2 + $0x94] sm:$0xf]
        %v3365 = vld [vmem:[#allocation2 + $0xa0] sm:$0xf]
        %v3366 = vld [vmem:[#allocation2 + $0xac] sm:$0xf]
        %v3367 = vld [vmem:[#allocation2 + $0xb8] sm:$0xf]
        %v3368 = vld [vmem:[#allocation2 + $0x8] sm:$0xf]
        %v3369 = vld [vmem:[#allocation2 + $0x14] sm:$0xf]
        %v3370 = vld [vmem:[#allocation2 + $0x20] sm:$0xf]
        %v3371 = vld [vmem:[#allocation2 + $0x2c] sm:$0xf]
        %v3372 = vld [vmem:[#allocation2 + $0x38] sm:$0xf]
        %v3373 = vld [vmem:[#allocation2 + $0x44] sm:$0xf]
        %v3374 = vld [vmem:[#allocation2 + $0x50] sm:$0xf]
        %v3375 = vld [vmem:[#allocation2 + $0x5c] sm:$0xf]
        %v3376 = vld [vmem:[#allocation2 + $0x68] sm:$0xf]
        %v3377 = vld [vmem:[#allocation2 + $0x74] sm:$0xf]
        %v3378 = vld [vmem:[#allocation2 + $0x80] sm:$0xf]
        %v3379 = vld [vmem:[#allocation2 + $0x8c] sm:$0xf]
        %v3380 = vld [vmem:[#allocation2 + $0x98] sm:$0xf]
        %v3381 = vld [vmem:[#allocation2 + $0xa4] sm:$0xf]
        %v3382 = vld [vmem:[#allocation2 + $0xb0] sm:$0xf]
        %v3383 = vld [vmem:[#allocation2 + $0xbc] sm:$0xf]
        %v3386 = vunpack.c.l.b16 %v3336
        %v3387 = vunpack.c.l.b16 %v3337
        %v3388 = vpack.c.b16 %v3387, %v3386
        %3389 = vrot.lane.b32.xlu0 %v3388, 80
        %v3390 = vpop.permute.xlu0 %3389
        %v3393 = vunpack.c.l.b16 %v3352
        %v3394 = vunpack.c.l.b16 %v3353
        %v3395 = vpack.c.b16 %v3394, %v3393
        %3396 = vrot.lane.b32.xlu0 %v3395, 80
        %v3397 = vpop.permute.xlu0 %3396
        %v3399 = vsel %vm1007, %v3390, 0
        %v3402 = vsel %vm1007, %v3397, 0
        %3404 = vmatpush.bf16.xpose.msra.mxu0 0
        %3405 = vmatpush.bf16.xpose.msra.mxu0 0
        %3406 = vmatpush.bf16.xpose.msra.mxu0 0
        %3407 = vmatpush.bf16.xpose.msra.mxu0 0
        %3408 = vmatpush.bf16.xpose.msra.mxu0 0
        %3409 = vmatpush.bf16.xpose.msra.mxu0 0
        %3410 = vmatpush.bf16.xpose.msra.mxu0 0
        %3411 = vmatpush.bf16.xpose.msra.mxu0 %v3402
        %3412 = vmatmul.bf16.gmra.mxu0 %v3399
        %v3413 = vpop.f32.mrf.mxu0
        %v3414 = vadd.f32 0.0, %v3413
        %v3415 = vpop.f32.mrf.mxu0
        %v3416 = vadd.f32 0.0, %v3415
        %3417 = vdwg.mxu0
        %v3420 = vunpack.c.l.b16 %v3338
        %v3421 = vunpack.c.l.b16 %v3339
        %v3422 = vpack.c.b16 %v3421, %v3420
        %3423 = vrot.lane.b32.xlu0 %v3422, 80
        %v3424 = vpop.permute.xlu0 %3423
        %v3427 = vunpack.c.l.b16 %v3354
        %v3428 = vunpack.c.l.b16 %v3355
        %v3429 = vpack.c.b16 %v3428, %v3427
        %3430 = vrot.lane.b32.xlu0 %v3429, 80
        %v3431 = vpop.permute.xlu0 %3430
        %v3433 = vsel %vm1007, %v3424, 0
        %v3436 = vsel %vm1007, %v3431, 0
        %3438 = vmatpush.bf16.xpose.msra.mxu0 0
        %3439 = vmatpush.bf16.xpose.msra.mxu0 0
        %3440 = vmatpush.bf16.xpose.msra.mxu0 0
        %3441 = vmatpush.bf16.xpose.msra.mxu0 0
        %3442 = vmatpush.bf16.xpose.msra.mxu0 0
        %3443 = vmatpush.bf16.xpose.msra.mxu0 0
        %3444 = vmatpush.bf16.xpose.msra.mxu0 0
        %3445 = vmatpush.bf16.xpose.msra.mxu0 %v3436
        %3446 = vmatmul.bf16.gmra.mxu0 %v3433
        %v3447 = vpop.f32.mrf.mxu0
        %v3448 = vadd.f32 0.0, %v3447
        %v3449 = vpop.f32.mrf.mxu0
        %v3450 = vadd.f32 0.0, %v3449
        %3451 = vdwg.mxu0
        %v3454 = vunpack.c.l.b16 %v3340
        %v3455 = vunpack.c.l.b16 %v3341
        %v3456 = vpack.c.b16 %v3455, %v3454
        %3457 = vrot.lane.b32.xlu0 %v3456, 80
        %v3458 = vpop.permute.xlu0 %3457
        %v3461 = vunpack.c.l.b16 %v3356
        %v3462 = vunpack.c.l.b16 %v3357
        %v3463 = vpack.c.b16 %v3462, %v3461
        %3464 = vrot.lane.b32.xlu0 %v3463, 80
        %v3465 = vpop.permute.xlu0 %3464
        %v3467 = vsel %vm1007, %v3458, 0
        %v3470 = vsel %vm1007, %v3465, 0
        %3472 = vmatpush.bf16.xpose.msra.mxu0 0
        %3473 = vmatpush.bf16.xpose.msra.mxu0 0
        %3474 = vmatpush.bf16.xpose.msra.mxu0 0
        %3475 = vmatpush.bf16.xpose.msra.mxu0 0
        %3476 = vmatpush.bf16.xpose.msra.mxu0 0
        %3477 = vmatpush.bf16.xpose.msra.mxu0 0
        %3478 = vmatpush.bf16.xpose.msra.mxu0 0
        %3479 = vmatpush.bf16.xpose.msra.mxu0 %v3470
        %3480 = vmatmul.bf16.gmra.mxu0 %v3467
        %v3481 = vpop.f32.mrf.mxu0
        %v3482 = vadd.f32 0.0, %v3481
        %v3483 = vpop.f32.mrf.mxu0
        %v3484 = vadd.f32 0.0, %v3483
        %3485 = vdwg.mxu0
        %v3488 = vunpack.c.l.b16 %v3342
        %v3489 = vunpack.c.l.b16 %v3343
        %v3490 = vpack.c.b16 %v3489, %v3488
        %3491 = vrot.lane.b32.xlu0 %v3490, 80
        %v3492 = vpop.permute.xlu0 %3491
        %v3495 = vunpack.c.l.b16 %v3358
        %v3496 = vunpack.c.l.b16 %v3359
        %v3497 = vpack.c.b16 %v3496, %v3495
        %3498 = vrot.lane.b32.xlu0 %v3497, 80
        %v3499 = vpop.permute.xlu0 %3498
        %v3501 = vsel %vm1007, %v3492, 0
        %v3504 = vsel %vm1007, %v3499, 0
        %3506 = vmatpush.bf16.xpose.msra.mxu0 0
        %3507 = vmatpush.bf16.xpose.msra.mxu0 0
        %3508 = vmatpush.bf16.xpose.msra.mxu0 0
        %3509 = vmatpush.bf16.xpose.msra.mxu0 0
        %3510 = vmatpush.bf16.xpose.msra.mxu0 0
        %3511 = vmatpush.bf16.xpose.msra.mxu0 0
        %3512 = vmatpush.bf16.xpose.msra.mxu0 0
        %3513 = vmatpush.bf16.xpose.msra.mxu0 %v3504
        %3514 = vmatmul.bf16.gmra.mxu0 %v3501
        %v3515 = vpop.f32.mrf.mxu0
        %v3516 = vadd.f32 0.0, %v3515
        %v3517 = vpop.f32.mrf.mxu0
        %v3518 = vadd.f32 0.0, %v3517
        %3519 = vdwg.mxu0
        %v3522 = vunpack.c.l.b16 %v3344
        %v3523 = vunpack.c.l.b16 %v3345
        %v3524 = vpack.c.b16 %v3523, %v3522
        %3525 = vrot.lane.b32.xlu0 %v3524, 80
        %v3526 = vpop.permute.xlu0 %3525
        %v3529 = vunpack.c.l.b16 %v3360
        %v3530 = vunpack.c.l.b16 %v3361
        %v3531 = vpack.c.b16 %v3530, %v3529
        %3532 = vrot.lane.b32.xlu0 %v3531, 80
        %v3533 = vpop.permute.xlu0 %3532
        %v3535 = vsel %vm1007, %v3526, 0
        %v3538 = vsel %vm1007, %v3533, 0
        %3540 = vmatpush.bf16.xpose.msra.mxu0 0
        %3541 = vmatpush.bf16.xpose.msra.mxu0 0
        %3542 = vmatpush.bf16.xpose.msra.mxu0 0
        %3543 = vmatpush.bf16.xpose.msra.mxu0 0
        %3544 = vmatpush.bf16.xpose.msra.mxu0 0
        %3545 = vmatpush.bf16.xpose.msra.mxu0 0
        %3546 = vmatpush.bf16.xpose.msra.mxu0 0
        %3547 = vmatpush.bf16.xpose.msra.mxu0 %v3538
        %3548 = vmatmul.bf16.gmra.mxu0 %v3535
        %v3549 = vpop.f32.mrf.mxu0
        %v3550 = vadd.f32 0.0, %v3549
        %v3551 = vpop.f32.mrf.mxu0
        %v3552 = vadd.f32 0.0, %v3551
        %3553 = vdwg.mxu0
        %v3556 = vunpack.c.l.b16 %v3346
        %v3557 = vunpack.c.l.b16 %v3347
        %v3558 = vpack.c.b16 %v3557, %v3556
        %3559 = vrot.lane.b32.xlu0 %v3558, 80
        %v3560 = vpop.permute.xlu0 %3559
        %v3563 = vunpack.c.l.b16 %v3362
        %v3564 = vunpack.c.l.b16 %v3363
        %v3565 = vpack.c.b16 %v3564, %v3563
        %3566 = vrot.lane.b32.xlu0 %v3565, 80
        %v3567 = vpop.permute.xlu0 %3566
        %v3569 = vsel %vm1007, %v3560, 0
        %v3572 = vsel %vm1007, %v3567, 0
        %3574 = vmatpush.bf16.xpose.msra.mxu0 0
        %3575 = vmatpush.bf16.xpose.msra.mxu0 0
        %3576 = vmatpush.bf16.xpose.msra.mxu0 0
        %3577 = vmatpush.bf16.xpose.msra.mxu0 0
        %3578 = vmatpush.bf16.xpose.msra.mxu0 0
        %3579 = vmatpush.bf16.xpose.msra.mxu0 0
        %3580 = vmatpush.bf16.xpose.msra.mxu0 0
        %3581 = vmatpush.bf16.xpose.msra.mxu0 %v3572
        %3582 = vmatmul.bf16.gmra.mxu0 %v3569
        %v3583 = vpop.f32.mrf.mxu0
        %v3584 = vadd.f32 0.0, %v3583
        %v3585 = vpop.f32.mrf.mxu0
        %v3586 = vadd.f32 0.0, %v3585
        %3587 = vdwg.mxu0
        %v3590 = vunpack.c.l.b16 %v3348
        %v3591 = vunpack.c.l.b16 %v3349
        %v3592 = vpack.c.b16 %v3591, %v3590
        %3593 = vrot.lane.b32.xlu0 %v3592, 80
        %v3594 = vpop.permute.xlu0 %3593
        %v3597 = vunpack.c.l.b16 %v3364
        %v3598 = vunpack.c.l.b16 %v3365
        %v3599 = vpack.c.b16 %v3598, %v3597
        %3600 = vrot.lane.b32.xlu0 %v3599, 80
        %v3601 = vpop.permute.xlu0 %3600
        %v3603 = vsel %vm1007, %v3594, 0
        %v3606 = vsel %vm1007, %v3601, 0
        %3608 = vmatpush.bf16.xpose.msra.mxu0 0
        %3609 = vmatpush.bf16.xpose.msra.mxu0 0
        %3610 = vmatpush.bf16.xpose.msra.mxu0 0
        %3611 = vmatpush.bf16.xpose.msra.mxu0 0
        %3612 = vmatpush.bf16.xpose.msra.mxu0 0
        %3613 = vmatpush.bf16.xpose.msra.mxu0 0
        %3614 = vmatpush.bf16.xpose.msra.mxu0 0
        %3615 = vmatpush.bf16.xpose.msra.mxu0 %v3606
        %3616 = vmatmul.bf16.gmra.mxu0 %v3603
        %v3617 = vpop.f32.mrf.mxu0
        %v3618 = vadd.f32 0.0, %v3617
        %v3619 = vpop.f32.mrf.mxu0
        %v3620 = vadd.f32 0.0, %v3619
        %3621 = vdwg.mxu0
        %v3624 = vunpack.c.l.b16 %v3350
        %v3625 = vunpack.c.l.b16 %v3351
        %v3626 = vpack.c.b16 %v3625, %v3624
        %3627 = vrot.lane.b32.xlu0 %v3626, 80
        %v3628 = vpop.permute.xlu0 %3627
        %v3631 = vunpack.c.l.b16 %v3366
        %v3632 = vunpack.c.l.b16 %v3367
        %v3633 = vpack.c.b16 %v3632, %v3631
        %3634 = vrot.lane.b32.xlu0 %v3633, 80
        %v3635 = vpop.permute.xlu0 %3634
        %v3637 = vsel %vm1007, %v3628, 0
        %v3640 = vsel %vm1007, %v3635, 0
        %3642 = vmatpush.bf16.xpose.msra.mxu0 0
        %3643 = vmatpush.bf16.xpose.msra.mxu0 0
        %3644 = vmatpush.bf16.xpose.msra.mxu0 0
        %3645 = vmatpush.bf16.xpose.msra.mxu0 0
        %3646 = vmatpush.bf16.xpose.msra.mxu0 0
        %3647 = vmatpush.bf16.xpose.msra.mxu0 0
        %3648 = vmatpush.bf16.xpose.msra.mxu0 0
        %3649 = vmatpush.bf16.xpose.msra.mxu0 %v3640
        %3650 = vmatmul.bf16.gmra.mxu0 %v3637
        %v3651 = vpop.f32.mrf.mxu0
        %v3652 = vadd.f32 0.0, %v3651
        %v3653 = vpop.f32.mrf.mxu0
        %v3654 = vadd.f32 0.0, %v3653
        %3655 = vdwg.mxu0
        %v3656 = vsel %vm1007, %v3414, -inf
        %3657 = vmax.xlane.f32.xlu0 %v3656
        %v3658 = vpop.xlane.xlu0 %3657
        %v3659 = vsel %vm1007, %v3416, -inf
        %3660 = vmax.xlane.f32.xlu0 %v3659
        %v3661 = vpop.xlane.xlu0 %3660
        %v3662 = vsel %vm1007, %v3448, -inf
        %3663 = vmax.xlane.f32.xlu0 %v3662
        %v3664 = vpop.xlane.xlu0 %3663
        %v3665 = vsel %vm1007, %v3450, -inf
        %3666 = vmax.xlane.f32.xlu0 %v3665
        %v3667 = vpop.xlane.xlu0 %3666
        %v3668 = vsel %vm1007, %v3482, -inf
        %3669 = vmax.xlane.f32.xlu0 %v3668
        %v3670 = vpop.xlane.xlu0 %3669
        %v3671 = vsel %vm1007, %v3484, -inf
        %3672 = vmax.xlane.f32.xlu0 %v3671
        %v3673 = vpop.xlane.xlu0 %3672
        %v3674 = vsel %vm1007, %v3516, -inf
        %3675 = vmax.xlane.f32.xlu0 %v3674
        %v3676 = vpop.xlane.xlu0 %3675
        %v3677 = vsel %vm1007, %v3518, -inf
        %3678 = vmax.xlane.f32.xlu0 %v3677
        %v3679 = vpop.xlane.xlu0 %3678
        %v3680 = vsel %vm1007, %v3550, -inf
        %3681 = vmax.xlane.f32.xlu0 %v3680
        %v3682 = vpop.xlane.xlu0 %3681
        %v3683 = vsel %vm1007, %v3552, -inf
        %3684 = vmax.xlane.f32.xlu0 %v3683
        %v3685 = vpop.xlane.xlu0 %3684
        %v3686 = vsel %vm1007, %v3584, -inf
        %3687 = vmax.xlane.f32.xlu0 %v3686
        %v3688 = vpop.xlane.xlu0 %3687
        %v3689 = vsel %vm1007, %v3586, -inf
        %3690 = vmax.xlane.f32.xlu0 %v3689
        %v3691 = vpop.xlane.xlu0 %3690
        %v3692 = vsel %vm1007, %v3618, -inf
        %3693 = vmax.xlane.f32.xlu0 %v3692
        %v3694 = vpop.xlane.xlu0 %3693
        %v3695 = vsel %vm1007, %v3620, -inf
        %3696 = vmax.xlane.f32.xlu0 %v3695
        %v3697 = vpop.xlane.xlu0 %3696
        %v3698 = vsel %vm1007, %v3652, -inf
        %3699 = vmax.xlane.f32.xlu0 %v3698
        %v3700 = vpop.xlane.xlu0 %3699
        %v3701 = vsel %vm1007, %v3654, -inf
        %3702 = vmax.xlane.f32.xlu0 %v3701
        %v3703 = vpop.xlane.xlu0 %3702
        %v3704 = vsub.f32 %v3414, %v3658
        %v3705 = vsub.f32 %v3416, %v3661
        %v3706 = vsub.f32 %v3448, %v3664
        %v3707 = vsub.f32 %v3450, %v3667
        %v3708 = vsub.f32 %v3482, %v3670
        %v3709 = vsub.f32 %v3484, %v3673
        %v3710 = vsub.f32 %v3516, %v3676
        %v3711 = vsub.f32 %v3518, %v3679
        %v3712 = vsub.f32 %v3550, %v3682
        %v3713 = vsub.f32 %v3552, %v3685
        %v3714 = vsub.f32 %v3584, %v3688
        %v3715 = vsub.f32 %v3586, %v3691
        %v3716 = vsub.f32 %v3618, %v3694
        %v3717 = vsub.f32 %v3620, %v3697
        %v3718 = vsub.f32 %v3652, %v3700
        %v3719 = vsub.f32 %v3654, %v3703
        %v3720 = vmul.f32 %v3704, 1.442695
        %v3721 = vpow.pop %v3720
        %v3722 = vmul.f32 %v3705, 1.442695
        %v3723 = vpow.pop %v3722
        %v3724 = vmul.f32 %v3706, 1.442695
        %v3725 = vpow.pop %v3724
        %v3726 = vmul.f32 %v3707, 1.442695
        %v3727 = vpow.pop %v3726
        %v3728 = vmul.f32 %v3708, 1.442695
        %v3729 = vpow.pop %v3728
        %v3730 = vmul.f32 %v3709, 1.442695
        %v3731 = vpow.pop %v3730
        %v3732 = vmul.f32 %v3710, 1.442695
        %v3733 = vpow.pop %v3732
        %v3734 = vmul.f32 %v3711, 1.442695
        %v3735 = vpow.pop %v3734
        %v3736 = vmul.f32 %v3712, 1.442695
        %v3737 = vpow.pop %v3736
        %v3738 = vmul.f32 %v3713, 1.442695
        %v3739 = vpow.pop %v3738
        %v3740 = vmul.f32 %v3714, 1.442695
        %v3741 = vpow.pop %v3740
        %v3742 = vmul.f32 %v3715, 1.442695
        %v3743 = vpow.pop %v3742
        %v3744 = vmul.f32 %v3716, 1.442695
        %v3745 = vpow.pop %v3744
        %v3746 = vmul.f32 %v3717, 1.442695
        %v3747 = vpow.pop %v3746
        %v3748 = vmul.f32 %v3718, 1.442695
        %v3749 = vpow.pop %v3748
        %v3750 = vmul.f32 %v3719, 1.442695
        %v3751 = vpow.pop %v3750
        %v3752 = vsel %vm1007, %v3721, 0.0
        %3753 = vadd.xlane.f32.xlu0 %v3752
        %v3754 = vpop.xlane.xlu0 %3753
        %v3755 = vsel %vm1007, %v3723, 0.0
        %3756 = vadd.xlane.f32.xlu0 %v3755
        %v3757 = vpop.xlane.xlu0 %3756
        %v3758 = vsel %vm1007, %v3725, 0.0
        %3759 = vadd.xlane.f32.xlu0 %v3758
        %v3760 = vpop.xlane.xlu0 %3759
        %v3761 = vsel %vm1007, %v3727, 0.0
        %3762 = vadd.xlane.f32.xlu0 %v3761
        %v3763 = vpop.xlane.xlu0 %3762
        %v3764 = vsel %vm1007, %v3729, 0.0
        %3765 = vadd.xlane.f32.xlu0 %v3764
        %v3766 = vpop.xlane.xlu0 %3765
        %v3767 = vsel %vm1007, %v3731, 0.0
        %3768 = vadd.xlane.f32.xlu0 %v3767
        %v3769 = vpop.xlane.xlu0 %3768
        %v3770 = vsel %vm1007, %v3733, 0.0
        %3771 = vadd.xlane.f32.xlu0 %v3770
        %v3772 = vpop.xlane.xlu0 %3771
        %v3773 = vsel %vm1007, %v3735, 0.0
        %3774 = vadd.xlane.f32.xlu0 %v3773
        %v3775 = vpop.xlane.xlu0 %3774
        %v3776 = vsel %vm1007, %v3737, 0.0
        %3777 = vadd.xlane.f32.xlu0 %v3776
        %v3778 = vpop.xlane.xlu0 %3777
        %v3779 = vsel %vm1007, %v3739, 0.0
        %3780 = vadd.xlane.f32.xlu0 %v3779
        %v3781 = vpop.xlane.xlu0 %3780
        %v3782 = vsel %vm1007, %v3741, 0.0
        %3783 = vadd.xlane.f32.xlu0 %v3782
        %v3784 = vpop.xlane.xlu0 %3783
        %v3785 = vsel %vm1007, %v3743, 0.0
        %3786 = vadd.xlane.f32.xlu0 %v3785
        %v3787 = vpop.xlane.xlu0 %3786
        %v3788 = vsel %vm1007, %v3745, 0.0
        %3789 = vadd.xlane.f32.xlu0 %v3788
        %v3790 = vpop.xlane.xlu0 %3789
        %v3791 = vsel %vm1007, %v3747, 0.0
        %3792 = vadd.xlane.f32.xlu0 %v3791
        %v3793 = vpop.xlane.xlu0 %3792
        %v3794 = vsel %vm1007, %v3749, 0.0
        %3795 = vadd.xlane.f32.xlu0 %v3794
        %v3796 = vpop.xlane.xlu0 %3795
        %v3797 = vsel %vm1007, %v3751, 0.0
        %3798 = vadd.xlane.f32.xlu0 %v3797
        %v3799 = vpop.xlane.xlu0 %3798
        %v3800 = vrcp.pop %v3754
        %v3801 = vrcp.pop %v3757
        %v3802 = vrcp.pop %v3760
        %v3803 = vrcp.pop %v3763
        %v3804 = vrcp.pop %v3766
        %v3805 = vrcp.pop %v3769
        %v3806 = vrcp.pop %v3772
        %v3807 = vrcp.pop %v3775
        %v3808 = vrcp.pop %v3778
        %v3809 = vrcp.pop %v3781
        %v3810 = vrcp.pop %v3784
        %v3811 = vrcp.pop %v3787
        %v3812 = vrcp.pop %v3790
        %v3813 = vrcp.pop %v3793
        %v3814 = vrcp.pop %v3796
        %v3815 = vrcp.pop %v3799
        %v3816 = vmul.f32 %v3721, %v3800
        %v3817 = vmul.f32 %v3723, %v3801
        %v3818 = vmul.f32 %v3725, %v3802
        %v3819 = vmul.f32 %v3727, %v3803
        %v3820 = vmul.f32 %v3729, %v3804
        %v3821 = vmul.f32 %v3731, %v3805
        %v3822 = vmul.f32 %v3733, %v3806
        %v3823 = vmul.f32 %v3735, %v3807
        %v3824 = vmul.f32 %v3737, %v3808
        %v3825 = vmul.f32 %v3739, %v3809
        %v3826 = vmul.f32 %v3741, %v3810
        %v3827 = vmul.f32 %v3743, %v3811
        %v3828 = vmul.f32 %v3745, %v3812
        %v3829 = vmul.f32 %v3747, %v3813
        %v3830 = vmul.f32 %v3749, %v3814
        %v3831 = vmul.f32 %v3751, %v3815
        %v3832 = vpack.c.bf16 %v3816, %v3816
        %v3833 = vpack.c.bf16 %v3817, %v3817
        %v3834 = vpack.c.bf16 %v3818, %v3818
        %v3835 = vpack.c.bf16 %v3819, %v3819
        %v3836 = vpack.c.bf16 %v3820, %v3820
        %v3837 = vpack.c.bf16 %v3821, %v3821
        %v3838 = vpack.c.bf16 %v3822, %v3822
        %v3839 = vpack.c.bf16 %v3823, %v3823
        %v3840 = vpack.c.bf16 %v3824, %v3824
        %v3841 = vpack.c.bf16 %v3825, %v3825
        %v3842 = vpack.c.bf16 %v3826, %v3826
        %v3843 = vpack.c.bf16 %v3827, %v3827
        %v3844 = vpack.c.bf16 %v3828, %v3828
        %v3845 = vpack.c.bf16 %v3829, %v3829
        %v3846 = vpack.c.bf16 %v3830, %v3830
        %v3847 = vpack.c.bf16 %v3831, %v3831
        %v3850 = vunpack.c.l.b16 %v3832
        %v3851 = vunpack.c.l.b16 %v3833
        %v3852 = vpack.c.b16 %v3851, %v3850
        %v3855 = vunpack.c.l.b16 %v3368
        %v3856 = vunpack.c.l.b16 %v3369
        %v3857 = vpack.c.b16 %v3856, %v3855
        %3858 = vrot.lane.b32.xlu0 %v3857, 80
        %v3859 = vpop.permute.xlu0 %3858
        %v3862 = vsel %vm1007, %v3852, 0
        %3864 = vmatpush.bf16.msra.mxu0 0
        %3865 = vmatpush.bf16.msra.mxu0 0
        %3866 = vmatpush.bf16.msra.mxu0 0
        %3867 = vmatpush.bf16.msra.mxu0 0
        %3868 = vmatpush.bf16.msra.mxu0 0
        %3869 = vmatpush.bf16.msra.mxu0 0
        %3870 = vmatpush.bf16.msra.mxu0 0
        %3871 = vmatpush.bf16.msra.mxu0 %v3859
        %3872 = vmatmul.bf16.gmra.mxu0 %v3862
        %v3873 = vpop.f32.mrf.mxu0
        %v3874 = vadd.f32 0.0, %v3873
        %v3875 = vpop.f32.mrf.mxu0
        %v3876 = vadd.f32 0.0, %v3875
        %3877 = vdwg.mxu0
        %v3880 = vunpack.c.l.b16 %v3834
        %v3881 = vunpack.c.l.b16 %v3835
        %v3882 = vpack.c.b16 %v3881, %v3880
        %v3885 = vunpack.c.l.b16 %v3370
        %v3886 = vunpack.c.l.b16 %v3371
        %v3887 = vpack.c.b16 %v3886, %v3885
        %3888 = vrot.lane.b32.xlu0 %v3887, 80
        %v3889 = vpop.permute.xlu0 %3888
        %v3892 = vsel %vm1007, %v3882, 0
        %3894 = vmatpush.bf16.msra.mxu0 0
        %3895 = vmatpush.bf16.msra.mxu0 0
        %3896 = vmatpush.bf16.msra.mxu0 0
        %3897 = vmatpush.bf16.msra.mxu0 0
        %3898 = vmatpush.bf16.msra.mxu0 0
        %3899 = vmatpush.bf16.msra.mxu0 0
        %3900 = vmatpush.bf16.msra.mxu0 0
        %3901 = vmatpush.bf16.msra.mxu0 %v3889
        %3902 = vmatmul.bf16.gmra.mxu0 %v3892
        %v3903 = vpop.f32.mrf.mxu0
        %v3904 = vadd.f32 0.0, %v3903
        %v3905 = vpop.f32.mrf.mxu0
        %v3906 = vadd.f32 0.0, %v3905
        %3907 = vdwg.mxu0
        %v3910 = vunpack.c.l.b16 %v3836
        %v3911 = vunpack.c.l.b16 %v3837
        %v3912 = vpack.c.b16 %v3911, %v3910
        %v3915 = vunpack.c.l.b16 %v3372
        %v3916 = vunpack.c.l.b16 %v3373
        %v3917 = vpack.c.b16 %v3916, %v3915
        %3918 = vrot.lane.b32.xlu0 %v3917, 80
        %v3919 = vpop.permute.xlu0 %3918
        %v3922 = vsel %vm1007, %v3912, 0
        %3924 = vmatpush.bf16.msra.mxu0 0
        %3925 = vmatpush.bf16.msra.mxu0 0
        %3926 = vmatpush.bf16.msra.mxu0 0
        %3927 = vmatpush.bf16.msra.mxu0 0
        %3928 = vmatpush.bf16.msra.mxu0 0
        %3929 = vmatpush.bf16.msra.mxu0 0
        %3930 = vmatpush.bf16.msra.mxu0 0
        %3931 = vmatpush.bf16.msra.mxu0 %v3919
        %3932 = vmatmul.bf16.gmra.mxu0 %v3922
        %v3933 = vpop.f32.mrf.mxu0
        %v3934 = vadd.f32 0.0, %v3933
        %v3935 = vpop.f32.mrf.mxu0
        %v3936 = vadd.f32 0.0, %v3935
        %3937 = vdwg.mxu0
        %v3940 = vunpack.c.l.b16 %v3838
        %v3941 = vunpack.c.l.b16 %v3839
        %v3942 = vpack.c.b16 %v3941, %v3940
        %v3945 = vunpack.c.l.b16 %v3374
        %v3946 = vunpack.c.l.b16 %v3375
        %v3947 = vpack.c.b16 %v3946, %v3945
        %3948 = vrot.lane.b32.xlu0 %v3947, 80
        %v3949 = vpop.permute.xlu0 %3948
        %v3952 = vsel %vm1007, %v3942, 0
        %3954 = vmatpush.bf16.msra.mxu0 0
        %3955 = vmatpush.bf16.msra.mxu0 0
        %3956 = vmatpush.bf16.msra.mxu0 0
        %3957 = vmatpush.bf16.msra.mxu0 0
        %3958 = vmatpush.bf16.msra.mxu0 0
        %3959 = vmatpush.bf16.msra.mxu0 0
        %3960 = vmatpush.bf16.msra.mxu0 0
        %3961 = vmatpush.bf16.msra.mxu0 %v3949
        %3962 = vmatmul.bf16.gmra.mxu0 %v3952
        %v3963 = vpop.f32.mrf.mxu0
        %v3964 = vadd.f32 0.0, %v3963
        %v3965 = vpop.f32.mrf.mxu0
        %v3966 = vadd.f32 0.0, %v3965
        %3967 = vdwg.mxu0
        %v3970 = vunpack.c.l.b16 %v3840
        %v3971 = vunpack.c.l.b16 %v3841
        %v3972 = vpack.c.b16 %v3971, %v3970
        %v3975 = vunpack.c.l.b16 %v3376
        %v3976 = vunpack.c.l.b16 %v3377
        %v3977 = vpack.c.b16 %v3976, %v3975
        %3978 = vrot.lane.b32.xlu0 %v3977, 80
        %v3979 = vpop.permute.xlu0 %3978
        %v3982 = vsel %vm1007, %v3972, 0
        %3984 = vmatpush.bf16.msra.mxu0 0
        %3985 = vmatpush.bf16.msra.mxu0 0
        %3986 = vmatpush.bf16.msra.mxu0 0
        %3987 = vmatpush.bf16.msra.mxu0 0
        %3988 = vmatpush.bf16.msra.mxu0 0
        %3989 = vmatpush.bf16.msra.mxu0 0
        %3990 = vmatpush.bf16.msra.mxu0 0
        %3991 = vmatpush.bf16.msra.mxu0 %v3979
        %3992 = vmatmul.bf16.gmra.mxu0 %v3982
        %v3993 = vpop.f32.mrf.mxu0
        %v3994 = vadd.f32 0.0, %v3993
        %v3995 = vpop.f32.mrf.mxu0
        %v3996 = vadd.f32 0.0, %v3995
        %3997 = vdwg.mxu0
        %v4000 = vunpack.c.l.b16 %v3842
        %v4001 = vunpack.c.l.b16 %v3843
        %v4002 = vpack.c.b16 %v4001, %v4000
        %v4005 = vunpack.c.l.b16 %v3378
        %v4006 = vunpack.c.l.b16 %v3379
        %v4007 = vpack.c.b16 %v4006, %v4005
        %4008 = vrot.lane.b32.xlu0 %v4007, 80
        %v4009 = vpop.permute.xlu0 %4008
        %v4012 = vsel %vm1007, %v4002, 0
        %4014 = vmatpush.bf16.msra.mxu0 0
        %4015 = vmatpush.bf16.msra.mxu0 0
        %4016 = vmatpush.bf16.msra.mxu0 0
        %4017 = vmatpush.bf16.msra.mxu0 0
        %4018 = vmatpush.bf16.msra.mxu0 0
        %4019 = vmatpush.bf16.msra.mxu0 0
        %4020 = vmatpush.bf16.msra.mxu0 0
        %4021 = vmatpush.bf16.msra.mxu0 %v4009
        %4022 = vmatmul.bf16.gmra.mxu0 %v4012
        %v4023 = vpop.f32.mrf.mxu0
        %v4024 = vadd.f32 0.0, %v4023
        %v4025 = vpop.f32.mrf.mxu0
        %v4026 = vadd.f32 0.0, %v4025
        %4027 = vdwg.mxu0
        %v4030 = vunpack.c.l.b16 %v3844
        %v4031 = vunpack.c.l.b16 %v3845
        %v4032 = vpack.c.b16 %v4031, %v4030
        %v4035 = vunpack.c.l.b16 %v3380
        %v4036 = vunpack.c.l.b16 %v3381
        %v4037 = vpack.c.b16 %v4036, %v4035
        %4038 = vrot.lane.b32.xlu0 %v4037, 80
        %v4039 = vpop.permute.xlu0 %4038
        %v4042 = vsel %vm1007, %v4032, 0
        %4044 = vmatpush.bf16.msra.mxu0 0
        %4045 = vmatpush.bf16.msra.mxu0 0
        %4046 = vmatpush.bf16.msra.mxu0 0
        %4047 = vmatpush.bf16.msra.mxu0 0
        %4048 = vmatpush.bf16.msra.mxu0 0
        %4049 = vmatpush.bf16.msra.mxu0 0
        %4050 = vmatpush.bf16.msra.mxu0 0
        %4051 = vmatpush.bf16.msra.mxu0 %v4039
        %4052 = vmatmul.bf16.gmra.mxu0 %v4042
        %v4053 = vpop.f32.mrf.mxu0
        %v4054 = vadd.f32 0.0, %v4053
        %v4055 = vpop.f32.mrf.mxu0
        %v4056 = vadd.f32 0.0, %v4055
        %4057 = vdwg.mxu0
        %v4060 = vunpack.c.l.b16 %v3846
        %v4061 = vunpack.c.l.b16 %v3847
        %v4062 = vpack.c.b16 %v4061, %v4060
        %v4065 = vunpack.c.l.b16 %v3382
        %v4066 = vunpack.c.l.b16 %v3383
        %v4067 = vpack.c.b16 %v4066, %v4065
        %4068 = vrot.lane.b32.xlu0 %v4067, 80
        %v4069 = vpop.permute.xlu0 %4068
        %v4072 = vsel %vm1007, %v4062, 0
        %4074 = vmatpush.bf16.msra.mxu0 0
        %4075 = vmatpush.bf16.msra.mxu0 0
        %4076 = vmatpush.bf16.msra.mxu0 0
        %4077 = vmatpush.bf16.msra.mxu0 0
        %4078 = vmatpush.bf16.msra.mxu0 0
        %4079 = vmatpush.bf16.msra.mxu0 0
        %4080 = vmatpush.bf16.msra.mxu0 0
        %4081 = vmatpush.bf16.msra.mxu0 %v4069
        %4082 = vmatmul.bf16.gmra.mxu0 %v4072
        %v4083 = vpop.f32.mrf.mxu0
        %v4084 = vadd.f32 0.0, %v4083
        %v4085 = vpop.f32.mrf.mxu0
        %v4086 = vadd.f32 0.0, %v4085
        %4087 = vdwg.mxu0
        %4104 = vrot.lane.b32.xlu0 %v3874, 48
        %v4105 = vpop.permute.xlu0 %4104
        %4106 = vrot.lane.b32.xlu0 %v3876, 48
        %v4107 = vpop.permute.xlu0 %4106
        %4108 = vrot.lane.b32.xlu0 %v3904, 48
        %v4109 = vpop.permute.xlu0 %4108
        %4110 = vrot.lane.b32.xlu0 %v3906, 48
        %v4111 = vpop.permute.xlu0 %4110
        %4112 = vrot.lane.b32.xlu0 %v3934, 48
        %v4113 = vpop.permute.xlu0 %4112
        %4114 = vrot.lane.b32.xlu0 %v3936, 48
        %v4115 = vpop.permute.xlu0 %4114
        %4116 = vrot.lane.b32.xlu0 %v3964, 48
        %v4117 = vpop.permute.xlu0 %4116
        %4118 = vrot.lane.b32.xlu0 %v3966, 48
        %v4119 = vpop.permute.xlu0 %4118
        %4120 = vrot.lane.b32.xlu0 %v3994, 48
        %v4121 = vpop.permute.xlu0 %4120
        %4122 = vrot.lane.b32.xlu0 %v3996, 48
        %v4123 = vpop.permute.xlu0 %4122
        %4124 = vrot.lane.b32.xlu0 %v4024, 48
        %v4125 = vpop.permute.xlu0 %4124
        %4126 = vrot.lane.b32.xlu0 %v4026, 48
        %v4127 = vpop.permute.xlu0 %4126
        %4128 = vrot.lane.b32.xlu0 %v4054, 48
        %v4129 = vpop.permute.xlu0 %4128
        %4130 = vrot.lane.b32.xlu0 %v4056, 48
        %v4131 = vpop.permute.xlu0 %4130
        %4132 = vrot.lane.b32.xlu0 %v4084, 48
        %v4133 = vpop.permute.xlu0 %4132
        %4134 = vrot.lane.b32.xlu0 %v4086, 48
        %v4135 = vpop.permute.xlu0 %4134
        %vm4152 = vcmask 523648
        %4153 = vst.msk [vmem:[#allocation3] sm:$0xff] %vm4152, %v4105
        %4154 = vst.msk [vmem:[#allocation3 + $0x8] sm:$0xff] %vm4152, %v4107
        %4155 = vst.msk [vmem:[#allocation3 + $0x10] sm:$0xff] %vm4152, %v4109
        %4156 = vst.msk [vmem:[#allocation3 + $0x18] sm:$0xff] %vm4152, %v4111
        %4157 = vst.msk [vmem:[#allocation3 + $0x20] sm:$0xff] %vm4152, %v4113
        %4158 = vst.msk [vmem:[#allocation3 + $0x28] sm:$0xff] %vm4152, %v4115
        %4159 = vst.msk [vmem:[#allocation3 + $0x30] sm:$0xff] %vm4152, %v4117
        %4160 = vst.msk [vmem:[#allocation3 + $0x38] sm:$0xff] %vm4152, %v4119
        %4161 = vst.msk [vmem:[#allocation3 + $0x40] sm:$0xff] %vm4152, %v4121
        %4162 = vst.msk [vmem:[#allocation3 + $0x48] sm:$0xff] %vm4152, %v4123
        %4163 = vst.msk [vmem:[#allocation3 + $0x50] sm:$0xff] %vm4152, %v4125
        %4164 = vst.msk [vmem:[#allocation3 + $0x58] sm:$0xff] %vm4152, %v4127
        %4165 = vst.msk [vmem:[#allocation3 + $0x60] sm:$0xff] %vm4152, %v4129
        %4166 = vst.msk [vmem:[#allocation3 + $0x68] sm:$0xff] %vm4152, %v4131
        %4167 = vst.msk [vmem:[#allocation3 + $0x70] sm:$0xff] %vm4152, %v4133
        %4168 = vst.msk [vmem:[#allocation3 + $0x78] sm:$0xff] %vm4152, %v4135
        %v4169 = vld [vmem:[#allocation2] sm:$0xf]
        %v4170 = vld [vmem:[#allocation2 + $0xc] sm:$0xf]
        %v4171 = vld [vmem:[#allocation2 + $0x18] sm:$0xf]
        %v4172 = vld [vmem:[#allocation2 + $0x24] sm:$0xf]
        %v4173 = vld [vmem:[#allocation2 + $0x30] sm:$0xf]
        %v4174 = vld [vmem:[#allocation2 + $0x3c] sm:$0xf]
        %v4175 = vld [vmem:[#allocation2 + $0x48] sm:$0xf]
        %v4176 = vld [vmem:[#allocation2 + $0x54] sm:$0xf]
        %v4177 = vld [vmem:[#allocation2 + $0x60] sm:$0xf]
        %v4178 = vld [vmem:[#allocation2 + $0x6c] sm:$0xf]
        %v4179 = vld [vmem:[#allocation2 + $0x78] sm:$0xf]
        %v4180 = vld [vmem:[#allocation2 + $0x84] sm:$0xf]
        %v4181 = vld [vmem:[#allocation2 + $0x90] sm:$0xf]
        %v4182 = vld [vmem:[#allocation2 + $0x9c] sm:$0xf]
        %v4183 = vld [vmem:[#allocation2 + $0xa8] sm:$0xf]
        %v4184 = vld [vmem:[#allocation2 + $0xb4] sm:$0xf]
        %v4185 = vld [vmem:[#allocation2 + $0x4] sm:$0xf]
        %v4186 = vld [vmem:[#allocation2 + $0x10] sm:$0xf]
        %v4187 = vld [vmem:[#allocation2 + $0x1c] sm:$0xf]
        %v4188 = vld [vmem:[#allocation2 + $0x28] sm:$0xf]
        %v4189 = vld [vmem:[#allocation2 + $0x34] sm:$0xf]
        %v4190 = vld [vmem:[#allocation2 + $0x40] sm:$0xf]
        %v4191 = vld [vmem:[#allocation2 + $0x4c] sm:$0xf]
        %v4192 = vld [vmem:[#allocation2 + $0x58] sm:$0xf]
        %v4193 = vld [vmem:[#allocation2 + $0x64] sm:$0xf]
        %v4194 = vld [vmem:[#allocation2 + $0x70] sm:$0xf]
        %v4195 = vld [vmem:[#allocation2 + $0x7c] sm:$0xf]
        %v4196 = vld [vmem:[#allocation2 + $0x88] sm:$0xf]
        %v4197 = vld [vmem:[#allocation2 + $0x94] sm:$0xf]
        %v4198 = vld [vmem:[#allocation2 + $0xa0] sm:$0xf]
        %v4199 = vld [vmem:[#allocation2 + $0xac] sm:$0xf]
        %v4200 = vld [vmem:[#allocation2 + $0xb8] sm:$0xf]
        %v4201 = vld [vmem:[#allocation2 + $0x8] sm:$0xf]
        %v4202 = vld [vmem:[#allocation2 + $0x14] sm:$0xf]
        %v4203 = vld [vmem:[#allocation2 + $0x20] sm:$0xf]
        %v4204 = vld [vmem:[#allocation2 + $0x2c] sm:$0xf]
        %v4205 = vld [vmem:[#allocation2 + $0x38] sm:$0xf]
        %v4206 = vld [vmem:[#allocation2 + $0x44] sm:$0xf]
        %v4207 = vld [vmem:[#allocation2 + $0x50] sm:$0xf]
        %v4208 = vld [vmem:[#allocation2 + $0x5c] sm:$0xf]
        %v4209 = vld [vmem:[#allocation2 + $0x68] sm:$0xf]
        %v4210 = vld [vmem:[#allocation2 + $0x74] sm:$0xf]
        %v4211 = vld [vmem:[#allocation2 + $0x80] sm:$0xf]
        %v4212 = vld [vmem:[#allocation2 + $0x8c] sm:$0xf]
        %v4213 = vld [vmem:[#allocation2 + $0x98] sm:$0xf]
        %v4214 = vld [vmem:[#allocation2 + $0xa4] sm:$0xf]
        %v4215 = vld [vmem:[#allocation2 + $0xb0] sm:$0xf]
        %v4216 = vld [vmem:[#allocation2 + $0xbc] sm:$0xf]
        %v4219 = vunpack.c.l.b16 %v4169
        %v4220 = vunpack.c.l.b16 %v4170
        %v4221 = vpack.c.b16 %v4220, %v4219
        %4222 = vrot.lane.b32.xlu0 %v4221, 64
        %v4223 = vpop.permute.xlu0 %4222
        %v4226 = vunpack.c.l.b16 %v4185
        %v4227 = vunpack.c.l.b16 %v4186
        %v4228 = vpack.c.b16 %v4227, %v4226
        %4229 = vrot.lane.b32.xlu0 %v4228, 64
        %v4230 = vpop.permute.xlu0 %4229
        %v4232 = vsel %vm1007, %v4223, 0
        %v4235 = vsel %vm1007, %v4230, 0
        %4237 = vmatpush.bf16.xpose.msra.mxu0 0
        %4238 = vmatpush.bf16.xpose.msra.mxu0 0
        %4239 = vmatpush.bf16.xpose.msra.mxu0 0
        %4240 = vmatpush.bf16.xpose.msra.mxu0 0
        %4241 = vmatpush.bf16.xpose.msra.mxu0 0
        %4242 = vmatpush.bf16.xpose.msra.mxu0 0
        %4243 = vmatpush.bf16.xpose.msra.mxu0 0
        %4244 = vmatpush.bf16.xpose.msra.mxu0 %v4235
        %4245 = vmatmul.bf16.gmra.mxu0 %v4232
        %v4246 = vpop.f32.mrf.mxu0
        %v4247 = vadd.f32 0.0, %v4246
        %v4248 = vpop.f32.mrf.mxu0
        %v4249 = vadd.f32 0.0, %v4248
        %4250 = vdwg.mxu0
        %v4253 = vunpack.c.l.b16 %v4171
        %v4254 = vunpack.c.l.b16 %v4172
        %v4255 = vpack.c.b16 %v4254, %v4253
        %4256 = vrot.lane.b32.xlu0 %v4255, 64
        %v4257 = vpop.permute.xlu0 %4256
        %v4260 = vunpack.c.l.b16 %v4187
        %v4261 = vunpack.c.l.b16 %v4188
        %v4262 = vpack.c.b16 %v4261, %v4260
        %4263 = vrot.lane.b32.xlu0 %v4262, 64
        %v4264 = vpop.permute.xlu0 %4263
        %v4266 = vsel %vm1007, %v4257, 0
        %v4269 = vsel %vm1007, %v4264, 0
        %4271 = vmatpush.bf16.xpose.msra.mxu0 0
        %4272 = vmatpush.bf16.xpose.msra.mxu0 0
        %4273 = vmatpush.bf16.xpose.msra.mxu0 0
        %4274 = vmatpush.bf16.xpose.msra.mxu0 0
        %4275 = vmatpush.bf16.xpose.msra.mxu0 0
        %4276 = vmatpush.bf16.xpose.msra.mxu0 0
        %4277 = vmatpush.bf16.xpose.msra.mxu0 0
        %4278 = vmatpush.bf16.xpose.msra.mxu0 %v4269
        %4279 = vmatmul.bf16.gmra.mxu0 %v4266
        %v4280 = vpop.f32.mrf.mxu0
        %v4281 = vadd.f32 0.0, %v4280
        %v4282 = vpop.f32.mrf.mxu0
        %v4283 = vadd.f32 0.0, %v4282
        %4284 = vdwg.mxu0
        %v4287 = vunpack.c.l.b16 %v4173
        %v4288 = vunpack.c.l.b16 %v4174
        %v4289 = vpack.c.b16 %v4288, %v4287
        %4290 = vrot.lane.b32.xlu0 %v4289, 64
        %v4291 = vpop.permute.xlu0 %4290
        %v4294 = vunpack.c.l.b16 %v4189
        %v4295 = vunpack.c.l.b16 %v4190
        %v4296 = vpack.c.b16 %v4295, %v4294
        %4297 = vrot.lane.b32.xlu0 %v4296, 64
        %v4298 = vpop.permute.xlu0 %4297
        %v4300 = vsel %vm1007, %v4291, 0
        %v4303 = vsel %vm1007, %v4298, 0
        %4305 = vmatpush.bf16.xpose.msra.mxu0 0
        %4306 = vmatpush.bf16.xpose.msra.mxu0 0
        %4307 = vmatpush.bf16.xpose.msra.mxu0 0
        %4308 = vmatpush.bf16.xpose.msra.mxu0 0
        %4309 = vmatpush.bf16.xpose.msra.mxu0 0
        %4310 = vmatpush.bf16.xpose.msra.mxu0 0
        %4311 = vmatpush.bf16.xpose.msra.mxu0 0
        %4312 = vmatpush.bf16.xpose.msra.mxu0 %v4303
        %4313 = vmatmul.bf16.gmra.mxu0 %v4300
        %v4314 = vpop.f32.mrf.mxu0
        %v4315 = vadd.f32 0.0, %v4314
        %v4316 = vpop.f32.mrf.mxu0
        %v4317 = vadd.f32 0.0, %v4316
        %4318 = vdwg.mxu0
        %v4321 = vunpack.c.l.b16 %v4175
        %v4322 = vunpack.c.l.b16 %v4176
        %v4323 = vpack.c.b16 %v4322, %v4321
        %4324 = vrot.lane.b32.xlu0 %v4323, 64
        %v4325 = vpop.permute.xlu0 %4324
        %v4328 = vunpack.c.l.b16 %v4191
        %v4329 = vunpack.c.l.b16 %v4192
        %v4330 = vpack.c.b16 %v4329, %v4328
        %4331 = vrot.lane.b32.xlu0 %v4330, 64
        %v4332 = vpop.permute.xlu0 %4331
        %v4334 = vsel %vm1007, %v4325, 0
        %v4337 = vsel %vm1007, %v4332, 0
        %4339 = vmatpush.bf16.xpose.msra.mxu0 0
        %4340 = vmatpush.bf16.xpose.msra.mxu0 0
        %4341 = vmatpush.bf16.xpose.msra.mxu0 0
        %4342 = vmatpush.bf16.xpose.msra.mxu0 0
        %4343 = vmatpush.bf16.xpose.msra.mxu0 0
        %4344 = vmatpush.bf16.xpose.msra.mxu0 0
        %4345 = vmatpush.bf16.xpose.msra.mxu0 0
        %4346 = vmatpush.bf16.xpose.msra.mxu0 %v4337
        %4347 = vmatmul.bf16.gmra.mxu0 %v4334
        %v4348 = vpop.f32.mrf.mxu0
        %v4349 = vadd.f32 0.0, %v4348
        %v4350 = vpop.f32.mrf.mxu0
        %v4351 = vadd.f32 0.0, %v4350
        %4352 = vdwg.mxu0
        %v4355 = vunpack.c.l.b16 %v4177
        %v4356 = vunpack.c.l.b16 %v4178
        %v4357 = vpack.c.b16 %v4356, %v4355
        %4358 = vrot.lane.b32.xlu0 %v4357, 64
        %v4359 = vpop.permute.xlu0 %4358
        %v4362 = vunpack.c.l.b16 %v4193
        %v4363 = vunpack.c.l.b16 %v4194
        %v4364 = vpack.c.b16 %v4363, %v4362
        %4365 = vrot.lane.b32.xlu0 %v4364, 64
        %v4366 = vpop.permute.xlu0 %4365
        %v4368 = vsel %vm1007, %v4359, 0
        %v4371 = vsel %vm1007, %v4366, 0
        %4373 = vmatpush.bf16.xpose.msra.mxu0 0
        %4374 = vmatpush.bf16.xpose.msra.mxu0 0
        %4375 = vmatpush.bf16.xpose.msra.mxu0 0
        %4376 = vmatpush.bf16.xpose.msra.mxu0 0
        %4377 = vmatpush.bf16.xpose.msra.mxu0 0
        %4378 = vmatpush.bf16.xpose.msra.mxu0 0
        %4379 = vmatpush.bf16.xpose.msra.mxu0 0
        %4380 = vmatpush.bf16.xpose.msra.mxu0 %v4371
        %4381 = vmatmul.bf16.gmra.mxu0 %v4368
        %v4382 = vpop.f32.mrf.mxu0
        %v4383 = vadd.f32 0.0, %v4382
        %v4384 = vpop.f32.mrf.mxu0
        %v4385 = vadd.f32 0.0, %v4384
        %4386 = vdwg.mxu0
        %v4389 = vunpack.c.l.b16 %v4179
        %v4390 = vunpack.c.l.b16 %v4180
        %v4391 = vpack.c.b16 %v4390, %v4389
        %4392 = vrot.lane.b32.xlu0 %v4391, 64
        %v4393 = vpop.permute.xlu0 %4392
        %v4396 = vunpack.c.l.b16 %v4195
        %v4397 = vunpack.c.l.b16 %v4196
        %v4398 = vpack.c.b16 %v4397, %v4396
        %4399 = vrot.lane.b32.xlu0 %v4398, 64
        %v4400 = vpop.permute.xlu0 %4399
        %v4402 = vsel %vm1007, %v4393, 0
        %v4405 = vsel %vm1007, %v4400, 0
        %4407 = vmatpush.bf16.xpose.msra.mxu0 0
        %4408 = vmatpush.bf16.xpose.msra.mxu0 0
        %4409 = vmatpush.bf16.xpose.msra.mxu0 0
        %4410 = vmatpush.bf16.xpose.msra.mxu0 0
        %4411 = vmatpush.bf16.xpose.msra.mxu0 0
        %4412 = vmatpush.bf16.xpose.msra.mxu0 0
        %4413 = vmatpush.bf16.xpose.msra.mxu0 0
        %4414 = vmatpush.bf16.xpose.msra.mxu0 %v4405
        %4415 = vmatmul.bf16.gmra.mxu0 %v4402
        %v4416 = vpop.f32.mrf.mxu0
        %v4417 = vadd.f32 0.0, %v4416
        %v4418 = vpop.f32.mrf.mxu0
        %v4419 = vadd.f32 0.0, %v4418
        %4420 = vdwg.mxu0
        %v4423 = vunpack.c.l.b16 %v4181
        %v4424 = vunpack.c.l.b16 %v4182
        %v4425 = vpack.c.b16 %v4424, %v4423
        %4426 = vrot.lane.b32.xlu0 %v4425, 64
        %v4427 = vpop.permute.xlu0 %4426
        %v4430 = vunpack.c.l.b16 %v4197
        %v4431 = vunpack.c.l.b16 %v4198
        %v4432 = vpack.c.b16 %v4431, %v4430
        %4433 = vrot.lane.b32.xlu0 %v4432, 64
        %v4434 = vpop.permute.xlu0 %4433
        %v4436 = vsel %vm1007, %v4427, 0
        %v4439 = vsel %vm1007, %v4434, 0
        %4441 = vmatpush.bf16.xpose.msra.mxu0 0
        %4442 = vmatpush.bf16.xpose.msra.mxu0 0
        %4443 = vmatpush.bf16.xpose.msra.mxu0 0
        %4444 = vmatpush.bf16.xpose.msra.mxu0 0
        %4445 = vmatpush.bf16.xpose.msra.mxu0 0
        %4446 = vmatpush.bf16.xpose.msra.mxu0 0
        %4447 = vmatpush.bf16.xpose.msra.mxu0 0
        %4448 = vmatpush.bf16.xpose.msra.mxu0 %v4439
        %4449 = vmatmul.bf16.gmra.mxu0 %v4436
        %v4450 = vpop.f32.mrf.mxu0
        %v4451 = vadd.f32 0.0, %v4450
        %v4452 = vpop.f32.mrf.mxu0
        %v4453 = vadd.f32 0.0, %v4452
        %4454 = vdwg.mxu0
        %v4457 = vunpack.c.l.b16 %v4183
        %v4458 = vunpack.c.l.b16 %v4184
        %v4459 = vpack.c.b16 %v4458, %v4457
        %4460 = vrot.lane.b32.xlu0 %v4459, 64
        %v4461 = vpop.permute.xlu0 %4460
        %v4464 = vunpack.c.l.b16 %v4199
        %v4465 = vunpack.c.l.b16 %v4200
        %v4466 = vpack.c.b16 %v4465, %v4464
        %4467 = vrot.lane.b32.xlu0 %v4466, 64
        %v4468 = vpop.permute.xlu0 %4467
        %v4470 = vsel %vm1007, %v4461, 0
        %v4473 = vsel %vm1007, %v4468, 0
        %4475 = vmatpush.bf16.xpose.msra.mxu0 0
        %4476 = vmatpush.bf16.xpose.msra.mxu0 0
        %4477 = vmatpush.bf16.xpose.msra.mxu0 0
        %4478 = vmatpush.bf16.xpose.msra.mxu0 0
        %4479 = vmatpush.bf16.xpose.msra.mxu0 0
        %4480 = vmatpush.bf16.xpose.msra.mxu0 0
        %4481 = vmatpush.bf16.xpose.msra.mxu0 0
        %4482 = vmatpush.bf16.xpose.msra.mxu0 %v4473
        %4483 = vmatmul.bf16.gmra.mxu0 %v4470
        %v4484 = vpop.f32.mrf.mxu0
        %v4485 = vadd.f32 0.0, %v4484
        %v4486 = vpop.f32.mrf.mxu0
        %v4487 = vadd.f32 0.0, %v4486
        %4488 = vdwg.mxu0
        %v4489 = vsel %vm1007, %v4247, -inf
        %4490 = vmax.xlane.f32.xlu0 %v4489
        %v4491 = vpop.xlane.xlu0 %4490
        %v4492 = vsel %vm1007, %v4249, -inf
        %4493 = vmax.xlane.f32.xlu0 %v4492
        %v4494 = vpop.xlane.xlu0 %4493
        %v4495 = vsel %vm1007, %v4281, -inf
        %4496 = vmax.xlane.f32.xlu0 %v4495
        %v4497 = vpop.xlane.xlu0 %4496
        %v4498 = vsel %vm1007, %v4283, -inf
        %4499 = vmax.xlane.f32.xlu0 %v4498
        %v4500 = vpop.xlane.xlu0 %4499
        %v4501 = vsel %vm1007, %v4315, -inf
        %4502 = vmax.xlane.f32.xlu0 %v4501
        %v4503 = vpop.xlane.xlu0 %4502
        %v4504 = vsel %vm1007, %v4317, -inf
        %4505 = vmax.xlane.f32.xlu0 %v4504
        %v4506 = vpop.xlane.xlu0 %4505
        %v4507 = vsel %vm1007, %v4349, -inf
        %4508 = vmax.xlane.f32.xlu0 %v4507
        %v4509 = vpop.xlane.xlu0 %4508
        %v4510 = vsel %vm1007, %v4351, -inf
        %4511 = vmax.xlane.f32.xlu0 %v4510
        %v4512 = vpop.xlane.xlu0 %4511
        %v4513 = vsel %vm1007, %v4383, -inf
        %4514 = vmax.xlane.f32.xlu0 %v4513
        %v4515 = vpop.xlane.xlu0 %4514
        %v4516 = vsel %vm1007, %v4385, -inf
        %4517 = vmax.xlane.f32.xlu0 %v4516
        %v4518 = vpop.xlane.xlu0 %4517
        %v4519 = vsel %vm1007, %v4417, -inf
        %4520 = vmax.xlane.f32.xlu0 %v4519
        %v4521 = vpop.xlane.xlu0 %4520
        %v4522 = vsel %vm1007, %v4419, -inf
        %4523 = vmax.xlane.f32.xlu0 %v4522
        %v4524 = vpop.xlane.xlu0 %4523
        %v4525 = vsel %vm1007, %v4451, -inf
        %4526 = vmax.xlane.f32.xlu0 %v4525
        %v4527 = vpop.xlane.xlu0 %4526
        %v4528 = vsel %vm1007, %v4453, -inf
        %4529 = vmax.xlane.f32.xlu0 %v4528
        %v4530 = vpop.xlane.xlu0 %4529
        %v4531 = vsel %vm1007, %v4485, -inf
        %4532 = vmax.xlane.f32.xlu0 %v4531
        %v4533 = vpop.xlane.xlu0 %4532
        %v4534 = vsel %vm1007, %v4487, -inf
        %4535 = vmax.xlane.f32.xlu0 %v4534
        %v4536 = vpop.xlane.xlu0 %4535
        %v4537 = vsub.f32 %v4247, %v4491
        %v4538 = vsub.f32 %v4249, %v4494
        %v4539 = vsub.f32 %v4281, %v4497
        %v4540 = vsub.f32 %v4283, %v4500
        %v4541 = vsub.f32 %v4315, %v4503
        %v4542 = vsub.f32 %v4317, %v4506
        %v4543 = vsub.f32 %v4349, %v4509
        %v4544 = vsub.f32 %v4351, %v4512
        %v4545 = vsub.f32 %v4383, %v4515
        %v4546 = vsub.f32 %v4385, %v4518
        %v4547 = vsub.f32 %v4417, %v4521
        %v4548 = vsub.f32 %v4419, %v4524
        %v4549 = vsub.f32 %v4451, %v4527
        %v4550 = vsub.f32 %v4453, %v4530
        %v4551 = vsub.f32 %v4485, %v4533
        %v4552 = vsub.f32 %v4487, %v4536
        %v4553 = vmul.f32 %v4537, 1.442695
        %v4554 = vpow.pop %v4553
        %v4555 = vmul.f32 %v4538, 1.442695
        %v4556 = vpow.pop %v4555
        %v4557 = vmul.f32 %v4539, 1.442695
        %v4558 = vpow.pop %v4557
        %v4559 = vmul.f32 %v4540, 1.442695
        %v4560 = vpow.pop %v4559
        %v4561 = vmul.f32 %v4541, 1.442695
        %v4562 = vpow.pop %v4561
        %v4563 = vmul.f32 %v4542, 1.442695
        %v4564 = vpow.pop %v4563
        %v4565 = vmul.f32 %v4543, 1.442695
        %v4566 = vpow.pop %v4565
        %v4567 = vmul.f32 %v4544, 1.442695
        %v4568 = vpow.pop %v4567
        %v4569 = vmul.f32 %v4545, 1.442695
        %v4570 = vpow.pop %v4569
        %v4571 = vmul.f32 %v4546, 1.442695
        %v4572 = vpow.pop %v4571
        %v4573 = vmul.f32 %v4547, 1.442695
        %v4574 = vpow.pop %v4573
        %v4575 = vmul.f32 %v4548, 1.442695
        %v4576 = vpow.pop %v4575
        %v4577 = vmul.f32 %v4549, 1.442695
        %v4578 = vpow.pop %v4577
        %v4579 = vmul.f32 %v4550, 1.442695
        %v4580 = vpow.pop %v4579
        %v4581 = vmul.f32 %v4551, 1.442695
        %v4582 = vpow.pop %v4581
        %v4583 = vmul.f32 %v4552, 1.442695
        %v4584 = vpow.pop %v4583
        %v4585 = vsel %vm1007, %v4554, 0.0
        %4586 = vadd.xlane.f32.xlu0 %v4585
        %v4587 = vpop.xlane.xlu0 %4586
        %v4588 = vsel %vm1007, %v4556, 0.0
        %4589 = vadd.xlane.f32.xlu0 %v4588
        %v4590 = vpop.xlane.xlu0 %4589
        %v4591 = vsel %vm1007, %v4558, 0.0
        %4592 = vadd.xlane.f32.xlu0 %v4591
        %v4593 = vpop.xlane.xlu0 %4592
        %v4594 = vsel %vm1007, %v4560, 0.0
        %4595 = vadd.xlane.f32.xlu0 %v4594
        %v4596 = vpop.xlane.xlu0 %4595
        %v4597 = vsel %vm1007, %v4562, 0.0
        %4598 = vadd.xlane.f32.xlu0 %v4597
        %v4599 = vpop.xlane.xlu0 %4598
        %v4600 = vsel %vm1007, %v4564, 0.0
        %4601 = vadd.xlane.f32.xlu0 %v4600
        %v4602 = vpop.xlane.xlu0 %4601
        %v4603 = vsel %vm1007, %v4566, 0.0
        %4604 = vadd.xlane.f32.xlu0 %v4603
        %v4605 = vpop.xlane.xlu0 %4604
        %v4606 = vsel %vm1007, %v4568, 0.0
        %4607 = vadd.xlane.f32.xlu0 %v4606
        %v4608 = vpop.xlane.xlu0 %4607
        %v4609 = vsel %vm1007, %v4570, 0.0
        %4610 = vadd.xlane.f32.xlu0 %v4609
        %v4611 = vpop.xlane.xlu0 %4610
        %v4612 = vsel %vm1007, %v4572, 0.0
        %4613 = vadd.xlane.f32.xlu0 %v4612
        %v4614 = vpop.xlane.xlu0 %4613
        %v4615 = vsel %vm1007, %v4574, 0.0
        %4616 = vadd.xlane.f32.xlu0 %v4615
        %v4617 = vpop.xlane.xlu0 %4616
        %v4618 = vsel %vm1007, %v4576, 0.0
        %4619 = vadd.xlane.f32.xlu0 %v4618
        %v4620 = vpop.xlane.xlu0 %4619
        %v4621 = vsel %vm1007, %v4578, 0.0
        %4622 = vadd.xlane.f32.xlu0 %v4621
        %v4623 = vpop.xlane.xlu0 %4622
        %v4624 = vsel %vm1007, %v4580, 0.0
        %4625 = vadd.xlane.f32.xlu0 %v4624
        %v4626 = vpop.xlane.xlu0 %4625
        %v4627 = vsel %vm1007, %v4582, 0.0
        %4628 = vadd.xlane.f32.xlu0 %v4627
        %v4629 = vpop.xlane.xlu0 %4628
        %v4630 = vsel %vm1007, %v4584, 0.0
        %4631 = vadd.xlane.f32.xlu0 %v4630
        %v4632 = vpop.xlane.xlu0 %4631
        %v4633 = vrcp.pop %v4587
        %v4634 = vrcp.pop %v4590
        %v4635 = vrcp.pop %v4593
        %v4636 = vrcp.pop %v4596
        %v4637 = vrcp.pop %v4599
        %v4638 = vrcp.pop %v4602
        %v4639 = vrcp.pop %v4605
        %v4640 = vrcp.pop %v4608
        %v4641 = vrcp.pop %v4611
        %v4642 = vrcp.pop %v4614
        %v4643 = vrcp.pop %v4617
        %v4644 = vrcp.pop %v4620
        %v4645 = vrcp.pop %v4623
        %v4646 = vrcp.pop %v4626
        %v4647 = vrcp.pop %v4629
        %v4648 = vrcp.pop %v4632
        %v4649 = vmul.f32 %v4554, %v4633
        %v4650 = vmul.f32 %v4556, %v4634
        %v4651 = vmul.f32 %v4558, %v4635
        %v4652 = vmul.f32 %v4560, %v4636
        %v4653 = vmul.f32 %v4562, %v4637
        %v4654 = vmul.f32 %v4564, %v4638
        %v4655 = vmul.f32 %v4566, %v4639
        %v4656 = vmul.f32 %v4568, %v4640
        %v4657 = vmul.f32 %v4570, %v4641
        %v4658 = vmul.f32 %v4572, %v4642
        %v4659 = vmul.f32 %v4574, %v4643
        %v4660 = vmul.f32 %v4576, %v4644
        %v4661 = vmul.f32 %v4578, %v4645
        %v4662 = vmul.f32 %v4580, %v4646
        %v4663 = vmul.f32 %v4582, %v4647
        %v4664 = vmul.f32 %v4584, %v4648
        %v4665 = vpack.c.bf16 %v4649, %v4649
        %v4666 = vpack.c.bf16 %v4650, %v4650
        %v4667 = vpack.c.bf16 %v4651, %v4651
        %v4668 = vpack.c.bf16 %v4652, %v4652
        %v4669 = vpack.c.bf16 %v4653, %v4653
        %v4670 = vpack.c.bf16 %v4654, %v4654
        %v4671 = vpack.c.bf16 %v4655, %v4655
        %v4672 = vpack.c.bf16 %v4656, %v4656
        %v4673 = vpack.c.bf16 %v4657, %v4657
        %v4674 = vpack.c.bf16 %v4658, %v4658
        %v4675 = vpack.c.bf16 %v4659, %v4659
        %v4676 = vpack.c.bf16 %v4660, %v4660
        %v4677 = vpack.c.bf16 %v4661, %v4661
        %v4678 = vpack.c.bf16 %v4662, %v4662
        %v4679 = vpack.c.bf16 %v4663, %v4663
        %v4680 = vpack.c.bf16 %v4664, %v4664
        %v4683 = vunpack.c.l.b16 %v4665
        %v4684 = vunpack.c.l.b16 %v4666
        %v4685 = vpack.c.b16 %v4684, %v4683
        %v4688 = vunpack.c.l.b16 %v4201
        %v4689 = vunpack.c.l.b16 %v4202
        %v4690 = vpack.c.b16 %v4689, %v4688
        %4691 = vrot.lane.b32.xlu0 %v4690, 64
        %v4692 = vpop.permute.xlu0 %4691
        %v4695 = vsel %vm1007, %v4685, 0
        %4697 = vmatpush.bf16.msra.mxu0 0
        %4698 = vmatpush.bf16.msra.mxu0 0
        %4699 = vmatpush.bf16.msra.mxu0 0
        %4700 = vmatpush.bf16.msra.mxu0 0
        %4701 = vmatpush.bf16.msra.mxu0 0
        %4702 = vmatpush.bf16.msra.mxu0 0
        %4703 = vmatpush.bf16.msra.mxu0 0
        %4704 = vmatpush.bf16.msra.mxu0 %v4692
        %4705 = vmatmul.bf16.gmra.mxu0 %v4695
        %v4706 = vpop.f32.mrf.mxu0
        %v4707 = vadd.f32 0.0, %v4706
        %v4708 = vpop.f32.mrf.mxu0
        %v4709 = vadd.f32 0.0, %v4708
        %4710 = vdwg.mxu0
        %v4713 = vunpack.c.l.b16 %v4667
        %v4714 = vunpack.c.l.b16 %v4668
        %v4715 = vpack.c.b16 %v4714, %v4713
        %v4718 = vunpack.c.l.b16 %v4203
        %v4719 = vunpack.c.l.b16 %v4204
        %v4720 = vpack.c.b16 %v4719, %v4718
        %4721 = vrot.lane.b32.xlu0 %v4720, 64
        %v4722 = vpop.permute.xlu0 %4721
        %v4725 = vsel %vm1007, %v4715, 0
        %4727 = vmatpush.bf16.msra.mxu0 0
        %4728 = vmatpush.bf16.msra.mxu0 0
        %4729 = vmatpush.bf16.msra.mxu0 0
        %4730 = vmatpush.bf16.msra.mxu0 0
        %4731 = vmatpush.bf16.msra.mxu0 0
        %4732 = vmatpush.bf16.msra.mxu0 0
        %4733 = vmatpush.bf16.msra.mxu0 0
        %4734 = vmatpush.bf16.msra.mxu0 %v4722
        %4735 = vmatmul.bf16.gmra.mxu0 %v4725
        %v4736 = vpop.f32.mrf.mxu0
        %v4737 = vadd.f32 0.0, %v4736
        %v4738 = vpop.f32.mrf.mxu0
        %v4739 = vadd.f32 0.0, %v4738
        %4740 = vdwg.mxu0
        %v4743 = vunpack.c.l.b16 %v4669
        %v4744 = vunpack.c.l.b16 %v4670
        %v4745 = vpack.c.b16 %v4744, %v4743
        %v4748 = vunpack.c.l.b16 %v4205
        %v4749 = vunpack.c.l.b16 %v4206
        %v4750 = vpack.c.b16 %v4749, %v4748
        %4751 = vrot.lane.b32.xlu0 %v4750, 64
        %v4752 = vpop.permute.xlu0 %4751
        %v4755 = vsel %vm1007, %v4745, 0
        %4757 = vmatpush.bf16.msra.mxu0 0
        %4758 = vmatpush.bf16.msra.mxu0 0
        %4759 = vmatpush.bf16.msra.mxu0 0
        %4760 = vmatpush.bf16.msra.mxu0 0
        %4761 = vmatpush.bf16.msra.mxu0 0
        %4762 = vmatpush.bf16.msra.mxu0 0
        %4763 = vmatpush.bf16.msra.mxu0 0
        %4764 = vmatpush.bf16.msra.mxu0 %v4752
        %4765 = vmatmul.bf16.gmra.mxu0 %v4755
        %v4766 = vpop.f32.mrf.mxu0
        %v4767 = vadd.f32 0.0, %v4766
        %v4768 = vpop.f32.mrf.mxu0
        %v4769 = vadd.f32 0.0, %v4768
        %4770 = vdwg.mxu0
        %v4773 = vunpack.c.l.b16 %v4671
        %v4774 = vunpack.c.l.b16 %v4672
        %v4775 = vpack.c.b16 %v4774, %v4773
        %v4778 = vunpack.c.l.b16 %v4207
        %v4779 = vunpack.c.l.b16 %v4208
        %v4780 = vpack.c.b16 %v4779, %v4778
        %4781 = vrot.lane.b32.xlu0 %v4780, 64
        %v4782 = vpop.permute.xlu0 %4781
        %v4785 = vsel %vm1007, %v4775, 0
        %4787 = vmatpush.bf16.msra.mxu0 0
        %4788 = vmatpush.bf16.msra.mxu0 0
        %4789 = vmatpush.bf16.msra.mxu0 0
        %4790 = vmatpush.bf16.msra.mxu0 0
        %4791 = vmatpush.bf16.msra.mxu0 0
        %4792 = vmatpush.bf16.msra.mxu0 0
        %4793 = vmatpush.bf16.msra.mxu0 0
        %4794 = vmatpush.bf16.msra.mxu0 %v4782
        %4795 = vmatmul.bf16.gmra.mxu0 %v4785
        %v4796 = vpop.f32.mrf.mxu0
        %v4797 = vadd.f32 0.0, %v4796
        %v4798 = vpop.f32.mrf.mxu0
        %v4799 = vadd.f32 0.0, %v4798
        %4800 = vdwg.mxu0
        %v4803 = vunpack.c.l.b16 %v4673
        %v4804 = vunpack.c.l.b16 %v4674
        %v4805 = vpack.c.b16 %v4804, %v4803
        %v4808 = vunpack.c.l.b16 %v4209
        %v4809 = vunpack.c.l.b16 %v4210
        %v4810 = vpack.c.b16 %v4809, %v4808
        %4811 = vrot.lane.b32.xlu0 %v4810, 64
        %v4812 = vpop.permute.xlu0 %4811
        %v4815 = vsel %vm1007, %v4805, 0
        %4817 = vmatpush.bf16.msra.mxu0 0
        %4818 = vmatpush.bf16.msra.mxu0 0
        %4819 = vmatpush.bf16.msra.mxu0 0
        %4820 = vmatpush.bf16.msra.mxu0 0
        %4821 = vmatpush.bf16.msra.mxu0 0
        %4822 = vmatpush.bf16.msra.mxu0 0
        %4823 = vmatpush.bf16.msra.mxu0 0
        %4824 = vmatpush.bf16.msra.mxu0 %v4812
        %4825 = vmatmul.bf16.gmra.mxu0 %v4815
        %v4826 = vpop.f32.mrf.mxu0
        %v4827 = vadd.f32 0.0, %v4826
        %v4828 = vpop.f32.mrf.mxu0
        %v4829 = vadd.f32 0.0, %v4828
        %4830 = vdwg.mxu0
        %v4833 = vunpack.c.l.b16 %v4675
        %v4834 = vunpack.c.l.b16 %v4676
        %v4835 = vpack.c.b16 %v4834, %v4833
        %v4838 = vunpack.c.l.b16 %v4211
        %v4839 = vunpack.c.l.b16 %v4212
        %v4840 = vpack.c.b16 %v4839, %v4838
        %4841 = vrot.lane.b32.xlu0 %v4840, 64
        %v4842 = vpop.permute.xlu0 %4841
        %v4845 = vsel %vm1007, %v4835, 0
        %4847 = vmatpush.bf16.msra.mxu0 0
        %4848 = vmatpush.bf16.msra.mxu0 0
        %4849 = vmatpush.bf16.msra.mxu0 0
        %4850 = vmatpush.bf16.msra.mxu0 0
        %4851 = vmatpush.bf16.msra.mxu0 0
        %4852 = vmatpush.bf16.msra.mxu0 0
        %4853 = vmatpush.bf16.msra.mxu0 0
        %4854 = vmatpush.bf16.msra.mxu0 %v4842
        %4855 = vmatmul.bf16.gmra.mxu0 %v4845
        %v4856 = vpop.f32.mrf.mxu0
        %v4857 = vadd.f32 0.0, %v4856
        %v4858 = vpop.f32.mrf.mxu0
        %v4859 = vadd.f32 0.0, %v4858
        %4860 = vdwg.mxu0
        %v4863 = vunpack.c.l.b16 %v4677
        %v4864 = vunpack.c.l.b16 %v4678
        %v4865 = vpack.c.b16 %v4864, %v4863
        %v4868 = vunpack.c.l.b16 %v4213
        %v4869 = vunpack.c.l.b16 %v4214
        %v4870 = vpack.c.b16 %v4869, %v4868
        %4871 = vrot.lane.b32.xlu0 %v4870, 64
        %v4872 = vpop.permute.xlu0 %4871
        %v4875 = vsel %vm1007, %v4865, 0
        %4877 = vmatpush.bf16.msra.mxu0 0
        %4878 = vmatpush.bf16.msra.mxu0 0
        %4879 = vmatpush.bf16.msra.mxu0 0
        %4880 = vmatpush.bf16.msra.mxu0 0
        %4881 = vmatpush.bf16.msra.mxu0 0
        %4882 = vmatpush.bf16.msra.mxu0 0
        %4883 = vmatpush.bf16.msra.mxu0 0
        %4884 = vmatpush.bf16.msra.mxu0 %v4872
        %4885 = vmatmul.bf16.gmra.mxu0 %v4875
        %v4886 = vpop.f32.mrf.mxu0
        %v4887 = vadd.f32 0.0, %v4886
        %v4888 = vpop.f32.mrf.mxu0
        %v4889 = vadd.f32 0.0, %v4888
        %4890 = vdwg.mxu0
        %v4893 = vunpack.c.l.b16 %v4679
        %v4894 = vunpack.c.l.b16 %v4680
        %v4895 = vpack.c.b16 %v4894, %v4893
        %v4898 = vunpack.c.l.b16 %v4215
        %v4899 = vunpack.c.l.b16 %v4216
        %v4900 = vpack.c.b16 %v4899, %v4898
        %4901 = vrot.lane.b32.xlu0 %v4900, 64
        %v4902 = vpop.permute.xlu0 %4901
        %v4905 = vsel %vm1007, %v4895, 0
        %4907 = vmatpush.bf16.msra.mxu0 0
        %4908 = vmatpush.bf16.msra.mxu0 0
        %4909 = vmatpush.bf16.msra.mxu0 0
        %4910 = vmatpush.bf16.msra.mxu0 0
        %4911 = vmatpush.bf16.msra.mxu0 0
        %4912 = vmatpush.bf16.msra.mxu0 0
        %4913 = vmatpush.bf16.msra.mxu0 0
        %4914 = vmatpush.bf16.msra.mxu0 %v4902
        %4915 = vmatmul.bf16.gmra.mxu0 %v4905
        %v4916 = vpop.f32.mrf.mxu0
        %v4917 = vadd.f32 0.0, %v4916
        %v4918 = vpop.f32.mrf.mxu0
        %v4919 = vadd.f32 0.0, %v4918
        %4920 = vdwg.mxu0
        %4937 = vrot.lane.b32.xlu0 %v4707, 64
        %v4938 = vpop.permute.xlu0 %4937
        %4939 = vrot.lane.b32.xlu0 %v4709, 64
        %v4940 = vpop.permute.xlu0 %4939
        %4941 = vrot.lane.b32.xlu0 %v4737, 64
        %v4942 = vpop.permute.xlu0 %4941
        %4943 = vrot.lane.b32.xlu0 %v4739, 64
        %v4944 = vpop.permute.xlu0 %4943
        %4945 = vrot.lane.b32.xlu0 %v4767, 64
        %v4946 = vpop.permute.xlu0 %4945
        %4947 = vrot.lane.b32.xlu0 %v4769, 64
        %v4948 = vpop.permute.xlu0 %4947
        %4949 = vrot.lane.b32.xlu0 %v4797, 64
        %v4950 = vpop.permute.xlu0 %4949
        %4951 = vrot.lane.b32.xlu0 %v4799, 64
        %v4952 = vpop.permute.xlu0 %4951
        %4953 = vrot.lane.b32.xlu0 %v4827, 64
        %v4954 = vpop.permute.xlu0 %4953
        %4955 = vrot.lane.b32.xlu0 %v4829, 64
        %v4956 = vpop.permute.xlu0 %4955
        %4957 = vrot.lane.b32.xlu0 %v4857, 64
        %v4958 = vpop.permute.xlu0 %4957
        %4959 = vrot.lane.b32.xlu0 %v4859, 64
        %v4960 = vpop.permute.xlu0 %4959
        %4961 = vrot.lane.b32.xlu0 %v4887, 64
        %v4962 = vpop.permute.xlu0 %4961
        %4963 = vrot.lane.b32.xlu0 %v4889, 64
        %v4964 = vpop.permute.xlu0 %4963
        %4965 = vrot.lane.b32.xlu0 %v4917, 64
        %v4966 = vpop.permute.xlu0 %4965
        %4967 = vrot.lane.b32.xlu0 %v4919, 64
        %v4968 = vpop.permute.xlu0 %4967
        %vm4985 = vcmask 654848
        %4986 = vst.msk [vmem:[#allocation3] sm:$0xff] %vm4985, %v4938
        %4987 = vst.msk [vmem:[#allocation3 + $0x8] sm:$0xff] %vm4985, %v4940
        %4988 = vst.msk [vmem:[#allocation3 + $0x10] sm:$0xff] %vm4985, %v4942
        %4989 = vst.msk [vmem:[#allocation3 + $0x18] sm:$0xff] %vm4985, %v4944
        %4990 = vst.msk [vmem:[#allocation3 + $0x20] sm:$0xff] %vm4985, %v4946
        %4991 = vst.msk [vmem:[#allocation3 + $0x28] sm:$0xff] %vm4985, %v4948
        %4992 = vst.msk [vmem:[#allocation3 + $0x30] sm:$0xff] %vm4985, %v4950
        %4993 = vst.msk [vmem:[#allocation3 + $0x38] sm:$0xff] %vm4985, %v4952
        %4994 = vst.msk [vmem:[#allocation3 + $0x40] sm:$0xff] %vm4985, %v4954
        %4995 = vst.msk [vmem:[#allocation3 + $0x48] sm:$0xff] %vm4985, %v4956
        %4996 = vst.msk [vmem:[#allocation3 + $0x50] sm:$0xff] %vm4985, %v4958
        %4997 = vst.msk [vmem:[#allocation3 + $0x58] sm:$0xff] %vm4985, %v4960
        %4998 = vst.msk [vmem:[#allocation3 + $0x60] sm:$0xff] %vm4985, %v4962
        %4999 = vst.msk [vmem:[#allocation3 + $0x68] sm:$0xff] %vm4985, %v4964
        %5000 = vst.msk [vmem:[#allocation3 + $0x70] sm:$0xff] %vm4985, %v4966
        %5001 = vst.msk [vmem:[#allocation3 + $0x78] sm:$0xff] %vm4985, %v4968
        %v5002 = vld [vmem:[#allocation2] sm:$0xf]
        %v5003 = vld [vmem:[#allocation2 + $0xc] sm:$0xf]
        %v5004 = vld [vmem:[#allocation2 + $0x18] sm:$0xf]
        %v5005 = vld [vmem:[#allocation2 + $0x24] sm:$0xf]
        %v5006 = vld [vmem:[#allocation2 + $0x30] sm:$0xf]
        %v5007 = vld [vmem:[#allocation2 + $0x3c] sm:$0xf]
        %v5008 = vld [vmem:[#allocation2 + $0x48] sm:$0xf]
        %v5009 = vld [vmem:[#allocation2 + $0x54] sm:$0xf]
        %v5010 = vld [vmem:[#allocation2 + $0x60] sm:$0xf]
        %v5011 = vld [vmem:[#allocation2 + $0x6c] sm:$0xf]
        %v5012 = vld [vmem:[#allocation2 + $0x78] sm:$0xf]
        %v5013 = vld [vmem:[#allocation2 + $0x84] sm:$0xf]
        %v5014 = vld [vmem:[#allocation2 + $0x90] sm:$0xf]
        %v5015 = vld [vmem:[#allocation2 + $0x9c] sm:$0xf]
        %v5016 = vld [vmem:[#allocation2 + $0xa8] sm:$0xf]
        %v5017 = vld [vmem:[#allocation2 + $0xb4] sm:$0xf]
        %v5018 = vld [vmem:[#allocation2 + $0x4] sm:$0xf]
        %v5019 = vld [vmem:[#allocation2 + $0x10] sm:$0xf]
        %v5020 = vld [vmem:[#allocation2 + $0x1c] sm:$0xf]
        %v5021 = vld [vmem:[#allocation2 + $0x28] sm:$0xf]
        %v5022 = vld [vmem:[#allocation2 + $0x34] sm:$0xf]
        %v5023 = vld [vmem:[#allocation2 + $0x40] sm:$0xf]
        %v5024 = vld [vmem:[#allocation2 + $0x4c] sm:$0xf]
        %v5025 = vld [vmem:[#allocation2 + $0x58] sm:$0xf]
        %v5026 = vld [vmem:[#allocation2 + $0x64] sm:$0xf]
        %v5027 = vld [vmem:[#allocation2 + $0x70] sm:$0xf]
        %v5028 = vld [vmem:[#allocation2 + $0x7c] sm:$0xf]
        %v5029 = vld [vmem:[#allocation2 + $0x88] sm:$0xf]
        %v5030 = vld [vmem:[#allocation2 + $0x94] sm:$0xf]
        %v5031 = vld [vmem:[#allocation2 + $0xa0] sm:$0xf]
        %v5032 = vld [vmem:[#allocation2 + $0xac] sm:$0xf]
        %v5033 = vld [vmem:[#allocation2 + $0xb8] sm:$0xf]
        %v5034 = vld [vmem:[#allocation2 + $0x8] sm:$0xf]
        %v5035 = vld [vmem:[#allocation2 + $0x14] sm:$0xf]
        %v5036 = vld [vmem:[#allocation2 + $0x20] sm:$0xf]
        %v5037 = vld [vmem:[#allocation2 + $0x2c] sm:$0xf]
        %v5038 = vld [vmem:[#allocation2 + $0x38] sm:$0xf]
        %v5039 = vld [vmem:[#allocation2 + $0x44] sm:$0xf]
        %v5040 = vld [vmem:[#allocation2 + $0x50] sm:$0xf]
        %v5041 = vld [vmem:[#allocation2 + $0x5c] sm:$0xf]
        %v5042 = vld [vmem:[#allocation2 + $0x68] sm:$0xf]
        %v5043 = vld [vmem:[#allocation2 + $0x74] sm:$0xf]
        %v5044 = vld [vmem:[#allocation2 + $0x80] sm:$0xf]
        %v5045 = vld [vmem:[#allocation2 + $0x8c] sm:$0xf]
        %v5046 = vld [vmem:[#allocation2 + $0x98] sm:$0xf]
        %v5047 = vld [vmem:[#allocation2 + $0xa4] sm:$0xf]
        %v5048 = vld [vmem:[#allocation2 + $0xb0] sm:$0xf]
        %v5049 = vld [vmem:[#allocation2 + $0xbc] sm:$0xf]
        %v5052 = vunpack.c.l.b16 %v5002
        %v5053 = vunpack.c.l.b16 %v5003
        %v5054 = vpack.c.b16 %v5053, %v5052
        %5055 = vrot.lane.b32.xlu0 %v5054, 48
        %v5056 = vpop.permute.xlu0 %5055
        %v5059 = vunpack.c.l.b16 %v5018
        %v5060 = vunpack.c.l.b16 %v5019
        %v5061 = vpack.c.b16 %v5060, %v5059
        %5062 = vrot.lane.b32.xlu0 %v5061, 48
        %v5063 = vpop.permute.xlu0 %5062
        %v5065 = vsel %vm1007, %v5056, 0
        %v5068 = vsel %vm1007, %v5063, 0
        %5070 = vmatpush.bf16.xpose.msra.mxu0 0
        %5071 = vmatpush.bf16.xpose.msra.mxu0 0
        %5072 = vmatpush.bf16.xpose.msra.mxu0 0
        %5073 = vmatpush.bf16.xpose.msra.mxu0 0
        %5074 = vmatpush.bf16.xpose.msra.mxu0 0
        %5075 = vmatpush.bf16.xpose.msra.mxu0 0
        %5076 = vmatpush.bf16.xpose.msra.mxu0 0
        %5077 = vmatpush.bf16.xpose.msra.mxu0 %v5068
        %5078 = vmatmul.bf16.gmra.mxu0 %v5065
        %v5079 = vpop.f32.mrf.mxu0
        %v5080 = vadd.f32 0.0, %v5079
        %v5081 = vpop.f32.mrf.mxu0
        %v5082 = vadd.f32 0.0, %v5081
        %5083 = vdwg.mxu0
        %v5086 = vunpack.c.l.b16 %v5004
        %v5087 = vunpack.c.l.b16 %v5005
        %v5088 = vpack.c.b16 %v5087, %v5086
        %5089 = vrot.lane.b32.xlu0 %v5088, 48
        %v5090 = vpop.permute.xlu0 %5089
        %v5093 = vunpack.c.l.b16 %v5020
        %v5094 = vunpack.c.l.b16 %v5021
        %v5095 = vpack.c.b16 %v5094, %v5093
        %5096 = vrot.lane.b32.xlu0 %v5095, 48
        %v5097 = vpop.permute.xlu0 %5096
        %v5099 = vsel %vm1007, %v5090, 0
        %v5102 = vsel %vm1007, %v5097, 0
        %5104 = vmatpush.bf16.xpose.msra.mxu0 0
        %5105 = vmatpush.bf16.xpose.msra.mxu0 0
        %5106 = vmatpush.bf16.xpose.msra.mxu0 0
        %5107 = vmatpush.bf16.xpose.msra.mxu0 0
        %5108 = vmatpush.bf16.xpose.msra.mxu0 0
        %5109 = vmatpush.bf16.xpose.msra.mxu0 0
        %5110 = vmatpush.bf16.xpose.msra.mxu0 0
        %5111 = vmatpush.bf16.xpose.msra.mxu0 %v5102
        %5112 = vmatmul.bf16.gmra.mxu0 %v5099
        %v5113 = vpop.f32.mrf.mxu0
        %v5114 = vadd.f32 0.0, %v5113
        %v5115 = vpop.f32.mrf.mxu0
        %v5116 = vadd.f32 0.0, %v5115
        %5117 = vdwg.mxu0
        %v5120 = vunpack.c.l.b16 %v5006
        %v5121 = vunpack.c.l.b16 %v5007
        %v5122 = vpack.c.b16 %v5121, %v5120
        %5123 = vrot.lane.b32.xlu0 %v5122, 48
        %v5124 = vpop.permute.xlu0 %5123
        %v5127 = vunpack.c.l.b16 %v5022
        %v5128 = vunpack.c.l.b16 %v5023
        %v5129 = vpack.c.b16 %v5128, %v5127
        %5130 = vrot.lane.b32.xlu0 %v5129, 48
        %v5131 = vpop.permute.xlu0 %5130
        %v5133 = vsel %vm1007, %v5124, 0
        %v5136 = vsel %vm1007, %v5131, 0
        %5138 = vmatpush.bf16.xpose.msra.mxu0 0
        %5139 = vmatpush.bf16.xpose.msra.mxu0 0
        %5140 = vmatpush.bf16.xpose.msra.mxu0 0
        %5141 = vmatpush.bf16.xpose.msra.mxu0 0
        %5142 = vmatpush.bf16.xpose.msra.mxu0 0
        %5143 = vmatpush.bf16.xpose.msra.mxu0 0
        %5144 = vmatpush.bf16.xpose.msra.mxu0 0
        %5145 = vmatpush.bf16.xpose.msra.mxu0 %v5136
        %5146 = vmatmul.bf16.gmra.mxu0 %v5133
        %v5147 = vpop.f32.mrf.mxu0
        %v5148 = vadd.f32 0.0, %v5147
        %v5149 = vpop.f32.mrf.mxu0
        %v5150 = vadd.f32 0.0, %v5149
        %5151 = vdwg.mxu0
        %v5154 = vunpack.c.l.b16 %v5008
        %v5155 = vunpack.c.l.b16 %v5009
        %v5156 = vpack.c.b16 %v5155, %v5154
        %5157 = vrot.lane.b32.xlu0 %v5156, 48
        %v5158 = vpop.permute.xlu0 %5157
        %v5161 = vunpack.c.l.b16 %v5024
        %v5162 = vunpack.c.l.b16 %v5025
        %v5163 = vpack.c.b16 %v5162, %v5161
        %5164 = vrot.lane.b32.xlu0 %v5163, 48
        %v5165 = vpop.permute.xlu0 %5164
        %v5167 = vsel %vm1007, %v5158, 0
        %v5170 = vsel %vm1007, %v5165, 0
        %5172 = vmatpush.bf16.xpose.msra.mxu0 0
        %5173 = vmatpush.bf16.xpose.msra.mxu0 0
        %5174 = vmatpush.bf16.xpose.msra.mxu0 0
        %5175 = vmatpush.bf16.xpose.msra.mxu0 0
        %5176 = vmatpush.bf16.xpose.msra.mxu0 0
        %5177 = vmatpush.bf16.xpose.msra.mxu0 0
        %5178 = vmatpush.bf16.xpose.msra.mxu0 0
        %5179 = vmatpush.bf16.xpose.msra.mxu0 %v5170
        %5180 = vmatmul.bf16.gmra.mxu0 %v5167
        %v5181 = vpop.f32.mrf.mxu0
        %v5182 = vadd.f32 0.0, %v5181
        %v5183 = vpop.f32.mrf.mxu0
        %v5184 = vadd.f32 0.0, %v5183
        %5185 = vdwg.mxu0
        %v5188 = vunpack.c.l.b16 %v5010
        %v5189 = vunpack.c.l.b16 %v5011
        %v5190 = vpack.c.b16 %v5189, %v5188
        %5191 = vrot.lane.b32.xlu0 %v5190, 48
        %v5192 = vpop.permute.xlu0 %5191
        %v5195 = vunpack.c.l.b16 %v5026
        %v5196 = vunpack.c.l.b16 %v5027
        %v5197 = vpack.c.b16 %v5196, %v5195
        %5198 = vrot.lane.b32.xlu0 %v5197, 48
        %v5199 = vpop.permute.xlu0 %5198
        %v5201 = vsel %vm1007, %v5192, 0
        %v5204 = vsel %vm1007, %v5199, 0
        %5206 = vmatpush.bf16.xpose.msra.mxu0 0
        %5207 = vmatpush.bf16.xpose.msra.mxu0 0
        %5208 = vmatpush.bf16.xpose.msra.mxu0 0
        %5209 = vmatpush.bf16.xpose.msra.mxu0 0
        %5210 = vmatpush.bf16.xpose.msra.mxu0 0
        %5211 = vmatpush.bf16.xpose.msra.mxu0 0
        %5212 = vmatpush.bf16.xpose.msra.mxu0 0
        %5213 = vmatpush.bf16.xpose.msra.mxu0 %v5204
        %5214 = vmatmul.bf16.gmra.mxu0 %v5201
        %v5215 = vpop.f32.mrf.mxu0
        %v5216 = vadd.f32 0.0, %v5215
        %v5217 = vpop.f32.mrf.mxu0
        %v5218 = vadd.f32 0.0, %v5217
        %5219 = vdwg.mxu0
        %v5222 = vunpack.c.l.b16 %v5012
        %v5223 = vunpack.c.l.b16 %v5013
        %v5224 = vpack.c.b16 %v5223, %v5222
        %5225 = vrot.lane.b32.xlu0 %v5224, 48
        %v5226 = vpop.permute.xlu0 %5225
        %v5229 = vunpack.c.l.b16 %v5028
        %v5230 = vunpack.c.l.b16 %v5029
        %v5231 = vpack.c.b16 %v5230, %v5229
        %5232 = vrot.lane.b32.xlu0 %v5231, 48
        %v5233 = vpop.permute.xlu0 %5232
        %v5235 = vsel %vm1007, %v5226, 0
        %v5238 = vsel %vm1007, %v5233, 0
        %5240 = vmatpush.bf16.xpose.msra.mxu0 0
        %5241 = vmatpush.bf16.xpose.msra.mxu0 0
        %5242 = vmatpush.bf16.xpose.msra.mxu0 0
        %5243 = vmatpush.bf16.xpose.msra.mxu0 0
        %5244 = vmatpush.bf16.xpose.msra.mxu0 0
        %5245 = vmatpush.bf16.xpose.msra.mxu0 0
        %5246 = vmatpush.bf16.xpose.msra.mxu0 0
        %5247 = vmatpush.bf16.xpose.msra.mxu0 %v5238
        %5248 = vmatmul.bf16.gmra.mxu0 %v5235
        %v5249 = vpop.f32.mrf.mxu0
        %v5250 = vadd.f32 0.0, %v5249
        %v5251 = vpop.f32.mrf.mxu0
        %v5252 = vadd.f32 0.0, %v5251
        %5253 = vdwg.mxu0
        %v5256 = vunpack.c.l.b16 %v5014
        %v5257 = vunpack.c.l.b16 %v5015
        %v5258 = vpack.c.b16 %v5257, %v5256
        %5259 = vrot.lane.b32.xlu0 %v5258, 48
        %v5260 = vpop.permute.xlu0 %5259
        %v5263 = vunpack.c.l.b16 %v5030
        %v5264 = vunpack.c.l.b16 %v5031
        %v5265 = vpack.c.b16 %v5264, %v5263
        %5266 = vrot.lane.b32.xlu0 %v5265, 48
        %v5267 = vpop.permute.xlu0 %5266
        %v5269 = vsel %vm1007, %v5260, 0
        %v5272 = vsel %vm1007, %v5267, 0
        %5274 = vmatpush.bf16.xpose.msra.mxu0 0
        %5275 = vmatpush.bf16.xpose.msra.mxu0 0
        %5276 = vmatpush.bf16.xpose.msra.mxu0 0
        %5277 = vmatpush.bf16.xpose.msra.mxu0 0
        %5278 = vmatpush.bf16.xpose.msra.mxu0 0
        %5279 = vmatpush.bf16.xpose.msra.mxu0 0
        %5280 = vmatpush.bf16.xpose.msra.mxu0 0
        %5281 = vmatpush.bf16.xpose.msra.mxu0 %v5272
        %5282 = vmatmul.bf16.gmra.mxu0 %v5269
        %v5283 = vpop.f32.mrf.mxu0
        %v5284 = vadd.f32 0.0, %v5283
        %v5285 = vpop.f32.mrf.mxu0
        %v5286 = vadd.f32 0.0, %v5285
        %5287 = vdwg.mxu0
        %v5290 = vunpack.c.l.b16 %v5016
        %v5291 = vunpack.c.l.b16 %v5017
        %v5292 = vpack.c.b16 %v5291, %v5290
        %5293 = vrot.lane.b32.xlu0 %v5292, 48
        %v5294 = vpop.permute.xlu0 %5293
        %v5297 = vunpack.c.l.b16 %v5032
        %v5298 = vunpack.c.l.b16 %v5033
        %v5299 = vpack.c.b16 %v5298, %v5297
        %5300 = vrot.lane.b32.xlu0 %v5299, 48
        %v5301 = vpop.permute.xlu0 %5300
        %v5303 = vsel %vm1007, %v5294, 0
        %v5306 = vsel %vm1007, %v5301, 0
        %5308 = vmatpush.bf16.xpose.msra.mxu0 0
        %5309 = vmatpush.bf16.xpose.msra.mxu0 0
        %5310 = vmatpush.bf16.xpose.msra.mxu0 0
        %5311 = vmatpush.bf16.xpose.msra.mxu0 0
        %5312 = vmatpush.bf16.xpose.msra.mxu0 0
        %5313 = vmatpush.bf16.xpose.msra.mxu0 0
        %5314 = vmatpush.bf16.xpose.msra.mxu0 0
        %5315 = vmatpush.bf16.xpose.msra.mxu0 %v5306
        %5316 = vmatmul.bf16.gmra.mxu0 %v5303
        %v5317 = vpop.f32.mrf.mxu0
        %v5318 = vadd.f32 0.0, %v5317
        %v5319 = vpop.f32.mrf.mxu0
        %v5320 = vadd.f32 0.0, %v5319
        %5321 = vdwg.mxu0
        %v5322 = vsel %vm1007, %v5080, -inf
        %5323 = vmax.xlane.f32.xlu0 %v5322
        %v5324 = vpop.xlane.xlu0 %5323
        %v5325 = vsel %vm1007, %v5082, -inf
        %5326 = vmax.xlane.f32.xlu0 %v5325
        %v5327 = vpop.xlane.xlu0 %5326
        %v5328 = vsel %vm1007, %v5114, -inf
        %5329 = vmax.xlane.f32.xlu0 %v5328
        %v5330 = vpop.xlane.xlu0 %5329
        %v5331 = vsel %vm1007, %v5116, -inf
        %5332 = vmax.xlane.f32.xlu0 %v5331
        %v5333 = vpop.xlane.xlu0 %5332
        %v5334 = vsel %vm1007, %v5148, -inf
        %5335 = vmax.xlane.f32.xlu0 %v5334
        %v5336 = vpop.xlane.xlu0 %5335
        %v5337 = vsel %vm1007, %v5150, -inf
        %5338 = vmax.xlane.f32.xlu0 %v5337
        %v5339 = vpop.xlane.xlu0 %5338
        %v5340 = vsel %vm1007, %v5182, -inf
        %5341 = vmax.xlane.f32.xlu0 %v5340
        %v5342 = vpop.xlane.xlu0 %5341
        %v5343 = vsel %vm1007, %v5184, -inf
        %5344 = vmax.xlane.f32.xlu0 %v5343
        %v5345 = vpop.xlane.xlu0 %5344
        %v5346 = vsel %vm1007, %v5216, -inf
        %5347 = vmax.xlane.f32.xlu0 %v5346
        %v5348 = vpop.xlane.xlu0 %5347
        %v5349 = vsel %vm1007, %v5218, -inf
        %5350 = vmax.xlane.f32.xlu0 %v5349
        %v5351 = vpop.xlane.xlu0 %5350
        %v5352 = vsel %vm1007, %v5250, -inf
        %5353 = vmax.xlane.f32.xlu0 %v5352
        %v5354 = vpop.xlane.xlu0 %5353
        %v5355 = vsel %vm1007, %v5252, -inf
        %5356 = vmax.xlane.f32.xlu0 %v5355
        %v5357 = vpop.xlane.xlu0 %5356
        %v5358 = vsel %vm1007, %v5284, -inf
        %5359 = vmax.xlane.f32.xlu0 %v5358
        %v5360 = vpop.xlane.xlu0 %5359
        %v5361 = vsel %vm1007, %v5286, -inf
        %5362 = vmax.xlane.f32.xlu0 %v5361
        %v5363 = vpop.xlane.xlu0 %5362
        %v5364 = vsel %vm1007, %v5318, -inf
        %5365 = vmax.xlane.f32.xlu0 %v5364
        %v5366 = vpop.xlane.xlu0 %5365
        %v5367 = vsel %vm1007, %v5320, -inf
        %5368 = vmax.xlane.f32.xlu0 %v5367
        %v5369 = vpop.xlane.xlu0 %5368
        %v5370 = vsub.f32 %v5080, %v5324
        %v5371 = vsub.f32 %v5082, %v5327
        %v5372 = vsub.f32 %v5114, %v5330
        %v5373 = vsub.f32 %v5116, %v5333
        %v5374 = vsub.f32 %v5148, %v5336
        %v5375 = vsub.f32 %v5150, %v5339
        %v5376 = vsub.f32 %v5182, %v5342
        %v5377 = vsub.f32 %v5184, %v5345
        %v5378 = vsub.f32 %v5216, %v5348
        %v5379 = vsub.f32 %v5218, %v5351
        %v5380 = vsub.f32 %v5250, %v5354
        %v5381 = vsub.f32 %v5252, %v5357
        %v5382 = vsub.f32 %v5284, %v5360
        %v5383 = vsub.f32 %v5286, %v5363
        %v5384 = vsub.f32 %v5318, %v5366
        %v5385 = vsub.f32 %v5320, %v5369
        %v5386 = vmul.f32 %v5370, 1.442695
        %v5387 = vpow.pop %v5386
        %v5388 = vmul.f32 %v5371, 1.442695
        %v5389 = vpow.pop %v5388
        %v5390 = vmul.f32 %v5372, 1.442695
        %v5391 = vpow.pop %v5390
        %v5392 = vmul.f32 %v5373, 1.442695
        %v5393 = vpow.pop %v5392
        %v5394 = vmul.f32 %v5374, 1.442695
        %v5395 = vpow.pop %v5394
        %v5396 = vmul.f32 %v5375, 1.442695
        %v5397 = vpow.pop %v5396
        %v5398 = vmul.f32 %v5376, 1.442695
        %v5399 = vpow.pop %v5398
        %v5400 = vmul.f32 %v5377, 1.442695
        %v5401 = vpow.pop %v5400
        %v5402 = vmul.f32 %v5378, 1.442695
        %v5403 = vpow.pop %v5402
        %v5404 = vmul.f32 %v5379, 1.442695
        %v5405 = vpow.pop %v5404
        %v5406 = vmul.f32 %v5380, 1.442695
        %v5407 = vpow.pop %v5406
        %v5408 = vmul.f32 %v5381, 1.442695
        %v5409 = vpow.pop %v5408
        %v5410 = vmul.f32 %v5382, 1.442695
        %v5411 = vpow.pop %v5410
        %v5412 = vmul.f32 %v5383, 1.442695
        %v5413 = vpow.pop %v5412
        %v5414 = vmul.f32 %v5384, 1.442695
        %v5415 = vpow.pop %v5414
        %v5416 = vmul.f32 %v5385, 1.442695
        %v5417 = vpow.pop %v5416
        %v5418 = vsel %vm1007, %v5387, 0.0
        %5419 = vadd.xlane.f32.xlu0 %v5418
        %v5420 = vpop.xlane.xlu0 %5419
        %v5421 = vsel %vm1007, %v5389, 0.0
        %5422 = vadd.xlane.f32.xlu0 %v5421
        %v5423 = vpop.xlane.xlu0 %5422
        %v5424 = vsel %vm1007, %v5391, 0.0
        %5425 = vadd.xlane.f32.xlu0 %v5424
        %v5426 = vpop.xlane.xlu0 %5425
        %v5427 = vsel %vm1007, %v5393, 0.0
        %5428 = vadd.xlane.f32.xlu0 %v5427
        %v5429 = vpop.xlane.xlu0 %5428
        %v5430 = vsel %vm1007, %v5395, 0.0
        %5431 = vadd.xlane.f32.xlu0 %v5430
        %v5432 = vpop.xlane.xlu0 %5431
        %v5433 = vsel %vm1007, %v5397, 0.0
        %5434 = vadd.xlane.f32.xlu0 %v5433
        %v5435 = vpop.xlane.xlu0 %5434
        %v5436 = vsel %vm1007, %v5399, 0.0
        %5437 = vadd.xlane.f32.xlu0 %v5436
        %v5438 = vpop.xlane.xlu0 %5437
        %v5439 = vsel %vm1007, %v5401, 0.0
        %5440 = vadd.xlane.f32.xlu0 %v5439
        %v5441 = vpop.xlane.xlu0 %5440
        %v5442 = vsel %vm1007, %v5403, 0.0
        %5443 = vadd.xlane.f32.xlu0 %v5442
        %v5444 = vpop.xlane.xlu0 %5443
        %v5445 = vsel %vm1007, %v5405, 0.0
        %5446 = vadd.xlane.f32.xlu0 %v5445
        %v5447 = vpop.xlane.xlu0 %5446
        %v5448 = vsel %vm1007, %v5407, 0.0
        %5449 = vadd.xlane.f32.xlu0 %v5448
        %v5450 = vpop.xlane.xlu0 %5449
        %v5451 = vsel %vm1007, %v5409, 0.0
        %5452 = vadd.xlane.f32.xlu0 %v5451
        %v5453 = vpop.xlane.xlu0 %5452
        %v5454 = vsel %vm1007, %v5411, 0.0
        %5455 = vadd.xlane.f32.xlu0 %v5454
        %v5456 = vpop.xlane.xlu0 %5455
        %v5457 = vsel %vm1007, %v5413, 0.0
        %5458 = vadd.xlane.f32.xlu0 %v5457
        %v5459 = vpop.xlane.xlu0 %5458
        %v5460 = vsel %vm1007, %v5415, 0.0
        %5461 = vadd.xlane.f32.xlu0 %v5460
        %v5462 = vpop.xlane.xlu0 %5461
        %v5463 = vsel %vm1007, %v5417, 0.0
        %5464 = vadd.xlane.f32.xlu0 %v5463
        %v5465 = vpop.xlane.xlu0 %5464
        %v5466 = vrcp.pop %v5420
        %v5467 = vrcp.pop %v5423
        %v5468 = vrcp.pop %v5426
        %v5469 = vrcp.pop %v5429
        %v5470 = vrcp.pop %v5432
        %v5471 = vrcp.pop %v5435
        %v5472 = vrcp.pop %v5438
        %v5473 = vrcp.pop %v5441
        %v5474 = vrcp.pop %v5444
        %v5475 = vrcp.pop %v5447
        %v5476 = vrcp.pop %v5450
        %v5477 = vrcp.pop %v5453
        %v5478 = vrcp.pop %v5456
        %v5479 = vrcp.pop %v5459
        %v5480 = vrcp.pop %v5462
        %v5481 = vrcp.pop %v5465
        %v5482 = vmul.f32 %v5387, %v5466
        %v5483 = vmul.f32 %v5389, %v5467
        %v5484 = vmul.f32 %v5391, %v5468
        %v5485 = vmul.f32 %v5393, %v5469
        %v5486 = vmul.f32 %v5395, %v5470
        %v5487 = vmul.f32 %v5397, %v5471
        %v5488 = vmul.f32 %v5399, %v5472
        %v5489 = vmul.f32 %v5401, %v5473
        %v5490 = vmul.f32 %v5403, %v5474
        %v5491 = vmul.f32 %v5405, %v5475
        %v5492 = vmul.f32 %v5407, %v5476
        %v5493 = vmul.f32 %v5409, %v5477
        %v5494 = vmul.f32 %v5411, %v5478
        %v5495 = vmul.f32 %v5413, %v5479
        %v5496 = vmul.f32 %v5415, %v5480
        %v5497 = vmul.f32 %v5417, %v5481
        %v5498 = vpack.c.bf16 %v5482, %v5482
        %v5499 = vpack.c.bf16 %v5483, %v5483
        %v5500 = vpack.c.bf16 %v5484, %v5484
        %v5501 = vpack.c.bf16 %v5485, %v5485
        %v5502 = vpack.c.bf16 %v5486, %v5486
        %v5503 = vpack.c.bf16 %v5487, %v5487
        %v5504 = vpack.c.bf16 %v5488, %v5488
        %v5505 = vpack.c.bf16 %v5489, %v5489
        %v5506 = vpack.c.bf16 %v5490, %v5490
        %v5507 = vpack.c.bf16 %v5491, %v5491
        %v5508 = vpack.c.bf16 %v5492, %v5492
        %v5509 = vpack.c.bf16 %v5493, %v5493
        %v5510 = vpack.c.bf16 %v5494, %v5494
        %v5511 = vpack.c.bf16 %v5495, %v5495
        %v5512 = vpack.c.bf16 %v5496, %v5496
        %v5513 = vpack.c.bf16 %v5497, %v5497
        %v5516 = vunpack.c.l.b16 %v5498
        %v5517 = vunpack.c.l.b16 %v5499
        %v5518 = vpack.c.b16 %v5517, %v5516
        %v5521 = vunpack.c.l.b16 %v5034
        %v5522 = vunpack.c.l.b16 %v5035
        %v5523 = vpack.c.b16 %v5522, %v5521
        %5524 = vrot.lane.b32.xlu0 %v5523, 48
        %v5525 = vpop.permute.xlu0 %5524
        %v5528 = vsel %vm1007, %v5518, 0
        %5530 = vmatpush.bf16.msra.mxu0 0
        %5531 = vmatpush.bf16.msra.mxu0 0
        %5532 = vmatpush.bf16.msra.mxu0 0
        %5533 = vmatpush.bf16.msra.mxu0 0
        %5534 = vmatpush.bf16.msra.mxu0 0
        %5535 = vmatpush.bf16.msra.mxu0 0
        %5536 = vmatpush.bf16.msra.mxu0 0
        %5537 = vmatpush.bf16.msra.mxu0 %v5525
        %5538 = vmatmul.bf16.gmra.mxu0 %v5528
        %v5539 = vpop.f32.mrf.mxu0
        %v5540 = vadd.f32 0.0, %v5539
        %v5541 = vpop.f32.mrf.mxu0
        %v5542 = vadd.f32 0.0, %v5541
        %5543 = vdwg.mxu0
        %v5546 = vunpack.c.l.b16 %v5500
        %v5547 = vunpack.c.l.b16 %v5501
        %v5548 = vpack.c.b16 %v5547, %v5546
        %v5551 = vunpack.c.l.b16 %v5036
        %v5552 = vunpack.c.l.b16 %v5037
        %v5553 = vpack.c.b16 %v5552, %v5551
        %5554 = vrot.lane.b32.xlu0 %v5553, 48
        %v5555 = vpop.permute.xlu0 %5554
        %v5558 = vsel %vm1007, %v5548, 0
        %5560 = vmatpush.bf16.msra.mxu0 0
        %5561 = vmatpush.bf16.msra.mxu0 0
        %5562 = vmatpush.bf16.msra.mxu0 0
        %5563 = vmatpush.bf16.msra.mxu0 0
        %5564 = vmatpush.bf16.msra.mxu0 0
        %5565 = vmatpush.bf16.msra.mxu0 0
        %5566 = vmatpush.bf16.msra.mxu0 0
        %5567 = vmatpush.bf16.msra.mxu0 %v5555
        %5568 = vmatmul.bf16.gmra.mxu0 %v5558
        %v5569 = vpop.f32.mrf.mxu0
        %v5570 = vadd.f32 0.0, %v5569
        %v5571 = vpop.f32.mrf.mxu0
        %v5572 = vadd.f32 0.0, %v5571
        %5573 = vdwg.mxu0
        %v5576 = vunpack.c.l.b16 %v5502
        %v5577 = vunpack.c.l.b16 %v5503
        %v5578 = vpack.c.b16 %v5577, %v5576
        %v5581 = vunpack.c.l.b16 %v5038
        %v5582 = vunpack.c.l.b16 %v5039
        %v5583 = vpack.c.b16 %v5582, %v5581
        %5584 = vrot.lane.b32.xlu0 %v5583, 48
        %v5585 = vpop.permute.xlu0 %5584
        %v5588 = vsel %vm1007, %v5578, 0
        %5590 = vmatpush.bf16.msra.mxu0 0
        %5591 = vmatpush.bf16.msra.mxu0 0
        %5592 = vmatpush.bf16.msra.mxu0 0
        %5593 = vmatpush.bf16.msra.mxu0 0
        %5594 = vmatpush.bf16.msra.mxu0 0
        %5595 = vmatpush.bf16.msra.mxu0 0
        %5596 = vmatpush.bf16.msra.mxu0 0
        %5597 = vmatpush.bf16.msra.mxu0 %v5585
        %5598 = vmatmul.bf16.gmra.mxu0 %v5588
        %v5599 = vpop.f32.mrf.mxu0
        %v5600 = vadd.f32 0.0, %v5599
        %v5601 = vpop.f32.mrf.mxu0
        %v5602 = vadd.f32 0.0, %v5601
        %5603 = vdwg.mxu0
        %v5606 = vunpack.c.l.b16 %v5504
        %v5607 = vunpack.c.l.b16 %v5505
        %v5608 = vpack.c.b16 %v5607, %v5606
        %v5611 = vunpack.c.l.b16 %v5040
        %v5612 = vunpack.c.l.b16 %v5041
        %v5613 = vpack.c.b16 %v5612, %v5611
        %5614 = vrot.lane.b32.xlu0 %v5613, 48
        %v5615 = vpop.permute.xlu0 %5614
        %v5618 = vsel %vm1007, %v5608, 0
        %5620 = vmatpush.bf16.msra.mxu0 0
        %5621 = vmatpush.bf16.msra.mxu0 0
        %5622 = vmatpush.bf16.msra.mxu0 0
        %5623 = vmatpush.bf16.msra.mxu0 0
        %5624 = vmatpush.bf16.msra.mxu0 0
        %5625 = vmatpush.bf16.msra.mxu0 0
        %5626 = vmatpush.bf16.msra.mxu0 0
        %5627 = vmatpush.bf16.msra.mxu0 %v5615
        %5628 = vmatmul.bf16.gmra.mxu0 %v5618
        %v5629 = vpop.f32.mrf.mxu0
        %v5630 = vadd.f32 0.0, %v5629
        %v5631 = vpop.f32.mrf.mxu0
        %v5632 = vadd.f32 0.0, %v5631
        %5633 = vdwg.mxu0
        %v5636 = vunpack.c.l.b16 %v5506
        %v5637 = vunpack.c.l.b16 %v5507
        %v5638 = vpack.c.b16 %v5637, %v5636
        %v5641 = vunpack.c.l.b16 %v5042
        %v5642 = vunpack.c.l.b16 %v5043
        %v5643 = vpack.c.b16 %v5642, %v5641
        %5644 = vrot.lane.b32.xlu0 %v5643, 48
        %v5645 = vpop.permute.xlu0 %5644
        %v5648 = vsel %vm1007, %v5638, 0
        %5650 = vmatpush.bf16.msra.mxu0 0
        %5651 = vmatpush.bf16.msra.mxu0 0
        %5652 = vmatpush.bf16.msra.mxu0 0
        %5653 = vmatpush.bf16.msra.mxu0 0
        %5654 = vmatpush.bf16.msra.mxu0 0
        %5655 = vmatpush.bf16.msra.mxu0 0
        %5656 = vmatpush.bf16.msra.mxu0 0
        %5657 = vmatpush.bf16.msra.mxu0 %v5645
        %5658 = vmatmul.bf16.gmra.mxu0 %v5648
        %v5659 = vpop.f32.mrf.mxu0
        %v5660 = vadd.f32 0.0, %v5659
        %v5661 = vpop.f32.mrf.mxu0
        %v5662 = vadd.f32 0.0, %v5661
        %5663 = vdwg.mxu0
        %v5666 = vunpack.c.l.b16 %v5508
        %v5667 = vunpack.c.l.b16 %v5509
        %v5668 = vpack.c.b16 %v5667, %v5666
        %v5671 = vunpack.c.l.b16 %v5044
        %v5672 = vunpack.c.l.b16 %v5045
        %v5673 = vpack.c.b16 %v5672, %v5671
        %5674 = vrot.lane.b32.xlu0 %v5673, 48
        %v5675 = vpop.permute.xlu0 %5674
        %v5678 = vsel %vm1007, %v5668, 0
        %5680 = vmatpush.bf16.msra.mxu0 0
        %5681 = vmatpush.bf16.msra.mxu0 0
        %5682 = vmatpush.bf16.msra.mxu0 0
        %5683 = vmatpush.bf16.msra.mxu0 0
        %5684 = vmatpush.bf16.msra.mxu0 0
        %5685 = vmatpush.bf16.msra.mxu0 0
        %5686 = vmatpush.bf16.msra.mxu0 0
        %5687 = vmatpush.bf16.msra.mxu0 %v5675
        %5688 = vmatmul.bf16.gmra.mxu0 %v5678
        %v5689 = vpop.f32.mrf.mxu0
        %v5690 = vadd.f32 0.0, %v5689
        %v5691 = vpop.f32.mrf.mxu0
        %v5692 = vadd.f32 0.0, %v5691
        %5693 = vdwg.mxu0
        %v5696 = vunpack.c.l.b16 %v5510
        %v5697 = vunpack.c.l.b16 %v5511
        %v5698 = vpack.c.b16 %v5697, %v5696
        %v5701 = vunpack.c.l.b16 %v5046
        %v5702 = vunpack.c.l.b16 %v5047
        %v5703 = vpack.c.b16 %v5702, %v5701
        %5704 = vrot.lane.b32.xlu0 %v5703, 48
        %v5705 = vpop.permute.xlu0 %5704
        %v5708 = vsel %vm1007, %v5698, 0
        %5710 = vmatpush.bf16.msra.mxu0 0
        %5711 = vmatpush.bf16.msra.mxu0 0
        %5712 = vmatpush.bf16.msra.mxu0 0
        %5713 = vmatpush.bf16.msra.mxu0 0
        %5714 = vmatpush.bf16.msra.mxu0 0
        %5715 = vmatpush.bf16.msra.mxu0 0
        %5716 = vmatpush.bf16.msra.mxu0 0
        %5717 = vmatpush.bf16.msra.mxu0 %v5705
        %5718 = vmatmul.bf16.gmra.mxu0 %v5708
        %v5719 = vpop.f32.mrf.mxu0
        %v5720 = vadd.f32 0.0, %v5719
        %v5721 = vpop.f32.mrf.mxu0
        %v5722 = vadd.f32 0.0, %v5721
        %5723 = vdwg.mxu0
        %v5726 = vunpack.c.l.b16 %v5512
        %v5727 = vunpack.c.l.b16 %v5513
        %v5728 = vpack.c.b16 %v5727, %v5726
        %v5731 = vunpack.c.l.b16 %v5048
        %v5732 = vunpack.c.l.b16 %v5049
        %v5733 = vpack.c.b16 %v5732, %v5731
        %5734 = vrot.lane.b32.xlu0 %v5733, 48
        %v5735 = vpop.permute.xlu0 %5734
        %v5738 = vsel %vm1007, %v5728, 0
        %5740 = vmatpush.bf16.msra.mxu0 0
        %5741 = vmatpush.bf16.msra.mxu0 0
        %5742 = vmatpush.bf16.msra.mxu0 0
        %5743 = vmatpush.bf16.msra.mxu0 0
        %5744 = vmatpush.bf16.msra.mxu0 0
        %5745 = vmatpush.bf16.msra.mxu0 0
        %5746 = vmatpush.bf16.msra.mxu0 0
        %5747 = vmatpush.bf16.msra.mxu0 %v5735
        %5748 = vmatmul.bf16.gmra.mxu0 %v5738
        %v5749 = vpop.f32.mrf.mxu0
        %v5750 = vadd.f32 0.0, %v5749
        %v5751 = vpop.f32.mrf.mxu0
        %v5752 = vadd.f32 0.0, %v5751
        %5753 = vdwg.mxu0
        %5770 = vrot.lane.b32.xlu0 %v5540, 80
        %v5771 = vpop.permute.xlu0 %5770
        %5772 = vrot.lane.b32.xlu0 %v5542, 80
        %v5773 = vpop.permute.xlu0 %5772
        %5774 = vrot.lane.b32.xlu0 %v5570, 80
        %v5775 = vpop.permute.xlu0 %5774
        %5776 = vrot.lane.b32.xlu0 %v5572, 80
        %v5777 = vpop.permute.xlu0 %5776
        %5778 = vrot.lane.b32.xlu0 %v5600, 80
        %v5779 = vpop.permute.xlu0 %5778
        %5780 = vrot.lane.b32.xlu0 %v5602, 80
        %v5781 = vpop.permute.xlu0 %5780
        %5782 = vrot.lane.b32.xlu0 %v5630, 80
        %v5783 = vpop.permute.xlu0 %5782
        %5784 = vrot.lane.b32.xlu0 %v5632, 80
        %v5785 = vpop.permute.xlu0 %5784
        %5786 = vrot.lane.b32.xlu0 %v5660, 80
        %v5787 = vpop.permute.xlu0 %5786
        %5788 = vrot.lane.b32.xlu0 %v5662, 80
        %v5789 = vpop.permute.xlu0 %5788
        %5790 = vrot.lane.b32.xlu0 %v5690, 80
        %v5791 = vpop.permute.xlu0 %5790
        %5792 = vrot.lane.b32.xlu0 %v5692, 80
        %v5793 = vpop.permute.xlu0 %5792
        %5794 = vrot.lane.b32.xlu0 %v5720, 80
        %v5795 = vpop.permute.xlu0 %5794
        %5796 = vrot.lane.b32.xlu0 %v5722, 80
        %v5797 = vpop.permute.xlu0 %5796
        %5798 = vrot.lane.b32.xlu0 %v5750, 80
        %v5799 = vpop.permute.xlu0 %5798
        %5800 = vrot.lane.b32.xlu0 %v5752, 80
        %v5801 = vpop.permute.xlu0 %5800
        %vm5818 = vcmask 786048
        %5819 = vst.msk [vmem:[#allocation3] sm:$0xff] %vm5818, %v5771
        %5820 = vst.msk [vmem:[#allocation3 + $0x8] sm:$0xff] %vm5818, %v5773
        %5821 = vst.msk [vmem:[#allocation3 + $0x10] sm:$0xff] %vm5818, %v5775
        %5822 = vst.msk [vmem:[#allocation3 + $0x18] sm:$0xff] %vm5818, %v5777
        %5823 = vst.msk [vmem:[#allocation3 + $0x20] sm:$0xff] %vm5818, %v5779
        %5824 = vst.msk [vmem:[#allocation3 + $0x28] sm:$0xff] %vm5818, %v5781
        %5825 = vst.msk [vmem:[#allocation3 + $0x30] sm:$0xff] %vm5818, %v5783
        %5826 = vst.msk [vmem:[#allocation3 + $0x38] sm:$0xff] %vm5818, %v5785
        %5827 = vst.msk [vmem:[#allocation3 + $0x40] sm:$0xff] %vm5818, %v5787
        %5828 = vst.msk [vmem:[#allocation3 + $0x48] sm:$0xff] %vm5818, %v5789
        %5829 = vst.msk [vmem:[#allocation3 + $0x50] sm:$0xff] %vm5818, %v5791
        %5830 = vst.msk [vmem:[#allocation3 + $0x58] sm:$0xff] %vm5818, %v5793
        %5831 = vst.msk [vmem:[#allocation3 + $0x60] sm:$0xff] %vm5818, %v5795
        %5832 = vst.msk [vmem:[#allocation3 + $0x68] sm:$0xff] %vm5818, %v5797
        %5833 = vst.msk [vmem:[#allocation3 + $0x70] sm:$0xff] %vm5818, %v5799
        %5834 = vst.msk [vmem:[#allocation3 + $0x78] sm:$0xff] %vm5818, %v5801
        %v5835 = vld [vmem:[#allocation2] sm:$0xf]
        %v5836 = vld [vmem:[#allocation2 + $0xc] sm:$0xf]
        %v5837 = vld [vmem:[#allocation2 + $0x18] sm:$0xf]
        %v5838 = vld [vmem:[#allocation2 + $0x24] sm:$0xf]
        %v5839 = vld [vmem:[#allocation2 + $0x30] sm:$0xf]
        %v5840 = vld [vmem:[#allocation2 + $0x3c] sm:$0xf]
        %v5841 = vld [vmem:[#allocation2 + $0x48] sm:$0xf]
        %v5842 = vld [vmem:[#allocation2 + $0x54] sm:$0xf]
        %v5843 = vld [vmem:[#allocation2 + $0x60] sm:$0xf]
        %v5844 = vld [vmem:[#allocation2 + $0x6c] sm:$0xf]
        %v5845 = vld [vmem:[#allocation2 + $0x78] sm:$0xf]
        %v5846 = vld [vmem:[#allocation2 + $0x84] sm:$0xf]
        %v5847 = vld [vmem:[#allocation2 + $0x90] sm:$0xf]
        %v5848 = vld [vmem:[#allocation2 + $0x9c] sm:$0xf]
        %v5849 = vld [vmem:[#allocation2 + $0xa8] sm:$0xf]
        %v5850 = vld [vmem:[#allocation2 + $0xb4] sm:$0xf]
        %v5851 = vld [vmem:[#allocation2 + $0x4] sm:$0xf]
        %v5852 = vld [vmem:[#allocation2 + $0x10] sm:$0xf]
        %v5853 = vld [vmem:[#allocation2 + $0x1c] sm:$0xf]
        %v5854 = vld [vmem:[#allocation2 + $0x28] sm:$0xf]
        %v5855 = vld [vmem:[#allocation2 + $0x34] sm:$0xf]
        %v5856 = vld [vmem:[#allocation2 + $0x40] sm:$0xf]
        %v5857 = vld [vmem:[#allocation2 + $0x4c] sm:$0xf]
        %v5858 = vld [vmem:[#allocation2 + $0x58] sm:$0xf]
        %v5859 = vld [vmem:[#allocation2 + $0x64] sm:$0xf]
        %v5860 = vld [vmem:[#allocation2 + $0x70] sm:$0xf]
        %v5861 = vld [vmem:[#allocation2 + $0x7c] sm:$0xf]
        %v5862 = vld [vmem:[#allocation2 + $0x88] sm:$0xf]
        %v5863 = vld [vmem:[#allocation2 + $0x94] sm:$0xf]
        %v5864 = vld [vmem:[#allocation2 + $0xa0] sm:$0xf]
        %v5865 = vld [vmem:[#allocation2 + $0xac] sm:$0xf]
        %v5866 = vld [vmem:[#allocation2 + $0xb8] sm:$0xf]
        %v5867 = vld [vmem:[#allocation2 + $0x8] sm:$0xf]
        %v5868 = vld [vmem:[#allocation2 + $0x14] sm:$0xf]
        %v5869 = vld [vmem:[#allocation2 + $0x20] sm:$0xf]
        %v5870 = vld [vmem:[#allocation2 + $0x2c] sm:$0xf]
        %v5871 = vld [vmem:[#allocation2 + $0x38] sm:$0xf]
        %v5872 = vld [vmem:[#allocation2 + $0x44] sm:$0xf]
        %v5873 = vld [vmem:[#allocation2 + $0x50] sm:$0xf]
        %v5874 = vld [vmem:[#allocation2 + $0x5c] sm:$0xf]
        %v5875 = vld [vmem:[#allocation2 + $0x68] sm:$0xf]
        %v5876 = vld [vmem:[#allocation2 + $0x74] sm:$0xf]
        %v5877 = vld [vmem:[#allocation2 + $0x80] sm:$0xf]
        %v5878 = vld [vmem:[#allocation2 + $0x8c] sm:$0xf]
        %v5879 = vld [vmem:[#allocation2 + $0x98] sm:$0xf]
        %v5880 = vld [vmem:[#allocation2 + $0xa4] sm:$0xf]
        %v5881 = vld [vmem:[#allocation2 + $0xb0] sm:$0xf]
        %v5882 = vld [vmem:[#allocation2 + $0xbc] sm:$0xf]
        %v5885 = vunpack.c.l.b16 %v5835
        %v5886 = vunpack.c.l.b16 %v5836
        %v5887 = vpack.c.b16 %v5886, %v5885
        %5888 = vrot.lane.b32.xlu0 %v5887, 32
        %v5889 = vpop.permute.xlu0 %5888
        %v5892 = vunpack.c.l.b16 %v5851
        %v5893 = vunpack.c.l.b16 %v5852
        %v5894 = vpack.c.b16 %v5893, %v5892
        %5895 = vrot.lane.b32.xlu0 %v5894, 32
        %v5896 = vpop.permute.xlu0 %5895
        %v5898 = vsel %vm1007, %v5889, 0
        %v5901 = vsel %vm1007, %v5896, 0
        %5903 = vmatpush.bf16.xpose.msra.mxu0 0
        %5904 = vmatpush.bf16.xpose.msra.mxu0 0
        %5905 = vmatpush.bf16.xpose.msra.mxu0 0
        %5906 = vmatpush.bf16.xpose.msra.mxu0 0
        %5907 = vmatpush.bf16.xpose.msra.mxu0 0
        %5908 = vmatpush.bf16.xpose.msra.mxu0 0
        %5909 = vmatpush.bf16.xpose.msra.mxu0 0
        %5910 = vmatpush.bf16.xpose.msra.mxu0 %v5901
        %5911 = vmatmul.bf16.gmra.mxu0 %v5898
        %v5912 = vpop.f32.mrf.mxu0
        %v5913 = vadd.f32 0.0, %v5912
        %v5914 = vpop.f32.mrf.mxu0
        %v5915 = vadd.f32 0.0, %v5914
        %5916 = vdwg.mxu0
        %v5919 = vunpack.c.l.b16 %v5837
        %v5920 = vunpack.c.l.b16 %v5838
        %v5921 = vpack.c.b16 %v5920, %v5919
        %5922 = vrot.lane.b32.xlu0 %v5921, 32
        %v5923 = vpop.permute.xlu0 %5922
        %v5926 = vunpack.c.l.b16 %v5853
        %v5927 = vunpack.c.l.b16 %v5854
        %v5928 = vpack.c.b16 %v5927, %v5926
        %5929 = vrot.lane.b32.xlu0 %v5928, 32
        %v5930 = vpop.permute.xlu0 %5929
        %v5932 = vsel %vm1007, %v5923, 0
        %v5935 = vsel %vm1007, %v5930, 0
        %5937 = vmatpush.bf16.xpose.msra.mxu0 0
        %5938 = vmatpush.bf16.xpose.msra.mxu0 0
        %5939 = vmatpush.bf16.xpose.msra.mxu0 0
        %5940 = vmatpush.bf16.xpose.msra.mxu0 0
        %5941 = vmatpush.bf16.xpose.msra.mxu0 0
        %5942 = vmatpush.bf16.xpose.msra.mxu0 0
        %5943 = vmatpush.bf16.xpose.msra.mxu0 0
        %5944 = vmatpush.bf16.xpose.msra.mxu0 %v5935
        %5945 = vmatmul.bf16.gmra.mxu0 %v5932
        %v5946 = vpop.f32.mrf.mxu0
        %v5947 = vadd.f32 0.0, %v5946
        %v5948 = vpop.f32.mrf.mxu0
        %v5949 = vadd.f32 0.0, %v5948
        %5950 = vdwg.mxu0
        %v5953 = vunpack.c.l.b16 %v5839
        %v5954 = vunpack.c.l.b16 %v5840
        %v5955 = vpack.c.b16 %v5954, %v5953
        %5956 = vrot.lane.b32.xlu0 %v5955, 32
        %v5957 = vpop.permute.xlu0 %5956
        %v5960 = vunpack.c.l.b16 %v5855
        %v5961 = vunpack.c.l.b16 %v5856
        %v5962 = vpack.c.b16 %v5961, %v5960
        %5963 = vrot.lane.b32.xlu0 %v5962, 32
        %v5964 = vpop.permute.xlu0 %5963
        %v5966 = vsel %vm1007, %v5957, 0
        %v5969 = vsel %vm1007, %v5964, 0
        %5971 = vmatpush.bf16.xpose.msra.mxu0 0
        %5972 = vmatpush.bf16.xpose.msra.mxu0 0
        %5973 = vmatpush.bf16.xpose.msra.mxu0 0
        %5974 = vmatpush.bf16.xpose.msra.mxu0 0
        %5975 = vmatpush.bf16.xpose.msra.mxu0 0
        %5976 = vmatpush.bf16.xpose.msra.mxu0 0
        %5977 = vmatpush.bf16.xpose.msra.mxu0 0
        %5978 = vmatpush.bf16.xpose.msra.mxu0 %v5969
        %5979 = vmatmul.bf16.gmra.mxu0 %v5966
        %v5980 = vpop.f32.mrf.mxu0
        %v5981 = vadd.f32 0.0, %v5980
        %v5982 = vpop.f32.mrf.mxu0
        %v5983 = vadd.f32 0.0, %v5982
        %5984 = vdwg.mxu0
        %v5987 = vunpack.c.l.b16 %v5841
        %v5988 = vunpack.c.l.b16 %v5842
        %v5989 = vpack.c.b16 %v5988, %v5987
        %5990 = vrot.lane.b32.xlu0 %v5989, 32
        %v5991 = vpop.permute.xlu0 %5990
        %v5994 = vunpack.c.l.b16 %v5857
        %v5995 = vunpack.c.l.b16 %v5858
        %v5996 = vpack.c.b16 %v5995, %v5994
        %5997 = vrot.lane.b32.xlu0 %v5996, 32
        %v5998 = vpop.permute.xlu0 %5997
        %v6000 = vsel %vm1007, %v5991, 0
        %v6003 = vsel %vm1007, %v5998, 0
        %6005 = vmatpush.bf16.xpose.msra.mxu0 0
        %6006 = vmatpush.bf16.xpose.msra.mxu0 0
        %6007 = vmatpush.bf16.xpose.msra.mxu0 0
        %6008 = vmatpush.bf16.xpose.msra.mxu0 0
        %6009 = vmatpush.bf16.xpose.msra.mxu0 0
        %6010 = vmatpush.bf16.xpose.msra.mxu0 0
        %6011 = vmatpush.bf16.xpose.msra.mxu0 0
        %6012 = vmatpush.bf16.xpose.msra.mxu0 %v6003
        %6013 = vmatmul.bf16.gmra.mxu0 %v6000
        %v6014 = vpop.f32.mrf.mxu0
        %v6015 = vadd.f32 0.0, %v6014
        %v6016 = vpop.f32.mrf.mxu0
        %v6017 = vadd.f32 0.0, %v6016
        %6018 = vdwg.mxu0
        %v6021 = vunpack.c.l.b16 %v5843
        %v6022 = vunpack.c.l.b16 %v5844
        %v6023 = vpack.c.b16 %v6022, %v6021
        %6024 = vrot.lane.b32.xlu0 %v6023, 32
        %v6025 = vpop.permute.xlu0 %6024
        %v6028 = vunpack.c.l.b16 %v5859
        %v6029 = vunpack.c.l.b16 %v5860
        %v6030 = vpack.c.b16 %v6029, %v6028
        %6031 = vrot.lane.b32.xlu0 %v6030, 32
        %v6032 = vpop.permute.xlu0 %6031
        %v6034 = vsel %vm1007, %v6025, 0
        %v6037 = vsel %vm1007, %v6032, 0
        %6039 = vmatpush.bf16.xpose.msra.mxu0 0
        %6040 = vmatpush.bf16.xpose.msra.mxu0 0
        %6041 = vmatpush.bf16.xpose.msra.mxu0 0
        %6042 = vmatpush.bf16.xpose.msra.mxu0 0
        %6043 = vmatpush.bf16.xpose.msra.mxu0 0
        %6044 = vmatpush.bf16.xpose.msra.mxu0 0
        %6045 = vmatpush.bf16.xpose.msra.mxu0 0
        %6046 = vmatpush.bf16.xpose.msra.mxu0 %v6037
        %6047 = vmatmul.bf16.gmra.mxu0 %v6034
        %v6048 = vpop.f32.mrf.mxu0
        %v6049 = vadd.f32 0.0, %v6048
        %v6050 = vpop.f32.mrf.mxu0
        %v6051 = vadd.f32 0.0, %v6050
        %6052 = vdwg.mxu0
        %v6055 = vunpack.c.l.b16 %v5845
        %v6056 = vunpack.c.l.b16 %v5846
        %v6057 = vpack.c.b16 %v6056, %v6055
        %6058 = vrot.lane.b32.xlu0 %v6057, 32
        %v6059 = vpop.permute.xlu0 %6058
        %v6062 = vunpack.c.l.b16 %v5861
        %v6063 = vunpack.c.l.b16 %v5862
        %v6064 = vpack.c.b16 %v6063, %v6062
        %6065 = vrot.lane.b32.xlu0 %v6064, 32
        %v6066 = vpop.permute.xlu0 %6065
        %v6068 = vsel %vm1007, %v6059, 0
        %v6071 = vsel %vm1007, %v6066, 0
        %6073 = vmatpush.bf16.xpose.msra.mxu0 0
        %6074 = vmatpush.bf16.xpose.msra.mxu0 0
        %6075 = vmatpush.bf16.xpose.msra.mxu0 0
        %6076 = vmatpush.bf16.xpose.msra.mxu0 0
        %6077 = vmatpush.bf16.xpose.msra.mxu0 0
        %6078 = vmatpush.bf16.xpose.msra.mxu0 0
        %6079 = vmatpush.bf16.xpose.msra.mxu0 0
        %6080 = vmatpush.bf16.xpose.msra.mxu0 %v6071
        %6081 = vmatmul.bf16.gmra.mxu0 %v6068
        %v6082 = vpop.f32.mrf.mxu0
        %v6083 = vadd.f32 0.0, %v6082
        %v6084 = vpop.f32.mrf.mxu0
        %v6085 = vadd.f32 0.0, %v6084
        %6086 = vdwg.mxu0
        %v6089 = vunpack.c.l.b16 %v5847
        %v6090 = vunpack.c.l.b16 %v5848
        %v6091 = vpack.c.b16 %v6090, %v6089
        %6092 = vrot.lane.b32.xlu0 %v6091, 32
        %v6093 = vpop.permute.xlu0 %6092
        %v6096 = vunpack.c.l.b16 %v5863
        %v6097 = vunpack.c.l.b16 %v5864
        %v6098 = vpack.c.b16 %v6097, %v6096
        %6099 = vrot.lane.b32.xlu0 %v6098, 32
        %v6100 = vpop.permute.xlu0 %6099
        %v6102 = vsel %vm1007, %v6093, 0
        %v6105 = vsel %vm1007, %v6100, 0
        %6107 = vmatpush.bf16.xpose.msra.mxu0 0
        %6108 = vmatpush.bf16.xpose.msra.mxu0 0
        %6109 = vmatpush.bf16.xpose.msra.mxu0 0
        %6110 = vmatpush.bf16.xpose.msra.mxu0 0
        %6111 = vmatpush.bf16.xpose.msra.mxu0 0
        %6112 = vmatpush.bf16.xpose.msra.mxu0 0
        %6113 = vmatpush.bf16.xpose.msra.mxu0 0
        %6114 = vmatpush.bf16.xpose.msra.mxu0 %v6105
        %6115 = vmatmul.bf16.gmra.mxu0 %v6102
        %v6116 = vpop.f32.mrf.mxu0
        %v6117 = vadd.f32 0.0, %v6116
        %v6118 = vpop.f32.mrf.mxu0
        %v6119 = vadd.f32 0.0, %v6118
        %6120 = vdwg.mxu0
        %v6123 = vunpack.c.l.b16 %v5849
        %v6124 = vunpack.c.l.b16 %v5850
        %v6125 = vpack.c.b16 %v6124, %v6123
        %6126 = vrot.lane.b32.xlu0 %v6125, 32
        %v6127 = vpop.permute.xlu0 %6126
        %v6130 = vunpack.c.l.b16 %v5865
        %v6131 = vunpack.c.l.b16 %v5866
        %v6132 = vpack.c.b16 %v6131, %v6130
        %6133 = vrot.lane.b32.xlu0 %v6132, 32
        %v6134 = vpop.permute.xlu0 %6133
        %v6136 = vsel %vm1007, %v6127, 0
        %v6139 = vsel %vm1007, %v6134, 0
        %6141 = vmatpush.bf16.xpose.msra.mxu0 0
        %6142 = vmatpush.bf16.xpose.msra.mxu0 0
        %6143 = vmatpush.bf16.xpose.msra.mxu0 0
        %6144 = vmatpush.bf16.xpose.msra.mxu0 0
        %6145 = vmatpush.bf16.xpose.msra.mxu0 0
        %6146 = vmatpush.bf16.xpose.msra.mxu0 0
        %6147 = vmatpush.bf16.xpose.msra.mxu0 0
        %6148 = vmatpush.bf16.xpose.msra.mxu0 %v6139
        %6149 = vmatmul.bf16.gmra.mxu0 %v6136
        %v6150 = vpop.f32.mrf.mxu0
        %v6151 = vadd.f32 0.0, %v6150
        %v6152 = vpop.f32.mrf.mxu0
        %v6153 = vadd.f32 0.0, %v6152
        %6154 = vdwg.mxu0
        %v6155 = vsel %vm1007, %v5913, -inf
        %6156 = vmax.xlane.f32.xlu0 %v6155
        %v6157 = vpop.xlane.xlu0 %6156
        %v6158 = vsel %vm1007, %v5915, -inf
        %6159 = vmax.xlane.f32.xlu0 %v6158
        %v6160 = vpop.xlane.xlu0 %6159
        %v6161 = vsel %vm1007, %v5947, -inf
        %6162 = vmax.xlane.f32.xlu0 %v6161
        %v6163 = vpop.xlane.xlu0 %6162
        %v6164 = vsel %vm1007, %v5949, -inf
        %6165 = vmax.xlane.f32.xlu0 %v6164
        %v6166 = vpop.xlane.xlu0 %6165
        %v6167 = vsel %vm1007, %v5981, -inf
        %6168 = vmax.xlane.f32.xlu0 %v6167
        %v6169 = vpop.xlane.xlu0 %6168
        %v6170 = vsel %vm1007, %v5983, -inf
        %6171 = vmax.xlane.f32.xlu0 %v6170
        %v6172 = vpop.xlane.xlu0 %6171
        %v6173 = vsel %vm1007, %v6015, -inf
        %6174 = vmax.xlane.f32.xlu0 %v6173
        %v6175 = vpop.xlane.xlu0 %6174
        %v6176 = vsel %vm1007, %v6017, -inf
        %6177 = vmax.xlane.f32.xlu0 %v6176
        %v6178 = vpop.xlane.xlu0 %6177
        %v6179 = vsel %vm1007, %v6049, -inf
        %6180 = vmax.xlane.f32.xlu0 %v6179
        %v6181 = vpop.xlane.xlu0 %6180
        %v6182 = vsel %vm1007, %v6051, -inf
        %6183 = vmax.xlane.f32.xlu0 %v6182
        %v6184 = vpop.xlane.xlu0 %6183
        %v6185 = vsel %vm1007, %v6083, -inf
        %6186 = vmax.xlane.f32.xlu0 %v6185
        %v6187 = vpop.xlane.xlu0 %6186
        %v6188 = vsel %vm1007, %v6085, -inf
        %6189 = vmax.xlane.f32.xlu0 %v6188
        %v6190 = vpop.xlane.xlu0 %6189
        %v6191 = vsel %vm1007, %v6117, -inf
        %6192 = vmax.xlane.f32.xlu0 %v6191
        %v6193 = vpop.xlane.xlu0 %6192
        %v6194 = vsel %vm1007, %v6119, -inf
        %6195 = vmax.xlane.f32.xlu0 %v6194
        %v6196 = vpop.xlane.xlu0 %6195
        %v6197 = vsel %vm1007, %v6151, -inf
        %6198 = vmax.xlane.f32.xlu0 %v6197
        %v6199 = vpop.xlane.xlu0 %6198
        %v6200 = vsel %vm1007, %v6153, -inf
        %6201 = vmax.xlane.f32.xlu0 %v6200
        %v6202 = vpop.xlane.xlu0 %6201
        %v6203 = vsub.f32 %v5913, %v6157
        %v6204 = vsub.f32 %v5915, %v6160
        %v6205 = vsub.f32 %v5947, %v6163
        %v6206 = vsub.f32 %v5949, %v6166
        %v6207 = vsub.f32 %v5981, %v6169
        %v6208 = vsub.f32 %v5983, %v6172
        %v6209 = vsub.f32 %v6015, %v6175
        %v6210 = vsub.f32 %v6017, %v6178
        %v6211 = vsub.f32 %v6049, %v6181
        %v6212 = vsub.f32 %v6051, %v6184
        %v6213 = vsub.f32 %v6083, %v6187
        %v6214 = vsub.f32 %v6085, %v6190
        %v6215 = vsub.f32 %v6117, %v6193
        %v6216 = vsub.f32 %v6119, %v6196
        %v6217 = vsub.f32 %v6151, %v6199
        %v6218 = vsub.f32 %v6153, %v6202
        %v6219 = vmul.f32 %v6203, 1.442695
        %v6220 = vpow.pop %v6219
        %v6221 = vmul.f32 %v6204, 1.442695
        %v6222 = vpow.pop %v6221
        %v6223 = vmul.f32 %v6205, 1.442695
        %v6224 = vpow.pop %v6223
        %v6225 = vmul.f32 %v6206, 1.442695
        %v6226 = vpow.pop %v6225
        %v6227 = vmul.f32 %v6207, 1.442695
        %v6228 = vpow.pop %v6227
        %v6229 = vmul.f32 %v6208, 1.442695
        %v6230 = vpow.pop %v6229
        %v6231 = vmul.f32 %v6209, 1.442695
        %v6232 = vpow.pop %v6231
        %v6233 = vmul.f32 %v6210, 1.442695
        %v6234 = vpow.pop %v6233
        %v6235 = vmul.f32 %v6211, 1.442695
        %v6236 = vpow.pop %v6235
        %v6237 = vmul.f32 %v6212, 1.442695
        %v6238 = vpow.pop %v6237
        %v6239 = vmul.f32 %v6213, 1.442695
        %v6240 = vpow.pop %v6239
        %v6241 = vmul.f32 %v6214, 1.442695
        %v6242 = vpow.pop %v6241
        %v6243 = vmul.f32 %v6215, 1.442695
        %v6244 = vpow.pop %v6243
        %v6245 = vmul.f32 %v6216, 1.442695
        %v6246 = vpow.pop %v6245
        %v6247 = vmul.f32 %v6217, 1.442695
        %v6248 = vpow.pop %v6247
        %v6249 = vmul.f32 %v6218, 1.442695
        %v6250 = vpow.pop %v6249
        %v6251 = vsel %vm1007, %v6220, 0.0
        %6252 = vadd.xlane.f32.xlu0 %v6251
        %v6253 = vpop.xlane.xlu0 %6252
        %v6254 = vsel %vm1007, %v6222, 0.0
        %6255 = vadd.xlane.f32.xlu0 %v6254
        %v6256 = vpop.xlane.xlu0 %6255
        %v6257 = vsel %vm1007, %v6224, 0.0
        %6258 = vadd.xlane.f32.xlu0 %v6257
        %v6259 = vpop.xlane.xlu0 %6258
        %v6260 = vsel %vm1007, %v6226, 0.0
        %6261 = vadd.xlane.f32.xlu0 %v6260
        %v6262 = vpop.xlane.xlu0 %6261
        %v6263 = vsel %vm1007, %v6228, 0.0
        %6264 = vadd.xlane.f32.xlu0 %v6263
        %v6265 = vpop.xlane.xlu0 %6264
        %v6266 = vsel %vm1007, %v6230, 0.0
        %6267 = vadd.xlane.f32.xlu0 %v6266
        %v6268 = vpop.xlane.xlu0 %6267
        %v6269 = vsel %vm1007, %v6232, 0.0
        %6270 = vadd.xlane.f32.xlu0 %v6269
        %v6271 = vpop.xlane.xlu0 %6270
        %v6272 = vsel %vm1007, %v6234, 0.0
        %6273 = vadd.xlane.f32.xlu0 %v6272
        %v6274 = vpop.xlane.xlu0 %6273
        %v6275 = vsel %vm1007, %v6236, 0.0
        %6276 = vadd.xlane.f32.xlu0 %v6275
        %v6277 = vpop.xlane.xlu0 %6276
        %v6278 = vsel %vm1007, %v6238, 0.0
        %6279 = vadd.xlane.f32.xlu0 %v6278
        %v6280 = vpop.xlane.xlu0 %6279
        %v6281 = vsel %vm1007, %v6240, 0.0
        %6282 = vadd.xlane.f32.xlu0 %v6281
        %v6283 = vpop.xlane.xlu0 %6282
        %v6284 = vsel %vm1007, %v6242, 0.0
        %6285 = vadd.xlane.f32.xlu0 %v6284
        %v6286 = vpop.xlane.xlu0 %6285
        %v6287 = vsel %vm1007, %v6244, 0.0
        %6288 = vadd.xlane.f32.xlu0 %v6287
        %v6289 = vpop.xlane.xlu0 %6288
        %v6290 = vsel %vm1007, %v6246, 0.0
        %6291 = vadd.xlane.f32.xlu0 %v6290
        %v6292 = vpop.xlane.xlu0 %6291
        %v6293 = vsel %vm1007, %v6248, 0.0
        %6294 = vadd.xlane.f32.xlu0 %v6293
        %v6295 = vpop.xlane.xlu0 %6294
        %v6296 = vsel %vm1007, %v6250, 0.0
        %6297 = vadd.xlane.f32.xlu0 %v6296
        %v6298 = vpop.xlane.xlu0 %6297
        %v6299 = vrcp.pop %v6253
        %v6300 = vrcp.pop %v6256
        %v6301 = vrcp.pop %v6259
        %v6302 = vrcp.pop %v6262
        %v6303 = vrcp.pop %v6265
        %v6304 = vrcp.pop %v6268
        %v6305 = vrcp.pop %v6271
        %v6306 = vrcp.pop %v6274
        %v6307 = vrcp.pop %v6277
        %v6308 = vrcp.pop %v6280
        %v6309 = vrcp.pop %v6283
        %v6310 = vrcp.pop %v6286
        %v6311 = vrcp.pop %v6289
        %v6312 = vrcp.pop %v6292
        %v6313 = vrcp.pop %v6295
        %v6314 = vrcp.pop %v6298
        %v6315 = vmul.f32 %v6220, %v6299
        %v6316 = vmul.f32 %v6222, %v6300
        %v6317 = vmul.f32 %v6224, %v6301
        %v6318 = vmul.f32 %v6226, %v6302
        %v6319 = vmul.f32 %v6228, %v6303
        %v6320 = vmul.f32 %v6230, %v6304
        %v6321 = vmul.f32 %v6232, %v6305
        %v6322 = vmul.f32 %v6234, %v6306
        %v6323 = vmul.f32 %v6236, %v6307
        %v6324 = vmul.f32 %v6238, %v6308
        %v6325 = vmul.f32 %v6240, %v6309
        %v6326 = vmul.f32 %v6242, %v6310
        %v6327 = vmul.f32 %v6244, %v6311
        %v6328 = vmul.f32 %v6246, %v6312
        %v6329 = vmul.f32 %v6248, %v6313
        %v6330 = vmul.f32 %v6250, %v6314
        %v6331 = vpack.c.bf16 %v6315, %v6315
        %v6332 = vpack.c.bf16 %v6316, %v6316
        %v6333 = vpack.c.bf16 %v6317, %v6317
        %v6334 = vpack.c.bf16 %v6318, %v6318
        %v6335 = vpack.c.bf16 %v6319, %v6319
        %v6336 = vpack.c.bf16 %v6320, %v6320
        %v6337 = vpack.c.bf16 %v6321, %v6321
        %v6338 = vpack.c.bf16 %v6322, %v6322
        %v6339 = vpack.c.bf16 %v6323, %v6323
        %v6340 = vpack.c.bf16 %v6324, %v6324
        %v6341 = vpack.c.bf16 %v6325, %v6325
        %v6342 = vpack.c.bf16 %v6326, %v6326
        %v6343 = vpack.c.bf16 %v6327, %v6327
        %v6344 = vpack.c.bf16 %v6328, %v6328
        %v6345 = vpack.c.bf16 %v6329, %v6329
        %v6346 = vpack.c.bf16 %v6330, %v6330
        %v6349 = vunpack.c.l.b16 %v6331
        %v6350 = vunpack.c.l.b16 %v6332
        %v6351 = vpack.c.b16 %v6350, %v6349
        %v6354 = vunpack.c.l.b16 %v5867
        %v6355 = vunpack.c.l.b16 %v5868
        %v6356 = vpack.c.b16 %v6355, %v6354
        %6357 = vrot.lane.b32.xlu0 %v6356, 32
        %v6358 = vpop.permute.xlu0 %6357
        %v6361 = vsel %vm1007, %v6351, 0
        %6363 = vmatpush.bf16.msra.mxu0 0
        %6364 = vmatpush.bf16.msra.mxu0 0
        %6365 = vmatpush.bf16.msra.mxu0 0
        %6366 = vmatpush.bf16.msra.mxu0 0
        %6367 = vmatpush.bf16.msra.mxu0 0
        %6368 = vmatpush.bf16.msra.mxu0 0
        %6369 = vmatpush.bf16.msra.mxu0 0
        %6370 = vmatpush.bf16.msra.mxu0 %v6358
        %6371 = vmatmul.bf16.gmra.mxu0 %v6361
        %v6372 = vpop.f32.mrf.mxu0
        %v6373 = vadd.f32 0.0, %v6372
        %v6374 = vpop.f32.mrf.mxu0
        %v6375 = vadd.f32 0.0, %v6374
        %6376 = vdwg.mxu0
        %v6379 = vunpack.c.l.b16 %v6333
        %v6380 = vunpack.c.l.b16 %v6334
        %v6381 = vpack.c.b16 %v6380, %v6379
        %v6384 = vunpack.c.l.b16 %v5869
        %v6385 = vunpack.c.l.b16 %v5870
        %v6386 = vpack.c.b16 %v6385, %v6384
        %6387 = vrot.lane.b32.xlu0 %v6386, 32
        %v6388 = vpop.permute.xlu0 %6387
        %v6391 = vsel %vm1007, %v6381, 0
        %6393 = vmatpush.bf16.msra.mxu0 0
        %6394 = vmatpush.bf16.msra.mxu0 0
        %6395 = vmatpush.bf16.msra.mxu0 0
        %6396 = vmatpush.bf16.msra.mxu0 0
        %6397 = vmatpush.bf16.msra.mxu0 0
        %6398 = vmatpush.bf16.msra.mxu0 0
        %6399 = vmatpush.bf16.msra.mxu0 0
        %6400 = vmatpush.bf16.msra.mxu0 %v6388
        %6401 = vmatmul.bf16.gmra.mxu0 %v6391
        %v6402 = vpop.f32.mrf.mxu0
        %v6403 = vadd.f32 0.0, %v6402
        %v6404 = vpop.f32.mrf.mxu0
        %v6405 = vadd.f32 0.0, %v6404
        %6406 = vdwg.mxu0
        %v6409 = vunpack.c.l.b16 %v6335
        %v6410 = vunpack.c.l.b16 %v6336
        %v6411 = vpack.c.b16 %v6410, %v6409
        %v6414 = vunpack.c.l.b16 %v5871
        %v6415 = vunpack.c.l.b16 %v5872
        %v6416 = vpack.c.b16 %v6415, %v6414
        %6417 = vrot.lane.b32.xlu0 %v6416, 32
        %v6418 = vpop.permute.xlu0 %6417
        %v6421 = vsel %vm1007, %v6411, 0
        %6423 = vmatpush.bf16.msra.mxu0 0
        %6424 = vmatpush.bf16.msra.mxu0 0
        %6425 = vmatpush.bf16.msra.mxu0 0
        %6426 = vmatpush.bf16.msra.mxu0 0
        %6427 = vmatpush.bf16.msra.mxu0 0
        %6428 = vmatpush.bf16.msra.mxu0 0
        %6429 = vmatpush.bf16.msra.mxu0 0
        %6430 = vmatpush.bf16.msra.mxu0 %v6418
        %6431 = vmatmul.bf16.gmra.mxu0 %v6421
        %v6432 = vpop.f32.mrf.mxu0
        %v6433 = vadd.f32 0.0, %v6432
        %v6434 = vpop.f32.mrf.mxu0
        %v6435 = vadd.f32 0.0, %v6434
        %6436 = vdwg.mxu0
        %v6439 = vunpack.c.l.b16 %v6337
        %v6440 = vunpack.c.l.b16 %v6338
        %v6441 = vpack.c.b16 %v6440, %v6439
        %v6444 = vunpack.c.l.b16 %v5873
        %v6445 = vunpack.c.l.b16 %v5874
        %v6446 = vpack.c.b16 %v6445, %v6444
        %6447 = vrot.lane.b32.xlu0 %v6446, 32
        %v6448 = vpop.permute.xlu0 %6447
        %v6451 = vsel %vm1007, %v6441, 0
        %6453 = vmatpush.bf16.msra.mxu0 0
        %6454 = vmatpush.bf16.msra.mxu0 0
        %6455 = vmatpush.bf16.msra.mxu0 0
        %6456 = vmatpush.bf16.msra.mxu0 0
        %6457 = vmatpush.bf16.msra.mxu0 0
        %6458 = vmatpush.bf16.msra.mxu0 0
        %6459 = vmatpush.bf16.msra.mxu0 0
        %6460 = vmatpush.bf16.msra.mxu0 %v6448
        %6461 = vmatmul.bf16.gmra.mxu0 %v6451
        %v6462 = vpop.f32.mrf.mxu0
        %v6463 = vadd.f32 0.0, %v6462
        %v6464 = vpop.f32.mrf.mxu0
        %v6465 = vadd.f32 0.0, %v6464
        %6466 = vdwg.mxu0
        %v6469 = vunpack.c.l.b16 %v6339
        %v6470 = vunpack.c.l.b16 %v6340
        %v6471 = vpack.c.b16 %v6470, %v6469
        %v6474 = vunpack.c.l.b16 %v5875
        %v6475 = vunpack.c.l.b16 %v5876
        %v6476 = vpack.c.b16 %v6475, %v6474
        %6477 = vrot.lane.b32.xlu0 %v6476, 32
        %v6478 = vpop.permute.xlu0 %6477
        %v6481 = vsel %vm1007, %v6471, 0
        %6483 = vmatpush.bf16.msra.mxu0 0
        %6484 = vmatpush.bf16.msra.mxu0 0
        %6485 = vmatpush.bf16.msra.mxu0 0
        %6486 = vmatpush.bf16.msra.mxu0 0
        %6487 = vmatpush.bf16.msra.mxu0 0
        %6488 = vmatpush.bf16.msra.mxu0 0
        %6489 = vmatpush.bf16.msra.mxu0 0
        %6490 = vmatpush.bf16.msra.mxu0 %v6478
        %6491 = vmatmul.bf16.gmra.mxu0 %v6481
        %v6492 = vpop.f32.mrf.mxu0
        %v6493 = vadd.f32 0.0, %v6492
        %v6494 = vpop.f32.mrf.mxu0
        %v6495 = vadd.f32 0.0, %v6494
        %6496 = vdwg.mxu0
        %v6499 = vunpack.c.l.b16 %v6341
        %v6500 = vunpack.c.l.b16 %v6342
        %v6501 = vpack.c.b16 %v6500, %v6499
        %v6504 = vunpack.c.l.b16 %v5877
        %v6505 = vunpack.c.l.b16 %v5878
        %v6506 = vpack.c.b16 %v6505, %v6504
        %6507 = vrot.lane.b32.xlu0 %v6506, 32
        %v6508 = vpop.permute.xlu0 %6507
        %v6511 = vsel %vm1007, %v6501, 0
        %6513 = vmatpush.bf16.msra.mxu0 0
        %6514 = vmatpush.bf16.msra.mxu0 0
        %6515 = vmatpush.bf16.msra.mxu0 0
        %6516 = vmatpush.bf16.msra.mxu0 0
        %6517 = vmatpush.bf16.msra.mxu0 0
        %6518 = vmatpush.bf16.msra.mxu0 0
        %6519 = vmatpush.bf16.msra.mxu0 0
        %6520 = vmatpush.bf16.msra.mxu0 %v6508
        %6521 = vmatmul.bf16.gmra.mxu0 %v6511
        %v6522 = vpop.f32.mrf.mxu0
        %v6523 = vadd.f32 0.0, %v6522
        %v6524 = vpop.f32.mrf.mxu0
        %v6525 = vadd.f32 0.0, %v6524
        %6526 = vdwg.mxu0
        %v6529 = vunpack.c.l.b16 %v6343
        %v6530 = vunpack.c.l.b16 %v6344
        %v6531 = vpack.c.b16 %v6530, %v6529
        %v6534 = vunpack.c.l.b16 %v5879
        %v6535 = vunpack.c.l.b16 %v5880
        %v6536 = vpack.c.b16 %v6535, %v6534
        %6537 = vrot.lane.b32.xlu0 %v6536, 32
        %v6538 = vpop.permute.xlu0 %6537
        %v6541 = vsel %vm1007, %v6531, 0
        %6543 = vmatpush.bf16.msra.mxu0 0
        %6544 = vmatpush.bf16.msra.mxu0 0
        %6545 = vmatpush.bf16.msra.mxu0 0
        %6546 = vmatpush.bf16.msra.mxu0 0
        %6547 = vmatpush.bf16.msra.mxu0 0
        %6548 = vmatpush.bf16.msra.mxu0 0
        %6549 = vmatpush.bf16.msra.mxu0 0
        %6550 = vmatpush.bf16.msra.mxu0 %v6538
        %6551 = vmatmul.bf16.gmra.mxu0 %v6541
        %v6552 = vpop.f32.mrf.mxu0
        %v6553 = vadd.f32 0.0, %v6552
        %v6554 = vpop.f32.mrf.mxu0
        %v6555 = vadd.f32 0.0, %v6554
        %6556 = vdwg.mxu0
        %v6559 = vunpack.c.l.b16 %v6345
        %v6560 = vunpack.c.l.b16 %v6346
        %v6561 = vpack.c.b16 %v6560, %v6559
        %v6564 = vunpack.c.l.b16 %v5881
        %v6565 = vunpack.c.l.b16 %v5882
        %v6566 = vpack.c.b16 %v6565, %v6564
        %6567 = vrot.lane.b32.xlu0 %v6566, 32
        %v6568 = vpop.permute.xlu0 %6567
        %v6571 = vsel %vm1007, %v6561, 0
        %6573 = vmatpush.bf16.msra.mxu0 0
        %6574 = vmatpush.bf16.msra.mxu0 0
        %6575 = vmatpush.bf16.msra.mxu0 0
        %6576 = vmatpush.bf16.msra.mxu0 0
        %6577 = vmatpush.bf16.msra.mxu0 0
        %6578 = vmatpush.bf16.msra.mxu0 0
        %6579 = vmatpush.bf16.msra.mxu0 0
        %6580 = vmatpush.bf16.msra.mxu0 %v6568
        %6581 = vmatmul.bf16.gmra.mxu0 %v6571
        %v6582 = vpop.f32.mrf.mxu0
        %v6583 = vadd.f32 0.0, %v6582
        %v6584 = vpop.f32.mrf.mxu0
        %v6585 = vadd.f32 0.0, %v6584
        %6586 = vdwg.mxu0
        %6603 = vrot.lane.b32.xlu0 %v6373, 96
        %v6604 = vpop.permute.xlu0 %6603
        %6605 = vrot.lane.b32.xlu0 %v6375, 96
        %v6606 = vpop.permute.xlu0 %6605
        %6607 = vrot.lane.b32.xlu0 %v6403, 96
        %v6608 = vpop.permute.xlu0 %6607
        %6609 = vrot.lane.b32.xlu0 %v6405, 96
        %v6610 = vpop.permute.xlu0 %6609
        %6611 = vrot.lane.b32.xlu0 %v6433, 96
        %v6612 = vpop.permute.xlu0 %6611
        %6613 = vrot.lane.b32.xlu0 %v6435, 96
        %v6614 = vpop.permute.xlu0 %6613
        %6615 = vrot.lane.b32.xlu0 %v6463, 96
        %v6616 = vpop.permute.xlu0 %6615
        %6617 = vrot.lane.b32.xlu0 %v6465, 96
        %v6618 = vpop.permute.xlu0 %6617
        %6619 = vrot.lane.b32.xlu0 %v6493, 96
        %v6620 = vpop.permute.xlu0 %6619
        %6621 = vrot.lane.b32.xlu0 %v6495, 96
        %v6622 = vpop.permute.xlu0 %6621
        %6623 = vrot.lane.b32.xlu0 %v6523, 96
        %v6624 = vpop.permute.xlu0 %6623
        %6625 = vrot.lane.b32.xlu0 %v6525, 96
        %v6626 = vpop.permute.xlu0 %6625
        %6627 = vrot.lane.b32.xlu0 %v6553, 96
        %v6628 = vpop.permute.xlu0 %6627
        %6629 = vrot.lane.b32.xlu0 %v6555, 96
        %v6630 = vpop.permute.xlu0 %6629
        %6631 = vrot.lane.b32.xlu0 %v6583, 96
        %v6632 = vpop.permute.xlu0 %6631
        %6633 = vrot.lane.b32.xlu0 %v6585, 96
        %v6634 = vpop.permute.xlu0 %6633
        %vm6651 = vcmask 917248
        %6652 = vst.msk [vmem:[#allocation3] sm:$0xff] %vm6651, %v6604
        %6653 = vst.msk [vmem:[#allocation3 + $0x8] sm:$0xff] %vm6651, %v6606
        %6654 = vst.msk [vmem:[#allocation3 + $0x10] sm:$0xff] %vm6651, %v6608
        %6655 = vst.msk [vmem:[#allocation3 + $0x18] sm:$0xff] %vm6651, %v6610
        %6656 = vst.msk [vmem:[#allocation3 + $0x20] sm:$0xff] %vm6651, %v6612
        %6657 = vst.msk [vmem:[#allocation3 + $0x28] sm:$0xff] %vm6651, %v6614
        %6658 = vst.msk [vmem:[#allocation3 + $0x30] sm:$0xff] %vm6651, %v6616
        %6659 = vst.msk [vmem:[#allocation3 + $0x38] sm:$0xff] %vm6651, %v6618
        %6660 = vst.msk [vmem:[#allocation3 + $0x40] sm:$0xff] %vm6651, %v6620
        %6661 = vst.msk [vmem:[#allocation3 + $0x48] sm:$0xff] %vm6651, %v6622
        %6662 = vst.msk [vmem:[#allocation3 + $0x50] sm:$0xff] %vm6651, %v6624
        %6663 = vst.msk [vmem:[#allocation3 + $0x58] sm:$0xff] %vm6651, %v6626
        %6664 = vst.msk [vmem:[#allocation3 + $0x60] sm:$0xff] %vm6651, %v6628
        %6665 = vst.msk [vmem:[#allocation3 + $0x68] sm:$0xff] %vm6651, %v6630
        %6666 = vst.msk [vmem:[#allocation3 + $0x70] sm:$0xff] %vm6651, %v6632
        %6667 = vst.msk [vmem:[#allocation3 + $0x78] sm:$0xff] %vm6651, %v6634
        %v6668 = vld [vmem:[#allocation2] sm:$0xf]
        %v6669 = vld [vmem:[#allocation2 + $0xc] sm:$0xf]
        %v6670 = vld [vmem:[#allocation2 + $0x18] sm:$0xf]
        %v6671 = vld [vmem:[#allocation2 + $0x24] sm:$0xf]
        %v6672 = vld [vmem:[#allocation2 + $0x30] sm:$0xf]
        %v6673 = vld [vmem:[#allocation2 + $0x3c] sm:$0xf]
        %v6674 = vld [vmem:[#allocation2 + $0x48] sm:$0xf]
        %v6675 = vld [vmem:[#allocation2 + $0x54] sm:$0xf]
        %v6676 = vld [vmem:[#allocation2 + $0x60] sm:$0xf]
        %v6677 = vld [vmem:[#allocation2 + $0x6c] sm:$0xf]
        %v6678 = vld [vmem:[#allocation2 + $0x78] sm:$0xf]
        %v6679 = vld [vmem:[#allocation2 + $0x84] sm:$0xf]
        %v6680 = vld [vmem:[#allocation2 + $0x90] sm:$0xf]
        %v6681 = vld [vmem:[#allocation2 + $0x9c] sm:$0xf]
        %v6682 = vld [vmem:[#allocation2 + $0xa8] sm:$0xf]
        %v6683 = vld [vmem:[#allocation2 + $0xb4] sm:$0xf]
        %v6684 = vld [vmem:[#allocation2 + $0x4] sm:$0xf]
        %v6685 = vld [vmem:[#allocation2 + $0x10] sm:$0xf]
        %v6686 = vld [vmem:[#allocation2 + $0x1c] sm:$0xf]
        %v6687 = vld [vmem:[#allocation2 + $0x28] sm:$0xf]
        %v6688 = vld [vmem:[#allocation2 + $0x34] sm:$0xf]
        %v6689 = vld [vmem:[#allocation2 + $0x40] sm:$0xf]
        %v6690 = vld [vmem:[#allocation2 + $0x4c] sm:$0xf]
        %v6691 = vld [vmem:[#allocation2 + $0x58] sm:$0xf]
        %v6692 = vld [vmem:[#allocation2 + $0x64] sm:$0xf]
        %v6693 = vld [vmem:[#allocation2 + $0x70] sm:$0xf]
        %v6694 = vld [vmem:[#allocation2 + $0x7c] sm:$0xf]
        %v6695 = vld [vmem:[#allocation2 + $0x88] sm:$0xf]
        %v6696 = vld [vmem:[#allocation2 + $0x94] sm:$0xf]
        %v6697 = vld [vmem:[#allocation2 + $0xa0] sm:$0xf]
        %v6698 = vld [vmem:[#allocation2 + $0xac] sm:$0xf]
        %v6699 = vld [vmem:[#allocation2 + $0xb8] sm:$0xf]
        %v6700 = vld [vmem:[#allocation2 + $0x8] sm:$0xf]
        %v6701 = vld [vmem:[#allocation2 + $0x14] sm:$0xf]
        %v6702 = vld [vmem:[#allocation2 + $0x20] sm:$0xf]
        %v6703 = vld [vmem:[#allocation2 + $0x2c] sm:$0xf]
        %v6704 = vld [vmem:[#allocation2 + $0x38] sm:$0xf]
        %v6705 = vld [vmem:[#allocation2 + $0x44] sm:$0xf]
        %v6706 = vld [vmem:[#allocation2 + $0x50] sm:$0xf]
        %v6707 = vld [vmem:[#allocation2 + $0x5c] sm:$0xf]
        %v6708 = vld [vmem:[#allocation2 + $0x68] sm:$0xf]
        %v6709 = vld [vmem:[#allocation2 + $0x74] sm:$0xf]
        %v6710 = vld [vmem:[#allocation2 + $0x80] sm:$0xf]
        %v6711 = vld [vmem:[#allocation2 + $0x8c] sm:$0xf]
        %v6712 = vld [vmem:[#allocation2 + $0x98] sm:$0xf]
        %v6713 = vld [vmem:[#allocation2 + $0xa4] sm:$0xf]
        %v6714 = vld [vmem:[#allocation2 + $0xb0] sm:$0xf]
        %v6715 = vld [vmem:[#allocation2 + $0xbc] sm:$0xf]
        %v6718 = vunpack.c.l.b16 %v6668
        %v6719 = vunpack.c.l.b16 %v6669
        %v6720 = vpack.c.b16 %v6719, %v6718
        %6721 = vrot.lane.b32.xlu0 %v6720, 16
        %v6722 = vpop.permute.xlu0 %6721
        %v6725 = vunpack.c.l.b16 %v6684
        %v6726 = vunpack.c.l.b16 %v6685
        %v6727 = vpack.c.b16 %v6726, %v6725
        %6728 = vrot.lane.b32.xlu0 %v6727, 16
        %v6729 = vpop.permute.xlu0 %6728
        %v6731 = vsel %vm1007, %v6722, 0
        %v6734 = vsel %vm1007, %v6729, 0
        %6736 = vmatpush.bf16.xpose.msra.mxu0 0
        %6737 = vmatpush.bf16.xpose.msra.mxu0 0
        %6738 = vmatpush.bf16.xpose.msra.mxu0 0
        %6739 = vmatpush.bf16.xpose.msra.mxu0 0
        %6740 = vmatpush.bf16.xpose.msra.mxu0 0
        %6741 = vmatpush.bf16.xpose.msra.mxu0 0
        %6742 = vmatpush.bf16.xpose.msra.mxu0 0
        %6743 = vmatpush.bf16.xpose.msra.mxu0 %v6734
        %6744 = vmatmul.bf16.gmra.mxu0 %v6731
        %v6745 = vpop.f32.mrf.mxu0
        %v6746 = vadd.f32 0.0, %v6745
        %v6747 = vpop.f32.mrf.mxu0
        %v6748 = vadd.f32 0.0, %v6747
        %6749 = vdwg.mxu0
        %v6752 = vunpack.c.l.b16 %v6670
        %v6753 = vunpack.c.l.b16 %v6671
        %v6754 = vpack.c.b16 %v6753, %v6752
        %6755 = vrot.lane.b32.xlu0 %v6754, 16
        %v6756 = vpop.permute.xlu0 %6755
        %v6759 = vunpack.c.l.b16 %v6686
        %v6760 = vunpack.c.l.b16 %v6687
        %v6761 = vpack.c.b16 %v6760, %v6759
        %6762 = vrot.lane.b32.xlu0 %v6761, 16
        %v6763 = vpop.permute.xlu0 %6762
        %v6765 = vsel %vm1007, %v6756, 0
        %v6768 = vsel %vm1007, %v6763, 0
        %6770 = vmatpush.bf16.xpose.msra.mxu0 0
        %6771 = vmatpush.bf16.xpose.msra.mxu0 0
        %6772 = vmatpush.bf16.xpose.msra.mxu0 0
        %6773 = vmatpush.bf16.xpose.msra.mxu0 0
        %6774 = vmatpush.bf16.xpose.msra.mxu0 0
        %6775 = vmatpush.bf16.xpose.msra.mxu0 0
        %6776 = vmatpush.bf16.xpose.msra.mxu0 0
        %6777 = vmatpush.bf16.xpose.msra.mxu0 %v6768
        %6778 = vmatmul.bf16.gmra.mxu0 %v6765
        %v6779 = vpop.f32.mrf.mxu0
        %v6780 = vadd.f32 0.0, %v6779
        %v6781 = vpop.f32.mrf.mxu0
        %v6782 = vadd.f32 0.0, %v6781
        %6783 = vdwg.mxu0
        %v6786 = vunpack.c.l.b16 %v6672
        %v6787 = vunpack.c.l.b16 %v6673
        %v6788 = vpack.c.b16 %v6787, %v6786
        %6789 = vrot.lane.b32.xlu0 %v6788, 16
        %v6790 = vpop.permute.xlu0 %6789
        %v6793 = vunpack.c.l.b16 %v6688
        %v6794 = vunpack.c.l.b16 %v6689
        %v6795 = vpack.c.b16 %v6794, %v6793
        %6796 = vrot.lane.b32.xlu0 %v6795, 16
        %v6797 = vpop.permute.xlu0 %6796
        %v6799 = vsel %vm1007, %v6790, 0
        %v6802 = vsel %vm1007, %v6797, 0
        %6804 = vmatpush.bf16.xpose.msra.mxu0 0
        %6805 = vmatpush.bf16.xpose.msra.mxu0 0
        %6806 = vmatpush.bf16.xpose.msra.mxu0 0
        %6807 = vmatpush.bf16.xpose.msra.mxu0 0
        %6808 = vmatpush.bf16.xpose.msra.mxu0 0
        %6809 = vmatpush.bf16.xpose.msra.mxu0 0
        %6810 = vmatpush.bf16.xpose.msra.mxu0 0
        %6811 = vmatpush.bf16.xpose.msra.mxu0 %v6802
        %6812 = vmatmul.bf16.gmra.mxu0 %v6799
        %v6813 = vpop.f32.mrf.mxu0
        %v6814 = vadd.f32 0.0, %v6813
        %v6815 = vpop.f32.mrf.mxu0
        %v6816 = vadd.f32 0.0, %v6815
        %6817 = vdwg.mxu0
        %v6820 = vunpack.c.l.b16 %v6674
        %v6821 = vunpack.c.l.b16 %v6675
        %v6822 = vpack.c.b16 %v6821, %v6820
        %6823 = vrot.lane.b32.xlu0 %v6822, 16
        %v6824 = vpop.permute.xlu0 %6823
        %v6827 = vunpack.c.l.b16 %v6690
        %v6828 = vunpack.c.l.b16 %v6691
        %v6829 = vpack.c.b16 %v6828, %v6827
        %6830 = vrot.lane.b32.xlu0 %v6829, 16
        %v6831 = vpop.permute.xlu0 %6830
        %v6833 = vsel %vm1007, %v6824, 0
        %v6836 = vsel %vm1007, %v6831, 0
        %6838 = vmatpush.bf16.xpose.msra.mxu0 0
        %6839 = vmatpush.bf16.xpose.msra.mxu0 0
        %6840 = vmatpush.bf16.xpose.msra.mxu0 0
        %6841 = vmatpush.bf16.xpose.msra.mxu0 0
        %6842 = vmatpush.bf16.xpose.msra.mxu0 0
        %6843 = vmatpush.bf16.xpose.msra.mxu0 0
        %6844 = vmatpush.bf16.xpose.msra.mxu0 0
        %6845 = vmatpush.bf16.xpose.msra.mxu0 %v6836
        %6846 = vmatmul.bf16.gmra.mxu0 %v6833
        %v6847 = vpop.f32.mrf.mxu0
        %v6848 = vadd.f32 0.0, %v6847
        %v6849 = vpop.f32.mrf.mxu0
        %v6850 = vadd.f32 0.0, %v6849
        %6851 = vdwg.mxu0
        %v6854 = vunpack.c.l.b16 %v6676
        %v6855 = vunpack.c.l.b16 %v6677
        %v6856 = vpack.c.b16 %v6855, %v6854
        %6857 = vrot.lane.b32.xlu0 %v6856, 16
        %v6858 = vpop.permute.xlu0 %6857
        %v6861 = vunpack.c.l.b16 %v6692
        %v6862 = vunpack.c.l.b16 %v6693
        %v6863 = vpack.c.b16 %v6862, %v6861
        %6864 = vrot.lane.b32.xlu0 %v6863, 16
        %v6865 = vpop.permute.xlu0 %6864
        %v6867 = vsel %vm1007, %v6858, 0
        %v6870 = vsel %vm1007, %v6865, 0
        %6872 = vmatpush.bf16.xpose.msra.mxu0 0
        %6873 = vmatpush.bf16.xpose.msra.mxu0 0
        %6874 = vmatpush.bf16.xpose.msra.mxu0 0
        %6875 = vmatpush.bf16.xpose.msra.mxu0 0
        %6876 = vmatpush.bf16.xpose.msra.mxu0 0
        %6877 = vmatpush.bf16.xpose.msra.mxu0 0
        %6878 = vmatpush.bf16.xpose.msra.mxu0 0
        %6879 = vmatpush.bf16.xpose.msra.mxu0 %v6870
        %6880 = vmatmul.bf16.gmra.mxu0 %v6867
        %v6881 = vpop.f32.mrf.mxu0
        %v6882 = vadd.f32 0.0, %v6881
        %v6883 = vpop.f32.mrf.mxu0
        %v6884 = vadd.f32 0.0, %v6883
        %6885 = vdwg.mxu0
        %v6888 = vunpack.c.l.b16 %v6678
        %v6889 = vunpack.c.l.b16 %v6679
        %v6890 = vpack.c.b16 %v6889, %v6888
        %6891 = vrot.lane.b32.xlu0 %v6890, 16
        %v6892 = vpop.permute.xlu0 %6891
        %v6895 = vunpack.c.l.b16 %v6694
        %v6896 = vunpack.c.l.b16 %v6695
        %v6897 = vpack.c.b16 %v6896, %v6895
        %6898 = vrot.lane.b32.xlu0 %v6897, 16
        %v6899 = vpop.permute.xlu0 %6898
        %v6901 = vsel %vm1007, %v6892, 0
        %v6904 = vsel %vm1007, %v6899, 0
        %6906 = vmatpush.bf16.xpose.msra.mxu0 0
        %6907 = vmatpush.bf16.xpose.msra.mxu0 0
        %6908 = vmatpush.bf16.xpose.msra.mxu0 0
        %6909 = vmatpush.bf16.xpose.msra.mxu0 0
        %6910 = vmatpush.bf16.xpose.msra.mxu0 0
        %6911 = vmatpush.bf16.xpose.msra.mxu0 0
        %6912 = vmatpush.bf16.xpose.msra.mxu0 0
        %6913 = vmatpush.bf16.xpose.msra.mxu0 %v6904
        %6914 = vmatmul.bf16.gmra.mxu0 %v6901
        %v6915 = vpop.f32.mrf.mxu0
        %v6916 = vadd.f32 0.0, %v6915
        %v6917 = vpop.f32.mrf.mxu0
        %v6918 = vadd.f32 0.0, %v6917
        %6919 = vdwg.mxu0
        %v6922 = vunpack.c.l.b16 %v6680
        %v6923 = vunpack.c.l.b16 %v6681
        %v6924 = vpack.c.b16 %v6923, %v6922
        %6925 = vrot.lane.b32.xlu0 %v6924, 16
        %v6926 = vpop.permute.xlu0 %6925
        %v6929 = vunpack.c.l.b16 %v6696
        %v6930 = vunpack.c.l.b16 %v6697
        %v6931 = vpack.c.b16 %v6930, %v6929
        %6932 = vrot.lane.b32.xlu0 %v6931, 16
        %v6933 = vpop.permute.xlu0 %6932
        %v6935 = vsel %vm1007, %v6926, 0
        %v6938 = vsel %vm1007, %v6933, 0
        %6940 = vmatpush.bf16.xpose.msra.mxu0 0
        %6941 = vmatpush.bf16.xpose.msra.mxu0 0
        %6942 = vmatpush.bf16.xpose.msra.mxu0 0
        %6943 = vmatpush.bf16.xpose.msra.mxu0 0
        %6944 = vmatpush.bf16.xpose.msra.mxu0 0
        %6945 = vmatpush.bf16.xpose.msra.mxu0 0
        %6946 = vmatpush.bf16.xpose.msra.mxu0 0
        %6947 = vmatpush.bf16.xpose.msra.mxu0 %v6938
        %6948 = vmatmul.bf16.gmra.mxu0 %v6935
        %v6949 = vpop.f32.mrf.mxu0
        %v6950 = vadd.f32 0.0, %v6949
        %v6951 = vpop.f32.mrf.mxu0
        %v6952 = vadd.f32 0.0, %v6951
        %6953 = vdwg.mxu0
        %v6956 = vunpack.c.l.b16 %v6682
        %v6957 = vunpack.c.l.b16 %v6683
        %v6958 = vpack.c.b16 %v6957, %v6956
        %6959 = vrot.lane.b32.xlu0 %v6958, 16
        %v6960 = vpop.permute.xlu0 %6959
        %v6963 = vunpack.c.l.b16 %v6698
        %v6964 = vunpack.c.l.b16 %v6699
        %v6965 = vpack.c.b16 %v6964, %v6963
        %6966 = vrot.lane.b32.xlu0 %v6965, 16
        %v6967 = vpop.permute.xlu0 %6966
        %v6969 = vsel %vm1007, %v6960, 0
        %v6972 = vsel %vm1007, %v6967, 0
        %6974 = vmatpush.bf16.xpose.msra.mxu0 0
        %6975 = vmatpush.bf16.xpose.msra.mxu0 0
        %6976 = vmatpush.bf16.xpose.msra.mxu0 0
        %6977 = vmatpush.bf16.xpose.msra.mxu0 0
        %6978 = vmatpush.bf16.xpose.msra.mxu0 0
        %6979 = vmatpush.bf16.xpose.msra.mxu0 0
        %6980 = vmatpush.bf16.xpose.msra.mxu0 0
        %6981 = vmatpush.bf16.xpose.msra.mxu0 %v6972
        %6982 = vmatmul.bf16.gmra.mxu0 %v6969
        %v6983 = vpop.f32.mrf.mxu0
        %v6984 = vadd.f32 0.0, %v6983
        %v6985 = vpop.f32.mrf.mxu0
        %v6986 = vadd.f32 0.0, %v6985
        %6987 = vdwg.mxu0
        %v6988 = vsel %vm1007, %v6746, -inf
        %6989 = vmax.xlane.f32.xlu0 %v6988
        %v6990 = vpop.xlane.xlu0 %6989
        %v6991 = vsel %vm1007, %v6748, -inf
        %6992 = vmax.xlane.f32.xlu0 %v6991
        %v6993 = vpop.xlane.xlu0 %6992
        %v6994 = vsel %vm1007, %v6780, -inf
        %6995 = vmax.xlane.f32.xlu0 %v6994
        %v6996 = vpop.xlane.xlu0 %6995
        %v6997 = vsel %vm1007, %v6782, -inf
        %6998 = vmax.xlane.f32.xlu0 %v6997
        %v6999 = vpop.xlane.xlu0 %6998
        %v7000 = vsel %vm1007, %v6814, -inf
        %7001 = vmax.xlane.f32.xlu0 %v7000
        %v7002 = vpop.xlane.xlu0 %7001
        %v7003 = vsel %vm1007, %v6816, -inf
        %7004 = vmax.xlane.f32.xlu0 %v7003
        %v7005 = vpop.xlane.xlu0 %7004
        %v7006 = vsel %vm1007, %v6848, -inf
        %7007 = vmax.xlane.f32.xlu0 %v7006
        %v7008 = vpop.xlane.xlu0 %7007
        %v7009 = vsel %vm1007, %v6850, -inf
        %7010 = vmax.xlane.f32.xlu0 %v7009
        %v7011 = vpop.xlane.xlu0 %7010
        %v7012 = vsel %vm1007, %v6882, -inf
        %7013 = vmax.xlane.f32.xlu0 %v7012
        %v7014 = vpop.xlane.xlu0 %7013
        %v7015 = vsel %vm1007, %v6884, -inf
        %7016 = vmax.xlane.f32.xlu0 %v7015
        %v7017 = vpop.xlane.xlu0 %7016
        %v7018 = vsel %vm1007, %v6916, -inf
        %7019 = vmax.xlane.f32.xlu0 %v7018
        %v7020 = vpop.xlane.xlu0 %7019
        %v7021 = vsel %vm1007, %v6918, -inf
        %7022 = vmax.xlane.f32.xlu0 %v7021
        %v7023 = vpop.xlane.xlu0 %7022
        %v7024 = vsel %vm1007, %v6950, -inf
        %7025 = vmax.xlane.f32.xlu0 %v7024
        %v7026 = vpop.xlane.xlu0 %7025
        %v7027 = vsel %vm1007, %v6952, -inf
        %7028 = vmax.xlane.f32.xlu0 %v7027
        %v7029 = vpop.xlane.xlu0 %7028
        %v7030 = vsel %vm1007, %v6984, -inf
        %7031 = vmax.xlane.f32.xlu0 %v7030
        %v7032 = vpop.xlane.xlu0 %7031
        %v7033 = vsel %vm1007, %v6986, -inf
        %7034 = vmax.xlane.f32.xlu0 %v7033
        %v7035 = vpop.xlane.xlu0 %7034
        %v7036 = vsub.f32 %v6746, %v6990
        %v7037 = vsub.f32 %v6748, %v6993
        %v7038 = vsub.f32 %v6780, %v6996
        %v7039 = vsub.f32 %v6782, %v6999
        %v7040 = vsub.f32 %v6814, %v7002
        %v7041 = vsub.f32 %v6816, %v7005
        %v7042 = vsub.f32 %v6848, %v7008
        %v7043 = vsub.f32 %v6850, %v7011
        %v7044 = vsub.f32 %v6882, %v7014
        %v7045 = vsub.f32 %v6884, %v7017
        %v7046 = vsub.f32 %v6916, %v7020
        %v7047 = vsub.f32 %v6918, %v7023
        %v7048 = vsub.f32 %v6950, %v7026
        %v7049 = vsub.f32 %v6952, %v7029
        %v7050 = vsub.f32 %v6984, %v7032
        %v7051 = vsub.f32 %v6986, %v7035
        %v7052 = vmul.f32 %v7036, 1.442695
        %v7053 = vpow.pop %v7052
        %v7054 = vmul.f32 %v7037, 1.442695
        %v7055 = vpow.pop %v7054
        %v7056 = vmul.f32 %v7038, 1.442695
        %v7057 = vpow.pop %v7056
        %v7058 = vmul.f32 %v7039, 1.442695
        %v7059 = vpow.pop %v7058
        %v7060 = vmul.f32 %v7040, 1.442695
        %v7061 = vpow.pop %v7060
        %v7062 = vmul.f32 %v7041, 1.442695
        %v7063 = vpow.pop %v7062
        %v7064 = vmul.f32 %v7042, 1.442695
        %v7065 = vpow.pop %v7064
        %v7066 = vmul.f32 %v7043, 1.442695
        %v7067 = vpow.pop %v7066
        %v7068 = vmul.f32 %v7044, 1.442695
        %v7069 = vpow.pop %v7068
        %v7070 = vmul.f32 %v7045, 1.442695
        %v7071 = vpow.pop %v7070
        %v7072 = vmul.f32 %v7046, 1.442695
        %v7073 = vpow.pop %v7072
        %v7074 = vmul.f32 %v7047, 1.442695
        %v7075 = vpow.pop %v7074
        %v7076 = vmul.f32 %v7048, 1.442695
        %v7077 = vpow.pop %v7076
        %v7078 = vmul.f32 %v7049, 1.442695
        %v7079 = vpow.pop %v7078
        %v7080 = vmul.f32 %v7050, 1.442695
        %v7081 = vpow.pop %v7080
        %v7082 = vmul.f32 %v7051, 1.442695
        %v7083 = vpow.pop %v7082
        %v7084 = vsel %vm1007, %v7053, 0.0
        %7085 = vadd.xlane.f32.xlu0 %v7084
        %v7086 = vpop.xlane.xlu0 %7085
        %v7087 = vsel %vm1007, %v7055, 0.0
        %7088 = vadd.xlane.f32.xlu0 %v7087
        %v7089 = vpop.xlane.xlu0 %7088
        %v7090 = vsel %vm1007, %v7057, 0.0
        %7091 = vadd.xlane.f32.xlu0 %v7090
        %v7092 = vpop.xlane.xlu0 %7091
        %v7093 = vsel %vm1007, %v7059, 0.0
        %7094 = vadd.xlane.f32.xlu0 %v7093
        %v7095 = vpop.xlane.xlu0 %7094
        %v7096 = vsel %vm1007, %v7061, 0.0
        %7097 = vadd.xlane.f32.xlu0 %v7096
        %v7098 = vpop.xlane.xlu0 %7097
        %v7099 = vsel %vm1007, %v7063, 0.0
        %7100 = vadd.xlane.f32.xlu0 %v7099
        %v7101 = vpop.xlane.xlu0 %7100
        %v7102 = vsel %vm1007, %v7065, 0.0
        %7103 = vadd.xlane.f32.xlu0 %v7102
        %v7104 = vpop.xlane.xlu0 %7103
        %v7105 = vsel %vm1007, %v7067, 0.0
        %7106 = vadd.xlane.f32.xlu0 %v7105
        %v7107 = vpop.xlane.xlu0 %7106
        %v7108 = vsel %vm1007, %v7069, 0.0
        %7109 = vadd.xlane.f32.xlu0 %v7108
        %v7110 = vpop.xlane.xlu0 %7109
        %v7111 = vsel %vm1007, %v7071, 0.0
        %7112 = vadd.xlane.f32.xlu0 %v7111
        %v7113 = vpop.xlane.xlu0 %7112
        %v7114 = vsel %vm1007, %v7073, 0.0
        %7115 = vadd.xlane.f32.xlu0 %v7114
        %v7116 = vpop.xlane.xlu0 %7115
        %v7117 = vsel %vm1007, %v7075, 0.0
        %7118 = vadd.xlane.f32.xlu0 %v7117
        %v7119 = vpop.xlane.xlu0 %7118
        %v7120 = vsel %vm1007, %v7077, 0.0
        %7121 = vadd.xlane.f32.xlu0 %v7120
        %v7122 = vpop.xlane.xlu0 %7121
        %v7123 = vsel %vm1007, %v7079, 0.0
        %7124 = vadd.xlane.f32.xlu0 %v7123
        %v7125 = vpop.xlane.xlu0 %7124
        %v7126 = vsel %vm1007, %v7081, 0.0
        %7127 = vadd.xlane.f32.xlu0 %v7126
        %v7128 = vpop.xlane.xlu0 %7127
        %v7129 = vsel %vm1007, %v7083, 0.0
        %7130 = vadd.xlane.f32.xlu0 %v7129
        %v7131 = vpop.xlane.xlu0 %7130
        %v7132 = vrcp.pop %v7086
        %v7133 = vrcp.pop %v7089
        %v7134 = vrcp.pop %v7092
        %v7135 = vrcp.pop %v7095
        %v7136 = vrcp.pop %v7098
        %v7137 = vrcp.pop %v7101
        %v7138 = vrcp.pop %v7104
        %v7139 = vrcp.pop %v7107
        %v7140 = vrcp.pop %v7110
        %v7141 = vrcp.pop %v7113
        %v7142 = vrcp.pop %v7116
        %v7143 = vrcp.pop %v7119
        %v7144 = vrcp.pop %v7122
        %v7145 = vrcp.pop %v7125
        %v7146 = vrcp.pop %v7128
        %v7147 = vrcp.pop %v7131
        %v7148 = vmul.f32 %v7053, %v7132
        %v7149 = vmul.f32 %v7055, %v7133
        %v7150 = vmul.f32 %v7057, %v7134
        %v7151 = vmul.f32 %v7059, %v7135
        %v7152 = vmul.f32 %v7061, %v7136
        %v7153 = vmul.f32 %v7063, %v7137
        %v7154 = vmul.f32 %v7065, %v7138
        %v7155 = vmul.f32 %v7067, %v7139
        %v7156 = vmul.f32 %v7069, %v7140
        %v7157 = vmul.f32 %v7071, %v7141
        %v7158 = vmul.f32 %v7073, %v7142
        %v7159 = vmul.f32 %v7075, %v7143
        %v7160 = vmul.f32 %v7077, %v7144
        %v7161 = vmul.f32 %v7079, %v7145
        %v7162 = vmul.f32 %v7081, %v7146
        %v7163 = vmul.f32 %v7083, %v7147
        %v7164 = vpack.c.bf16 %v7148, %v7148
        %v7165 = vpack.c.bf16 %v7149, %v7149
        %v7166 = vpack.c.bf16 %v7150, %v7150
        %v7167 = vpack.c.bf16 %v7151, %v7151
        %v7168 = vpack.c.bf16 %v7152, %v7152
        %v7169 = vpack.c.bf16 %v7153, %v7153
        %v7170 = vpack.c.bf16 %v7154, %v7154
        %v7171 = vpack.c.bf16 %v7155, %v7155
        %v7172 = vpack.c.bf16 %v7156, %v7156
        %v7173 = vpack.c.bf16 %v7157, %v7157
        %v7174 = vpack.c.bf16 %v7158, %v7158
        %v7175 = vpack.c.bf16 %v7159, %v7159
        %v7176 = vpack.c.bf16 %v7160, %v7160
        %v7177 = vpack.c.bf16 %v7161, %v7161
        %v7178 = vpack.c.bf16 %v7162, %v7162
        %v7179 = vpack.c.bf16 %v7163, %v7163
        %v7182 = vunpack.c.l.b16 %v7164
        %v7183 = vunpack.c.l.b16 %v7165
        %v7184 = vpack.c.b16 %v7183, %v7182
        %v7187 = vunpack.c.l.b16 %v6700
        %v7188 = vunpack.c.l.b16 %v6701
        %v7189 = vpack.c.b16 %v7188, %v7187
        %7190 = vrot.lane.b32.xlu0 %v7189, 16
        %v7191 = vpop.permute.xlu0 %7190
        %v7194 = vsel %vm1007, %v7184, 0
        %7196 = vmatpush.bf16.msra.mxu0 0
        %7197 = vmatpush.bf16.msra.mxu0 0
        %7198 = vmatpush.bf16.msra.mxu0 0
        %7199 = vmatpush.bf16.msra.mxu0 0
        %7200 = vmatpush.bf16.msra.mxu0 0
        %7201 = vmatpush.bf16.msra.mxu0 0
        %7202 = vmatpush.bf16.msra.mxu0 0
        %7203 = vmatpush.bf16.msra.mxu0 %v7191
        %7204 = vmatmul.bf16.gmra.mxu0 %v7194
        %v7205 = vpop.f32.mrf.mxu0
        %v7206 = vadd.f32 0.0, %v7205
        %v7207 = vpop.f32.mrf.mxu0
        %v7208 = vadd.f32 0.0, %v7207
        %7209 = vdwg.mxu0
        %v7212 = vunpack.c.l.b16 %v7166
        %v7213 = vunpack.c.l.b16 %v7167
        %v7214 = vpack.c.b16 %v7213, %v7212
        %v7217 = vunpack.c.l.b16 %v6702
        %v7218 = vunpack.c.l.b16 %v6703
        %v7219 = vpack.c.b16 %v7218, %v7217
        %7220 = vrot.lane.b32.xlu0 %v7219, 16
        %v7221 = vpop.permute.xlu0 %7220
        %v7224 = vsel %vm1007, %v7214, 0
        %7226 = vmatpush.bf16.msra.mxu0 0
        %7227 = vmatpush.bf16.msra.mxu0 0
        %7228 = vmatpush.bf16.msra.mxu0 0
        %7229 = vmatpush.bf16.msra.mxu0 0
        %7230 = vmatpush.bf16.msra.mxu0 0
        %7231 = vmatpush.bf16.msra.mxu0 0
        %7232 = vmatpush.bf16.msra.mxu0 0
        %7233 = vmatpush.bf16.msra.mxu0 %v7221
        %7234 = vmatmul.bf16.gmra.mxu0 %v7224
        %v7235 = vpop.f32.mrf.mxu0
        %v7236 = vadd.f32 0.0, %v7235
        %v7237 = vpop.f32.mrf.mxu0
        %v7238 = vadd.f32 0.0, %v7237
        %7239 = vdwg.mxu0
        %v7242 = vunpack.c.l.b16 %v7168
        %v7243 = vunpack.c.l.b16 %v7169
        %v7244 = vpack.c.b16 %v7243, %v7242
        %v7247 = vunpack.c.l.b16 %v6704
        %v7248 = vunpack.c.l.b16 %v6705
        %v7249 = vpack.c.b16 %v7248, %v7247
        %7250 = vrot.lane.b32.xlu0 %v7249, 16
        %v7251 = vpop.permute.xlu0 %7250
        %v7254 = vsel %vm1007, %v7244, 0
        %7256 = vmatpush.bf16.msra.mxu0 0
        %7257 = vmatpush.bf16.msra.mxu0 0
        %7258 = vmatpush.bf16.msra.mxu0 0
        %7259 = vmatpush.bf16.msra.mxu0 0
        %7260 = vmatpush.bf16.msra.mxu0 0
        %7261 = vmatpush.bf16.msra.mxu0 0
        %7262 = vmatpush.bf16.msra.mxu0 0
        %7263 = vmatpush.bf16.msra.mxu0 %v7251
        %7264 = vmatmul.bf16.gmra.mxu0 %v7254
        %v7265 = vpop.f32.mrf.mxu0
        %v7266 = vadd.f32 0.0, %v7265
        %v7267 = vpop.f32.mrf.mxu0
        %v7268 = vadd.f32 0.0, %v7267
        %7269 = vdwg.mxu0
        %v7272 = vunpack.c.l.b16 %v7170
        %v7273 = vunpack.c.l.b16 %v7171
        %v7274 = vpack.c.b16 %v7273, %v7272
        %v7277 = vunpack.c.l.b16 %v6706
        %v7278 = vunpack.c.l.b16 %v6707
        %v7279 = vpack.c.b16 %v7278, %v7277
        %7280 = vrot.lane.b32.xlu0 %v7279, 16
        %v7281 = vpop.permute.xlu0 %7280
        %v7284 = vsel %vm1007, %v7274, 0
        %7286 = vmatpush.bf16.msra.mxu0 0
        %7287 = vmatpush.bf16.msra.mxu0 0
        %7288 = vmatpush.bf16.msra.mxu0 0
        %7289 = vmatpush.bf16.msra.mxu0 0
        %7290 = vmatpush.bf16.msra.mxu0 0
        %7291 = vmatpush.bf16.msra.mxu0 0
        %7292 = vmatpush.bf16.msra.mxu0 0
        %7293 = vmatpush.bf16.msra.mxu0 %v7281
        %7294 = vmatmul.bf16.gmra.mxu0 %v7284
        %v7295 = vpop.f32.mrf.mxu0
        %v7296 = vadd.f32 0.0, %v7295
        %v7297 = vpop.f32.mrf.mxu0
        %v7298 = vadd.f32 0.0, %v7297
        %7299 = vdwg.mxu0
        %v7302 = vunpack.c.l.b16 %v7172
        %v7303 = vunpack.c.l.b16 %v7173
        %v7304 = vpack.c.b16 %v7303, %v7302
        %v7307 = vunpack.c.l.b16 %v6708
        %v7308 = vunpack.c.l.b16 %v6709
        %v7309 = vpack.c.b16 %v7308, %v7307
        %7310 = vrot.lane.b32.xlu0 %v7309, 16
        %v7311 = vpop.permute.xlu0 %7310
        %v7314 = vsel %vm1007, %v7304, 0
        %7316 = vmatpush.bf16.msra.mxu0 0
        %7317 = vmatpush.bf16.msra.mxu0 0
        %7318 = vmatpush.bf16.msra.mxu0 0
        %7319 = vmatpush.bf16.msra.mxu0 0
        %7320 = vmatpush.bf16.msra.mxu0 0
        %7321 = vmatpush.bf16.msra.mxu0 0
        %7322 = vmatpush.bf16.msra.mxu0 0
        %7323 = vmatpush.bf16.msra.mxu0 %v7311
        %7324 = vmatmul.bf16.gmra.mxu0 %v7314
        %v7325 = vpop.f32.mrf.mxu0
        %v7326 = vadd.f32 0.0, %v7325
        %v7327 = vpop.f32.mrf.mxu0
        %v7328 = vadd.f32 0.0, %v7327
        %7329 = vdwg.mxu0
        %v7332 = vunpack.c.l.b16 %v7174
        %v7333 = vunpack.c.l.b16 %v7175
        %v7334 = vpack.c.b16 %v7333, %v7332
        %v7337 = vunpack.c.l.b16 %v6710
        %v7338 = vunpack.c.l.b16 %v6711
        %v7339 = vpack.c.b16 %v7338, %v7337
        %7340 = vrot.lane.b32.xlu0 %v7339, 16
        %v7341 = vpop.permute.xlu0 %7340
        %v7344 = vsel %vm1007, %v7334, 0
        %7346 = vmatpush.bf16.msra.mxu0 0
        %7347 = vmatpush.bf16.msra.mxu0 0
        %7348 = vmatpush.bf16.msra.mxu0 0
        %7349 = vmatpush.bf16.msra.mxu0 0
        %7350 = vmatpush.bf16.msra.mxu0 0
        %7351 = vmatpush.bf16.msra.mxu0 0
        %7352 = vmatpush.bf16.msra.mxu0 0
        %7353 = vmatpush.bf16.msra.mxu0 %v7341
        %7354 = vmatmul.bf16.gmra.mxu0 %v7344
        %v7355 = vpop.f32.mrf.mxu0
        %v7356 = vadd.f32 0.0, %v7355
        %v7357 = vpop.f32.mrf.mxu0
        %v7358 = vadd.f32 0.0, %v7357
        %7359 = vdwg.mxu0
        %v7362 = vunpack.c.l.b16 %v7176
        %v7363 = vunpack.c.l.b16 %v7177
        %v7364 = vpack.c.b16 %v7363, %v7362
        %v7367 = vunpack.c.l.b16 %v6712
        %v7368 = vunpack.c.l.b16 %v6713
        %v7369 = vpack.c.b16 %v7368, %v7367
        %7370 = vrot.lane.b32.xlu0 %v7369, 16
        %v7371 = vpop.permute.xlu0 %7370
        %v7374 = vsel %vm1007, %v7364, 0
        %7376 = vmatpush.bf16.msra.mxu0 0
        %7377 = vmatpush.bf16.msra.mxu0 0
        %7378 = vmatpush.bf16.msra.mxu0 0
        %7379 = vmatpush.bf16.msra.mxu0 0
        %7380 = vmatpush.bf16.msra.mxu0 0
        %7381 = vmatpush.bf16.msra.mxu0 0
        %7382 = vmatpush.bf16.msra.mxu0 0
        %7383 = vmatpush.bf16.msra.mxu0 %v7371
        %7384 = vmatmul.bf16.gmra.mxu0 %v7374
        %v7385 = vpop.f32.mrf.mxu0
        %v7386 = vadd.f32 0.0, %v7385
        %v7387 = vpop.f32.mrf.mxu0
        %v7388 = vadd.f32 0.0, %v7387
        %7389 = vdwg.mxu0
        %v7392 = vunpack.c.l.b16 %v7178
        %v7393 = vunpack.c.l.b16 %v7179
        %v7394 = vpack.c.b16 %v7393, %v7392
        %v7397 = vunpack.c.l.b16 %v6714
        %v7398 = vunpack.c.l.b16 %v6715
        %v7399 = vpack.c.b16 %v7398, %v7397
        %7400 = vrot.lane.b32.xlu0 %v7399, 16
        %v7401 = vpop.permute.xlu0 %7400
        %v7404 = vsel %vm1007, %v7394, 0
        %7406 = vmatpush.bf16.msra.mxu0 0
        %7407 = vmatpush.bf16.msra.mxu0 0
        %7408 = vmatpush.bf16.msra.mxu0 0
        %7409 = vmatpush.bf16.msra.mxu0 0
        %7410 = vmatpush.bf16.msra.mxu0 0
        %7411 = vmatpush.bf16.msra.mxu0 0
        %7412 = vmatpush.bf16.msra.mxu0 0
        %7413 = vmatpush.bf16.msra.mxu0 %v7401
        %7414 = vmatmul.bf16.gmra.mxu0 %v7404
        %v7415 = vpop.f32.mrf.mxu0
        %v7416 = vadd.f32 0.0, %v7415
        %v7417 = vpop.f32.mrf.mxu0
        %v7418 = vadd.f32 0.0, %v7417
        %7419 = vdwg.mxu0
        %7436 = vrot.lane.b32.xlu0 %v7206, 112
        %v7437 = vpop.permute.xlu0 %7436
        %7438 = vrot.lane.b32.xlu0 %v7208, 112
        %v7439 = vpop.permute.xlu0 %7438
        %7440 = vrot.lane.b32.xlu0 %v7236, 112
        %v7441 = vpop.permute.xlu0 %7440
        %7442 = vrot.lane.b32.xlu0 %v7238, 112
        %v7443 = vpop.permute.xlu0 %7442
        %7444 = vrot.lane.b32.xlu0 %v7266, 112
        %v7445 = vpop.permute.xlu0 %7444
        %7446 = vrot.lane.b32.xlu0 %v7268, 112
        %v7447 = vpop.permute.xlu0 %7446
        %7448 = vrot.lane.b32.xlu0 %v7296, 112
        %v7449 = vpop.permute.xlu0 %7448
        %7450 = vrot.lane.b32.xlu0 %v7298, 112
        %v7451 = vpop.permute.xlu0 %7450
        %7452 = vrot.lane.b32.xlu0 %v7326, 112
        %v7453 = vpop.permute.xlu0 %7452
        %7454 = vrot.lane.b32.xlu0 %v7328, 112
        %v7455 = vpop.permute.xlu0 %7454
        %7456 = vrot.lane.b32.xlu0 %v7356, 112
        %v7457 = vpop.permute.xlu0 %7456
        %7458 = vrot.lane.b32.xlu0 %v7358, 112
        %v7459 = vpop.permute.xlu0 %7458
        %7460 = vrot.lane.b32.xlu0 %v7386, 112
        %v7461 = vpop.permute.xlu0 %7460
        %7462 = vrot.lane.b32.xlu0 %v7388, 112
        %v7463 = vpop.permute.xlu0 %7462
        %7464 = vrot.lane.b32.xlu0 %v7416, 112
        %v7465 = vpop.permute.xlu0 %7464
        %7466 = vrot.lane.b32.xlu0 %v7418, 112
        %v7467 = vpop.permute.xlu0 %7466
        %vm7484 = vcmask 1048448
        %7485 = vst.msk [vmem:[#allocation3] sm:$0xff] %vm7484, %v7437
        %7486 = vst.msk [vmem:[#allocation3 + $0x8] sm:$0xff] %vm7484, %v7439
        %7487 = vst.msk [vmem:[#allocation3 + $0x10] sm:$0xff] %vm7484, %v7441
        %7488 = vst.msk [vmem:[#allocation3 + $0x18] sm:$0xff] %vm7484, %v7443
        %7489 = vst.msk [vmem:[#allocation3 + $0x20] sm:$0xff] %vm7484, %v7445
        %7490 = vst.msk [vmem:[#allocation3 + $0x28] sm:$0xff] %vm7484, %v7447
        %7491 = vst.msk [vmem:[#allocation3 + $0x30] sm:$0xff] %vm7484, %v7449
        %7492 = vst.msk [vmem:[#allocation3 + $0x38] sm:$0xff] %vm7484, %v7451
        %7493 = vst.msk [vmem:[#allocation3 + $0x40] sm:$0xff] %vm7484, %v7453
        %7494 = vst.msk [vmem:[#allocation3 + $0x48] sm:$0xff] %vm7484, %v7455
        %7495 = vst.msk [vmem:[#allocation3 + $0x50] sm:$0xff] %vm7484, %v7457
        %7496 = vst.msk [vmem:[#allocation3 + $0x58] sm:$0xff] %vm7484, %v7459
        %7497 = vst.msk [vmem:[#allocation3 + $0x60] sm:$0xff] %vm7484, %v7461
        %7498 = vst.msk [vmem:[#allocation3 + $0x68] sm:$0xff] %vm7484, %v7463
        %7499 = vst.msk [vmem:[#allocation3 + $0x70] sm:$0xff] %vm7484, %v7465
        %7500 = vst.msk [vmem:[#allocation3 + $0x78] sm:$0xff] %vm7484, %v7467
        %v7501 = vld [vmem:[#allocation3] sm:$0xff]
        %v7502 = vld [vmem:[#allocation3 + $0x8] sm:$0xff]
        %v7503 = vld [vmem:[#allocation3 + $0x10] sm:$0xff]
        %v7504 = vld [vmem:[#allocation3 + $0x18] sm:$0xff]
        %v7505 = vld [vmem:[#allocation3 + $0x20] sm:$0xff]
        %v7506 = vld [vmem:[#allocation3 + $0x28] sm:$0xff]
        %v7507 = vld [vmem:[#allocation3 + $0x30] sm:$0xff]
        %v7508 = vld [vmem:[#allocation3 + $0x38] sm:$0xff]
        %v7509 = vld [vmem:[#allocation3 + $0x40] sm:$0xff]
        %v7510 = vld [vmem:[#allocation3 + $0x48] sm:$0xff]
        %v7511 = vld [vmem:[#allocation3 + $0x50] sm:$0xff]
        %v7512 = vld [vmem:[#allocation3 + $0x58] sm:$0xff]
        %v7513 = vld [vmem:[#allocation3 + $0x60] sm:$0xff]
        %v7514 = vld [vmem:[#allocation3 + $0x68] sm:$0xff]
        %v7515 = vld [vmem:[#allocation3 + $0x70] sm:$0xff]
        %v7516 = vld [vmem:[#allocation3 + $0x78] sm:$0xff]
        %v7517 = vpack.c.bf16 %v7502, %v7501
        %v7518 = vpack.c.bf16 %v7504, %v7503
        %v7519 = vpack.c.bf16 %v7506, %v7505
        %v7520 = vpack.c.bf16 %v7508, %v7507
        %v7521 = vpack.c.bf16 %v7510, %v7509
        %v7522 = vpack.c.bf16 %v7512, %v7511
        %v7523 = vpack.c.bf16 %v7514, %v7513
        %v7524 = vpack.c.bf16 %v7516, %v7515
        %v7525 = vld [vmem:[#allocation10] sm:$0xf]
        %v7526 = vld [vmem:[#allocation10 + $0x4] sm:$0xf]
        %v7527 = vld [vmem:[#allocation10 + $0x8] sm:$0xf]
        %v7528 = vld [vmem:[#allocation10 + $0xc] sm:$0xf]
        %v7529 = vld [vmem:[#allocation10 + $0x10] sm:$0xf]
        %v7530 = vld [vmem:[#allocation10 + $0x14] sm:$0xf]
        %v7531 = vld [vmem:[#allocation10 + $0x18] sm:$0xf]
        %v7532 = vld [vmem:[#allocation10 + $0x1c] sm:$0xf]
        %v7533 = vld [vmem:[#allocation10 + $0x20] sm:$0xf]
        %v7534 = vld [vmem:[#allocation10 + $0x24] sm:$0xf]
        %v7535 = vld [vmem:[#allocation10 + $0x28] sm:$0xf]
        %v7536 = vld [vmem:[#allocation10 + $0x2c] sm:$0xf]
        %v7537 = vld [vmem:[#allocation10 + $0x30] sm:$0xf]
        %v7538 = vld [vmem:[#allocation10 + $0x34] sm:$0xf]
        %v7539 = vld [vmem:[#allocation10 + $0x38] sm:$0xf]
        %v7540 = vld [vmem:[#allocation10 + $0x3c] sm:$0xf]
        %v7541 = vld [vmem:[%s4] sm:$0x1]
        %v7543 = vperm.slane %v7541, 0
        %v7561 = vunpack.c.l.b16 %v7525
        %v7562 = vunpack.c.l.b16 %v7526
        %v7563 = vunpack.c.l.b16 %v7527
        %v7564 = vunpack.c.l.b16 %v7528
        %v7565 = vunpack.c.l.b16 %v7529
        %v7566 = vunpack.c.l.b16 %v7530
        %v7567 = vunpack.c.l.b16 %v7531
        %v7568 = vunpack.c.l.b16 %v7532
        %v7569 = vunpack.c.l.b16 %v7533
        %v7570 = vunpack.c.l.b16 %v7534
        %v7571 = vunpack.c.l.b16 %v7535
        %v7572 = vunpack.c.l.b16 %v7536
        %v7573 = vunpack.c.l.b16 %v7537
        %v7574 = vunpack.c.l.b16 %v7538
        %v7575 = vunpack.c.l.b16 %v7539
        %v7576 = vunpack.c.l.b16 %v7540
        %v7577 = vpack.c.b16 %v7562, %v7561
        %v7578 = vpack.c.b16 %v7564, %v7563
        %v7579 = vpack.c.b16 %v7566, %v7565
        %v7580 = vpack.c.b16 %v7568, %v7567
        %v7581 = vpack.c.b16 %v7570, %v7569
        %v7582 = vpack.c.b16 %v7572, %v7571
        %v7583 = vpack.c.b16 %v7574, %v7573
        %v7584 = vpack.c.b16 %v7576, %v7575
        %7593 = vmatpush.bf16.msra.mxu0 %v7584
        %7594 = vmatpush.bf16.msra.mxu0 %v7583
        %7595 = vmatpush.bf16.msra.mxu0 %v7582
        %7596 = vmatpush.bf16.msra.mxu0 %v7581
        %7597 = vmatpush.bf16.msra.mxu0 %v7580
        %7598 = vmatpush.bf16.msra.mxu0 %v7579
        %7599 = vmatpush.bf16.msra.mxu0 %v7578
        %7600 = vmatpush.bf16.msra.mxu0 %v7577
        %7601 = vmatmul.bf16.gmra.mxu0 %v7517
        %v7602 = vpop.f32.mrf.mxu0
        %v7603 = vadd.f32 %v7543, %v7602
        %v7604 = vpop.f32.mrf.mxu0
        %v7605 = vadd.f32 %v7543, %v7604
        %7606 = vmatmul.bf16.gmra.mxu0 %v7518
        %v7607 = vpop.f32.mrf.mxu0
        %v7608 = vadd.f32 %v7543, %v7607
        %v7609 = vpop.f32.mrf.mxu0
        %v7610 = vadd.f32 %v7543, %v7609
        %7611 = vmatmul.bf16.gmra.mxu0 %v7519
        %v7612 = vpop.f32.mrf.mxu0
        %v7613 = vadd.f32 %v7543, %v7612
        %v7614 = vpop.f32.mrf.mxu0
        %v7615 = vadd.f32 %v7543, %v7614
        %7616 = vmatmul.bf16.gmra.mxu0 %v7520
        %v7617 = vpop.f32.mrf.mxu0
        %v7618 = vadd.f32 %v7543, %v7617
        %v7619 = vpop.f32.mrf.mxu0
        %v7620 = vadd.f32 %v7543, %v7619
        %7621 = vmatmul.bf16.gmra.mxu0 %v7521
        %v7622 = vpop.f32.mrf.mxu0
        %v7623 = vadd.f32 %v7543, %v7622
        %v7624 = vpop.f32.mrf.mxu0
        %v7625 = vadd.f32 %v7543, %v7624
        %7626 = vmatmul.bf16.gmra.mxu0 %v7522
        %v7627 = vpop.f32.mrf.mxu0
        %v7628 = vadd.f32 %v7543, %v7627
        %v7629 = vpop.f32.mrf.mxu0
        %v7630 = vadd.f32 %v7543, %v7629
        %7631 = vmatmul.bf16.gmra.mxu0 %v7523
        %v7632 = vpop.f32.mrf.mxu0
        %v7633 = vadd.f32 %v7543, %v7632
        %v7634 = vpop.f32.mrf.mxu0
        %v7635 = vadd.f32 %v7543, %v7634
        %7636 = vmatmul.bf16.gmra.mxu0 %v7524
        %v7637 = vpop.f32.mrf.mxu0
        %v7638 = vadd.f32 %v7543, %v7637
        %v7639 = vpop.f32.mrf.mxu0
        %v7640 = vadd.f32 %v7543, %v7639
        %7641 = vdwg.mxu0
        %v7642 = vadd.f32 %v7603, %v546
        %v7643 = vadd.f32 %v7605, %v547
        %v7644 = vadd.f32 %v7608, %v548
        %v7645 = vadd.f32 %v7610, %v549
        %v7646 = vadd.f32 %v7613, %v550
        %v7647 = vadd.f32 %v7615, %v551
        %v7648 = vadd.f32 %v7618, %v552
        %v7649 = vadd.f32 %v7620, %v553
        %v7650 = vadd.f32 %v7623, %v554
        %v7651 = vadd.f32 %v7625, %v555
        %v7652 = vadd.f32 %v7628, %v556
        %v7653 = vadd.f32 %v7630, %v557
        %v7654 = vadd.f32 %v7633, %v558
        %v7655 = vadd.f32 %v7635, %v559
        %v7656 = vadd.f32 %v7638, %v560
        %v7657 = vadd.f32 %v7640, %v561
        %v7658 = vld [vmem:[%s5] sm:$0x1]
        %v7659 = vld [vmem:[%s6] sm:$0x1]
        %7660 = vadd.xlane.f32.xlu0 %v7642
        %v7661 = vpop.xlane.xlu0 %7660
        %7662 = vadd.xlane.f32.xlu0 %v7643
        %v7663 = vpop.xlane.xlu0 %7662
        %7664 = vadd.xlane.f32.xlu0 %v7644
        %v7665 = vpop.xlane.xlu0 %7664
        %7666 = vadd.xlane.f32.xlu0 %v7645
        %v7667 = vpop.xlane.xlu0 %7666
        %7668 = vadd.xlane.f32.xlu0 %v7646
        %v7669 = vpop.xlane.xlu0 %7668
        %7670 = vadd.xlane.f32.xlu0 %v7647
        %v7671 = vpop.xlane.xlu0 %7670
        %7672 = vadd.xlane.f32.xlu0 %v7648
        %v7673 = vpop.xlane.xlu0 %7672
        %7674 = vadd.xlane.f32.xlu0 %v7649
        %v7675 = vpop.xlane.xlu0 %7674
        %7676 = vadd.xlane.f32.xlu0 %v7650
        %v7677 = vpop.xlane.xlu0 %7676
        %7678 = vadd.xlane.f32.xlu0 %v7651
        %v7679 = vpop.xlane.xlu0 %7678
        %7680 = vadd.xlane.f32.xlu0 %v7652
        %v7681 = vpop.xlane.xlu0 %7680
        %7682 = vadd.xlane.f32.xlu0 %v7653
        %v7683 = vpop.xlane.xlu0 %7682
        %7684 = vadd.xlane.f32.xlu0 %v7654
        %v7685 = vpop.xlane.xlu0 %7684
        %7686 = vadd.xlane.f32.xlu0 %v7655
        %v7687 = vpop.xlane.xlu0 %7686
        %7688 = vadd.xlane.f32.xlu0 %v7656
        %v7689 = vpop.xlane.xlu0 %7688
        %7690 = vadd.xlane.f32.xlu0 %v7657
        %v7691 = vpop.xlane.xlu0 %7690
        %v7692 = vrcp.pop 128.0
        %v7693 = vmul.f32 128.0, %v7692
        %v7694 = vsub.f32 1.0, %v7693
        %v7695 = vmul.f32 %v7692, %v7694
        %v7696 = vadd.f32 %v7692, %v7695
        %vm7697 = vweird.f32 %v7692
        %v7698 = vsel %vm7697, %v7692, %v7696
        %v7699 = vmul.f32 %v7661, %v7698
        %v7700 = vmul.f32 %v7663, %v7698
        %v7701 = vmul.f32 %v7665, %v7698
        %v7702 = vmul.f32 %v7667, %v7698
        %v7703 = vmul.f32 %v7669, %v7698
        %v7704 = vmul.f32 %v7671, %v7698
        %v7705 = vmul.f32 %v7673, %v7698
        %v7706 = vmul.f32 %v7675, %v7698
        %v7707 = vmul.f32 %v7677, %v7698
        %v7708 = vmul.f32 %v7679, %v7698
        %v7709 = vmul.f32 %v7681, %v7698
        %v7710 = vmul.f32 %v7683, %v7698
        %v7711 = vmul.f32 %v7685, %v7698
        %v7712 = vmul.f32 %v7687, %v7698
        %v7713 = vmul.f32 %v7689, %v7698
        %v7714 = vmul.f32 %v7691, %v7698
        %v7715 = vsub.f32 %v7642, %v7699
        %v7716 = vsub.f32 %v7643, %v7700
        %v7717 = vsub.f32 %v7644, %v7701
        %v7718 = vsub.f32 %v7645, %v7702
        %v7719 = vsub.f32 %v7646, %v7703
        %v7720 = vsub.f32 %v7647, %v7704
        %v7721 = vsub.f32 %v7648, %v7705
        %v7722 = vsub.f32 %v7649, %v7706
        %v7723 = vsub.f32 %v7650, %v7707
        %v7724 = vsub.f32 %v7651, %v7708
        %v7725 = vsub.f32 %v7652, %v7709
        %v7726 = vsub.f32 %v7653, %v7710
        %v7727 = vsub.f32 %v7654, %v7711
        %v7728 = vsub.f32 %v7655, %v7712
        %v7729 = vsub.f32 %v7656, %v7713
        %v7730 = vsub.f32 %v7657, %v7714
        %v7731 = vmul.f32 %v7715, %v7715
        %v7732 = vmul.f32 %v7716, %v7716
        %v7733 = vmul.f32 %v7717, %v7717
        %v7734 = vmul.f32 %v7718, %v7718
        %v7735 = vmul.f32 %v7719, %v7719
        %v7736 = vmul.f32 %v7720, %v7720
        %v7737 = vmul.f32 %v7721, %v7721
        %v7738 = vmul.f32 %v7722, %v7722
        %v7739 = vmul.f32 %v7723, %v7723
        %v7740 = vmul.f32 %v7724, %v7724
        %v7741 = vmul.f32 %v7725, %v7725
        %v7742 = vmul.f32 %v7726, %v7726
        %v7743 = vmul.f32 %v7727, %v7727
        %v7744 = vmul.f32 %v7728, %v7728
        %v7745 = vmul.f32 %v7729, %v7729
        %v7746 = vmul.f32 %v7730, %v7730
        %7747 = vadd.xlane.f32.xlu0 %v7731
        %v7748 = vpop.xlane.xlu0 %7747
        %7749 = vadd.xlane.f32.xlu0 %v7732
        %v7750 = vpop.xlane.xlu0 %7749
        %7751 = vadd.xlane.f32.xlu0 %v7733
        %v7752 = vpop.xlane.xlu0 %7751
        %7753 = vadd.xlane.f32.xlu0 %v7734
        %v7754 = vpop.xlane.xlu0 %7753
        %7755 = vadd.xlane.f32.xlu0 %v7735
        %v7756 = vpop.xlane.xlu0 %7755
        %7757 = vadd.xlane.f32.xlu0 %v7736
        %v7758 = vpop.xlane.xlu0 %7757
        %7759 = vadd.xlane.f32.xlu0 %v7737
        %v7760 = vpop.xlane.xlu0 %7759
        %7761 = vadd.xlane.f32.xlu0 %v7738
        %v7762 = vpop.xlane.xlu0 %7761
        %7763 = vadd.xlane.f32.xlu0 %v7739
        %v7764 = vpop.xlane.xlu0 %7763
        %7765 = vadd.xlane.f32.xlu0 %v7740
        %v7766 = vpop.xlane.xlu0 %7765
        %7767 = vadd.xlane.f32.xlu0 %v7741
        %v7768 = vpop.xlane.xlu0 %7767
        %7769 = vadd.xlane.f32.xlu0 %v7742
        %v7770 = vpop.xlane.xlu0 %7769
        %7771 = vadd.xlane.f32.xlu0 %v7743
        %v7772 = vpop.xlane.xlu0 %7771
        %7773 = vadd.xlane.f32.xlu0 %v7744
        %v7774 = vpop.xlane.xlu0 %7773
        %7775 = vadd.xlane.f32.xlu0 %v7745
        %v7776 = vpop.xlane.xlu0 %7775
        %7777 = vadd.xlane.f32.xlu0 %v7746
        %v7778 = vpop.xlane.xlu0 %7777
        %v7779 = vmul.f32 %v7748, %v7698
        %v7780 = vmul.f32 %v7750, %v7698
        %v7781 = vmul.f32 %v7752, %v7698
        %v7782 = vmul.f32 %v7754, %v7698
        %v7783 = vmul.f32 %v7756, %v7698
        %v7784 = vmul.f32 %v7758, %v7698
        %v7785 = vmul.f32 %v7760, %v7698
        %v7786 = vmul.f32 %v7762, %v7698
        %v7787 = vmul.f32 %v7764, %v7698
        %v7788 = vmul.f32 %v7766, %v7698
        %v7789 = vmul.f32 %v7768, %v7698
        %v7790 = vmul.f32 %v7770, %v7698
        %v7791 = vmul.f32 %v7772, %v7698
        %v7792 = vmul.f32 %v7774, %v7698
        %v7793 = vmul.f32 %v7776, %v7698
        %v7794 = vmul.f32 %v7778, %v7698
        %v7795 = vadd.f32 %v7779, 1e-05
        %v7796 = vadd.f32 %v7780, 1e-05
        %v7797 = vadd.f32 %v7781, 1e-05
        %v7798 = vadd.f32 %v7782, 1e-05
        %v7799 = vadd.f32 %v7783, 1e-05
        %v7800 = vadd.f32 %v7784, 1e-05
        %v7801 = vadd.f32 %v7785, 1e-05
        %v7802 = vadd.f32 %v7786, 1e-05
        %v7803 = vadd.f32 %v7787, 1e-05
        %v7804 = vadd.f32 %v7788, 1e-05
        %v7805 = vadd.f32 %v7789, 1e-05
        %v7806 = vadd.f32 %v7790, 1e-05
        %v7807 = vadd.f32 %v7791, 1e-05
        %v7808 = vadd.f32 %v7792, 1e-05
        %v7809 = vadd.f32 %v7793, 1e-05
        %v7810 = vadd.f32 %v7794, 1e-05
        %v7811 = vrsqrt.pop %v7795
        %v7812 = vmul.f32 %v7811, %v7795
        %v7813 = vmul.f32 %v7812, %v7811
        %v7814 = vmul.f32 0.5, %v7813
        %v7815 = vsub.f32 1.5, %v7814
        %v7816 = vmul.f32 %v7811, %v7815
        %vm7817 = vweird.f32 %v7795
        %vm7818 = vweird.f32 %v7811
        %vm7819 = vmor %vm7817, %vm7818
        %v7820 = vsel %vm7819, %v7811, %v7816
        %v7821 = vrsqrt.pop %v7796
        %v7822 = vmul.f32 %v7821, %v7796
        %v7823 = vmul.f32 %v7822, %v7821
        %v7824 = vmul.f32 0.5, %v7823
        %v7825 = vsub.f32 1.5, %v7824
        %v7826 = vmul.f32 %v7821, %v7825
        %vm7827 = vweird.f32 %v7796
        %vm7828 = vweird.f32 %v7821
        %vm7829 = vmor %vm7827, %vm7828
        %v7830 = vsel %vm7829, %v7821, %v7826
        %v7831 = vrsqrt.pop %v7797
        %v7832 = vmul.f32 %v7831, %v7797
        %v7833 = vmul.f32 %v7832, %v7831
        %v7834 = vmul.f32 0.5, %v7833
        %v7835 = vsub.f32 1.5, %v7834
        %v7836 = vmul.f32 %v7831, %v7835
        %vm7837 = vweird.f32 %v7797
        %vm7838 = vweird.f32 %v7831
        %vm7839 = vmor %vm7837, %vm7838
        %v7840 = vsel %vm7839, %v7831, %v7836
        %v7841 = vrsqrt.pop %v7798
        %v7842 = vmul.f32 %v7841, %v7798
        %v7843 = vmul.f32 %v7842, %v7841
        %v7844 = vmul.f32 0.5, %v7843
        %v7845 = vsub.f32 1.5, %v7844
        %v7846 = vmul.f32 %v7841, %v7845
        %vm7847 = vweird.f32 %v7798
        %vm7848 = vweird.f32 %v7841
        %vm7849 = vmor %vm7847, %vm7848
        %v7850 = vsel %vm7849, %v7841, %v7846
        %v7851 = vrsqrt.pop %v7799
        %v7852 = vmul.f32 %v7851, %v7799
        %v7853 = vmul.f32 %v7852, %v7851
        %v7854 = vmul.f32 0.5, %v7853
        %v7855 = vsub.f32 1.5, %v7854
        %v7856 = vmul.f32 %v7851, %v7855
        %vm7857 = vweird.f32 %v7799
        %vm7858 = vweird.f32 %v7851
        %vm7859 = vmor %vm7857, %vm7858
        %v7860 = vsel %vm7859, %v7851, %v7856
        %v7861 = vrsqrt.pop %v7800
        %v7862 = vmul.f32 %v7861, %v7800
        %v7863 = vmul.f32 %v7862, %v7861
        %v7864 = vmul.f32 0.5, %v7863
        %v7865 = vsub.f32 1.5, %v7864
        %v7866 = vmul.f32 %v7861, %v7865
        %vm7867 = vweird.f32 %v7800
        %vm7868 = vweird.f32 %v7861
        %vm7869 = vmor %vm7867, %vm7868
        %v7870 = vsel %vm7869, %v7861, %v7866
        %v7871 = vrsqrt.pop %v7801
        %v7872 = vmul.f32 %v7871, %v7801
        %v7873 = vmul.f32 %v7872, %v7871
        %v7874 = vmul.f32 0.5, %v7873
        %v7875 = vsub.f32 1.5, %v7874
        %v7876 = vmul.f32 %v7871, %v7875
        %vm7877 = vweird.f32 %v7801
        %vm7878 = vweird.f32 %v7871
        %vm7879 = vmor %vm7877, %vm7878
        %v7880 = vsel %vm7879, %v7871, %v7876
        %v7881 = vrsqrt.pop %v7802
        %v7882 = vmul.f32 %v7881, %v7802
        %v7883 = vmul.f32 %v7882, %v7881
        %v7884 = vmul.f32 0.5, %v7883
        %v7885 = vsub.f32 1.5, %v7884
        %v7886 = vmul.f32 %v7881, %v7885
        %vm7887 = vweird.f32 %v7802
        %vm7888 = vweird.f32 %v7881
        %vm7889 = vmor %vm7887, %vm7888
        %v7890 = vsel %vm7889, %v7881, %v7886
        %v7891 = vrsqrt.pop %v7803
        %v7892 = vmul.f32 %v7891, %v7803
        %v7893 = vmul.f32 %v7892, %v7891
        %v7894 = vmul.f32 0.5, %v7893
        %v7895 = vsub.f32 1.5, %v7894
        %v7896 = vmul.f32 %v7891, %v7895
        %vm7897 = vweird.f32 %v7803
        %vm7898 = vweird.f32 %v7891
        %vm7899 = vmor %vm7897, %vm7898
        %v7900 = vsel %vm7899, %v7891, %v7896
        %v7901 = vrsqrt.pop %v7804
        %v7902 = vmul.f32 %v7901, %v7804
        %v7903 = vmul.f32 %v7902, %v7901
        %v7904 = vmul.f32 0.5, %v7903
        %v7905 = vsub.f32 1.5, %v7904
        %v7906 = vmul.f32 %v7901, %v7905
        %vm7907 = vweird.f32 %v7804
        %vm7908 = vweird.f32 %v7901
        %vm7909 = vmor %vm7907, %vm7908
        %v7910 = vsel %vm7909, %v7901, %v7906
        %v7911 = vrsqrt.pop %v7805
        %v7912 = vmul.f32 %v7911, %v7805
        %v7913 = vmul.f32 %v7912, %v7911
        %v7914 = vmul.f32 0.5, %v7913
        %v7915 = vsub.f32 1.5, %v7914
        %v7916 = vmul.f32 %v7911, %v7915
        %vm7917 = vweird.f32 %v7805
        %vm7918 = vweird.f32 %v7911
        %vm7919 = vmor %vm7917, %vm7918
        %v7920 = vsel %vm7919, %v7911, %v7916
        %v7921 = vrsqrt.pop %v7806
        %v7922 = vmul.f32 %v7921, %v7806
        %v7923 = vmul.f32 %v7922, %v7921
        %v7924 = vmul.f32 0.5, %v7923
        %v7925 = vsub.f32 1.5, %v7924
        %v7926 = vmul.f32 %v7921, %v7925
        %vm7927 = vweird.f32 %v7806
        %vm7928 = vweird.f32 %v7921
        %vm7929 = vmor %vm7927, %vm7928
        %v7930 = vsel %vm7929, %v7921, %v7926
        %v7931 = vrsqrt.pop %v7807
        %v7932 = vmul.f32 %v7931, %v7807
        %v7933 = vmul.f32 %v7932, %v7931
        %v7934 = vmul.f32 0.5, %v7933
        %v7935 = vsub.f32 1.5, %v7934
        %v7936 = vmul.f32 %v7931, %v7935
        %vm7937 = vweird.f32 %v7807
        %vm7938 = vweird.f32 %v7931
        %vm7939 = vmor %vm7937, %vm7938
        %v7940 = vsel %vm7939, %v7931, %v7936
        %v7941 = vrsqrt.pop %v7808
        %v7942 = vmul.f32 %v7941, %v7808
        %v7943 = vmul.f32 %v7942, %v7941
        %v7944 = vmul.f32 0.5, %v7943
        %v7945 = vsub.f32 1.5, %v7944
        %v7946 = vmul.f32 %v7941, %v7945
        %vm7947 = vweird.f32 %v7808
        %vm7948 = vweird.f32 %v7941
        %vm7949 = vmor %vm7947, %vm7948
        %v7950 = vsel %vm7949, %v7941, %v7946
        %v7951 = vrsqrt.pop %v7809
        %v7952 = vmul.f32 %v7951, %v7809
        %v7953 = vmul.f32 %v7952, %v7951
        %v7954 = vmul.f32 0.5, %v7953
        %v7955 = vsub.f32 1.5, %v7954
        %v7956 = vmul.f32 %v7951, %v7955
        %vm7957 = vweird.f32 %v7809
        %vm7958 = vweird.f32 %v7951
        %vm7959 = vmor %vm7957, %vm7958
        %v7960 = vsel %vm7959, %v7951, %v7956
        %v7961 = vrsqrt.pop %v7810
        %v7962 = vmul.f32 %v7961, %v7810
        %v7963 = vmul.f32 %v7962, %v7961
        %v7964 = vmul.f32 0.5, %v7963
        %v7965 = vsub.f32 1.5, %v7964
        %v7966 = vmul.f32 %v7961, %v7965
        %vm7967 = vweird.f32 %v7810
        %vm7968 = vweird.f32 %v7961
        %vm7969 = vmor %vm7967, %vm7968
        %v7970 = vsel %vm7969, %v7961, %v7966
        %v7971 = vmul.f32 %v7715, %v7820
        %v7972 = vmul.f32 %v7716, %v7830
        %v7973 = vmul.f32 %v7717, %v7840
        %v7974 = vmul.f32 %v7718, %v7850
        %v7975 = vmul.f32 %v7719, %v7860
        %v7976 = vmul.f32 %v7720, %v7870
        %v7977 = vmul.f32 %v7721, %v7880
        %v7978 = vmul.f32 %v7722, %v7890
        %v7979 = vmul.f32 %v7723, %v7900
        %v7980 = vmul.f32 %v7724, %v7910
        %v7981 = vmul.f32 %v7725, %v7920
        %v7982 = vmul.f32 %v7726, %v7930
        %v7983 = vmul.f32 %v7727, %v7940
        %v7984 = vmul.f32 %v7728, %v7950
        %v7985 = vmul.f32 %v7729, %v7960
        %v7986 = vmul.f32 %v7730, %v7970
        %v7988 = vperm.slane %v7658, 0
        %v7990 = vmul.f32 %v7971, %v7988
        %v7991 = vmul.f32 %v7972, %v7988
        %v7992 = vmul.f32 %v7973, %v7988
        %v7993 = vmul.f32 %v7974, %v7988
        %v7994 = vmul.f32 %v7975, %v7988
        %v7995 = vmul.f32 %v7976, %v7988
        %v7996 = vmul.f32 %v7977, %v7988
        %v7997 = vmul.f32 %v7978, %v7988
        %v7998 = vmul.f32 %v7979, %v7988
        %v7999 = vmul.f32 %v7980, %v7988
        %v8000 = vmul.f32 %v7981, %v7988
        %v8001 = vmul.f32 %v7982, %v7988
        %v8002 = vmul.f32 %v7983, %v7988
        %v8003 = vmul.f32 %v7984, %v7988
        %v8004 = vmul.f32 %v7985, %v7988
        %v8005 = vmul.f32 %v7986, %v7988
        %v8007 = vperm.slane %v7659, 0
        %v8009 = vadd.f32 %v7990, %v8007
        %v8010 = vadd.f32 %v7991, %v8007
        %v8011 = vadd.f32 %v7992, %v8007
        %v8012 = vadd.f32 %v7993, %v8007
        %v8013 = vadd.f32 %v7994, %v8007
        %v8014 = vadd.f32 %v7995, %v8007
        %v8015 = vadd.f32 %v7996, %v8007
        %v8016 = vadd.f32 %v7997, %v8007
        %v8017 = vadd.f32 %v7998, %v8007
        %v8018 = vadd.f32 %v7999, %v8007
        %v8019 = vadd.f32 %v8000, %v8007
        %v8020 = vadd.f32 %v8001, %v8007
        %v8021 = vadd.f32 %v8002, %v8007
        %v8022 = vadd.f32 %v8003, %v8007
        %v8023 = vadd.f32 %v8004, %v8007
        %v8024 = vadd.f32 %v8005, %v8007
        %v8025 = vpack.c.bf16 %v8010, %v8009
        %v8026 = vpack.c.bf16 %v8012, %v8011
        %v8027 = vpack.c.bf16 %v8014, %v8013
        %v8028 = vpack.c.bf16 %v8016, %v8015
        %v8029 = vpack.c.bf16 %v8018, %v8017
        %v8030 = vpack.c.bf16 %v8020, %v8019
        %v8031 = vpack.c.bf16 %v8022, %v8021
        %v8032 = vpack.c.bf16 %v8024, %v8023
        %v8033 = vld [vmem:[#allocation12] sm:$0xff]
        %v8034 = vld [vmem:[#allocation12 + $0x8] sm:$0xff]
        %v8035 = vld [vmem:[#allocation12 + $0x10] sm:$0xff]
        %v8036 = vld [vmem:[#allocation12 + $0x18] sm:$0xff]
        %v8037 = vld [vmem:[#allocation12 + $0x20] sm:$0xff]
        %v8038 = vld [vmem:[#allocation12 + $0x28] sm:$0xff]
        %v8039 = vld [vmem:[#allocation12 + $0x30] sm:$0xff]
        %v8040 = vld [vmem:[#allocation12 + $0x38] sm:$0xff]
        %v8041 = vld [vmem:[#allocation12 + $0x40] sm:$0xff]
        %v8042 = vld [vmem:[#allocation12 + $0x48] sm:$0xff]
        %v8043 = vld [vmem:[#allocation12 + $0x50] sm:$0xff]
        %v8044 = vld [vmem:[#allocation12 + $0x58] sm:$0xff]
        %v8045 = vld [vmem:[#allocation12 + $0x60] sm:$0xff]
        %v8046 = vld [vmem:[#allocation12 + $0x68] sm:$0xff]
        %v8047 = vld [vmem:[#allocation12 + $0x70] sm:$0xff]
        %v8048 = vld [vmem:[#allocation12 + $0x78] sm:$0xff]
        %v8049 = vld [vmem:[#allocation12 + $0x80] sm:$0xff]
        %v8050 = vld [vmem:[#allocation12 + $0x88] sm:$0xff]
        %v8051 = vld [vmem:[#allocation12 + $0x90] sm:$0xff]
        %v8052 = vld [vmem:[#allocation12 + $0x98] sm:$0xff]
        %v8053 = vld [vmem:[#allocation12 + $0xa0] sm:$0xff]
        %v8054 = vld [vmem:[#allocation12 + $0xa8] sm:$0xff]
        %v8055 = vld [vmem:[#allocation12 + $0xb0] sm:$0xff]
        %v8056 = vld [vmem:[#allocation12 + $0xb8] sm:$0xff]
        %v8057 = vld [vmem:[#allocation12 + $0xc0] sm:$0xff]
        %v8058 = vld [vmem:[#allocation12 + $0xc8] sm:$0xff]
        %v8059 = vld [vmem:[#allocation12 + $0xd0] sm:$0xff]
        %v8060 = vld [vmem:[#allocation12 + $0xd8] sm:$0xff]
        %v8061 = vld [vmem:[#allocation12 + $0xe0] sm:$0xff]
        %v8062 = vld [vmem:[#allocation12 + $0xe8] sm:$0xff]
        %v8063 = vld [vmem:[#allocation12 + $0xf0] sm:$0xff]
        %v8064 = vld [vmem:[#allocation12 + $0xf8] sm:$0xff]
        %v8065 = vld [vmem:[%s8] sm:$0xf]
        %v8067 = vperm.slane %v8065, 0
        %v8068 = vperm.slane %v8065, 1
        %v8069 = vperm.slane %v8065, 2
        %v8070 = vperm.slane %v8065, 3
        %v8107 = vunpack.c.l.b16 %v8033
        %v8108 = vunpack.c.h.b16 %v8033
        %v8109 = vunpack.c.l.b16 %v8034
        %v8110 = vunpack.c.h.b16 %v8034
        %v8111 = vunpack.c.l.b16 %v8035
        %v8112 = vunpack.c.h.b16 %v8035
        %v8113 = vunpack.c.l.b16 %v8036
        %v8114 = vunpack.c.h.b16 %v8036
        %v8115 = vunpack.c.l.b16 %v8037
        %v8116 = vunpack.c.h.b16 %v8037
        %v8117 = vunpack.c.l.b16 %v8038
        %v8118 = vunpack.c.h.b16 %v8038
        %v8119 = vunpack.c.l.b16 %v8039
        %v8120 = vunpack.c.h.b16 %v8039
        %v8121 = vunpack.c.l.b16 %v8040
        %v8122 = vunpack.c.h.b16 %v8040
        %v8123 = vunpack.c.l.b16 %v8041
        %v8124 = vunpack.c.h.b16 %v8041
        %v8125 = vunpack.c.l.b16 %v8042
        %v8126 = vunpack.c.h.b16 %v8042
        %v8127 = vunpack.c.l.b16 %v8043
        %v8128 = vunpack.c.h.b16 %v8043
        %v8129 = vunpack.c.l.b16 %v8044
        %v8130 = vunpack.c.h.b16 %v8044
        %v8131 = vunpack.c.l.b16 %v8045
        %v8132 = vunpack.c.h.b16 %v8045
        %v8133 = vunpack.c.l.b16 %v8046
        %v8134 = vunpack.c.h.b16 %v8046
        %v8135 = vunpack.c.l.b16 %v8047
        %v8136 = vunpack.c.h.b16 %v8047
        %v8137 = vunpack.c.l.b16 %v8048
        %v8138 = vunpack.c.h.b16 %v8048
        %v8139 = vunpack.c.l.b16 %v8049
        %v8140 = vunpack.c.h.b16 %v8049
        %v8141 = vunpack.c.l.b16 %v8050
        %v8142 = vunpack.c.h.b16 %v8050
        %v8143 = vunpack.c.l.b16 %v8051
        %v8144 = vunpack.c.h.b16 %v8051
        %v8145 = vunpack.c.l.b16 %v8052
        %v8146 = vunpack.c.h.b16 %v8052
        %v8147 = vunpack.c.l.b16 %v8053
        %v8148 = vunpack.c.h.b16 %v8053
        %v8149 = vunpack.c.l.b16 %v8054
        %v8150 = vunpack.c.h.b16 %v8054
        %v8151 = vunpack.c.l.b16 %v8055
        %v8152 = vunpack.c.h.b16 %v8055
        %v8153 = vunpack.c.l.b16 %v8056
        %v8154 = vunpack.c.h.b16 %v8056
        %v8155 = vunpack.c.l.b16 %v8057
        %v8156 = vunpack.c.h.b16 %v8057
        %v8157 = vunpack.c.l.b16 %v8058
        %v8158 = vunpack.c.h.b16 %v8058
        %v8159 = vunpack.c.l.b16 %v8059
        %v8160 = vunpack.c.h.b16 %v8059
        %v8161 = vunpack.c.l.b16 %v8060
        %v8162 = vunpack.c.h.b16 %v8060
        %v8163 = vunpack.c.l.b16 %v8061
        %v8164 = vunpack.c.h.b16 %v8061
        %v8165 = vunpack.c.l.b16 %v8062
        %v8166 = vunpack.c.h.b16 %v8062
        %v8167 = vunpack.c.l.b16 %v8063
        %v8168 = vunpack.c.h.b16 %v8063
        %v8169 = vunpack.c.l.b16 %v8064
        %v8170 = vunpack.c.h.b16 %v8064
        %v8171 = vpack.c.b16 %v8111, %v8107
        %v8172 = vpack.c.b16 %v8112, %v8108
        %v8173 = vpack.c.b16 %v8113, %v8109
        %v8174 = vpack.c.b16 %v8114, %v8110
        %v8175 = vpack.c.b16 %v8119, %v8115
        %v8176 = vpack.c.b16 %v8120, %v8116
        %v8177 = vpack.c.b16 %v8121, %v8117
        %v8178 = vpack.c.b16 %v8122, %v8118
        %v8179 = vpack.c.b16 %v8127, %v8123
        %v8180 = vpack.c.b16 %v8128, %v8124
        %v8181 = vpack.c.b16 %v8129, %v8125
        %v8182 = vpack.c.b16 %v8130, %v8126
        %v8183 = vpack.c.b16 %v8135, %v8131
        %v8184 = vpack.c.b16 %v8136, %v8132
        %v8185 = vpack.c.b16 %v8137, %v8133
        %v8186 = vpack.c.b16 %v8138, %v8134
        %v8187 = vpack.c.b16 %v8143, %v8139
        %v8188 = vpack.c.b16 %v8144, %v8140
        %v8189 = vpack.c.b16 %v8145, %v8141
        %v8190 = vpack.c.b16 %v8146, %v8142
        %v8191 = vpack.c.b16 %v8151, %v8147
        %v8192 = vpack.c.b16 %v8152, %v8148
        %v8193 = vpack.c.b16 %v8153, %v8149
        %v8194 = vpack.c.b16 %v8154, %v8150
        %v8195 = vpack.c.b16 %v8159, %v8155
        %v8196 = vpack.c.b16 %v8160, %v8156
        %v8197 = vpack.c.b16 %v8161, %v8157
        %v8198 = vpack.c.b16 %v8162, %v8158
        %v8199 = vpack.c.b16 %v8167, %v8163
        %v8200 = vpack.c.b16 %v8168, %v8164
        %v8201 = vpack.c.b16 %v8169, %v8165
        %v8202 = vpack.c.b16 %v8170, %v8166
        %8235 = vmatpush.bf16.msra.mxu0 %v8199
        %8236 = vmatpush.bf16.msra.mxu0 %v8195
        %8237 = vmatpush.bf16.msra.mxu0 %v8191
        %8238 = vmatpush.bf16.msra.mxu0 %v8187
        %8239 = vmatpush.bf16.msra.mxu0 %v8183
        %8240 = vmatpush.bf16.msra.mxu0 %v8179
        %8241 = vmatpush.bf16.msra.mxu0 %v8175
        %8242 = vmatpush.bf16.msra.mxu0 %v8171
        %8243 = vmatmul.bf16.gmra.mxu0 %v8025
        %v8244 = vpop.f32.mrf.mxu0
        %v8245 = vadd.f32 %v8067, %v8244
        %v8246 = vpop.f32.mrf.mxu0
        %v8247 = vadd.f32 %v8067, %v8246
        %8248 = vmatmul.bf16.gmra.mxu0 %v8026
        %v8249 = vpop.f32.mrf.mxu0
        %v8250 = vadd.f32 %v8067, %v8249
        %v8251 = vpop.f32.mrf.mxu0
        %v8252 = vadd.f32 %v8067, %v8251
        %8253 = vmatmul.bf16.gmra.mxu0 %v8027
        %v8254 = vpop.f32.mrf.mxu0
        %v8255 = vadd.f32 %v8067, %v8254
        %v8256 = vpop.f32.mrf.mxu0
        %v8257 = vadd.f32 %v8067, %v8256
        %8258 = vmatmul.bf16.gmra.mxu0 %v8028
        %v8259 = vpop.f32.mrf.mxu0
        %v8260 = vadd.f32 %v8067, %v8259
        %v8261 = vpop.f32.mrf.mxu0
        %v8262 = vadd.f32 %v8067, %v8261
        %8263 = vmatmul.bf16.gmra.mxu0 %v8029
        %v8264 = vpop.f32.mrf.mxu0
        %v8265 = vadd.f32 %v8067, %v8264
        %v8266 = vpop.f32.mrf.mxu0
        %v8267 = vadd.f32 %v8067, %v8266
        %8268 = vmatmul.bf16.gmra.mxu0 %v8030
        %v8269 = vpop.f32.mrf.mxu0
        %v8270 = vadd.f32 %v8067, %v8269
        %v8271 = vpop.f32.mrf.mxu0
        %v8272 = vadd.f32 %v8067, %v8271
        %8273 = vmatmul.bf16.gmra.mxu0 %v8031
        %v8274 = vpop.f32.mrf.mxu0
        %v8275 = vadd.f32 %v8067, %v8274
        %v8276 = vpop.f32.mrf.mxu0
        %v8277 = vadd.f32 %v8067, %v8276
        %8278 = vmatmul.bf16.gmra.mxu0 %v8032
        %v8279 = vpop.f32.mrf.mxu0
        %v8280 = vadd.f32 %v8067, %v8279
        %v8281 = vpop.f32.mrf.mxu0
        %v8282 = vadd.f32 %v8067, %v8281
        %8283 = vdwg.mxu0
        %8284 = vmatpush.bf16.msra.mxu0 %v8200
        %8285 = vmatpush.bf16.msra.mxu0 %v8196
        %8286 = vmatpush.bf16.msra.mxu0 %v8192
        %8287 = vmatpush.bf16.msra.mxu0 %v8188
        %8288 = vmatpush.bf16.msra.mxu0 %v8184
        %8289 = vmatpush.bf16.msra.mxu0 %v8180
        %8290 = vmatpush.bf16.msra.mxu0 %v8176
        %8291 = vmatpush.bf16.msra.mxu0 %v8172
        %8292 = vmatmul.bf16.gmra.mxu0 %v8025
        %v8293 = vpop.f32.mrf.mxu0
        %v8294 = vadd.f32 %v8068, %v8293
        %v8295 = vpop.f32.mrf.mxu0
        %v8296 = vadd.f32 %v8068, %v8295
        %8297 = vmatmul.bf16.gmra.mxu0 %v8026
        %v8298 = vpop.f32.mrf.mxu0
        %v8299 = vadd.f32 %v8068, %v8298
        %v8300 = vpop.f32.mrf.mxu0
        %v8301 = vadd.f32 %v8068, %v8300
        %8302 = vmatmul.bf16.gmra.mxu0 %v8027
        %v8303 = vpop.f32.mrf.mxu0
        %v8304 = vadd.f32 %v8068, %v8303
        %v8305 = vpop.f32.mrf.mxu0
        %v8306 = vadd.f32 %v8068, %v8305
        %8307 = vmatmul.bf16.gmra.mxu0 %v8028
        %v8308 = vpop.f32.mrf.mxu0
        %v8309 = vadd.f32 %v8068, %v8308
        %v8310 = vpop.f32.mrf.mxu0
        %v8311 = vadd.f32 %v8068, %v8310
        %8312 = vmatmul.bf16.gmra.mxu0 %v8029
        %v8313 = vpop.f32.mrf.mxu0
        %v8314 = vadd.f32 %v8068, %v8313
        %v8315 = vpop.f32.mrf.mxu0
        %v8316 = vadd.f32 %v8068, %v8315
        %8317 = vmatmul.bf16.gmra.mxu0 %v8030
        %v8318 = vpop.f32.mrf.mxu0
        %v8319 = vadd.f32 %v8068, %v8318
        %v8320 = vpop.f32.mrf.mxu0
        %v8321 = vadd.f32 %v8068, %v8320
        %8322 = vmatmul.bf16.gmra.mxu0 %v8031
        %v8323 = vpop.f32.mrf.mxu0
        %v8324 = vadd.f32 %v8068, %v8323
        %v8325 = vpop.f32.mrf.mxu0
        %v8326 = vadd.f32 %v8068, %v8325
        %8327 = vmatmul.bf16.gmra.mxu0 %v8032
        %v8328 = vpop.f32.mrf.mxu0
        %v8329 = vadd.f32 %v8068, %v8328
        %v8330 = vpop.f32.mrf.mxu0
        %v8331 = vadd.f32 %v8068, %v8330
        %8332 = vdwg.mxu0
        %8333 = vmatpush.bf16.msra.mxu0 %v8201
        %8334 = vmatpush.bf16.msra.mxu0 %v8197
        %8335 = vmatpush.bf16.msra.mxu0 %v8193
        %8336 = vmatpush.bf16.msra.mxu0 %v8189
        %8337 = vmatpush.bf16.msra.mxu0 %v8185
        %8338 = vmatpush.bf16.msra.mxu0 %v8181
        %8339 = vmatpush.bf16.msra.mxu0 %v8177
        %8340 = vmatpush.bf16.msra.mxu0 %v8173
        %8341 = vmatmul.bf16.gmra.mxu0 %v8025
        %v8342 = vpop.f32.mrf.mxu0
        %v8343 = vadd.f32 %v8069, %v8342
        %v8344 = vpop.f32.mrf.mxu0
        %v8345 = vadd.f32 %v8069, %v8344
        %8346 = vmatmul.bf16.gmra.mxu0 %v8026
        %v8347 = vpop.f32.mrf.mxu0
        %v8348 = vadd.f32 %v8069, %v8347
        %v8349 = vpop.f32.mrf.mxu0
        %v8350 = vadd.f32 %v8069, %v8349
        %8351 = vmatmul.bf16.gmra.mxu0 %v8027
        %v8352 = vpop.f32.mrf.mxu0
        %v8353 = vadd.f32 %v8069, %v8352
        %v8354 = vpop.f32.mrf.mxu0
        %v8355 = vadd.f32 %v8069, %v8354
        %8356 = vmatmul.bf16.gmra.mxu0 %v8028
        %v8357 = vpop.f32.mrf.mxu0
        %v8358 = vadd.f32 %v8069, %v8357
        %v8359 = vpop.f32.mrf.mxu0
        %v8360 = vadd.f32 %v8069, %v8359
        %8361 = vmatmul.bf16.gmra.mxu0 %v8029
        %v8362 = vpop.f32.mrf.mxu0
        %v8363 = vadd.f32 %v8069, %v8362
        %v8364 = vpop.f32.mrf.mxu0
        %v8365 = vadd.f32 %v8069, %v8364
        %8366 = vmatmul.bf16.gmra.mxu0 %v8030
        %v8367 = vpop.f32.mrf.mxu0
        %v8368 = vadd.f32 %v8069, %v8367
        %v8369 = vpop.f32.mrf.mxu0
        %v8370 = vadd.f32 %v8069, %v8369
        %8371 = vmatmul.bf16.gmra.mxu0 %v8031
        %v8372 = vpop.f32.mrf.mxu0
        %v8373 = vadd.f32 %v8069, %v8372
        %v8374 = vpop.f32.mrf.mxu0
        %v8375 = vadd.f32 %v8069, %v8374
        %8376 = vmatmul.bf16.gmra.mxu0 %v8032
        %v8377 = vpop.f32.mrf.mxu0
        %v8378 = vadd.f32 %v8069, %v8377
        %v8379 = vpop.f32.mrf.mxu0
        %v8380 = vadd.f32 %v8069, %v8379
        %8381 = vdwg.mxu0
        %8382 = vmatpush.bf16.msra.mxu0 %v8202
        %8383 = vmatpush.bf16.msra.mxu0 %v8198
        %8384 = vmatpush.bf16.msra.mxu0 %v8194
        %8385 = vmatpush.bf16.msra.mxu0 %v8190
        %8386 = vmatpush.bf16.msra.mxu0 %v8186
        %8387 = vmatpush.bf16.msra.mxu0 %v8182
        %8388 = vmatpush.bf16.msra.mxu0 %v8178
        %8389 = vmatpush.bf16.msra.mxu0 %v8174
        %8390 = vmatmul.bf16.gmra.mxu0 %v8025
        %v8391 = vpop.f32.mrf.mxu0
        %v8392 = vadd.f32 %v8070, %v8391
        %v8393 = vpop.f32.mrf.mxu0
        %v8394 = vadd.f32 %v8070, %v8393
        %8395 = vmatmul.bf16.gmra.mxu0 %v8026
        %v8396 = vpop.f32.mrf.mxu0
        %v8397 = vadd.f32 %v8070, %v8396
        %v8398 = vpop.f32.mrf.mxu0
        %v8399 = vadd.f32 %v8070, %v8398
        %8400 = vmatmul.bf16.gmra.mxu0 %v8027
        %v8401 = vpop.f32.mrf.mxu0
        %v8402 = vadd.f32 %v8070, %v8401
        %v8403 = vpop.f32.mrf.mxu0
        %v8404 = vadd.f32 %v8070, %v8403
        %8405 = vmatmul.bf16.gmra.mxu0 %v8028
        %v8406 = vpop.f32.mrf.mxu0
        %v8407 = vadd.f32 %v8070, %v8406
        %v8408 = vpop.f32.mrf.mxu0
        %v8409 = vadd.f32 %v8070, %v8408
        %8410 = vmatmul.bf16.gmra.mxu0 %v8029
        %v8411 = vpop.f32.mrf.mxu0
        %v8412 = vadd.f32 %v8070, %v8411
        %v8413 = vpop.f32.mrf.mxu0
        %v8414 = vadd.f32 %v8070, %v8413
        %8415 = vmatmul.bf16.gmra.mxu0 %v8030
        %v8416 = vpop.f32.mrf.mxu0
        %v8417 = vadd.f32 %v8070, %v8416
        %v8418 = vpop.f32.mrf.mxu0
        %v8419 = vadd.f32 %v8070, %v8418
        %8420 = vmatmul.bf16.gmra.mxu0 %v8031
        %v8421 = vpop.f32.mrf.mxu0
        %v8422 = vadd.f32 %v8070, %v8421
        %v8423 = vpop.f32.mrf.mxu0
        %v8424 = vadd.f32 %v8070, %v8423
        %8425 = vmatmul.bf16.gmra.mxu0 %v8032
        %v8426 = vpop.f32.mrf.mxu0
        %v8427 = vadd.f32 %v8070, %v8426
        %v8428 = vpop.f32.mrf.mxu0
        %v8429 = vadd.f32 %v8070, %v8428
        %8430 = vdwg.mxu0
        %v8431 = vmax.f32 %v8245, 0.0
        %v8432 = vmax.f32 %v8294, 0.0
        %v8433 = vmax.f32 %v8343, 0.0
        %v8434 = vmax.f32 %v8392, 0.0
        %v8435 = vmax.f32 %v8247, 0.0
        %v8436 = vmax.f32 %v8296, 0.0
        %v8437 = vmax.f32 %v8345, 0.0
        %v8438 = vmax.f32 %v8394, 0.0
        %v8439 = vmax.f32 %v8250, 0.0
        %v8440 = vmax.f32 %v8299, 0.0
        %v8441 = vmax.f32 %v8348, 0.0
        %v8442 = vmax.f32 %v8397, 0.0
        %v8443 = vmax.f32 %v8252, 0.0
        %v8444 = vmax.f32 %v8301, 0.0
        %v8445 = vmax.f32 %v8350, 0.0
        %v8446 = vmax.f32 %v8399, 0.0
        %v8447 = vmax.f32 %v8255, 0.0
        %v8448 = vmax.f32 %v8304, 0.0
        %v8449 = vmax.f32 %v8353, 0.0
        %v8450 = vmax.f32 %v8402, 0.0
        %v8451 = vmax.f32 %v8257, 0.0
        %v8452 = vmax.f32 %v8306, 0.0
        %v8453 = vmax.f32 %v8355, 0.0
        %v8454 = vmax.f32 %v8404, 0.0
        %v8455 = vmax.f32 %v8260, 0.0
        %v8456 = vmax.f32 %v8309, 0.0
        %v8457 = vmax.f32 %v8358, 0.0
        %v8458 = vmax.f32 %v8407, 0.0
        %v8459 = vmax.f32 %v8262, 0.0
        %v8460 = vmax.f32 %v8311, 0.0
        %v8461 = vmax.f32 %v8360, 0.0
        %v8462 = vmax.f32 %v8409, 0.0
        %v8463 = vmax.f32 %v8265, 0.0
        %v8464 = vmax.f32 %v8314, 0.0
        %v8465 = vmax.f32 %v8363, 0.0
        %v8466 = vmax.f32 %v8412, 0.0
        %v8467 = vmax.f32 %v8267, 0.0
        %v8468 = vmax.f32 %v8316, 0.0
        %v8469 = vmax.f32 %v8365, 0.0
        %v8470 = vmax.f32 %v8414, 0.0
        %v8471 = vmax.f32 %v8270, 0.0
        %v8472 = vmax.f32 %v8319, 0.0
        %v8473 = vmax.f32 %v8368, 0.0
        %v8474 = vmax.f32 %v8417, 0.0
        %v8475 = vmax.f32 %v8272, 0.0
        %v8476 = vmax.f32 %v8321, 0.0
        %v8477 = vmax.f32 %v8370, 0.0
        %v8478 = vmax.f32 %v8419, 0.0
        %v8479 = vmax.f32 %v8275, 0.0
        %v8480 = vmax.f32 %v8324, 0.0
        %v8481 = vmax.f32 %v8373, 0.0
        %v8482 = vmax.f32 %v8422, 0.0
        %v8483 = vmax.f32 %v8277, 0.0
        %v8484 = vmax.f32 %v8326, 0.0
        %v8485 = vmax.f32 %v8375, 0.0
        %v8486 = vmax.f32 %v8424, 0.0
        %v8487 = vmax.f32 %v8280, 0.0
        %v8488 = vmax.f32 %v8329, 0.0
        %v8489 = vmax.f32 %v8378, 0.0
        %v8490 = vmax.f32 %v8427, 0.0
        %v8491 = vmax.f32 %v8282, 0.0
        %v8492 = vmax.f32 %v8331, 0.0
        %v8493 = vmax.f32 %v8380, 0.0
        %v8494 = vmax.f32 %v8429, 0.0
        %v8495 = vpack.c.bf16 %v8435, %v8431
        %v8496 = vpack.c.bf16 %v8436, %v8432
        %v8497 = vpack.c.bf16 %v8437, %v8433
        %v8498 = vpack.c.bf16 %v8438, %v8434
        %v8499 = vpack.c.bf16 %v8443, %v8439
        %v8500 = vpack.c.bf16 %v8444, %v8440
        %v8501 = vpack.c.bf16 %v8445, %v8441
        %v8502 = vpack.c.bf16 %v8446, %v8442
        %v8503 = vpack.c.bf16 %v8451, %v8447
        %v8504 = vpack.c.bf16 %v8452, %v8448
        %v8505 = vpack.c.bf16 %v8453, %v8449
        %v8506 = vpack.c.bf16 %v8454, %v8450
        %v8507 = vpack.c.bf16 %v8459, %v8455
        %v8508 = vpack.c.bf16 %v8460, %v8456
        %v8509 = vpack.c.bf16 %v8461, %v8457
        %v8510 = vpack.c.bf16 %v8462, %v8458
        %v8511 = vpack.c.bf16 %v8467, %v8463
        %v8512 = vpack.c.bf16 %v8468, %v8464
        %v8513 = vpack.c.bf16 %v8469, %v8465
        %v8514 = vpack.c.bf16 %v8470, %v8466
        %v8515 = vpack.c.bf16 %v8475, %v8471
        %v8516 = vpack.c.bf16 %v8476, %v8472
        %v8517 = vpack.c.bf16 %v8477, %v8473
        %v8518 = vpack.c.bf16 %v8478, %v8474
        %v8519 = vpack.c.bf16 %v8483, %v8479
        %v8520 = vpack.c.bf16 %v8484, %v8480
        %v8521 = vpack.c.bf16 %v8485, %v8481
        %v8522 = vpack.c.bf16 %v8486, %v8482
        %v8523 = vpack.c.bf16 %v8491, %v8487
        %v8524 = vpack.c.bf16 %v8492, %v8488
        %v8525 = vpack.c.bf16 %v8493, %v8489
        %v8526 = vpack.c.bf16 %v8494, %v8490
        %v8527 = vld [vmem:[#allocation13] sm:$0xf]
        %v8528 = vld [vmem:[#allocation13 + $0x4] sm:$0xf]
        %v8529 = vld [vmem:[#allocation13 + $0x8] sm:$0xf]
        %v8530 = vld [vmem:[#allocation13 + $0xc] sm:$0xf]
        %v8531 = vld [vmem:[#allocation13 + $0x10] sm:$0xf]
        %v8532 = vld [vmem:[#allocation13 + $0x14] sm:$0xf]
        %v8533 = vld [vmem:[#allocation13 + $0x18] sm:$0xf]
        %v8534 = vld [vmem:[#allocation13 + $0x1c] sm:$0xf]
        %v8535 = vld [vmem:[#allocation13 + $0x20] sm:$0xf]
        %v8536 = vld [vmem:[#allocation13 + $0x24] sm:$0xf]
        %v8537 = vld [vmem:[#allocation13 + $0x28] sm:$0xf]
        %v8538 = vld [vmem:[#allocation13 + $0x2c] sm:$0xf]
        %v8539 = vld [vmem:[#allocation13 + $0x30] sm:$0xf]
        %v8540 = vld [vmem:[#allocation13 + $0x34] sm:$0xf]
        %v8541 = vld [vmem:[#allocation13 + $0x38] sm:$0xf]
        %v8542 = vld [vmem:[#allocation13 + $0x3c] sm:$0xf]
        %v8543 = vld [vmem:[#allocation13 + $0x40] sm:$0xf]
        %v8544 = vld [vmem:[#allocation13 + $0x44] sm:$0xf]
        %v8545 = vld [vmem:[#allocation13 + $0x48] sm:$0xf]
        %v8546 = vld [vmem:[#allocation13 + $0x4c] sm:$0xf]
        %v8547 = vld [vmem:[#allocation13 + $0x50] sm:$0xf]
        %v8548 = vld [vmem:[#allocation13 + $0x54] sm:$0xf]
        %v8549 = vld [vmem:[#allocation13 + $0x58] sm:$0xf]
        %v8550 = vld [vmem:[#allocation13 + $0x5c] sm:$0xf]
        %v8551 = vld [vmem:[#allocation13 + $0x60] sm:$0xf]
        %v8552 = vld [vmem:[#allocation13 + $0x64] sm:$0xf]
        %v8553 = vld [vmem:[#allocation13 + $0x68] sm:$0xf]
        %v8554 = vld [vmem:[#allocation13 + $0x6c] sm:$0xf]
        %v8555 = vld [vmem:[#allocation13 + $0x70] sm:$0xf]
        %v8556 = vld [vmem:[#allocation13 + $0x74] sm:$0xf]
        %v8557 = vld [vmem:[#allocation13 + $0x78] sm:$0xf]
        %v8558 = vld [vmem:[#allocation13 + $0x7c] sm:$0xf]
        %v8559 = vld [vmem:[#allocation13 + $0x80] sm:$0xf]
        %v8560 = vld [vmem:[#allocation13 + $0x84] sm:$0xf]
        %v8561 = vld [vmem:[#allocation13 + $0x88] sm:$0xf]
        %v8562 = vld [vmem:[#allocation13 + $0x8c] sm:$0xf]
        %v8563 = vld [vmem:[#allocation13 + $0x90] sm:$0xf]
        %v8564 = vld [vmem:[#allocation13 + $0x94] sm:$0xf]
        %v8565 = vld [vmem:[#allocation13 + $0x98] sm:$0xf]
        %v8566 = vld [vmem:[#allocation13 + $0x9c] sm:$0xf]
        %v8567 = vld [vmem:[#allocation13 + $0xa0] sm:$0xf]
        %v8568 = vld [vmem:[#allocation13 + $0xa4] sm:$0xf]
        %v8569 = vld [vmem:[#allocation13 + $0xa8] sm:$0xf]
        %v8570 = vld [vmem:[#allocation13 + $0xac] sm:$0xf]
        %v8571 = vld [vmem:[#allocation13 + $0xb0] sm:$0xf]
        %v8572 = vld [vmem:[#allocation13 + $0xb4] sm:$0xf]
        %v8573 = vld [vmem:[#allocation13 + $0xb8] sm:$0xf]
        %v8574 = vld [vmem:[#allocation13 + $0xbc] sm:$0xf]
        %v8575 = vld [vmem:[#allocation13 + $0xc0] sm:$0xf]
        %v8576 = vld [vmem:[#allocation13 + $0xc4] sm:$0xf]
        %v8577 = vld [vmem:[#allocation13 + $0xc8] sm:$0xf]
        %v8578 = vld [vmem:[#allocation13 + $0xcc] sm:$0xf]
        %v8579 = vld [vmem:[#allocation13 + $0xd0] sm:$0xf]
        %v8580 = vld [vmem:[#allocation13 + $0xd4] sm:$0xf]
        %v8581 = vld [vmem:[#allocation13 + $0xd8] sm:$0xf]
        %v8582 = vld [vmem:[#allocation13 + $0xdc] sm:$0xf]
        %v8583 = vld [vmem:[#allocation13 + $0xe0] sm:$0xf]
        %v8584 = vld [vmem:[#allocation13 + $0xe4] sm:$0xf]
        %v8585 = vld [vmem:[#allocation13 + $0xe8] sm:$0xf]
        %v8586 = vld [vmem:[#allocation13 + $0xec] sm:$0xf]
        %v8587 = vld [vmem:[#allocation13 + $0xf0] sm:$0xf]
        %v8588 = vld [vmem:[#allocation13 + $0xf4] sm:$0xf]
        %v8589 = vld [vmem:[#allocation13 + $0xf8] sm:$0xf]
        %v8590 = vld [vmem:[#allocation13 + $0xfc] sm:$0xf]
        %v8591 = vld [vmem:[%s10] sm:$0x1]
        %v8593 = vperm.slane %v8591, 0
        %v8659 = vunpack.c.l.b16 %v8527
        %v8660 = vunpack.c.l.b16 %v8528
        %v8661 = vunpack.c.l.b16 %v8529
        %v8662 = vunpack.c.l.b16 %v8530
        %v8663 = vunpack.c.l.b16 %v8531
        %v8664 = vunpack.c.l.b16 %v8532
        %v8665 = vunpack.c.l.b16 %v8533
        %v8666 = vunpack.c.l.b16 %v8534
        %v8667 = vunpack.c.l.b16 %v8535
        %v8668 = vunpack.c.l.b16 %v8536
        %v8669 = vunpack.c.l.b16 %v8537
        %v8670 = vunpack.c.l.b16 %v8538
        %v8671 = vunpack.c.l.b16 %v8539
        %v8672 = vunpack.c.l.b16 %v8540
        %v8673 = vunpack.c.l.b16 %v8541
        %v8674 = vunpack.c.l.b16 %v8542
        %v8675 = vunpack.c.l.b16 %v8543
        %v8676 = vunpack.c.l.b16 %v8544
        %v8677 = vunpack.c.l.b16 %v8545
        %v8678 = vunpack.c.l.b16 %v8546
        %v8679 = vunpack.c.l.b16 %v8547
        %v8680 = vunpack.c.l.b16 %v8548
        %v8681 = vunpack.c.l.b16 %v8549
        %v8682 = vunpack.c.l.b16 %v8550
        %v8683 = vunpack.c.l.b16 %v8551
        %v8684 = vunpack.c.l.b16 %v8552
        %v8685 = vunpack.c.l.b16 %v8553
        %v8686 = vunpack.c.l.b16 %v8554
        %v8687 = vunpack.c.l.b16 %v8555
        %v8688 = vunpack.c.l.b16 %v8556
        %v8689 = vunpack.c.l.b16 %v8557
        %v8690 = vunpack.c.l.b16 %v8558
        %v8691 = vunpack.c.l.b16 %v8559
        %v8692 = vunpack.c.l.b16 %v8560
        %v8693 = vunpack.c.l.b16 %v8561
        %v8694 = vunpack.c.l.b16 %v8562
        %v8695 = vunpack.c.l.b16 %v8563
        %v8696 = vunpack.c.l.b16 %v8564
        %v8697 = vunpack.c.l.b16 %v8565
        %v8698 = vunpack.c.l.b16 %v8566
        %v8699 = vunpack.c.l.b16 %v8567
        %v8700 = vunpack.c.l.b16 %v8568
        %v8701 = vunpack.c.l.b16 %v8569
        %v8702 = vunpack.c.l.b16 %v8570
        %v8703 = vunpack.c.l.b16 %v8571
        %v8704 = vunpack.c.l.b16 %v8572
        %v8705 = vunpack.c.l.b16 %v8573
        %v8706 = vunpack.c.l.b16 %v8574
        %v8707 = vunpack.c.l.b16 %v8575
        %v8708 = vunpack.c.l.b16 %v8576
        %v8709 = vunpack.c.l.b16 %v8577
        %v8710 = vunpack.c.l.b16 %v8578
        %v8711 = vunpack.c.l.b16 %v8579
        %v8712 = vunpack.c.l.b16 %v8580
        %v8713 = vunpack.c.l.b16 %v8581
        %v8714 = vunpack.c.l.b16 %v8582
        %v8715 = vunpack.c.l.b16 %v8583
        %v8716 = vunpack.c.l.b16 %v8584
        %v8717 = vunpack.c.l.b16 %v8585
        %v8718 = vunpack.c.l.b16 %v8586
        %v8719 = vunpack.c.l.b16 %v8587
        %v8720 = vunpack.c.l.b16 %v8588
        %v8721 = vunpack.c.l.b16 %v8589
        %v8722 = vunpack.c.l.b16 %v8590
        %v8723 = vpack.c.b16 %v8660, %v8659
        %v8724 = vpack.c.b16 %v8662, %v8661
        %v8725 = vpack.c.b16 %v8664, %v8663
        %v8726 = vpack.c.b16 %v8666, %v8665
        %v8727 = vpack.c.b16 %v8668, %v8667
        %v8728 = vpack.c.b16 %v8670, %v8669
        %v8729 = vpack.c.b16 %v8672, %v8671
        %v8730 = vpack.c.b16 %v8674, %v8673
        %v8731 = vpack.c.b16 %v8676, %v8675
        %v8732 = vpack.c.b16 %v8678, %v8677
        %v8733 = vpack.c.b16 %v8680, %v8679
        %v8734 = vpack.c.b16 %v8682, %v8681
        %v8735 = vpack.c.b16 %v8684, %v8683
        %v8736 = vpack.c.b16 %v8686, %v8685
        %v8737 = vpack.c.b16 %v8688, %v8687
        %v8738 = vpack.c.b16 %v8690, %v8689
        %v8739 = vpack.c.b16 %v8692, %v8691
        %v8740 = vpack.c.b16 %v8694, %v8693
        %v8741 = vpack.c.b16 %v8696, %v8695
        %v8742 = vpack.c.b16 %v8698, %v8697
        %v8743 = vpack.c.b16 %v8700, %v8699
        %v8744 = vpack.c.b16 %v8702, %v8701
        %v8745 = vpack.c.b16 %v8704, %v8703
        %v8746 = vpack.c.b16 %v8706, %v8705
        %v8747 = vpack.c.b16 %v8708, %v8707
        %v8748 = vpack.c.b16 %v8710, %v8709
        %v8749 = vpack.c.b16 %v8712, %v8711
        %v8750 = vpack.c.b16 %v8714, %v8713
        %v8751 = vpack.c.b16 %v8716, %v8715
        %v8752 = vpack.c.b16 %v8718, %v8717
        %v8753 = vpack.c.b16 %v8720, %v8719
        %v8754 = vpack.c.b16 %v8722, %v8721
        %8787 = vmatpush.bf16.msra.mxu0 %v8730
        %8788 = vmatpush.bf16.msra.mxu0 %v8729
        %8789 = vmatpush.bf16.msra.mxu0 %v8728
        %8790 = vmatpush.bf16.msra.mxu0 %v8727
        %8791 = vmatpush.bf16.msra.mxu0 %v8726
        %8792 = vmatpush.bf16.msra.mxu0 %v8725
        %8793 = vmatpush.bf16.msra.mxu0 %v8724
        %8794 = vmatpush.bf16.msra.mxu0 %v8723
        %8795 = vmatmul.bf16.gmra.mxu0 %v8495
        %v8796 = vpop.f32.mrf.mxu0
        %v8797 = vadd.f32 %v8593, %v8796
        %v8798 = vpop.f32.mrf.mxu0
        %v8799 = vadd.f32 %v8593, %v8798
        %8800 = vmatmul.bf16.gmra.mxu0 %v8499
        %v8801 = vpop.f32.mrf.mxu0
        %v8802 = vadd.f32 %v8593, %v8801
        %v8803 = vpop.f32.mrf.mxu0
        %v8804 = vadd.f32 %v8593, %v8803
        %8805 = vmatmul.bf16.gmra.mxu0 %v8503
        %v8806 = vpop.f32.mrf.mxu0
        %v8807 = vadd.f32 %v8593, %v8806
        %v8808 = vpop.f32.mrf.mxu0
        %v8809 = vadd.f32 %v8593, %v8808
        %8810 = vmatmul.bf16.gmra.mxu0 %v8507
        %v8811 = vpop.f32.mrf.mxu0
        %v8812 = vadd.f32 %v8593, %v8811
        %v8813 = vpop.f32.mrf.mxu0
        %v8814 = vadd.f32 %v8593, %v8813
        %8815 = vmatmul.bf16.gmra.mxu0 %v8511
        %v8816 = vpop.f32.mrf.mxu0
        %v8817 = vadd.f32 %v8593, %v8816
        %v8818 = vpop.f32.mrf.mxu0
        %v8819 = vadd.f32 %v8593, %v8818
        %8820 = vmatmul.bf16.gmra.mxu0 %v8515
        %v8821 = vpop.f32.mrf.mxu0
        %v8822 = vadd.f32 %v8593, %v8821
        %v8823 = vpop.f32.mrf.mxu0
        %v8824 = vadd.f32 %v8593, %v8823
        %8825 = vmatmul.bf16.gmra.mxu0 %v8519
        %v8826 = vpop.f32.mrf.mxu0
        %v8827 = vadd.f32 %v8593, %v8826
        %v8828 = vpop.f32.mrf.mxu0
        %v8829 = vadd.f32 %v8593, %v8828
        %8830 = vmatmul.bf16.gmra.mxu0 %v8523
        %v8831 = vpop.f32.mrf.mxu0
        %v8832 = vadd.f32 %v8593, %v8831
        %v8833 = vpop.f32.mrf.mxu0
        %v8834 = vadd.f32 %v8593, %v8833
        %8835 = vdwg.mxu0
        %8836 = vmatpush.bf16.msra.mxu0 %v8738
        %8837 = vmatpush.bf16.msra.mxu0 %v8737
        %8838 = vmatpush.bf16.msra.mxu0 %v8736
        %8839 = vmatpush.bf16.msra.mxu0 %v8735
        %8840 = vmatpush.bf16.msra.mxu0 %v8734
        %8841 = vmatpush.bf16.msra.mxu0 %v8733
        %8842 = vmatpush.bf16.msra.mxu0 %v8732
        %8843 = vmatpush.bf16.msra.mxu0 %v8731
        %8844 = vmatmul.bf16.gmra.mxu0 %v8496
        %v8845 = vpop.f32.mrf.mxu0
        %v8846 = vadd.f32 %v8797, %v8845
        %v8847 = vpop.f32.mrf.mxu0
        %v8848 = vadd.f32 %v8799, %v8847
        %8849 = vmatmul.bf16.gmra.mxu0 %v8500
        %v8850 = vpop.f32.mrf.mxu0
        %v8851 = vadd.f32 %v8802, %v8850
        %v8852 = vpop.f32.mrf.mxu0
        %v8853 = vadd.f32 %v8804, %v8852
        %8854 = vmatmul.bf16.gmra.mxu0 %v8504
        %v8855 = vpop.f32.mrf.mxu0
        %v8856 = vadd.f32 %v8807, %v8855
        %v8857 = vpop.f32.mrf.mxu0
        %v8858 = vadd.f32 %v8809, %v8857
        %8859 = vmatmul.bf16.gmra.mxu0 %v8508
        %v8860 = vpop.f32.mrf.mxu0
        %v8861 = vadd.f32 %v8812, %v8860
        %v8862 = vpop.f32.mrf.mxu0
        %v8863 = vadd.f32 %v8814, %v8862
        %8864 = vmatmul.bf16.gmra.mxu0 %v8512
        %v8865 = vpop.f32.mrf.mxu0
        %v8866 = vadd.f32 %v8817, %v8865
        %v8867 = vpop.f32.mrf.mxu0
        %v8868 = vadd.f32 %v8819, %v8867
        %8869 = vmatmul.bf16.gmra.mxu0 %v8516
        %v8870 = vpop.f32.mrf.mxu0
        %v8871 = vadd.f32 %v8822, %v8870
        %v8872 = vpop.f32.mrf.mxu0
        %v8873 = vadd.f32 %v8824, %v8872
        %8874 = vmatmul.bf16.gmra.mxu0 %v8520
        %v8875 = vpop.f32.mrf.mxu0
        %v8876 = vadd.f32 %v8827, %v8875
        %v8877 = vpop.f32.mrf.mxu0
        %v8878 = vadd.f32 %v8829, %v8877
        %8879 = vmatmul.bf16.gmra.mxu0 %v8524
        %v8880 = vpop.f32.mrf.mxu0
        %v8881 = vadd.f32 %v8832, %v8880
        %v8882 = vpop.f32.mrf.mxu0
        %v8883 = vadd.f32 %v8834, %v8882
        %8884 = vdwg.mxu0
        %8885 = vmatpush.bf16.msra.mxu0 %v8746
        %8886 = vmatpush.bf16.msra.mxu0 %v8745
        %8887 = vmatpush.bf16.msra.mxu0 %v8744
        %8888 = vmatpush.bf16.msra.mxu0 %v8743
        %8889 = vmatpush.bf16.msra.mxu0 %v8742
        %8890 = vmatpush.bf16.msra.mxu0 %v8741
        %8891 = vmatpush.bf16.msra.mxu0 %v8740
        %8892 = vmatpush.bf16.msra.mxu0 %v8739
        %8893 = vmatmul.bf16.gmra.mxu0 %v8497
        %v8894 = vpop.f32.mrf.mxu0
        %v8895 = vadd.f32 %v8846, %v8894
        %v8896 = vpop.f32.mrf.mxu0
        %v8897 = vadd.f32 %v8848, %v8896
        %8898 = vmatmul.bf16.gmra.mxu0 %v8501
        %v8899 = vpop.f32.mrf.mxu0
        %v8900 = vadd.f32 %v8851, %v8899
        %v8901 = vpop.f32.mrf.mxu0
        %v8902 = vadd.f32 %v8853, %v8901
        %8903 = vmatmul.bf16.gmra.mxu0 %v8505
        %v8904 = vpop.f32.mrf.mxu0
        %v8905 = vadd.f32 %v8856, %v8904
        %v8906 = vpop.f32.mrf.mxu0
        %v8907 = vadd.f32 %v8858, %v8906
        %8908 = vmatmul.bf16.gmra.mxu0 %v8509
        %v8909 = vpop.f32.mrf.mxu0
        %v8910 = vadd.f32 %v8861, %v8909
        %v8911 = vpop.f32.mrf.mxu0
        %v8912 = vadd.f32 %v8863, %v8911
        %8913 = vmatmul.bf16.gmra.mxu0 %v8513
        %v8914 = vpop.f32.mrf.mxu0
        %v8915 = vadd.f32 %v8866, %v8914
        %v8916 = vpop.f32.mrf.mxu0
        %v8917 = vadd.f32 %v8868, %v8916
        %8918 = vmatmul.bf16.gmra.mxu0 %v8517
        %v8919 = vpop.f32.mrf.mxu0
        %v8920 = vadd.f32 %v8871, %v8919
        %v8921 = vpop.f32.mrf.mxu0
        %v8922 = vadd.f32 %v8873, %v8921
        %8923 = vmatmul.bf16.gmra.mxu0 %v8521
        %v8924 = vpop.f32.mrf.mxu0
        %v8925 = vadd.f32 %v8876, %v8924
        %v8926 = vpop.f32.mrf.mxu0
        %v8927 = vadd.f32 %v8878, %v8926
        %8928 = vmatmul.bf16.gmra.mxu0 %v8525
        %v8929 = vpop.f32.mrf.mxu0
        %v8930 = vadd.f32 %v8881, %v8929
        %v8931 = vpop.f32.mrf.mxu0
        %v8932 = vadd.f32 %v8883, %v8931
        %8933 = vdwg.mxu0
        %8934 = vmatpush.bf16.msra.mxu0 %v8754
        %8935 = vmatpush.bf16.msra.mxu0 %v8753
        %8936 = vmatpush.bf16.msra.mxu0 %v8752
        %8937 = vmatpush.bf16.msra.mxu0 %v8751
        %8938 = vmatpush.bf16.msra.mxu0 %v8750
        %8939 = vmatpush.bf16.msra.mxu0 %v8749
        %8940 = vmatpush.bf16.msra.mxu0 %v8748
        %8941 = vmatpush.bf16.msra.mxu0 %v8747
        %8942 = vmatmul.bf16.gmra.mxu0 %v8498
        %v8943 = vpop.f32.mrf.mxu0
        %v8944 = vadd.f32 %v8895, %v8943
        %v8945 = vpop.f32.mrf.mxu0
        %v8946 = vadd.f32 %v8897, %v8945
        %8947 = vmatmul.bf16.gmra.mxu0 %v8502
        %v8948 = vpop.f32.mrf.mxu0
        %v8949 = vadd.f32 %v8900, %v8948
        %v8950 = vpop.f32.mrf.mxu0
        %v8951 = vadd.f32 %v8902, %v8950
        %8952 = vmatmul.bf16.gmra.mxu0 %v8506
        %v8953 = vpop.f32.mrf.mxu0
        %v8954 = vadd.f32 %v8905, %v8953
        %v8955 = vpop.f32.mrf.mxu0
        %v8956 = vadd.f32 %v8907, %v8955
        %8957 = vmatmul.bf16.gmra.mxu0 %v8510
        %v8958 = vpop.f32.mrf.mxu0
        %v8959 = vadd.f32 %v8910, %v8958
        %v8960 = vpop.f32.mrf.mxu0
        %v8961 = vadd.f32 %v8912, %v8960
        %8962 = vmatmul.bf16.gmra.mxu0 %v8514
        %v8963 = vpop.f32.mrf.mxu0
        %v8964 = vadd.f32 %v8915, %v8963
        %v8965 = vpop.f32.mrf.mxu0
        %v8966 = vadd.f32 %v8917, %v8965
        %8967 = vmatmul.bf16.gmra.mxu0 %v8518
        %v8968 = vpop.f32.mrf.mxu0
        %v8969 = vadd.f32 %v8920, %v8968
        %v8970 = vpop.f32.mrf.mxu0
        %v8971 = vadd.f32 %v8922, %v8970
        %8972 = vmatmul.bf16.gmra.mxu0 %v8522
        %v8973 = vpop.f32.mrf.mxu0
        %v8974 = vadd.f32 %v8925, %v8973
        %v8975 = vpop.f32.mrf.mxu0
        %v8976 = vadd.f32 %v8927, %v8975
        %8977 = vmatmul.bf16.gmra.mxu0 %v8526
        %v8978 = vpop.f32.mrf.mxu0
        %v8979 = vadd.f32 %v8930, %v8978
        %v8980 = vpop.f32.mrf.mxu0
        %v8981 = vadd.f32 %v8932, %v8980
        %8982 = vdwg.mxu0
        %v8983 = vadd.f32 %v8944, %v8009
        %v8984 = vadd.f32 %v8946, %v8010
        %v8985 = vadd.f32 %v8949, %v8011
        %v8986 = vadd.f32 %v8951, %v8012
        %v8987 = vadd.f32 %v8954, %v8013
        %v8988 = vadd.f32 %v8956, %v8014
        %v8989 = vadd.f32 %v8959, %v8015
        %v8990 = vadd.f32 %v8961, %v8016
        %v8991 = vadd.f32 %v8964, %v8017
        %v8992 = vadd.f32 %v8966, %v8018
        %v8993 = vadd.f32 %v8969, %v8019
        %v8994 = vadd.f32 %v8971, %v8020
        %v8995 = vadd.f32 %v8974, %v8021
        %v8996 = vadd.f32 %v8976, %v8022
        %v8997 = vadd.f32 %v8979, %v8023
        %v8998 = vadd.f32 %v8981, %v8024
        %v8999 = vld [vmem:[%s11] sm:$0x1]
        %v9000 = vld [vmem:[%s12] sm:$0x1]
        %9001 = vadd.xlane.f32.xlu0 %v8983
        %v9002 = vpop.xlane.xlu0 %9001
        %9003 = vadd.xlane.f32.xlu0 %v8984
        %v9004 = vpop.xlane.xlu0 %9003
        %9005 = vadd.xlane.f32.xlu0 %v8985
        %v9006 = vpop.xlane.xlu0 %9005
        %9007 = vadd.xlane.f32.xlu0 %v8986
        %v9008 = vpop.xlane.xlu0 %9007
        %9009 = vadd.xlane.f32.xlu0 %v8987
        %v9010 = vpop.xlane.xlu0 %9009
        %9011 = vadd.xlane.f32.xlu0 %v8988
        %v9012 = vpop.xlane.xlu0 %9011
        %9013 = vadd.xlane.f32.xlu0 %v8989
        %v9014 = vpop.xlane.xlu0 %9013
        %9015 = vadd.xlane.f32.xlu0 %v8990
        %v9016 = vpop.xlane.xlu0 %9015
        %9017 = vadd.xlane.f32.xlu0 %v8991
        %v9018 = vpop.xlane.xlu0 %9017
        %9019 = vadd.xlane.f32.xlu0 %v8992
        %v9020 = vpop.xlane.xlu0 %9019
        %9021 = vadd.xlane.f32.xlu0 %v8993
        %v9022 = vpop.xlane.xlu0 %9021
        %9023 = vadd.xlane.f32.xlu0 %v8994
        %v9024 = vpop.xlane.xlu0 %9023
        %9025 = vadd.xlane.f32.xlu0 %v8995
        %v9026 = vpop.xlane.xlu0 %9025
        %9027 = vadd.xlane.f32.xlu0 %v8996
        %v9028 = vpop.xlane.xlu0 %9027
        %9029 = vadd.xlane.f32.xlu0 %v8997
        %v9030 = vpop.xlane.xlu0 %9029
        %9031 = vadd.xlane.f32.xlu0 %v8998
        %v9032 = vpop.xlane.xlu0 %9031
        %v9033 = vmul.f32 %v9002, %v7698
        %v9034 = vmul.f32 %v9004, %v7698
        %v9035 = vmul.f32 %v9006, %v7698
        %v9036 = vmul.f32 %v9008, %v7698
        %v9037 = vmul.f32 %v9010, %v7698
        %v9038 = vmul.f32 %v9012, %v7698
        %v9039 = vmul.f32 %v9014, %v7698
        %v9040 = vmul.f32 %v9016, %v7698
        %v9041 = vmul.f32 %v9018, %v7698
        %v9042 = vmul.f32 %v9020, %v7698
        %v9043 = vmul.f32 %v9022, %v7698
        %v9044 = vmul.f32 %v9024, %v7698
        %v9045 = vmul.f32 %v9026, %v7698
        %v9046 = vmul.f32 %v9028, %v7698
        %v9047 = vmul.f32 %v9030, %v7698
        %v9048 = vmul.f32 %v9032, %v7698
        %v9049 = vsub.f32 %v8983, %v9033
        %v9050 = vsub.f32 %v8984, %v9034
        %v9051 = vsub.f32 %v8985, %v9035
        %v9052 = vsub.f32 %v8986, %v9036
        %v9053 = vsub.f32 %v8987, %v9037
        %v9054 = vsub.f32 %v8988, %v9038
        %v9055 = vsub.f32 %v8989, %v9039
        %v9056 = vsub.f32 %v8990, %v9040
        %v9057 = vsub.f32 %v8991, %v9041
        %v9058 = vsub.f32 %v8992, %v9042
        %v9059 = vsub.f32 %v8993, %v9043
        %v9060 = vsub.f32 %v8994, %v9044
        %v9061 = vsub.f32 %v8995, %v9045
        %v9062 = vsub.f32 %v8996, %v9046
        %v9063 = vsub.f32 %v8997, %v9047
        %v9064 = vsub.f32 %v8998, %v9048
        %v9065 = vmul.f32 %v9049, %v9049
        %v9066 = vmul.f32 %v9050, %v9050
        %v9067 = vmul.f32 %v9051, %v9051
        %v9068 = vmul.f32 %v9052, %v9052
        %v9069 = vmul.f32 %v9053, %v9053
        %v9070 = vmul.f32 %v9054, %v9054
        %v9071 = vmul.f32 %v9055, %v9055
        %v9072 = vmul.f32 %v9056, %v9056
        %v9073 = vmul.f32 %v9057, %v9057
        %v9074 = vmul.f32 %v9058, %v9058
        %v9075 = vmul.f32 %v9059, %v9059
        %v9076 = vmul.f32 %v9060, %v9060
        %v9077 = vmul.f32 %v9061, %v9061
        %v9078 = vmul.f32 %v9062, %v9062
        %v9079 = vmul.f32 %v9063, %v9063
        %v9080 = vmul.f32 %v9064, %v9064
        %9081 = vadd.xlane.f32.xlu0 %v9065
        %v9082 = vpop.xlane.xlu0 %9081
        %9083 = vadd.xlane.f32.xlu0 %v9066
        %v9084 = vpop.xlane.xlu0 %9083
        %9085 = vadd.xlane.f32.xlu0 %v9067
        %v9086 = vpop.xlane.xlu0 %9085
        %9087 = vadd.xlane.f32.xlu0 %v9068
        %v9088 = vpop.xlane.xlu0 %9087
        %9089 = vadd.xlane.f32.xlu0 %v9069
        %v9090 = vpop.xlane.xlu0 %9089
        %9091 = vadd.xlane.f32.xlu0 %v9070
        %v9092 = vpop.xlane.xlu0 %9091
        %9093 = vadd.xlane.f32.xlu0 %v9071
        %v9094 = vpop.xlane.xlu0 %9093
        %9095 = vadd.xlane.f32.xlu0 %v9072
        %v9096 = vpop.xlane.xlu0 %9095
        %9097 = vadd.xlane.f32.xlu0 %v9073
        %v9098 = vpop.xlane.xlu0 %9097
        %9099 = vadd.xlane.f32.xlu0 %v9074
        %v9100 = vpop.xlane.xlu0 %9099
        %9101 = vadd.xlane.f32.xlu0 %v9075
        %v9102 = vpop.xlane.xlu0 %9101
        %9103 = vadd.xlane.f32.xlu0 %v9076
        %v9104 = vpop.xlane.xlu0 %9103
        %9105 = vadd.xlane.f32.xlu0 %v9077
        %v9106 = vpop.xlane.xlu0 %9105
        %9107 = vadd.xlane.f32.xlu0 %v9078
        %v9108 = vpop.xlane.xlu0 %9107
        %9109 = vadd.xlane.f32.xlu0 %v9079
        %v9110 = vpop.xlane.xlu0 %9109
        %9111 = vadd.xlane.f32.xlu0 %v9080
        %v9112 = vpop.xlane.xlu0 %9111
        %v9113 = vmul.f32 %v9082, %v7698
        %v9114 = vmul.f32 %v9084, %v7698
        %v9115 = vmul.f32 %v9086, %v7698
        %v9116 = vmul.f32 %v9088, %v7698
        %v9117 = vmul.f32 %v9090, %v7698
        %v9118 = vmul.f32 %v9092, %v7698
        %v9119 = vmul.f32 %v9094, %v7698
        %v9120 = vmul.f32 %v9096, %v7698
        %v9121 = vmul.f32 %v9098, %v7698
        %v9122 = vmul.f32 %v9100, %v7698
        %v9123 = vmul.f32 %v9102, %v7698
        %v9124 = vmul.f32 %v9104, %v7698
        %v9125 = vmul.f32 %v9106, %v7698
        %v9126 = vmul.f32 %v9108, %v7698
        %v9127 = vmul.f32 %v9110, %v7698
        %v9128 = vmul.f32 %v9112, %v7698
        %v9129 = vadd.f32 %v9113, 1e-05
        %v9130 = vadd.f32 %v9114, 1e-05
        %v9131 = vadd.f32 %v9115, 1e-05
        %v9132 = vadd.f32 %v9116, 1e-05
        %v9133 = vadd.f32 %v9117, 1e-05
        %v9134 = vadd.f32 %v9118, 1e-05
        %v9135 = vadd.f32 %v9119, 1e-05
        %v9136 = vadd.f32 %v9120, 1e-05
        %v9137 = vadd.f32 %v9121, 1e-05
        %v9138 = vadd.f32 %v9122, 1e-05
        %v9139 = vadd.f32 %v9123, 1e-05
        %v9140 = vadd.f32 %v9124, 1e-05
        %v9141 = vadd.f32 %v9125, 1e-05
        %v9142 = vadd.f32 %v9126, 1e-05
        %v9143 = vadd.f32 %v9127, 1e-05
        %v9144 = vadd.f32 %v9128, 1e-05
        %v9145 = vrsqrt.pop %v9129
        %v9146 = vmul.f32 %v9145, %v9129
        %v9147 = vmul.f32 %v9146, %v9145
        %v9148 = vmul.f32 0.5, %v9147
        %v9149 = vsub.f32 1.5, %v9148
        %v9150 = vmul.f32 %v9145, %v9149
        %vm9151 = vweird.f32 %v9129
        %vm9152 = vweird.f32 %v9145
        %vm9153 = vmor %vm9151, %vm9152
        %v9154 = vsel %vm9153, %v9145, %v9150
        %v9155 = vrsqrt.pop %v9130
        %v9156 = vmul.f32 %v9155, %v9130
        %v9157 = vmul.f32 %v9156, %v9155
        %v9158 = vmul.f32 0.5, %v9157
        %v9159 = vsub.f32 1.5, %v9158
        %v9160 = vmul.f32 %v9155, %v9159
        %vm9161 = vweird.f32 %v9130
        %vm9162 = vweird.f32 %v9155
        %vm9163 = vmor %vm9161, %vm9162
        %v9164 = vsel %vm9163, %v9155, %v9160
        %v9165 = vrsqrt.pop %v9131
        %v9166 = vmul.f32 %v9165, %v9131
        %v9167 = vmul.f32 %v9166, %v9165
        %v9168 = vmul.f32 0.5, %v9167
        %v9169 = vsub.f32 1.5, %v9168
        %v9170 = vmul.f32 %v9165, %v9169
        %vm9171 = vweird.f32 %v9131
        %vm9172 = vweird.f32 %v9165
        %vm9173 = vmor %vm9171, %vm9172
        %v9174 = vsel %vm9173, %v9165, %v9170
        %v9175 = vrsqrt.pop %v9132
        %v9176 = vmul.f32 %v9175, %v9132
        %v9177 = vmul.f32 %v9176, %v9175
        %v9178 = vmul.f32 0.5, %v9177
        %v9179 = vsub.f32 1.5, %v9178
        %v9180 = vmul.f32 %v9175, %v9179
        %vm9181 = vweird.f32 %v9132
        %vm9182 = vweird.f32 %v9175
        %vm9183 = vmor %vm9181, %vm9182
        %v9184 = vsel %vm9183, %v9175, %v9180
        %v9185 = vrsqrt.pop %v9133
        %v9186 = vmul.f32 %v9185, %v9133
        %v9187 = vmul.f32 %v9186, %v9185
        %v9188 = vmul.f32 0.5, %v9187
        %v9189 = vsub.f32 1.5, %v9188
        %v9190 = vmul.f32 %v9185, %v9189
        %vm9191 = vweird.f32 %v9133
        %vm9192 = vweird.f32 %v9185
        %vm9193 = vmor %vm9191, %vm9192
        %v9194 = vsel %vm9193, %v9185, %v9190
        %v9195 = vrsqrt.pop %v9134
        %v9196 = vmul.f32 %v9195, %v9134
        %v9197 = vmul.f32 %v9196, %v9195
        %v9198 = vmul.f32 0.5, %v9197
        %v9199 = vsub.f32 1.5, %v9198
        %v9200 = vmul.f32 %v9195, %v9199
        %vm9201 = vweird.f32 %v9134
        %vm9202 = vweird.f32 %v9195
        %vm9203 = vmor %vm9201, %vm9202
        %v9204 = vsel %vm9203, %v9195, %v9200
        %v9205 = vrsqrt.pop %v9135
        %v9206 = vmul.f32 %v9205, %v9135
        %v9207 = vmul.f32 %v9206, %v9205
        %v9208 = vmul.f32 0.5, %v9207
        %v9209 = vsub.f32 1.5, %v9208
        %v9210 = vmul.f32 %v9205, %v9209
        %vm9211 = vweird.f32 %v9135
        %vm9212 = vweird.f32 %v9205
        %vm9213 = vmor %vm9211, %vm9212
        %v9214 = vsel %vm9213, %v9205, %v9210
        %v9215 = vrsqrt.pop %v9136
        %v9216 = vmul.f32 %v9215, %v9136
        %v9217 = vmul.f32 %v9216, %v9215
        %v9218 = vmul.f32 0.5, %v9217
        %v9219 = vsub.f32 1.5, %v9218
        %v9220 = vmul.f32 %v9215, %v9219
        %vm9221 = vweird.f32 %v9136
        %vm9222 = vweird.f32 %v9215
        %vm9223 = vmor %vm9221, %vm9222
        %v9224 = vsel %vm9223, %v9215, %v9220
        %v9225 = vrsqrt.pop %v9137
        %v9226 = vmul.f32 %v9225, %v9137
        %v9227 = vmul.f32 %v9226, %v9225
        %v9228 = vmul.f32 0.5, %v9227
        %v9229 = vsub.f32 1.5, %v9228
        %v9230 = vmul.f32 %v9225, %v9229
        %vm9231 = vweird.f32 %v9137
        %vm9232 = vweird.f32 %v9225
        %vm9233 = vmor %vm9231, %vm9232
        %v9234 = vsel %vm9233, %v9225, %v9230
        %v9235 = vrsqrt.pop %v9138
        %v9236 = vmul.f32 %v9235, %v9138
        %v9237 = vmul.f32 %v9236, %v9235
        %v9238 = vmul.f32 0.5, %v9237
        %v9239 = vsub.f32 1.5, %v9238
        %v9240 = vmul.f32 %v9235, %v9239
        %vm9241 = vweird.f32 %v9138
        %vm9242 = vweird.f32 %v9235
        %vm9243 = vmor %vm9241, %vm9242
        %v9244 = vsel %vm9243, %v9235, %v9240
        %v9245 = vrsqrt.pop %v9139
        %v9246 = vmul.f32 %v9245, %v9139
        %v9247 = vmul.f32 %v9246, %v9245
        %v9248 = vmul.f32 0.5, %v9247
        %v9249 = vsub.f32 1.5, %v9248
        %v9250 = vmul.f32 %v9245, %v9249
        %vm9251 = vweird.f32 %v9139
        %vm9252 = vweird.f32 %v9245
        %vm9253 = vmor %vm9251, %vm9252
        %v9254 = vsel %vm9253, %v9245, %v9250
        %v9255 = vrsqrt.pop %v9140
        %v9256 = vmul.f32 %v9255, %v9140
        %v9257 = vmul.f32 %v9256, %v9255
        %v9258 = vmul.f32 0.5, %v9257
        %v9259 = vsub.f32 1.5, %v9258
        %v9260 = vmul.f32 %v9255, %v9259
        %vm9261 = vweird.f32 %v9140
        %vm9262 = vweird.f32 %v9255
        %vm9263 = vmor %vm9261, %vm9262
        %v9264 = vsel %vm9263, %v9255, %v9260
        %v9265 = vrsqrt.pop %v9141
        %v9266 = vmul.f32 %v9265, %v9141
        %v9267 = vmul.f32 %v9266, %v9265
        %v9268 = vmul.f32 0.5, %v9267
        %v9269 = vsub.f32 1.5, %v9268
        %v9270 = vmul.f32 %v9265, %v9269
        %vm9271 = vweird.f32 %v9141
        %vm9272 = vweird.f32 %v9265
        %vm9273 = vmor %vm9271, %vm9272
        %v9274 = vsel %vm9273, %v9265, %v9270
        %v9275 = vrsqrt.pop %v9142
        %v9276 = vmul.f32 %v9275, %v9142
        %v9277 = vmul.f32 %v9276, %v9275
        %v9278 = vmul.f32 0.5, %v9277
        %v9279 = vsub.f32 1.5, %v9278
        %v9280 = vmul.f32 %v9275, %v9279
        %vm9281 = vweird.f32 %v9142
        %vm9282 = vweird.f32 %v9275
        %vm9283 = vmor %vm9281, %vm9282
        %v9284 = vsel %vm9283, %v9275, %v9280
        %v9285 = vrsqrt.pop %v9143
        %v9286 = vmul.f32 %v9285, %v9143
        %v9287 = vmul.f32 %v9286, %v9285
        %v9288 = vmul.f32 0.5, %v9287
        %v9289 = vsub.f32 1.5, %v9288
        %v9290 = vmul.f32 %v9285, %v9289
        %vm9291 = vweird.f32 %v9143
        %vm9292 = vweird.f32 %v9285
        %vm9293 = vmor %vm9291, %vm9292
        %v9294 = vsel %vm9293, %v9285, %v9290
        %v9295 = vrsqrt.pop %v9144
        %v9296 = vmul.f32 %v9295, %v9144
        %v9297 = vmul.f32 %v9296, %v9295
        %v9298 = vmul.f32 0.5, %v9297
        %v9299 = vsub.f32 1.5, %v9298
        %v9300 = vmul.f32 %v9295, %v9299
        %vm9301 = vweird.f32 %v9144
        %vm9302 = vweird.f32 %v9295
        %vm9303 = vmor %vm9301, %vm9302
        %v9304 = vsel %vm9303, %v9295, %v9300
        %v9305 = vmul.f32 %v9049, %v9154
        %v9306 = vmul.f32 %v9050, %v9164
        %v9307 = vmul.f32 %v9051, %v9174
        %v9308 = vmul.f32 %v9052, %v9184
        %v9309 = vmul.f32 %v9053, %v9194
        %v9310 = vmul.f32 %v9054, %v9204
        %v9311 = vmul.f32 %v9055, %v9214
        %v9312 = vmul.f32 %v9056, %v9224
        %v9313 = vmul.f32 %v9057, %v9234
        %v9314 = vmul.f32 %v9058, %v9244
        %v9315 = vmul.f32 %v9059, %v9254
        %v9316 = vmul.f32 %v9060, %v9264
        %v9317 = vmul.f32 %v9061, %v9274
        %v9318 = vmul.f32 %v9062, %v9284
        %v9319 = vmul.f32 %v9063, %v9294
        %v9320 = vmul.f32 %v9064, %v9304
        %v9322 = vperm.slane %v8999, 0
        %v9324 = vmul.f32 %v9305, %v9322
        %v9325 = vmul.f32 %v9306, %v9322
        %v9326 = vmul.f32 %v9307, %v9322
        %v9327 = vmul.f32 %v9308, %v9322
        %v9328 = vmul.f32 %v9309, %v9322
        %v9329 = vmul.f32 %v9310, %v9322
        %v9330 = vmul.f32 %v9311, %v9322
        %v9331 = vmul.f32 %v9312, %v9322
        %v9332 = vmul.f32 %v9313, %v9322
        %v9333 = vmul.f32 %v9314, %v9322
        %v9334 = vmul.f32 %v9315, %v9322
        %v9335 = vmul.f32 %v9316, %v9322
        %v9336 = vmul.f32 %v9317, %v9322
        %v9337 = vmul.f32 %v9318, %v9322
        %v9338 = vmul.f32 %v9319, %v9322
        %v9339 = vmul.f32 %v9320, %v9322
        %v9341 = vperm.slane %v9000, 0
        %v9343 = vadd.f32 %v9324, %v9341
        %v9344 = vadd.f32 %v9325, %v9341
        %v9345 = vadd.f32 %v9326, %v9341
        %v9346 = vadd.f32 %v9327, %v9341
        %v9347 = vadd.f32 %v9328, %v9341
        %v9348 = vadd.f32 %v9329, %v9341
        %v9349 = vadd.f32 %v9330, %v9341
        %v9350 = vadd.f32 %v9331, %v9341
        %v9351 = vadd.f32 %v9332, %v9341
        %v9352 = vadd.f32 %v9333, %v9341
        %v9353 = vadd.f32 %v9334, %v9341
        %v9354 = vadd.f32 %v9335, %v9341
        %v9355 = vadd.f32 %v9336, %v9341
        %v9356 = vadd.f32 %v9337, %v9341
        %v9357 = vadd.f32 %v9338, %v9341
        %v9358 = vadd.f32 %v9339, %v9341
        %9359 = vst [vmem:[%s542] sm:$0xff] %v9343
        %9360 = vst [vmem:[%s542 + $0x8] sm:$0xff] %v9344
        %9361 = vst [vmem:[%s542 + $0x10] sm:$0xff] %v9345
        %9362 = vst [vmem:[%s542 + $0x18] sm:$0xff] %v9346
        %9363 = vst [vmem:[%s542 + $0x20] sm:$0xff] %v9347
        %9364 = vst [vmem:[%s542 + $0x28] sm:$0xff] %v9348
        %9365 = vst [vmem:[%s542 + $0x30] sm:$0xff] %v9349
        %9366 = vst [vmem:[%s542 + $0x38] sm:$0xff] %v9350
        %9367 = vst [vmem:[%s542 + $0x40] sm:$0xff] %v9351
        %9368 = vst [vmem:[%s542 + $0x48] sm:$0xff] %v9352
        %9369 = vst [vmem:[%s542 + $0x50] sm:$0xff] %v9353
        %9370 = vst [vmem:[%s542 + $0x58] sm:$0xff] %v9354
        %9371 = vst [vmem:[%s542 + $0x60] sm:$0xff] %v9355
        %9372 = vst [vmem:[%s542 + $0x68] sm:$0xff] %v9356
        %9373 = vst [vmem:[%s542 + $0x70] sm:$0xff] %v9357
        %9374 = vst [vmem:[%s542 + $0x78] sm:$0xff] %v9358
        %s9375 = sand.u32 %s319, 1
        %s9376 = scalar_lea.sflag [#allocation6], %s9375
        %s9377 = sand.u32 %s319, 1
        %s9378 = smul.addr %s9377, 128
        %s9379 = scalar_lea.vmem [#allocation15], %s9378
        // Predicated region
        $region97: #{tpu_custom_call.1} parent=71 // pred_check
          %p9380 = pneg %p329
        $region98: #{tpu_custom_call.1} parent=71 // pred_check_branch
          %9382 = sbr.rel (%p9380) target = $region100
        $region99: #{tpu_custom_call.1} parent=71 // pred_region
          %s9383 = smul.u32 8, %s33
          %9385 = vsyncadd %s9376, 0
          %s9386 = smul.addr %s9383, 2
          %s9387 = smul.addr %s9386, 8
          %s9388 = scalar_lea.hbm %s13, %s9387
          %s9389 = sshll.u32 %s9379, 4
          %s9390 = int_to_ptr.vmem [resolvable:$true] %s9389
          %s9391 = sshll.u32 %s9388, 4
          %s9392 = int_to_ptr.hbm [resolvable:$true] %s9391
          %9397 = dma.vmem_to_hbm [thread:$0]  %s9390, 2048, %s9392, %s9376, 128, 128, 8
        $region100: #{tpu_custom_call.1} parent=71 // pred_fallthru
          _
      $region72: #{tpu_custom_call.1} parent=5 // pred_fallthru
        _
      %p9398 = scmp.le.s32.totalorder 2, %s28
      // Predicated region
      $region101: #{tpu_custom_call.1} parent=5 // pred_check
        %p9399 = pneg %p9398
      $region102: #{tpu_custom_call.1} parent=5 // pred_check_branch
        %9401 = sbr.rel (%p9399) target = $region104
      $region103: #{tpu_custom_call.1} parent=5 // pred_region
        %s9402 = ssub.s32 %s28, 2
        // Predicated region
        $region105: #{tpu_custom_call.1} parent=103 // pred_check
          %p9403 = pneg %p335
        $region106: #{tpu_custom_call.1} parent=103 // pred_check_branch
          %9405 = sbr.rel (%p9403) target = $region108
        $region107: #{tpu_custom_call.1} parent=103 // pred_region
          %s9406 = sand.u32 %s320, 1
          %s9407 = scalar_lea.sflag [#allocation6], %s9406
          %s9408 = sand.u32 %s320, 1
          %s9409 = smul.addr %s9408, 128
          %s9410 = scalar_lea.vmem [#allocation15], %s9409
          %9412 = dma.done %s9407, 2048
        $region108: #{tpu_custom_call.1} parent=103 // pred_fallthru
          _
      $region104: #{tpu_custom_call.1} parent=5 // pred_fallthru
        _
    $region6: #{tpu_custom_call.1} parent=1 // loop_footer
      %s32 = sadd.s32 1, %s28
    $region7: #{tpu_custom_call.1} parent=1 // loop_footer_branch
      %27 = sbr.rel target = $region3
    $region8: #{tpu_custom_call.1} parent=1 // loop_exit
      _
    %9413 = vsyncpa [#allocation5], 1
    %s9414 = scalar_lea.sflag [#allocation5], 1
    %9415 = vsyncpa %s9414, 1
    %9416 = vsyncpa [#allocation8], 1
    %9417 = vsyncpa [#allocation11], 1
    %9418 = vsyncpa [#allocation14], 1
    %9419 = vsyncpa [#allocation6], 1
    %s9420 = scalar_lea.sflag [#allocation6], 1
    %9421 = vsyncpa %s9420, 1

</llo_original>
